<compile_context>
chip_gen: v5e
topology: v5e:2x2
jax: 0.10.0
libtpu: 0.0.40
codegen_flags: <defaults>
</compile_context>

<pallas_src>
import functools

import jax
import jax.numpy as jnp
from jax import lax
from jax.experimental import pallas as pl
from jax.experimental.pallas import tpu as pltpu


def _block_kernel(x_ref, w1_ref, g1_ref, b1_ref, w2_ref, g2_ref, b2_ref,
                  o_ref, pad_ref, *, H, W, eps):
    C = o_ref.shape[-1]            # channels handled by this grid step (384)
    inv_hw = 1.0 / (H * W)

    # ---- 1x1 conv (pointwise) as a single MXU matmul: [H*W, C1] @ [C1, C] ----
    y = jnp.dot(x_ref[...], w1_ref[...], preferred_element_type=jnp.float32)

    # ---- BN1 (training-mode batch stats) + ReLU6, fused ----
    s1 = jnp.sum(y, axis=0, keepdims=True)
    q1 = jnp.sum(y * y, axis=0, keepdims=True)
    m1 = s1 * inv_hw
    v1 = q1 * inv_hw - m1 * m1
    sc1 = g1_ref[...] * lax.rsqrt(v1 + eps)
    bi1 = b1_ref[...] - m1 * sc1
    y = jnp.clip(y * sc1 + bi1, 0.0, 6.0)

    # ---- stage into padded scratch; zero only the halo ring (interior is
    #      fully overwritten right after) ----
    pad_ref[0:1, :, :] = jnp.zeros((1, W + 2, C), jnp.float32)
    pad_ref[H + 1:H + 2, :, :] = jnp.zeros((1, W + 2, C), jnp.float32)
    pad_ref[:, 0:1, :] = jnp.zeros((H + 2, 1, C), jnp.float32)
    pad_ref[:, W + 1:W + 2, :] = jnp.zeros((H + 2, 1, C), jnp.float32)
    pad_ref[1:H + 1, 1:W + 1, :] = y.reshape(H, W, C)

    # ---- depthwise 3x3 conv, one output row per step (acc stays in vregs) ----
    w2 = w2_ref[...]                                    # [9, C]
    taps = [w2[k:k + 1, :] for k in range(9)]           # hoisted, each [1, C]

    def row_body(h, _):
        acc = jnp.zeros((W, C), jnp.float32)
        for dh in range(3):
            band = pad_ref[h + dh]                      # [W+2, C] aligned load
            for dw in range(3):                         # shifts from the value
                acc = acc + band[dw:dw + W] * taps[3 * dh + dw]
        o_ref[h] = acc                                  # stash pre-BN2 row
        return 0

    lax.fori_loop(0, H, row_body, 0, unroll=True)

    # ---- BN2 batch stats from the VMEM-resident output block ----
    def stat_body(h, carry):
        s2r, q2r = carry
        row = o_ref[h]                                  # [W, C]
        return s2r + row, q2r + row * row

    s2r, q2r = lax.fori_loop(
        0, H, stat_body,
        (jnp.zeros((W, C), jnp.float32), jnp.zeros((W, C), jnp.float32)),
        unroll=True)

    s2 = jnp.sum(s2r, axis=0, keepdims=True)
    q2 = jnp.sum(q2r, axis=0, keepdims=True)
    m2 = s2 * inv_hw
    v2 = q2 * inv_hw - m2 * m2
    sc2 = g2_ref[...] * lax.rsqrt(v2 + eps)
    bi2 = b2_ref[...] - m2 * sc2
    o_ref[...] = o_ref[...] * sc2 + bi2


def mobilenet_block(x_nchw, w1t, g1, b1, w2hwc, g2, b2, *, eps=1e-5, n_split=2):
    """x_nchw: [1, 96, H, W] f32 -> [1, 576, H, W] f32."""
    N, C1, H, W = x_nchw.shape
    assert N == 1
    C2 = w1t.shape[1]
    HW = H * W

    # channel super-blocks: pad 576 -> 768 = 2 x 384 (each a multiple of 128 so
    # stores stay lane-dense; dead channels are exactly zero and are sliced away)
    cb = ((-(-C2 // n_split)) + 127) // 128 * 128       # 384
    C2p = cb * n_split                                  # 768
    pc = C2p - C2
    w1p = jnp.pad(w1t, ((0, 0), (0, pc)))
    g1p = jnp.pad(g1, ((0, 0), (0, pc)))
    b1p = jnp.pad(b1, ((0, 0), (0, pc)))
    w2p = jnp.pad(w2hwc.reshape(9, C2), ((0, 0), (0, pc)))   # [9, C2p]
    g2p = jnp.pad(g2, ((0, 0), (0, pc)))
    b2p = jnp.pad(b2, ((0, 0), (0, pc)))

    # NCHW -> (H*W, Cin): channels on lanes, spatial on sublanes
    x2d = jnp.transpose(x_nchw, (0, 2, 3, 1)).reshape(HW, C1)

    kernel = functools.partial(_block_kernel, H=H, W=W, eps=eps)

    out_hwc = pl.pallas_call(
        kernel,
        out_shape=jax.ShapeDtypeStruct((H, W, C2p), jnp.float32),
        grid=(n_split,),
        in_specs=[
            pl.BlockSpec((HW, C1), lambda c: (0, 0)),      # x2d, fetched once
            pl.BlockSpec((C1, cb), lambda c: (0, c)),      # 1x1 weight slab
            pl.BlockSpec((1, cb), lambda c: (0, c)),       # gamma1
            pl.BlockSpec((1, cb), lambda c: (0, c)),       # beta1
            pl.BlockSpec((9, cb), lambda c: (0, c)),       # depthwise weight
            pl.BlockSpec((1, cb), lambda c: (0, c)),       # gamma2
            pl.BlockSpec((1, cb), lambda c: (0, c)),       # beta2
        ],
        out_specs=pl.BlockSpec((H, W, cb), lambda c: (0, 0, c)),
        scratch_shapes=[pltpu.VMEM((H + 2, W + 2, cb), jnp.float32)],
        compiler_params=pltpu.CompilerParams(
            dimension_semantics=("parallel",)),
    )(x2d, w1p, g1p, b1p, w2p, g2p, b2p)

    # drop padded channels, back to NCHW
    return jnp.transpose(out_hwc[:, :, :C2], (2, 0, 1))[None]


def _reference(x_nchw, w1t, g1, b1, w2hwc, g2, b2, eps=1e-5):
    # plain-JAX reference with the same training-mode BN semantics
    H, W = x_nchw.shape[2], x_nchw.shape[3]
    x = jnp.transpose(x_nchw, (0, 2, 3, 1))[0]                 # [H, W, 96]
    y = jnp.einsum("hwc,cd->hwd", x, w1t)                      # [H, W, 576]
    m1 = y.mean((0, 1)); v1 = jnp.square(y - m1).mean((0, 1))
    y = (y - m1) * (g1[0] / jnp.sqrt(v1 + eps)) + b1[0]
    y = jnp.clip(y, 0.0, 6.0)
    yp = jnp.pad(y, ((1, 1), (1, 1), (0, 0)))
    acc = jnp.zeros_like(y)
    for dh in range(3):
        for dw in range(3):
            acc = acc + yp[dh:dh + H, dw:dw + W, :] * w2hwc[dh, dw]
    m2 = acc.mean((0, 1)); v2 = jnp.square(acc - m2).mean((0, 1))
    out = (acc - m2) * (g2[0] / jnp.sqrt(v2 + eps)) + b2[0]
    return jnp.transpose(out, (2, 0, 1))[None]


if __name__ == "__main__":
    key = jax.random.PRNGKey(0)
    k = jax.random.split(key, 7)

    N, C1, H, W, C2 = 1, 96, 14, 14, 576

    # input (matches torch.randn([1, 96, 14, 14]))
    x94 = jax.random.normal(k[0], (N, C1, H, W), jnp.float32)

    # conv2d33 weight: torch [576, 96, 1, 1] -> kernel layout [96, 576]
    w1t = 0.1 * jax.random.normal(k[1], (C1, C2), jnp.float32)
    # batchnorm2d33 affine params
    g1 = 1.0 + 0.1 * jax.random.normal(k[2], (1, C2), jnp.float32)
    b1 = 0.1 * jax.random.normal(k[3], (1, C2), jnp.float32)
    # conv2d34 depthwise weight: torch [576, 1, 3, 3] -> kernel layout [3, 3, 576]
    w2hwc = 0.1 * jax.random.normal(k[4], (3, 3, C2), jnp.float32)
    # batchnorm2d34 affine params
    g2 = 1.0 + 0.1 * jax.random.normal(k[5], (1, C2), jnp.float32)
    b2 = 0.1 * jax.random.normal(k[6], (1, C2), jnp.float32)

    out = mobilenet_block(x94, w1t, g1, b1, w2hwc, g2, b2)
    out = jax.block_until_ready(out)

    assert out.shape == (N, C2, H, W), out.shape

    ref = jax.block_until_ready(_reference(x94, w1t, g1, b1, w2hwc, g2, b2))
    assert jnp.allclose(out, ref, rtol=1e-2, atol=1e-2), \
        float(jnp.max(jnp.abs(out - ref)))

    print("KERNEL_OK")
</pallas_src>

<mosaic_0001>
module attributes {stable_mosaic.version = 11 : i64} {
  func.func @_block_kernel(%arg0: i32, %arg1: memref<196x96xf32, #tpu.memory_space<vmem>>, %arg2: memref<96x384xf32, #tpu.memory_space<vmem>>, %arg3: memref<1x384xf32, #tpu.memory_space<vmem>>, %arg4: memref<1x384xf32, #tpu.memory_space<vmem>>, %arg5: memref<9x384xf32, #tpu.memory_space<vmem>>, %arg6: memref<1x384xf32, #tpu.memory_space<vmem>>, %arg7: memref<1x384xf32, #tpu.memory_space<vmem>>, %arg8: memref<14x14x384xf32, #tpu.memory_space<vmem>>, %arg9: memref<16x16x384xf32, #tpu.memory_space<vmem>>) attributes {dimension_semantics = [#tpu.dimension_semantics<parallel>], iteration_bounds = array<i64: 2>, scalar_prefetch = 0 : i64, scratch_operands = 1 : i64, tpu.core_type = #tpu.core_type<tc>, window_params = [{pipeline_mode = #tpu.pipeline_mode<synchronous>, transform_indices = @transform_0, window_bounds = array<i64: 196, 96>}, {transform_indices = @transform_1, window_bounds = array<i64: 96, 384>}, {transform_indices = @transform_2, window_bounds = array<i64: 1, 384>}, {transform_indices = @transform_3, window_bounds = array<i64: 1, 384>}, {transform_indices = @transform_4, window_bounds = array<i64: 9, 384>}, {transform_indices = @transform_5, window_bounds = array<i64: 1, 384>}, {transform_indices = @transform_6, window_bounds = array<i64: 1, 384>}, {transform_indices = @transform_7, window_bounds = array<i64: 14, 14, 384>}]} {
    %c0 = arith.constant 0 : index
    %c0_0 = arith.constant 0 : index
    %0 = vector.load %arg1[%c0, %c0_0] : memref<196x96xf32, #tpu.memory_space<vmem>>, vector<196x96xf32>
    %c0_1 = arith.constant 0 : index
    %c0_2 = arith.constant 0 : index
    %1 = vector.load %arg2[%c0_1, %c0_2] : memref<96x384xf32, #tpu.memory_space<vmem>>, vector<96x384xf32>
    %cst = arith.constant dense<0.000000e+00> : vector<196x384xf32>
    %2 = tpu.matmul %0, %1, %cst {dimension_numbers = #tpu.dot_dimension_numbers<[1], [0], [0], [1], [0, 0, 1, 1], [], []>} : vector<196x96xf32>, vector<96x384xf32>, vector<196x384xf32> -> vector<196x384xf32>
    %cst_3 = arith.constant dense<0.000000e+00> : vector<384xf32>
    %3 = vector.multi_reduction <add>, %2, %cst_3 [0] : vector<196x384xf32> to vector<384xf32>
    %4 = vector.shape_cast %3 : vector<384xf32> to vector<1x384xf32>
    %5 = arith.mulf %2, %2 : vector<196x384xf32>
    %cst_4 = arith.constant dense<0.000000e+00> : vector<384xf32>
    %6 = vector.multi_reduction <add>, %5, %cst_4 [0] : vector<196x384xf32> to vector<384xf32>
    %7 = vector.shape_cast %6 : vector<384xf32> to vector<1x384xf32>
    %cst_5 = arith.constant 0.00510204071 : f32
    %8 = vector.broadcast %cst_5 : f32 to vector<1x384xf32>
    %9 = arith.mulf %4, %8 : vector<1x384xf32>
    %cst_6 = arith.constant 0.00510204071 : f32
    %10 = vector.broadcast %cst_6 : f32 to vector<1x384xf32>
    %11 = arith.mulf %7, %10 : vector<1x384xf32>
    %12 = arith.mulf %9, %9 : vector<1x384xf32>
    %13 = arith.subf %11, %12 : vector<1x384xf32>
    %c0_7 = arith.constant 0 : index
    %c0_8 = arith.constant 0 : index
    %14 = vector.load %arg3[%c0_7, %c0_8] : memref<1x384xf32, #tpu.memory_space<vmem>>, vector<1x384xf32>
    %cst_9 = arith.constant 9.99999974E-6 : f32
    %15 = vector.broadcast %cst_9 : f32 to vector<1x384xf32>
    %16 = arith.addf %13, %15 : vector<1x384xf32>
    %17 = math.rsqrt %16 : vector<1x384xf32>
    %18 = arith.mulf %14, %17 : vector<1x384xf32>
    %c0_10 = arith.constant 0 : index
    %c0_11 = arith.constant 0 : index
    %19 = vector.load %arg4[%c0_10, %c0_11] : memref<1x384xf32, #tpu.memory_space<vmem>>, vector<1x384xf32>
    %20 = arith.mulf %9, %18 : vector<1x384xf32>
    %21 = arith.subf %19, %20 : vector<1x384xf32>
    %22 = vector.broadcast %18 : vector<1x384xf32> to vector<196x384xf32>
    %23 = arith.mulf %2, %22 : vector<196x384xf32>
    %24 = vector.broadcast %21 : vector<1x384xf32> to vector<196x384xf32>
    %25 = arith.addf %23, %24 : vector<196x384xf32>
    %cst_12 = arith.constant 0.000000e+00 : f32
    %cst_13 = arith.constant 6.000000e+00 : f32
    %26 = vector.broadcast %cst_12 : f32 to vector<196x384xf32>
    %27 = arith.maximumf %26, %25 : vector<196x384xf32>
    %28 = vector.broadcast %cst_13 : f32 to vector<196x384xf32>
    %29 = arith.minimumf %28, %27 : vector<196x384xf32>
    %cst_14 = arith.constant 0.000000e+00 : f32
    %30 = vector.broadcast %cst_14 : f32 to vector<1x16x384xf32>
    %c0_15 = arith.constant 0 : index
    %c0_16 = arith.constant 0 : index
    %c0_17 = arith.constant 0 : index
    %31 = vector.load %arg9[%c0_15, %c0_16, %c0_17] : memref<16x16x384xf32, #tpu.memory_space<vmem>>, vector<1x16x384xf32>
    tpu.vector_store %arg9[%c0_15, %c0_16, %c0_17], %30 {strides = array<i32>} : memref<16x16x384xf32, #tpu.memory_space<vmem>>, vector<1x16x384xf32>,
    %cst_18 = arith.constant 0.000000e+00 : f32
    %32 = vector.broadcast %cst_18 : f32 to vector<1x16x384xf32>
    %c15 = arith.constant 15 : index
    %c0_19 = arith.constant 0 : index
    %c0_20 = arith.constant 0 : index
    %33 = vector.load %arg9[%c15, %c0_19, %c0_20] : memref<16x16x384xf32, #tpu.memory_space<vmem>>, vector<1x16x384xf32>
    tpu.vector_store %arg9[%c15, %c0_19, %c0_20], %32 {strides = array<i32>} : memref<16x16x384xf32, #tpu.memory_space<vmem>>, vector<1x16x384xf32>,
    %cst_21 = arith.constant 0.000000e+00 : f32
    %34 = vector.broadcast %cst_21 : f32 to vector<16x1x384xf32>
    %c0_22 = arith.constant 0 : index
    %c0_23 = arith.constant 0 : index
    %c0_24 = arith.constant 0 : index
    %35 = vector.load %arg9[%c0_22, %c0_23, %c0_24] : memref<16x16x384xf32, #tpu.memory_space<vmem>>, vector<16x1x384xf32>
    tpu.vector_store %arg9[%c0_22, %c0_23, %c0_24], %34 {strides = array<i32>} : memref<16x16x384xf32, #tpu.memory_space<vmem>>, vector<16x1x384xf32>,
    %cst_25 = arith.constant 0.000000e+00 : f32
    %36 = vector.broadcast %cst_25 : f32 to vector<16x1x384xf32>
    %c0_26 = arith.constant 0 : index
    %c15_27 = arith.constant 15 : index
    %c0_28 = arith.constant 0 : index
    %37 = vector.load %arg9[%c0_26, %c15_27, %c0_28] : memref<16x16x384xf32, #tpu.memory_space<vmem>>, vector<16x1x384xf32>
    tpu.vector_store %arg9[%c0_26, %c15_27, %c0_28], %36 {strides = array<i32>} : memref<16x16x384xf32, #tpu.memory_space<vmem>>, vector<16x1x384xf32>,
    %38 = vector.shape_cast %29 : vector<196x384xf32> to vector<14x14x384xf32>
    %c1 = arith.constant 1 : index
    %c1_29 = arith.constant 1 : index
    %c0_30 = arith.constant 0 : index
    %39 = vector.load %arg9[%c1, %c1_29, %c0_30] : memref<16x16x384xf32, #tpu.memory_space<vmem>>, vector<14x14x384xf32>
    tpu.vector_store %arg9[%c1, %c1_29, %c0_30], %38 {strides = array<i32>} : memref<16x16x384xf32, #tpu.memory_space<vmem>>, vector<14x14x384xf32>,
    %c0_31 = arith.constant 0 : index
    %c0_32 = arith.constant 0 : index
    %40 = vector.load %arg5[%c0_31, %c0_32] : memref<9x384xf32, #tpu.memory_space<vmem>>, vector<9x384xf32>
    %41 = vector.extract_strided_slice %40 {offsets = [0, 0], sizes = [1, 384], strides = [1, 1]} : vector<9x384xf32> to vector<1x384xf32>
    %42 = vector.extract_strided_slice %40 {offsets = [1, 0], sizes = [1, 384], strides = [1, 1]} : vector<9x384xf32> to vector<1x384xf32>
    %43 = vector.extract_strided_slice %40 {offsets = [2, 0], sizes = [1, 384], strides = [1, 1]} : vector<9x384xf32> to vector<1x384xf32>
    %44 = vector.extract_strided_slice %40 {offsets = [3, 0], sizes = [1, 384], strides = [1, 1]} : vector<9x384xf32> to vector<1x384xf32>
    %45 = vector.extract_strided_slice %40 {offsets = [4, 0], sizes = [1, 384], strides = [1, 1]} : vector<9x384xf32> to vector<1x384xf32>
    %46 = vector.extract_strided_slice %40 {offsets = [5, 0], sizes = [1, 384], strides = [1, 1]} : vector<9x384xf32> to vector<1x384xf32>
    %47 = vector.extract_strided_slice %40 {offsets = [6, 0], sizes = [1, 384], strides = [1, 1]} : vector<9x384xf32> to vector<1x384xf32>
    %48 = vector.extract_strided_slice %40 {offsets = [7, 0], sizes = [1, 384], strides = [1, 1]} : vector<9x384xf32> to vector<1x384xf32>
    %49 = vector.extract_strided_slice %40 {offsets = [8, 0], sizes = [1, 384], strides = [1, 1]} : vector<9x384xf32> to vector<1x384xf32>
    %c0_i32 = arith.constant 0 : i32
    %cst_33 = arith.constant 0.000000e+00 : f32
    %50 = vector.broadcast %cst_33 : f32 to vector<14x384xf32>
    %c0_i32_34 = arith.constant 0 : i32
    %51 = arith.addi %c0_i32, %c0_i32_34 : i32
    %52 = arith.index_cast %51 : i32 to index
    %c0_35 = arith.constant 0 : index
    %c0_36 = arith.constant 0 : index
    %53 = vector.load %arg9[%52, %c0_35, %c0_36] : memref<16x16x384xf32, #tpu.memory_space<vmem>>, vector<1x16x384xf32>
    %54 = vector.shape_cast %53 : vector<1x16x384xf32> to vector<16x384xf32>
    %55 = vector.extract_strided_slice %54 {offsets = [0, 0], sizes = [14, 384], strides = [1, 1]} : vector<16x384xf32> to vector<14x384xf32>
    %56 = vector.broadcast %41 : vector<1x384xf32> to vector<14x384xf32>
    %57 = arith.mulf %55, %56 : vector<14x384xf32>
    %58 = arith.addf %50, %57 : vector<14x384xf32>
    %59 = vector.extract_strided_slice %54 {offsets = [1, 0], sizes = [14, 384], strides = [1, 1]} : vector<16x384xf32> to vector<14x384xf32>
    %60 = vector.broadcast %42 : vector<1x384xf32> to vector<14x384xf32>
    %61 = arith.mulf %59, %60 : vector<14x384xf32>
    %62 = arith.addf %58, %61 : vector<14x384xf32>
    %63 = vector.extract_strided_slice %54 {offsets = [2, 0], sizes = [14, 384], strides = [1, 1]} : vector<16x384xf32> to vector<14x384xf32>
    %64 = vector.broadcast %43 : vector<1x384xf32> to vector<14x384xf32>
    %65 = arith.mulf %63, %64 : vector<14x384xf32>
    %66 = arith.addf %62, %65 : vector<14x384xf32>
    %c1_i32 = arith.constant 1 : i32
    %67 = arith.addi %c0_i32, %c1_i32 : i32
    %68 = arith.index_cast %67 : i32 to index
    %c0_37 = arith.constant 0 : index
    %c0_38 = arith.constant 0 : index
    %69 = vector.load %arg9[%68, %c0_37, %c0_38] : memref<16x16x384xf32, #tpu.memory_space<vmem>>, vector<1x16x384xf32>
    %70 = vector.shape_cast %69 : vector<1x16x384xf32> to vector<16x384xf32>
    %71 = vector.extract_strided_slice %70 {offsets = [0, 0], sizes = [14, 384], strides = [1, 1]} : vector<16x384xf32> to vector<14x384xf32>
    %72 = vector.broadcast %44 : vector<1x384xf32> to vector<14x384xf32>
    %73 = arith.mulf %71, %72 : vector<14x384xf32>
    %74 = arith.addf %66, %73 : vector<14x384xf32>
    %75 = vector.extract_strided_slice %70 {offsets = [1, 0], sizes = [14, 384], strides = [1, 1]} : vector<16x384xf32> to vector<14x384xf32>
    %76 = vector.broadcast %45 : vector<1x384xf32> to vector<14x384xf32>
    %77 = arith.mulf %75, %76 : vector<14x384xf32>
    %78 = arith.addf %74, %77 : vector<14x384xf32>
    %79 = vector.extract_strided_slice %70 {offsets = [2, 0], sizes = [14, 384], strides = [1, 1]} : vector<16x384xf32> to vector<14x384xf32>
    %80 = vector.broadcast %46 : vector<1x384xf32> to vector<14x384xf32>
    %81 = arith.mulf %79, %80 : vector<14x384xf32>
    %82 = arith.addf %78, %81 : vector<14x384xf32>
    %c2_i32 = arith.constant 2 : i32
    %83 = arith.addi %c0_i32, %c2_i32 : i32
    %84 = arith.index_cast %83 : i32 to index
    %c0_39 = arith.constant 0 : index
    %c0_40 = arith.constant 0 : index
    %85 = vector.load %arg9[%84, %c0_39, %c0_40] : memref<16x16x384xf32, #tpu.memory_space<vmem>>, vector<1x16x384xf32>
    %86 = vector.shape_cast %85 : vector<1x16x384xf32> to vector<16x384xf32>
    %87 = vector.extract_strided_slice %86 {offsets = [0, 0], sizes = [14, 384], strides = [1, 1]} : vector<16x384xf32> to vector<14x384xf32>
    %88 = vector.broadcast %47 : vector<1x384xf32> to vector<14x384xf32>
    %89 = arith.mulf %87, %88 : vector<14x384xf32>
    %90 = arith.addf %82, %89 : vector<14x384xf32>
    %91 = vector.extract_strided_slice %86 {offsets = [1, 0], sizes = [14, 384], strides = [1, 1]} : vector<16x384xf32> to vector<14x384xf32>
    %92 = vector.broadcast %48 : vector<1x384xf32> to vector<14x384xf32>
    %93 = arith.mulf %91, %92 : vector<14x384xf32>
    %94 = arith.addf %90, %93 : vector<14x384xf32>
    %95 = vector.extract_strided_slice %86 {offsets = [2, 0], sizes = [14, 384], strides = [1, 1]} : vector<16x384xf32> to vector<14x384xf32>
    %96 = vector.broadcast %49 : vector<1x384xf32> to vector<14x384xf32>
    %97 = arith.mulf %95, %96 : vector<14x384xf32>
    %98 = arith.addf %94, %97 : vector<14x384xf32>
    %99 = arith.index_cast %c0_i32 : i32 to index
    %c0_41 = arith.constant 0 : index
    %c0_42 = arith.constant 0 : index
    %100 = vector.load %arg8[%99, %c0_41, %c0_42] : memref<14x14x384xf32, #tpu.memory_space<vmem>>, vector<1x14x384xf32>
    %101 = vector.shape_cast %100 : vector<1x14x384xf32> to vector<14x384xf32>
    %102 = vector.shape_cast %98 : vector<14x384xf32> to vector<1x14x384xf32>
    tpu.vector_store %arg8[%99, %c0_41, %c0_42], %102 {strides = array<i32>} : memref<14x14x384xf32, #tpu.memory_space<vmem>>, vector<1x14x384xf32>,
    %c1_i32_43 = arith.constant 1 : i32
    %cst_44 = arith.constant 0.000000e+00 : f32
    %103 = vector.broadcast %cst_44 : f32 to vector<14x384xf32>
    %c0_i32_45 = arith.constant 0 : i32
    %104 = arith.addi %c1_i32_43, %c0_i32_45 : i32
    %105 = arith.index_cast %104 : i32 to index
    %c0_46 = arith.constant 0 : index
    %c0_47 = arith.constant 0 : index
    %106 = vector.load %arg9[%105, %c0_46, %c0_47] : memref<16x16x384xf32, #tpu.memory_space<vmem>>, vector<1x16x384xf32>
    %107 = vector.shape_cast %106 : vector<1x16x384xf32> to vector<16x384xf32>
    %108 = vector.extract_strided_slice %107 {offsets = [0, 0], sizes = [14, 384], strides = [1, 1]} : vector<16x384xf32> to vector<14x384xf32>
    %109 = vector.broadcast %41 : vector<1x384xf32> to vector<14x384xf32>
    %110 = arith.mulf %108, %109 : vector<14x384xf32>
    %111 = arith.addf %103, %110 : vector<14x384xf32>
    %112 = vector.extract_strided_slice %107 {offsets = [1, 0], sizes = [14, 384], strides = [1, 1]} : vector<16x384xf32> to vector<14x384xf32>
    %113 = vector.broadcast %42 : vector<1x384xf32> to vector<14x384xf32>
    %114 = arith.mulf %112, %113 : vector<14x384xf32>
    %115 = arith.addf %111, %114 : vector<14x384xf32>
    %116 = vector.extract_strided_slice %107 {offsets = [2, 0], sizes = [14, 384], strides = [1, 1]} : vector<16x384xf32> to vector<14x384xf32>
    %117 = vector.broadcast %43 : vector<1x384xf32> to vector<14x384xf32>
    %118 = arith.mulf %116, %117 : vector<14x384xf32>
    %119 = arith.addf %115, %118 : vector<14x384xf32>
    %c1_i32_48 = arith.constant 1 : i32
    %120 = arith.addi %c1_i32_43, %c1_i32_48 : i32
    %121 = arith.index_cast %120 : i32 to index
    %c0_49 = arith.constant 0 : index
    %c0_50 = arith.constant 0 : index
    %122 = vector.load %arg9[%121, %c0_49, %c0_50] : memref<16x16x384xf32, #tpu.memory_space<vmem>>, vector<1x16x384xf32>
    %123 = vector.shape_cast %122 : vector<1x16x384xf32> to vector<16x384xf32>
    %124 = vector.extract_strided_slice %123 {offsets = [0, 0], sizes = [14, 384], strides = [1, 1]} : vector<16x384xf32> to vector<14x384xf32>
    %125 = vector.broadcast %44 : vector<1x384xf32> to vector<14x384xf32>
    %126 = arith.mulf %124, %125 : vector<14x384xf32>
    %127 = arith.addf %119, %126 : vector<14x384xf32>
    %128 = vector.extract_strided_slice %123 {offsets = [1, 0], sizes = [14, 384], strides = [1, 1]} : vector<16x384xf32> to vector<14x384xf32>
    %129 = vector.broadcast %45 : vector<1x384xf32> to vector<14x384xf32>
    %130 = arith.mulf %128, %129 : vector<14x384xf32>
    %131 = arith.addf %127, %130 : vector<14x384xf32>
    %132 = vector.extract_strided_slice %123 {offsets = [2, 0], sizes = [14, 384], strides = [1, 1]} : vector<16x384xf32> to vector<14x384xf32>
    %133 = vector.broadcast %46 : vector<1x384xf32> to vector<14x384xf32>
    %134 = arith.mulf %132, %133 : vector<14x384xf32>
    %135 = arith.addf %131, %134 : vector<14x384xf32>
    %c2_i32_51 = arith.constant 2 : i32
    %136 = arith.addi %c1_i32_43, %c2_i32_51 : i32
    %137 = arith.index_cast %136 : i32 to index
    %c0_52 = arith.constant 0 : index
    %c0_53 = arith.constant 0 : index
    %138 = vector.load %arg9[%137, %c0_52, %c0_53] : memref<16x16x384xf32, #tpu.memory_space<vmem>>, vector<1x16x384xf32>
    %139 = vector.shape_cast %138 : vector<1x16x384xf32> to vector<16x384xf32>
    %140 = vector.extract_strided_slice %139 {offsets = [0, 0], sizes = [14, 384], strides = [1, 1]} : vector<16x384xf32> to vector<14x384xf32>
    %141 = vector.broadcast %47 : vector<1x384xf32> to vector<14x384xf32>
    %142 = arith.mulf %140, %141 : vector<14x384xf32>
    %143 = arith.addf %135, %142 : vector<14x384xf32>
    %144 = vector.extract_strided_slice %139 {offsets = [1, 0], sizes = [14, 384], strides = [1, 1]} : vector<16x384xf32> to vector<14x384xf32>
    %145 = vector.broadcast %48 : vector<1x384xf32> to vector<14x384xf32>
    %146 = arith.mulf %144, %145 : vector<14x384xf32>
    %147 = arith.addf %143, %146 : vector<14x384xf32>
    %148 = vector.extract_strided_slice %139 {offsets = [2, 0], sizes = [14, 384], strides = [1, 1]} : vector<16x384xf32> to vector<14x384xf32>
    %149 = vector.broadcast %49 : vector<1x384xf32> to vector<14x384xf32>
    %150 = arith.mulf %148, %149 : vector<14x384xf32>
    %151 = arith.addf %147, %150 : vector<14x384xf32>
    %152 = arith.index_cast %c1_i32_43 : i32 to index
    %c0_54 = arith.constant 0 : index
    %c0_55 = arith.constant 0 : index
    %153 = vector.load %arg8[%152, %c0_54, %c0_55] : memref<14x14x384xf32, #tpu.memory_space<vmem>>, vector<1x14x384xf32>
    %154 = vector.shape_cast %153 : vector<1x14x384xf32> to vector<14x384xf32>
    %155 = vector.shape_cast %151 : vector<14x384xf32> to vector<1x14x384xf32>
    tpu.vector_store %arg8[%152, %c0_54, %c0_55], %155 {strides = array<i32>} : memref<14x14x384xf32, #tpu.memory_space<vmem>>, vector<1x14x384xf32>,
    %c2_i32_56 = arith.constant 2 : i32
    %cst_57 = arith.constant 0.000000e+00 : f32
    %156 = vector.broadcast %cst_57 : f32 to vector<14x384xf32>
    %c0_i32_58 = arith.constant 0 : i32
    %157 = arith.addi %c2_i32_56, %c0_i32_58 : i32
    %158 = arith.index_cast %157 : i32 to index
    %c0_59 = arith.constant 0 : index
    %c0_60 = arith.constant 0 : index
    %159 = vector.load %arg9[%158, %c0_59, %c0_60] : memref<16x16x384xf32, #tpu.memory_space<vmem>>, vector<1x16x384xf32>
    %160 = vector.shape_cast %159 : vector<1x16x384xf32> to vector<16x384xf32>
    %161 = vector.extract_strided_slice %160 {offsets = [0, 0], sizes = [14, 384], strides = [1, 1]} : vector<16x384xf32> to vector<14x384xf32>
    %162 = vector.broadcast %41 : vector<1x384xf32> to vector<14x384xf32>
    %163 = arith.mulf %161, %162 : vector<14x384xf32>
    %164 = arith.addf %156, %163 : vector<14x384xf32>
    %165 = vector.extract_strided_slice %160 {offsets = [1, 0], sizes = [14, 384], strides = [1, 1]} : vector<16x384xf32> to vector<14x384xf32>
    %166 = vector.broadcast %42 : vector<1x384xf32> to vector<14x384xf32>
    %167 = arith.mulf %165, %166 : vector<14x384xf32>
    %168 = arith.addf %164, %167 : vector<14x384xf32>
    %169 = vector.extract_strided_slice %160 {offsets = [2, 0], sizes = [14, 384], strides = [1, 1]} : vector<16x384xf32> to vector<14x384xf32>
    %170 = vector.broadcast %43 : vector<1x384xf32> to vector<14x384xf32>
    %171 = arith.mulf %169, %170 : vector<14x384xf32>
    %172 = arith.addf %168, %171 : vector<14x384xf32>
    %c1_i32_61 = arith.constant 1 : i32
    %173 = arith.addi %c2_i32_56, %c1_i32_61 : i32
    %174 = arith.index_cast %173 : i32 to index
    %c0_62 = arith.constant 0 : index
    %c0_63 = arith.constant 0 : index
    %175 = vector.load %arg9[%174, %c0_62, %c0_63] : memref<16x16x384xf32, #tpu.memory_space<vmem>>, vector<1x16x384xf32>
    %176 = vector.shape_cast %175 : vector<1x16x384xf32> to vector<16x384xf32>
    %177 = vector.extract_strided_slice %176 {offsets = [0, 0], sizes = [14, 384], strides = [1, 1]} : vector<16x384xf32> to vector<14x384xf32>
    %178 = vector.broadcast %44 : vector<1x384xf32> to vector<14x384xf32>
    %179 = arith.mulf %177, %178 : vector<14x384xf32>
    %180 = arith.addf %172, %179 : vector<14x384xf32>
    %181 = vector.extract_strided_slice %176 {offsets = [1, 0], sizes = [14, 384], strides = [1, 1]} : vector<16x384xf32> to vector<14x384xf32>
    %182 = vector.broadcast %45 : vector<1x384xf32> to vector<14x384xf32>
    %183 = arith.mulf %181, %182 : vector<14x384xf32>
    %184 = arith.addf %180, %183 : vector<14x384xf32>
    %185 = vector.extract_strided_slice %176 {offsets = [2, 0], sizes = [14, 384], strides = [1, 1]} : vector<16x384xf32> to vector<14x384xf32>
    %186 = vector.broadcast %46 : vector<1x384xf32> to vector<14x384xf32>
    %187 = arith.mulf %185, %186 : vector<14x384xf32>
    %188 = arith.addf %184, %187 : vector<14x384xf32>
    %c2_i32_64 = arith.constant 2 : i32
    %189 = arith.addi %c2_i32_56, %c2_i32_64 : i32
    %190 = arith.index_cast %189 : i32 to index
    %c0_65 = arith.constant 0 : index
    %c0_66 = arith.constant 0 : index
    %191 = vector.load %arg9[%190, %c0_65, %c0_66] : memref<16x16x384xf32, #tpu.memory_space<vmem>>, vector<1x16x384xf32>
    %192 = vector.shape_cast %191 : vector<1x16x384xf32> to vector<16x384xf32>
    %193 = vector.extract_strided_slice %192 {offsets = [0, 0], sizes = [14, 384], strides = [1, 1]} : vector<16x384xf32> to vector<14x384xf32>
    %194 = vector.broadcast %47 : vector<1x384xf32> to vector<14x384xf32>
    %195 = arith.mulf %193, %194 : vector<14x384xf32>
    %196 = arith.addf %188, %195 : vector<14x384xf32>
    %197 = vector.extract_strided_slice %192 {offsets = [1, 0], sizes = [14, 384], strides = [1, 1]} : vector<16x384xf32> to vector<14x384xf32>
    %198 = vector.broadcast %48 : vector<1x384xf32> to vector<14x384xf32>
    %199 = arith.mulf %197, %198 : vector<14x384xf32>
    %200 = arith.addf %196, %199 : vector<14x384xf32>
    %201 = vector.extract_strided_slice %192 {offsets = [2, 0], sizes = [14, 384], strides = [1, 1]} : vector<16x384xf32> to vector<14x384xf32>
    %202 = vector.broadcast %49 : vector<1x384xf32> to vector<14x384xf32>
    %203 = arith.mulf %201, %202 : vector<14x384xf32>
    %204 = arith.addf %200, %203 : vector<14x384xf32>
    %205 = arith.index_cast %c2_i32_56 : i32 to index
    %c0_67 = arith.constant 0 : index
    %c0_68 = arith.constant 0 : index
    %206 = vector.load %arg8[%205, %c0_67, %c0_68] : memref<14x14x384xf32, #tpu.memory_space<vmem>>, vector<1x14x384xf32>
    %207 = vector.shape_cast %206 : vector<1x14x384xf32> to vector<14x384xf32>
    %208 = vector.shape_cast %204 : vector<14x384xf32> to vector<1x14x384xf32>
    tpu.vector_store %arg8[%205, %c0_67, %c0_68], %208 {strides = array<i32>} : memref<14x14x384xf32, #tpu.memory_space<vmem>>, vector<1x14x384xf32>,
    %c3_i32 = arith.constant 3 : i32
    %cst_69 = arith.constant 0.000000e+00 : f32
    %209 = vector.broadcast %cst_69 : f32 to vector<14x384xf32>
    %c0_i32_70 = arith.constant 0 : i32
    %210 = arith.addi %c3_i32, %c0_i32_70 : i32
    %211 = arith.index_cast %210 : i32 to index
    %c0_71 = arith.constant 0 : index
    %c0_72 = arith.constant 0 : index
    %212 = vector.load %arg9[%211, %c0_71, %c0_72] : memref<16x16x384xf32, #tpu.memory_space<vmem>>, vector<1x16x384xf32>
    %213 = vector.shape_cast %212 : vector<1x16x384xf32> to vector<16x384xf32>
    %214 = vector.extract_strided_slice %213 {offsets = [0, 0], sizes = [14, 384], strides = [1, 1]} : vector<16x384xf32> to vector<14x384xf32>
    %215 = vector.broadcast %41 : vector<1x384xf32> to vector<14x384xf32>
    %216 = arith.mulf %214, %215 : vector<14x384xf32>
    %217 = arith.addf %209, %216 : vector<14x384xf32>
    %218 = vector.extract_strided_slice %213 {offsets = [1, 0], sizes = [14, 384], strides = [1, 1]} : vector<16x384xf32> to vector<14x384xf32>
    %219 = vector.broadcast %42 : vector<1x384xf32> to vector<14x384xf32>
    %220 = arith.mulf %218, %219 : vector<14x384xf32>
    %221 = arith.addf %217, %220 : vector<14x384xf32>
    %222 = vector.extract_strided_slice %213 {offsets = [2, 0], sizes = [14, 384], strides = [1, 1]} : vector<16x384xf32> to vector<14x384xf32>
    %223 = vector.broadcast %43 : vector<1x384xf32> to vector<14x384xf32>
    %224 = arith.mulf %222, %223 : vector<14x384xf32>
    %225 = arith.addf %221, %224 : vector<14x384xf32>
    %c1_i32_73 = arith.constant 1 : i32
    %226 = arith.addi %c3_i32, %c1_i32_73 : i32
    %227 = arith.index_cast %226 : i32 to index
    %c0_74 = arith.constant 0 : index
    %c0_75 = arith.constant 0 : index
    %228 = vector.load %arg9[%227, %c0_74, %c0_75] : memref<16x16x384xf32, #tpu.memory_space<vmem>>, vector<1x16x384xf32>
    %229 = vector.shape_cast %228 : vector<1x16x384xf32> to vector<16x384xf32>
    %230 = vector.extract_strided_slice %229 {offsets = [0, 0], sizes = [14, 384], strides = [1, 1]} : vector<16x384xf32> to vector<14x384xf32>
    %231 = vector.broadcast %44 : vector<1x384xf32> to vector<14x384xf32>
    %232 = arith.mulf %230, %231 : vector<14x384xf32>
    %233 = arith.addf %225, %232 : vector<14x384xf32>
    %234 = vector.extract_strided_slice %229 {offsets = [1, 0], sizes = [14, 384], strides = [1, 1]} : vector<16x384xf32> to vector<14x384xf32>
    %235 = vector.broadcast %45 : vector<1x384xf32> to vector<14x384xf32>
    %236 = arith.mulf %234, %235 : vector<14x384xf32>
    %237 = arith.addf %233, %236 : vector<14x384xf32>
    %238 = vector.extract_strided_slice %229 {offsets = [2, 0], sizes = [14, 384], strides = [1, 1]} : vector<16x384xf32> to vector<14x384xf32>
    %239 = vector.broadcast %46 : vector<1x384xf32> to vector<14x384xf32>
    %240 = arith.mulf %238, %239 : vector<14x384xf32>
    %241 = arith.addf %237, %240 : vector<14x384xf32>
    %c2_i32_76 = arith.constant 2 : i32
    %242 = arith.addi %c3_i32, %c2_i32_76 : i32
    %243 = arith.index_cast %242 : i32 to index
    %c0_77 = arith.constant 0 : index
    %c0_78 = arith.constant 0 : index
    %244 = vector.load %arg9[%243, %c0_77, %c0_78] : memref<16x16x384xf32, #tpu.memory_space<vmem>>, vector<1x16x384xf32>
    %245 = vector.shape_cast %244 : vector<1x16x384xf32> to vector<16x384xf32>
    %246 = vector.extract_strided_slice %245 {offsets = [0, 0], sizes = [14, 384], strides = [1, 1]} : vector<16x384xf32> to vector<14x384xf32>
    %247 = vector.broadcast %47 : vector<1x384xf32> to vector<14x384xf32>
    %248 = arith.mulf %246, %247 : vector<14x384xf32>
    %249 = arith.addf %241, %248 : vector<14x384xf32>
    %250 = vector.extract_strided_slice %245 {offsets = [1, 0], sizes = [14, 384], strides = [1, 1]} : vector<16x384xf32> to vector<14x384xf32>
    %251 = vector.broadcast %48 : vector<1x384xf32> to vector<14x384xf32>
    %252 = arith.mulf %250, %251 : vector<14x384xf32>
    %253 = arith.addf %249, %252 : vector<14x384xf32>
    %254 = vector.extract_strided_slice %245 {offsets = [2, 0], sizes = [14, 384], strides = [1, 1]} : vector<16x384xf32> to vector<14x384xf32>
    %255 = vector.broadcast %49 : vector<1x384xf32> to vector<14x384xf32>
    %256 = arith.mulf %254, %255 : vector<14x384xf32>
    %257 = arith.addf %253, %256 : vector<14x384xf32>
    %258 = arith.index_cast %c3_i32 : i32 to index
    %c0_79 = arith.constant 0 : index
    %c0_80 = arith.constant 0 : index
    %259 = vector.load %arg8[%258, %c0_79, %c0_80] : memref<14x14x384xf32, #tpu.memory_space<vmem>>, vector<1x14x384xf32>
    %260 = vector.shape_cast %259 : vector<1x14x384xf32> to vector<14x384xf32>
    %261 = vector.shape_cast %257 : vector<14x384xf32> to vector<1x14x384xf32>
    tpu.vector_store %arg8[%258, %c0_79, %c0_80], %261 {strides = array<i32>} : memref<14x14x384xf32, #tpu.memory_space<vmem>>, vector<1x14x384xf32>,
    %c4_i32 = arith.constant 4 : i32
    %cst_81 = arith.constant 0.000000e+00 : f32
    %262 = vector.broadcast %cst_81 : f32 to vector<14x384xf32>
    %c0_i32_82 = arith.constant 0 : i32
    %263 = arith.addi %c4_i32, %c0_i32_82 : i32
    %264 = arith.index_cast %263 : i32 to index
    %c0_83 = arith.constant 0 : index
    %c0_84 = arith.constant 0 : index
    %265 = vector.load %arg9[%264, %c0_83, %c0_84] : memref<16x16x384xf32, #tpu.memory_space<vmem>>, vector<1x16x384xf32>
    %266 = vector.shape_cast %265 : vector<1x16x384xf32> to vector<16x384xf32>
    %267 = vector.extract_strided_slice %266 {offsets = [0, 0], sizes = [14, 384], strides = [1, 1]} : vector<16x384xf32> to vector<14x384xf32>
    %268 = vector.broadcast %41 : vector<1x384xf32> to vector<14x384xf32>
    %269 = arith.mulf %267, %268 : vector<14x384xf32>
    %270 = arith.addf %262, %269 : vector<14x384xf32>
    %271 = vector.extract_strided_slice %266 {offsets = [1, 0], sizes = [14, 384], strides = [1, 1]} : vector<16x384xf32> to vector<14x384xf32>
    %272 = vector.broadcast %42 : vector<1x384xf32> to vector<14x384xf32>
    %273 = arith.mulf %271, %272 : vector<14x384xf32>
    %274 = arith.addf %270, %273 : vector<14x384xf32>
    %275 = vector.extract_strided_slice %266 {offsets = [2, 0], sizes = [14, 384], strides = [1, 1]} : vector<16x384xf32> to vector<14x384xf32>
    %276 = vector.broadcast %43 : vector<1x384xf32> to vector<14x384xf32>
    %277 = arith.mulf %275, %276 : vector<14x384xf32>
    %278 = arith.addf %274, %277 : vector<14x384xf32>
    %c1_i32_85 = arith.constant 1 : i32
    %279 = arith.addi %c4_i32, %c1_i32_85 : i32
    %280 = arith.index_cast %279 : i32 to index
    %c0_86 = arith.constant 0 : index
    %c0_87 = arith.constant 0 : index
    %281 = vector.load %arg9[%280, %c0_86, %c0_87] : memref<16x16x384xf32, #tpu.memory_space<vmem>>, vector<1x16x384xf32>
    %282 = vector.shape_cast %281 : vector<1x16x384xf32> to vector<16x384xf32>
    %283 = vector.extract_strided_slice %282 {offsets = [0, 0], sizes = [14, 384], strides = [1, 1]} : vector<16x384xf32> to vector<14x384xf32>
    %284 = vector.broadcast %44 : vector<1x384xf32> to vector<14x384xf32>
    %285 = arith.mulf %283, %284 : vector<14x384xf32>
    %286 = arith.addf %278, %285 : vector<14x384xf32>
    %287 = vector.extract_strided_slice %282 {offsets = [1, 0], sizes = [14, 384], strides = [1, 1]} : vector<16x384xf32> to vector<14x384xf32>
    %288 = vector.broadcast %45 : vector<1x384xf32> to vector<14x384xf32>
    %289 = arith.mulf %287, %288 : vector<14x384xf32>
    %290 = arith.addf %286, %289 : vector<14x384xf32>
    %291 = vector.extract_strided_slice %282 {offsets = [2, 0], sizes = [14, 384], strides = [1, 1]} : vector<16x384xf32> to vector<14x384xf32>
    %292 = vector.broadcast %46 : vector<1x384xf32> to vector<14x384xf32>
    %293 = arith.mulf %291, %292 : vector<14x384xf32>
    %294 = arith.addf %290, %293 : vector<14x384xf32>
    %c2_i32_88 = arith.constant 2 : i32
    %295 = arith.addi %c4_i32, %c2_i32_88 : i32
    %296 = arith.index_cast %295 : i32 to index
    %c0_89 = arith.constant 0 : index
    %c0_90 = arith.constant 0 : index
    %297 = vector.load %arg9[%296, %c0_89, %c0_90] : memref<16x16x384xf32, #tpu.memory_space<vmem>>, vector<1x16x384xf32>
    %298 = vector.shape_cast %297 : vector<1x16x384xf32> to vector<16x384xf32>
    %299 = vector.extract_strided_slice %298 {offsets = [0, 0], sizes = [14, 384], strides = [1, 1]} : vector<16x384xf32> to vector<14x384xf32>
    %300 = vector.broadcast %47 : vector<1x384xf32> to vector<14x384xf32>
    %301 = arith.mulf %299, %300 : vector<14x384xf32>
    %302 = arith.addf %294, %301 : vector<14x384xf32>
    %303 = vector.extract_strided_slice %298 {offsets = [1, 0], sizes = [14, 384], strides = [1, 1]} : vector<16x384xf32> to vector<14x384xf32>
    %304 = vector.broadcast %48 : vector<1x384xf32> to vector<14x384xf32>
    %305 = arith.mulf %303, %304 : vector<14x384xf32>
    %306 = arith.addf %302, %305 : vector<14x384xf32>
    %307 = vector.extract_strided_slice %298 {offsets = [2, 0], sizes = [14, 384], strides = [1, 1]} : vector<16x384xf32> to vector<14x384xf32>
    %308 = vector.broadcast %49 : vector<1x384xf32> to vector<14x384xf32>
    %309 = arith.mulf %307, %308 : vector<14x384xf32>
    %310 = arith.addf %306, %309 : vector<14x384xf32>
    %311 = arith.index_cast %c4_i32 : i32 to index
    %c0_91 = arith.constant 0 : index
    %c0_92 = arith.constant 0 : index
    %312 = vector.load %arg8[%311, %c0_91, %c0_92] : memref<14x14x384xf32, #tpu.memory_space<vmem>>, vector<1x14x384xf32>
    %313 = vector.shape_cast %312 : vector<1x14x384xf32> to vector<14x384xf32>
    %314 = vector.shape_cast %310 : vector<14x384xf32> to vector<1x14x384xf32>
    tpu.vector_store %arg8[%311, %c0_91, %c0_92], %314 {strides = array<i32>} : memref<14x14x384xf32, #tpu.memory_space<vmem>>, vector<1x14x384xf32>,
    %c5_i32 = arith.constant 5 : i32
    %cst_93 = arith.constant 0.000000e+00 : f32
    %315 = vector.broadcast %cst_93 : f32 to vector<14x384xf32>
    %c0_i32_94 = arith.constant 0 : i32
    %316 = arith.addi %c5_i32, %c0_i32_94 : i32
    %317 = arith.index_cast %316 : i32 to index
    %c0_95 = arith.constant 0 : index
    %c0_96 = arith.constant 0 : index
    %318 = vector.load %arg9[%317, %c0_95, %c0_96] : memref<16x16x384xf32, #tpu.memory_space<vmem>>, vector<1x16x384xf32>
    %319 = vector.shape_cast %318 : vector<1x16x384xf32> to vector<16x384xf32>
    %320 = vector.extract_strided_slice %319 {offsets = [0, 0], sizes = [14, 384], strides = [1, 1]} : vector<16x384xf32> to vector<14x384xf32>
    %321 = vector.broadcast %41 : vector<1x384xf32> to vector<14x384xf32>
    %322 = arith.mulf %320, %321 : vector<14x384xf32>
    %323 = arith.addf %315, %322 : vector<14x384xf32>
    %324 = vector.extract_strided_slice %319 {offsets = [1, 0], sizes = [14, 384], strides = [1, 1]} : vector<16x384xf32> to vector<14x384xf32>
    %325 = vector.broadcast %42 : vector<1x384xf32> to vector<14x384xf32>
    %326 = arith.mulf %324, %325 : vector<14x384xf32>
    %327 = arith.addf %323, %326 : vector<14x384xf32>
    %328 = vector.extract_strided_slice %319 {offsets = [2, 0], sizes = [14, 384], strides = [1, 1]} : vector<16x384xf32> to vector<14x384xf32>
    %329 = vector.broadcast %43 : vector<1x384xf32> to vector<14x384xf32>
    %330 = arith.mulf %328, %329 : vector<14x384xf32>
    %331 = arith.addf %327, %330 : vector<14x384xf32>
    %c1_i32_97 = arith.constant 1 : i32
    %332 = arith.addi %c5_i32, %c1_i32_97 : i32
    %333 = arith.index_cast %332 : i32 to index
    %c0_98 = arith.constant 0 : index
    %c0_99 = arith.constant 0 : index
    %334 = vector.load %arg9[%333, %c0_98, %c0_99] : memref<16x16x384xf32, #tpu.memory_space<vmem>>, vector<1x16x384xf32>
    %335 = vector.shape_cast %334 : vector<1x16x384xf32> to vector<16x384xf32>
    %336 = vector.extract_strided_slice %335 {offsets = [0, 0], sizes = [14, 384], strides = [1, 1]} : vector<16x384xf32> to vector<14x384xf32>
    %337 = vector.broadcast %44 : vector<1x384xf32> to vector<14x384xf32>
    %338 = arith.mulf %336, %337 : vector<14x384xf32>
    %339 = arith.addf %331, %338 : vector<14x384xf32>
    %340 = vector.extract_strided_slice %335 {offsets = [1, 0], sizes = [14, 384], strides = [1, 1]} : vector<16x384xf32> to vector<14x384xf32>
    %341 = vector.broadcast %45 : vector<1x384xf32> to vector<14x384xf32>
    %342 = arith.mulf %340, %341 : vector<14x384xf32>
    %343 = arith.addf %339, %342 : vector<14x384xf32>
    %344 = vector.extract_strided_slice %335 {offsets = [2, 0], sizes = [14, 384], strides = [1, 1]} : vector<16x384xf32> to vector<14x384xf32>
    %345 = vector.broadcast %46 : vector<1x384xf32> to vector<14x384xf32>
    %346 = arith.mulf %344, %345 : vector<14x384xf32>
    %347 = arith.addf %343, %346 : vector<14x384xf32>
    %c2_i32_100 = arith.constant 2 : i32
    %348 = arith.addi %c5_i32, %c2_i32_100 : i32
    %349 = arith.index_cast %348 : i32 to index
    %c0_101 = arith.constant 0 : index
    %c0_102 = arith.constant 0 : index
    %350 = vector.load %arg9[%349, %c0_101, %c0_102] : memref<16x16x384xf32, #tpu.memory_space<vmem>>, vector<1x16x384xf32>
    %351 = vector.shape_cast %350 : vector<1x16x384xf32> to vector<16x384xf32>
    %352 = vector.extract_strided_slice %351 {offsets = [0, 0], sizes = [14, 384], strides = [1, 1]} : vector<16x384xf32> to vector<14x384xf32>
    %353 = vector.broadcast %47 : vector<1x384xf32> to vector<14x384xf32>
    %354 = arith.mulf %352, %353 : vector<14x384xf32>
    %355 = arith.addf %347, %354 : vector<14x384xf32>
    %356 = vector.extract_strided_slice %351 {offsets = [1, 0], sizes = [14, 384], strides = [1, 1]} : vector<16x384xf32> to vector<14x384xf32>
    %357 = vector.broadcast %48 : vector<1x384xf32> to vector<14x384xf32>
    %358 = arith.mulf %356, %357 : vector<14x384xf32>
    %359 = arith.addf %355, %358 : vector<14x384xf32>
    %360 = vector.extract_strided_slice %351 {offsets = [2, 0], sizes = [14, 384], strides = [1, 1]} : vector<16x384xf32> to vector<14x384xf32>
    %361 = vector.broadcast %49 : vector<1x384xf32> to vector<14x384xf32>
    %362 = arith.mulf %360, %361 : vector<14x384xf32>
    %363 = arith.addf %359, %362 : vector<14x384xf32>
    %364 = arith.index_cast %c5_i32 : i32 to index
    %c0_103 = arith.constant 0 : index
    %c0_104 = arith.constant 0 : index
    %365 = vector.load %arg8[%364, %c0_103, %c0_104] : memref<14x14x384xf32, #tpu.memory_space<vmem>>, vector<1x14x384xf32>
    %366 = vector.shape_cast %365 : vector<1x14x384xf32> to vector<14x384xf32>
    %367 = vector.shape_cast %363 : vector<14x384xf32> to vector<1x14x384xf32>
    tpu.vector_store %arg8[%364, %c0_103, %c0_104], %367 {strides = array<i32>} : memref<14x14x384xf32, #tpu.memory_space<vmem>>, vector<1x14x384xf32>,
    %c6_i32 = arith.constant 6 : i32
    %cst_105 = arith.constant 0.000000e+00 : f32
    %368 = vector.broadcast %cst_105 : f32 to vector<14x384xf32>
    %c0_i32_106 = arith.constant 0 : i32
    %369 = arith.addi %c6_i32, %c0_i32_106 : i32
    %370 = arith.index_cast %369 : i32 to index
    %c0_107 = arith.constant 0 : index
    %c0_108 = arith.constant 0 : index
    %371 = vector.load %arg9[%370, %c0_107, %c0_108] : memref<16x16x384xf32, #tpu.memory_space<vmem>>, vector<1x16x384xf32>
    %372 = vector.shape_cast %371 : vector<1x16x384xf32> to vector<16x384xf32>
    %373 = vector.extract_strided_slice %372 {offsets = [0, 0], sizes = [14, 384], strides = [1, 1]} : vector<16x384xf32> to vector<14x384xf32>
    %374 = vector.broadcast %41 : vector<1x384xf32> to vector<14x384xf32>
    %375 = arith.mulf %373, %374 : vector<14x384xf32>
    %376 = arith.addf %368, %375 : vector<14x384xf32>
    %377 = vector.extract_strided_slice %372 {offsets = [1, 0], sizes = [14, 384], strides = [1, 1]} : vector<16x384xf32> to vector<14x384xf32>
    %378 = vector.broadcast %42 : vector<1x384xf32> to vector<14x384xf32>
    %379 = arith.mulf %377, %378 : vector<14x384xf32>
    %380 = arith.addf %376, %379 : vector<14x384xf32>
    %381 = vector.extract_strided_slice %372 {offsets = [2, 0], sizes = [14, 384], strides = [1, 1]} : vector<16x384xf32> to vector<14x384xf32>
    %382 = vector.broadcast %43 : vector<1x384xf32> to vector<14x384xf32>
    %383 = arith.mulf %381, %382 : vector<14x384xf32>
    %384 = arith.addf %380, %383 : vector<14x384xf32>
    %c1_i32_109 = arith.constant 1 : i32
    %385 = arith.addi %c6_i32, %c1_i32_109 : i32
    %386 = arith.index_cast %385 : i32 to index
    %c0_110 = arith.constant 0 : index
    %c0_111 = arith.constant 0 : index
    %387 = vector.load %arg9[%386, %c0_110, %c0_111] : memref<16x16x384xf32, #tpu.memory_space<vmem>>, vector<1x16x384xf32>
    %388 = vector.shape_cast %387 : vector<1x16x384xf32> to vector<16x384xf32>
    %389 = vector.extract_strided_slice %388 {offsets = [0, 0], sizes = [14, 384], strides = [1, 1]} : vector<16x384xf32> to vector<14x384xf32>
    %390 = vector.broadcast %44 : vector<1x384xf32> to vector<14x384xf32>
    %391 = arith.mulf %389, %390 : vector<14x384xf32>
    %392 = arith.addf %384, %391 : vector<14x384xf32>
    %393 = vector.extract_strided_slice %388 {offsets = [1, 0], sizes = [14, 384], strides = [1, 1]} : vector<16x384xf32> to vector<14x384xf32>
    %394 = vector.broadcast %45 : vector<1x384xf32> to vector<14x384xf32>
    %395 = arith.mulf %393, %394 : vector<14x384xf32>
    %396 = arith.addf %392, %395 : vector<14x384xf32>
    %397 = vector.extract_strided_slice %388 {offsets = [2, 0], sizes = [14, 384], strides = [1, 1]} : vector<16x384xf32> to vector<14x384xf32>
    %398 = vector.broadcast %46 : vector<1x384xf32> to vector<14x384xf32>
    %399 = arith.mulf %397, %398 : vector<14x384xf32>
    %400 = arith.addf %396, %399 : vector<14x384xf32>
    %c2_i32_112 = arith.constant 2 : i32
    %401 = arith.addi %c6_i32, %c2_i32_112 : i32
    %402 = arith.index_cast %401 : i32 to index
    %c0_113 = arith.constant 0 : index
    %c0_114 = arith.constant 0 : index
    %403 = vector.load %arg9[%402, %c0_113, %c0_114] : memref<16x16x384xf32, #tpu.memory_space<vmem>>, vector<1x16x384xf32>
    %404 = vector.shape_cast %403 : vector<1x16x384xf32> to vector<16x384xf32>
    %405 = vector.extract_strided_slice %404 {offsets = [0, 0], sizes = [14, 384], strides = [1, 1]} : vector<16x384xf32> to vector<14x384xf32>
    %406 = vector.broadcast %47 : vector<1x384xf32> to vector<14x384xf32>
    %407 = arith.mulf %405, %406 : vector<14x384xf32>
    %408 = arith.addf %400, %407 : vector<14x384xf32>
    %409 = vector.extract_strided_slice %404 {offsets = [1, 0], sizes = [14, 384], strides = [1, 1]} : vector<16x384xf32> to vector<14x384xf32>
    %410 = vector.broadcast %48 : vector<1x384xf32> to vector<14x384xf32>
    %411 = arith.mulf %409, %410 : vector<14x384xf32>
    %412 = arith.addf %408, %411 : vector<14x384xf32>
    %413 = vector.extract_strided_slice %404 {offsets = [2, 0], sizes = [14, 384], strides = [1, 1]} : vector<16x384xf32> to vector<14x384xf32>
    %414 = vector.broadcast %49 : vector<1x384xf32> to vector<14x384xf32>
    %415 = arith.mulf %413, %414 : vector<14x384xf32>
    %416 = arith.addf %412, %415 : vector<14x384xf32>
    %417 = arith.index_cast %c6_i32 : i32 to index
    %c0_115 = arith.constant 0 : index
    %c0_116 = arith.constant 0 : index
    %418 = vector.load %arg8[%417, %c0_115, %c0_116] : memref<14x14x384xf32, #tpu.memory_space<vmem>>, vector<1x14x384xf32>
    %419 = vector.shape_cast %418 : vector<1x14x384xf32> to vector<14x384xf32>
    %420 = vector.shape_cast %416 : vector<14x384xf32> to vector<1x14x384xf32>
    tpu.vector_store %arg8[%417, %c0_115, %c0_116], %420 {strides = array<i32>} : memref<14x14x384xf32, #tpu.memory_space<vmem>>, vector<1x14x384xf32>,
    %c7_i32 = arith.constant 7 : i32
    %cst_117 = arith.constant 0.000000e+00 : f32
    %421 = vector.broadcast %cst_117 : f32 to vector<14x384xf32>
    %c0_i32_118 = arith.constant 0 : i32
    %422 = arith.addi %c7_i32, %c0_i32_118 : i32
    %423 = arith.index_cast %422 : i32 to index
    %c0_119 = arith.constant 0 : index
    %c0_120 = arith.constant 0 : index
    %424 = vector.load %arg9[%423, %c0_119, %c0_120] : memref<16x16x384xf32, #tpu.memory_space<vmem>>, vector<1x16x384xf32>
    %425 = vector.shape_cast %424 : vector<1x16x384xf32> to vector<16x384xf32>
    %426 = vector.extract_strided_slice %425 {offsets = [0, 0], sizes = [14, 384], strides = [1, 1]} : vector<16x384xf32> to vector<14x384xf32>
    %427 = vector.broadcast %41 : vector<1x384xf32> to vector<14x384xf32>
    %428 = arith.mulf %426, %427 : vector<14x384xf32>
    %429 = arith.addf %421, %428 : vector<14x384xf32>
    %430 = vector.extract_strided_slice %425 {offsets = [1, 0], sizes = [14, 384], strides = [1, 1]} : vector<16x384xf32> to vector<14x384xf32>
    %431 = vector.broadcast %42 : vector<1x384xf32> to vector<14x384xf32>
    %432 = arith.mulf %430, %431 : vector<14x384xf32>
    %433 = arith.addf %429, %432 : vector<14x384xf32>
    %434 = vector.extract_strided_slice %425 {offsets = [2, 0], sizes = [14, 384], strides = [1, 1]} : vector<16x384xf32> to vector<14x384xf32>
    %435 = vector.broadcast %43 : vector<1x384xf32> to vector<14x384xf32>
    %436 = arith.mulf %434, %435 : vector<14x384xf32>
    %437 = arith.addf %433, %436 : vector<14x384xf32>
    %c1_i32_121 = arith.constant 1 : i32
    %438 = arith.addi %c7_i32, %c1_i32_121 : i32
    %439 = arith.index_cast %438 : i32 to index
    %c0_122 = arith.constant 0 : index
    %c0_123 = arith.constant 0 : index
    %440 = vector.load %arg9[%439, %c0_122, %c0_123] : memref<16x16x384xf32, #tpu.memory_space<vmem>>, vector<1x16x384xf32>
    %441 = vector.shape_cast %440 : vector<1x16x384xf32> to vector<16x384xf32>
    %442 = vector.extract_strided_slice %441 {offsets = [0, 0], sizes = [14, 384], strides = [1, 1]} : vector<16x384xf32> to vector<14x384xf32>
    %443 = vector.broadcast %44 : vector<1x384xf32> to vector<14x384xf32>
    %444 = arith.mulf %442, %443 : vector<14x384xf32>
    %445 = arith.addf %437, %444 : vector<14x384xf32>
    %446 = vector.extract_strided_slice %441 {offsets = [1, 0], sizes = [14, 384], strides = [1, 1]} : vector<16x384xf32> to vector<14x384xf32>
    %447 = vector.broadcast %45 : vector<1x384xf32> to vector<14x384xf32>
    %448 = arith.mulf %446, %447 : vector<14x384xf32>
    %449 = arith.addf %445, %448 : vector<14x384xf32>
    %450 = vector.extract_strided_slice %441 {offsets = [2, 0], sizes = [14, 384], strides = [1, 1]} : vector<16x384xf32> to vector<14x384xf32>
    %451 = vector.broadcast %46 : vector<1x384xf32> to vector<14x384xf32>
    %452 = arith.mulf %450, %451 : vector<14x384xf32>
    %453 = arith.addf %449, %452 : vector<14x384xf32>
    %c2_i32_124 = arith.constant 2 : i32
    %454 = arith.addi %c7_i32, %c2_i32_124 : i32
    %455 = arith.index_cast %454 : i32 to index
    %c0_125 = arith.constant 0 : index
    %c0_126 = arith.constant 0 : index
    %456 = vector.load %arg9[%455, %c0_125, %c0_126] : memref<16x16x384xf32, #tpu.memory_space<vmem>>, vector<1x16x384xf32>
    %457 = vector.shape_cast %456 : vector<1x16x384xf32> to vector<16x384xf32>
    %458 = vector.extract_strided_slice %457 {offsets = [0, 0], sizes = [14, 384], strides = [1, 1]} : vector<16x384xf32> to vector<14x384xf32>
    %459 = vector.broadcast %47 : vector<1x384xf32> to vector<14x384xf32>
    %460 = arith.mulf %458, %459 : vector<14x384xf32>
    %461 = arith.addf %453, %460 : vector<14x384xf32>
    %462 = vector.extract_strided_slice %457 {offsets = [1, 0], sizes = [14, 384], strides = [1, 1]} : vector<16x384xf32> to vector<14x384xf32>
    %463 = vector.broadcast %48 : vector<1x384xf32> to vector<14x384xf32>
    %464 = arith.mulf %462, %463 : vector<14x384xf32>
    %465 = arith.addf %461, %464 : vector<14x384xf32>
    %466 = vector.extract_strided_slice %457 {offsets = [2, 0], sizes = [14, 384], strides = [1, 1]} : vector<16x384xf32> to vector<14x384xf32>
    %467 = vector.broadcast %49 : vector<1x384xf32> to vector<14x384xf32>
    %468 = arith.mulf %466, %467 : vector<14x384xf32>
    %469 = arith.addf %465, %468 : vector<14x384xf32>
    %470 = arith.index_cast %c7_i32 : i32 to index
    %c0_127 = arith.constant 0 : index
    %c0_128 = arith.constant 0 : index
    %471 = vector.load %arg8[%470, %c0_127, %c0_128] : memref<14x14x384xf32, #tpu.memory_space<vmem>>, vector<1x14x384xf32>
    %472 = vector.shape_cast %471 : vector<1x14x384xf32> to vector<14x384xf32>
    %473 = vector.shape_cast %469 : vector<14x384xf32> to vector<1x14x384xf32>
    tpu.vector_store %arg8[%470, %c0_127, %c0_128], %473 {strides = array<i32>} : memref<14x14x384xf32, #tpu.memory_space<vmem>>, vector<1x14x384xf32>,
    %c8_i32 = arith.constant 8 : i32
    %cst_129 = arith.constant 0.000000e+00 : f32
    %474 = vector.broadcast %cst_129 : f32 to vector<14x384xf32>
    %c0_i32_130 = arith.constant 0 : i32
    %475 = arith.addi %c8_i32, %c0_i32_130 : i32
    %476 = arith.index_cast %475 : i32 to index
    %c0_131 = arith.constant 0 : index
    %c0_132 = arith.constant 0 : index
    %477 = vector.load %arg9[%476, %c0_131, %c0_132] : memref<16x16x384xf32, #tpu.memory_space<vmem>>, vector<1x16x384xf32>
    %478 = vector.shape_cast %477 : vector<1x16x384xf32> to vector<16x384xf32>
    %479 = vector.extract_strided_slice %478 {offsets = [0, 0], sizes = [14, 384], strides = [1, 1]} : vector<16x384xf32> to vector<14x384xf32>
    %480 = vector.broadcast %41 : vector<1x384xf32> to vector<14x384xf32>
    %481 = arith.mulf %479, %480 : vector<14x384xf32>
    %482 = arith.addf %474, %481 : vector<14x384xf32>
    %483 = vector.extract_strided_slice %478 {offsets = [1, 0], sizes = [14, 384], strides = [1, 1]} : vector<16x384xf32> to vector<14x384xf32>
    %484 = vector.broadcast %42 : vector<1x384xf32> to vector<14x384xf32>
    %485 = arith.mulf %483, %484 : vector<14x384xf32>
    %486 = arith.addf %482, %485 : vector<14x384xf32>
    %487 = vector.extract_strided_slice %478 {offsets = [2, 0], sizes = [14, 384], strides = [1, 1]} : vector<16x384xf32> to vector<14x384xf32>
    %488 = vector.broadcast %43 : vector<1x384xf32> to vector<14x384xf32>
    %489 = arith.mulf %487, %488 : vector<14x384xf32>
    %490 = arith.addf %486, %489 : vector<14x384xf32>
    %c1_i32_133 = arith.constant 1 : i32
    %491 = arith.addi %c8_i32, %c1_i32_133 : i32
    %492 = arith.index_cast %491 : i32 to index
    %c0_134 = arith.constant 0 : index
    %c0_135 = arith.constant 0 : index
    %493 = vector.load %arg9[%492, %c0_134, %c0_135] : memref<16x16x384xf32, #tpu.memory_space<vmem>>, vector<1x16x384xf32>
    %494 = vector.shape_cast %493 : vector<1x16x384xf32> to vector<16x384xf32>
    %495 = vector.extract_strided_slice %494 {offsets = [0, 0], sizes = [14, 384], strides = [1, 1]} : vector<16x384xf32> to vector<14x384xf32>
    %496 = vector.broadcast %44 : vector<1x384xf32> to vector<14x384xf32>
    %497 = arith.mulf %495, %496 : vector<14x384xf32>
    %498 = arith.addf %490, %497 : vector<14x384xf32>
    %499 = vector.extract_strided_slice %494 {offsets = [1, 0], sizes = [14, 384], strides = [1, 1]} : vector<16x384xf32> to vector<14x384xf32>
    %500 = vector.broadcast %45 : vector<1x384xf32> to vector<14x384xf32>
    %501 = arith.mulf %499, %500 : vector<14x384xf32>
    %502 = arith.addf %498, %501 : vector<14x384xf32>
    %503 = vector.extract_strided_slice %494 {offsets = [2, 0], sizes = [14, 384], strides = [1, 1]} : vector<16x384xf32> to vector<14x384xf32>
    %504 = vector.broadcast %46 : vector<1x384xf32> to vector<14x384xf32>
    %505 = arith.mulf %503, %504 : vector<14x384xf32>
    %506 = arith.addf %502, %505 : vector<14x384xf32>
    %c2_i32_136 = arith.constant 2 : i32
    %507 = arith.addi %c8_i32, %c2_i32_136 : i32
    %508 = arith.index_cast %507 : i32 to index
    %c0_137 = arith.constant 0 : index
    %c0_138 = arith.constant 0 : index
    %509 = vector.load %arg9[%508, %c0_137, %c0_138] : memref<16x16x384xf32, #tpu.memory_space<vmem>>, vector<1x16x384xf32>
    %510 = vector.shape_cast %509 : vector<1x16x384xf32> to vector<16x384xf32>
    %511 = vector.extract_strided_slice %510 {offsets = [0, 0], sizes = [14, 384], strides = [1, 1]} : vector<16x384xf32> to vector<14x384xf32>
    %512 = vector.broadcast %47 : vector<1x384xf32> to vector<14x384xf32>
    %513 = arith.mulf %511, %512 : vector<14x384xf32>
    %514 = arith.addf %506, %513 : vector<14x384xf32>
    %515 = vector.extract_strided_slice %510 {offsets = [1, 0], sizes = [14, 384], strides = [1, 1]} : vector<16x384xf32> to vector<14x384xf32>
    %516 = vector.broadcast %48 : vector<1x384xf32> to vector<14x384xf32>
    %517 = arith.mulf %515, %516 : vector<14x384xf32>
    %518 = arith.addf %514, %517 : vector<14x384xf32>
    %519 = vector.extract_strided_slice %510 {offsets = [2, 0], sizes = [14, 384], strides = [1, 1]} : vector<16x384xf32> to vector<14x384xf32>
    %520 = vector.broadcast %49 : vector<1x384xf32> to vector<14x384xf32>
    %521 = arith.mulf %519, %520 : vector<14x384xf32>
    %522 = arith.addf %518, %521 : vector<14x384xf32>
    %523 = arith.index_cast %c8_i32 : i32 to index
    %c0_139 = arith.constant 0 : index
    %c0_140 = arith.constant 0 : index
    %524 = vector.load %arg8[%523, %c0_139, %c0_140] : memref<14x14x384xf32, #tpu.memory_space<vmem>>, vector<1x14x384xf32>
    %525 = vector.shape_cast %524 : vector<1x14x384xf32> to vector<14x384xf32>
    %526 = vector.shape_cast %522 : vector<14x384xf32> to vector<1x14x384xf32>
    tpu.vector_store %arg8[%523, %c0_139, %c0_140], %526 {strides = array<i32>} : memref<14x14x384xf32, #tpu.memory_space<vmem>>, vector<1x14x384xf32>,
    %c9_i32 = arith.constant 9 : i32
    %cst_141 = arith.constant 0.000000e+00 : f32
    %527 = vector.broadcast %cst_141 : f32 to vector<14x384xf32>
    %c0_i32_142 = arith.constant 0 : i32
    %528 = arith.addi %c9_i32, %c0_i32_142 : i32
    %529 = arith.index_cast %528 : i32 to index
    %c0_143 = arith.constant 0 : index
    %c0_144 = arith.constant 0 : index
    %530 = vector.load %arg9[%529, %c0_143, %c0_144] : memref<16x16x384xf32, #tpu.memory_space<vmem>>, vector<1x16x384xf32>
    %531 = vector.shape_cast %530 : vector<1x16x384xf32> to vector<16x384xf32>
    %532 = vector.extract_strided_slice %531 {offsets = [0, 0], sizes = [14, 384], strides = [1, 1]} : vector<16x384xf32> to vector<14x384xf32>
    %533 = vector.broadcast %41 : vector<1x384xf32> to vector<14x384xf32>
    %534 = arith.mulf %532, %533 : vector<14x384xf32>
    %535 = arith.addf %527, %534 : vector<14x384xf32>
    %536 = vector.extract_strided_slice %531 {offsets = [1, 0], sizes = [14, 384], strides = [1, 1]} : vector<16x384xf32> to vector<14x384xf32>
    %537 = vector.broadcast %42 : vector<1x384xf32> to vector<14x384xf32>
    %538 = arith.mulf %536, %537 : vector<14x384xf32>
    %539 = arith.addf %535, %538 : vector<14x384xf32>
    %540 = vector.extract_strided_slice %531 {offsets = [2, 0], sizes = [14, 384], strides = [1, 1]} : vector<16x384xf32> to vector<14x384xf32>
    %541 = vector.broadcast %43 : vector<1x384xf32> to vector<14x384xf32>
    %542 = arith.mulf %540, %541 : vector<14x384xf32>
    %543 = arith.addf %539, %542 : vector<14x384xf32>
    %c1_i32_145 = arith.constant 1 : i32
    %544 = arith.addi %c9_i32, %c1_i32_145 : i32
    %545 = arith.index_cast %544 : i32 to index
    %c0_146 = arith.constant 0 : index
    %c0_147 = arith.constant 0 : index
    %546 = vector.load %arg9[%545, %c0_146, %c0_147] : memref<16x16x384xf32, #tpu.memory_space<vmem>>, vector<1x16x384xf32>
    %547 = vector.shape_cast %546 : vector<1x16x384xf32> to vector<16x384xf32>
    %548 = vector.extract_strided_slice %547 {offsets = [0, 0], sizes = [14, 384], strides = [1, 1]} : vector<16x384xf32> to vector<14x384xf32>
    %549 = vector.broadcast %44 : vector<1x384xf32> to vector<14x384xf32>
    %550 = arith.mulf %548, %549 : vector<14x384xf32>
    %551 = arith.addf %543, %550 : vector<14x384xf32>
    %552 = vector.extract_strided_slice %547 {offsets = [1, 0], sizes = [14, 384], strides = [1, 1]} : vector<16x384xf32> to vector<14x384xf32>
    %553 = vector.broadcast %45 : vector<1x384xf32> to vector<14x384xf32>
    %554 = arith.mulf %552, %553 : vector<14x384xf32>
    %555 = arith.addf %551, %554 : vector<14x384xf32>
    %556 = vector.extract_strided_slice %547 {offsets = [2, 0], sizes = [14, 384], strides = [1, 1]} : vector<16x384xf32> to vector<14x384xf32>
    %557 = vector.broadcast %46 : vector<1x384xf32> to vector<14x384xf32>
    %558 = arith.mulf %556, %557 : vector<14x384xf32>
    %559 = arith.addf %555, %558 : vector<14x384xf32>
    %c2_i32_148 = arith.constant 2 : i32
    %560 = arith.addi %c9_i32, %c2_i32_148 : i32
    %561 = arith.index_cast %560 : i32 to index
    %c0_149 = arith.constant 0 : index
    %c0_150 = arith.constant 0 : index
    %562 = vector.load %arg9[%561, %c0_149, %c0_150] : memref<16x16x384xf32, #tpu.memory_space<vmem>>, vector<1x16x384xf32>
    %563 = vector.shape_cast %562 : vector<1x16x384xf32> to vector<16x384xf32>
    %564 = vector.extract_strided_slice %563 {offsets = [0, 0], sizes = [14, 384], strides = [1, 1]} : vector<16x384xf32> to vector<14x384xf32>
    %565 = vector.broadcast %47 : vector<1x384xf32> to vector<14x384xf32>
    %566 = arith.mulf %564, %565 : vector<14x384xf32>
    %567 = arith.addf %559, %566 : vector<14x384xf32>
    %568 = vector.extract_strided_slice %563 {offsets = [1, 0], sizes = [14, 384], strides = [1, 1]} : vector<16x384xf32> to vector<14x384xf32>
    %569 = vector.broadcast %48 : vector<1x384xf32> to vector<14x384xf32>
    %570 = arith.mulf %568, %569 : vector<14x384xf32>
    %571 = arith.addf %567, %570 : vector<14x384xf32>
    %572 = vector.extract_strided_slice %563 {offsets = [2, 0], sizes = [14, 384], strides = [1, 1]} : vector<16x384xf32> to vector<14x384xf32>
    %573 = vector.broadcast %49 : vector<1x384xf32> to vector<14x384xf32>
    %574 = arith.mulf %572, %573 : vector<14x384xf32>
    %575 = arith.addf %571, %574 : vector<14x384xf32>
    %576 = arith.index_cast %c9_i32 : i32 to index
    %c0_151 = arith.constant 0 : index
    %c0_152 = arith.constant 0 : index
    %577 = vector.load %arg8[%576, %c0_151, %c0_152] : memref<14x14x384xf32, #tpu.memory_space<vmem>>, vector<1x14x384xf32>
    %578 = vector.shape_cast %577 : vector<1x14x384xf32> to vector<14x384xf32>
    %579 = vector.shape_cast %575 : vector<14x384xf32> to vector<1x14x384xf32>
    tpu.vector_store %arg8[%576, %c0_151, %c0_152], %579 {strides = array<i32>} : memref<14x14x384xf32, #tpu.memory_space<vmem>>, vector<1x14x384xf32>,
    %c10_i32 = arith.constant 10 : i32
    %cst_153 = arith.constant 0.000000e+00 : f32
    %580 = vector.broadcast %cst_153 : f32 to vector<14x384xf32>
    %c0_i32_154 = arith.constant 0 : i32
    %581 = arith.addi %c10_i32, %c0_i32_154 : i32
    %582 = arith.index_cast %581 : i32 to index
    %c0_155 = arith.constant 0 : index
    %c0_156 = arith.constant 0 : index
    %583 = vector.load %arg9[%582, %c0_155, %c0_156] : memref<16x16x384xf32, #tpu.memory_space<vmem>>, vector<1x16x384xf32>
    %584 = vector.shape_cast %583 : vector<1x16x384xf32> to vector<16x384xf32>
    %585 = vector.extract_strided_slice %584 {offsets = [0, 0], sizes = [14, 384], strides = [1, 1]} : vector<16x384xf32> to vector<14x384xf32>
    %586 = vector.broadcast %41 : vector<1x384xf32> to vector<14x384xf32>
    %587 = arith.mulf %585, %586 : vector<14x384xf32>
    %588 = arith.addf %580, %587 : vector<14x384xf32>
    %589 = vector.extract_strided_slice %584 {offsets = [1, 0], sizes = [14, 384], strides = [1, 1]} : vector<16x384xf32> to vector<14x384xf32>
    %590 = vector.broadcast %42 : vector<1x384xf32> to vector<14x384xf32>
    %591 = arith.mulf %589, %590 : vector<14x384xf32>
    %592 = arith.addf %588, %591 : vector<14x384xf32>
    %593 = vector.extract_strided_slice %584 {offsets = [2, 0], sizes = [14, 384], strides = [1, 1]} : vector<16x384xf32> to vector<14x384xf32>
    %594 = vector.broadcast %43 : vector<1x384xf32> to vector<14x384xf32>
    %595 = arith.mulf %593, %594 : vector<14x384xf32>
    %596 = arith.addf %592, %595 : vector<14x384xf32>
    %c1_i32_157 = arith.constant 1 : i32
    %597 = arith.addi %c10_i32, %c1_i32_157 : i32
    %598 = arith.index_cast %597 : i32 to index
    %c0_158 = arith.constant 0 : index
    %c0_159 = arith.constant 0 : index
    %599 = vector.load %arg9[%598, %c0_158, %c0_159] : memref<16x16x384xf32, #tpu.memory_space<vmem>>, vector<1x16x384xf32>
    %600 = vector.shape_cast %599 : vector<1x16x384xf32> to vector<16x384xf32>
    %601 = vector.extract_strided_slice %600 {offsets = [0, 0], sizes = [14, 384], strides = [1, 1]} : vector<16x384xf32> to vector<14x384xf32>
    %602 = vector.broadcast %44 : vector<1x384xf32> to vector<14x384xf32>
    %603 = arith.mulf %601, %602 : vector<14x384xf32>
    %604 = arith.addf %596, %603 : vector<14x384xf32>
    %605 = vector.extract_strided_slice %600 {offsets = [1, 0], sizes = [14, 384], strides = [1, 1]} : vector<16x384xf32> to vector<14x384xf32>
    %606 = vector.broadcast %45 : vector<1x384xf32> to vector<14x384xf32>
    %607 = arith.mulf %605, %606 : vector<14x384xf32>
    %608 = arith.addf %604, %607 : vector<14x384xf32>
    %609 = vector.extract_strided_slice %600 {offsets = [2, 0], sizes = [14, 384], strides = [1, 1]} : vector<16x384xf32> to vector<14x384xf32>
    %610 = vector.broadcast %46 : vector<1x384xf32> to vector<14x384xf32>
    %611 = arith.mulf %609, %610 : vector<14x384xf32>
    %612 = arith.addf %608, %611 : vector<14x384xf32>
    %c2_i32_160 = arith.constant 2 : i32
    %613 = arith.addi %c10_i32, %c2_i32_160 : i32
    %614 = arith.index_cast %613 : i32 to index
    %c0_161 = arith.constant 0 : index
    %c0_162 = arith.constant 0 : index
    %615 = vector.load %arg9[%614, %c0_161, %c0_162] : memref<16x16x384xf32, #tpu.memory_space<vmem>>, vector<1x16x384xf32>
    %616 = vector.shape_cast %615 : vector<1x16x384xf32> to vector<16x384xf32>
    %617 = vector.extract_strided_slice %616 {offsets = [0, 0], sizes = [14, 384], strides = [1, 1]} : vector<16x384xf32> to vector<14x384xf32>
    %618 = vector.broadcast %47 : vector<1x384xf32> to vector<14x384xf32>
    %619 = arith.mulf %617, %618 : vector<14x384xf32>
    %620 = arith.addf %612, %619 : vector<14x384xf32>
    %621 = vector.extract_strided_slice %616 {offsets = [1, 0], sizes = [14, 384], strides = [1, 1]} : vector<16x384xf32> to vector<14x384xf32>
    %622 = vector.broadcast %48 : vector<1x384xf32> to vector<14x384xf32>
    %623 = arith.mulf %621, %622 : vector<14x384xf32>
    %624 = arith.addf %620, %623 : vector<14x384xf32>
    %625 = vector.extract_strided_slice %616 {offsets = [2, 0], sizes = [14, 384], strides = [1, 1]} : vector<16x384xf32> to vector<14x384xf32>
    %626 = vector.broadcast %49 : vector<1x384xf32> to vector<14x384xf32>
    %627 = arith.mulf %625, %626 : vector<14x384xf32>
    %628 = arith.addf %624, %627 : vector<14x384xf32>
    %629 = arith.index_cast %c10_i32 : i32 to index
    %c0_163 = arith.constant 0 : index
    %c0_164 = arith.constant 0 : index
    %630 = vector.load %arg8[%629, %c0_163, %c0_164] : memref<14x14x384xf32, #tpu.memory_space<vmem>>, vector<1x14x384xf32>
    %631 = vector.shape_cast %630 : vector<1x14x384xf32> to vector<14x384xf32>
    %632 = vector.shape_cast %628 : vector<14x384xf32> to vector<1x14x384xf32>
    tpu.vector_store %arg8[%629, %c0_163, %c0_164], %632 {strides = array<i32>} : memref<14x14x384xf32, #tpu.memory_space<vmem>>, vector<1x14x384xf32>,
    %c11_i32 = arith.constant 11 : i32
    %cst_165 = arith.constant 0.000000e+00 : f32
    %633 = vector.broadcast %cst_165 : f32 to vector<14x384xf32>
    %c0_i32_166 = arith.constant 0 : i32
    %634 = arith.addi %c11_i32, %c0_i32_166 : i32
    %635 = arith.index_cast %634 : i32 to index
    %c0_167 = arith.constant 0 : index
    %c0_168 = arith.constant 0 : index
    %636 = vector.load %arg9[%635, %c0_167, %c0_168] : memref<16x16x384xf32, #tpu.memory_space<vmem>>, vector<1x16x384xf32>
    %637 = vector.shape_cast %636 : vector<1x16x384xf32> to vector<16x384xf32>
    %638 = vector.extract_strided_slice %637 {offsets = [0, 0], sizes = [14, 384], strides = [1, 1]} : vector<16x384xf32> to vector<14x384xf32>
    %639 = vector.broadcast %41 : vector<1x384xf32> to vector<14x384xf32>
    %640 = arith.mulf %638, %639 : vector<14x384xf32>
    %641 = arith.addf %633, %640 : vector<14x384xf32>
    %642 = vector.extract_strided_slice %637 {offsets = [1, 0], sizes = [14, 384], strides = [1, 1]} : vector<16x384xf32> to vector<14x384xf32>
    %643 = vector.broadcast %42 : vector<1x384xf32> to vector<14x384xf32>
    %644 = arith.mulf %642, %643 : vector<14x384xf32>
    %645 = arith.addf %641, %644 : vector<14x384xf32>
    %646 = vector.extract_strided_slice %637 {offsets = [2, 0], sizes = [14, 384], strides = [1, 1]} : vector<16x384xf32> to vector<14x384xf32>
    %647 = vector.broadcast %43 : vector<1x384xf32> to vector<14x384xf32>
    %648 = arith.mulf %646, %647 : vector<14x384xf32>
    %649 = arith.addf %645, %648 : vector<14x384xf32>
    %c1_i32_169 = arith.constant 1 : i32
    %650 = arith.addi %c11_i32, %c1_i32_169 : i32
    %651 = arith.index_cast %650 : i32 to index
    %c0_170 = arith.constant 0 : index
    %c0_171 = arith.constant 0 : index
    %652 = vector.load %arg9[%651, %c0_170, %c0_171] : memref<16x16x384xf32, #tpu.memory_space<vmem>>, vector<1x16x384xf32>
    %653 = vector.shape_cast %652 : vector<1x16x384xf32> to vector<16x384xf32>
    %654 = vector.extract_strided_slice %653 {offsets = [0, 0], sizes = [14, 384], strides = [1, 1]} : vector<16x384xf32> to vector<14x384xf32>
    %655 = vector.broadcast %44 : vector<1x384xf32> to vector<14x384xf32>
    %656 = arith.mulf %654, %655 : vector<14x384xf32>
    %657 = arith.addf %649, %656 : vector<14x384xf32>
    %658 = vector.extract_strided_slice %653 {offsets = [1, 0], sizes = [14, 384], strides = [1, 1]} : vector<16x384xf32> to vector<14x384xf32>
    %659 = vector.broadcast %45 : vector<1x384xf32> to vector<14x384xf32>
    %660 = arith.mulf %658, %659 : vector<14x384xf32>
    %661 = arith.addf %657, %660 : vector<14x384xf32>
    %662 = vector.extract_strided_slice %653 {offsets = [2, 0], sizes = [14, 384], strides = [1, 1]} : vector<16x384xf32> to vector<14x384xf32>
    %663 = vector.broadcast %46 : vector<1x384xf32> to vector<14x384xf32>
    %664 = arith.mulf %662, %663 : vector<14x384xf32>
    %665 = arith.addf %661, %664 : vector<14x384xf32>
    %c2_i32_172 = arith.constant 2 : i32
    %666 = arith.addi %c11_i32, %c2_i32_172 : i32
    %667 = arith.index_cast %666 : i32 to index
    %c0_173 = arith.constant 0 : index
    %c0_174 = arith.constant 0 : index
    %668 = vector.load %arg9[%667, %c0_173, %c0_174] : memref<16x16x384xf32, #tpu.memory_space<vmem>>, vector<1x16x384xf32>
    %669 = vector.shape_cast %668 : vector<1x16x384xf32> to vector<16x384xf32>
    %670 = vector.extract_strided_slice %669 {offsets = [0, 0], sizes = [14, 384], strides = [1, 1]} : vector<16x384xf32> to vector<14x384xf32>
    %671 = vector.broadcast %47 : vector<1x384xf32> to vector<14x384xf32>
    %672 = arith.mulf %670, %671 : vector<14x384xf32>
    %673 = arith.addf %665, %672 : vector<14x384xf32>
    %674 = vector.extract_strided_slice %669 {offsets = [1, 0], sizes = [14, 384], strides = [1, 1]} : vector<16x384xf32> to vector<14x384xf32>
    %675 = vector.broadcast %48 : vector<1x384xf32> to vector<14x384xf32>
    %676 = arith.mulf %674, %675 : vector<14x384xf32>
    %677 = arith.addf %673, %676 : vector<14x384xf32>
    %678 = vector.extract_strided_slice %669 {offsets = [2, 0], sizes = [14, 384], strides = [1, 1]} : vector<16x384xf32> to vector<14x384xf32>
    %679 = vector.broadcast %49 : vector<1x384xf32> to vector<14x384xf32>
    %680 = arith.mulf %678, %679 : vector<14x384xf32>
    %681 = arith.addf %677, %680 : vector<14x384xf32>
    %682 = arith.index_cast %c11_i32 : i32 to index
    %c0_175 = arith.constant 0 : index
    %c0_176 = arith.constant 0 : index
    %683 = vector.load %arg8[%682, %c0_175, %c0_176] : memref<14x14x384xf32, #tpu.memory_space<vmem>>, vector<1x14x384xf32>
    %684 = vector.shape_cast %683 : vector<1x14x384xf32> to vector<14x384xf32>
    %685 = vector.shape_cast %681 : vector<14x384xf32> to vector<1x14x384xf32>
    tpu.vector_store %arg8[%682, %c0_175, %c0_176], %685 {strides = array<i32>} : memref<14x14x384xf32, #tpu.memory_space<vmem>>, vector<1x14x384xf32>,
    %c12_i32 = arith.constant 12 : i32
    %cst_177 = arith.constant 0.000000e+00 : f32
    %686 = vector.broadcast %cst_177 : f32 to vector<14x384xf32>
    %c0_i32_178 = arith.constant 0 : i32
    %687 = arith.addi %c12_i32, %c0_i32_178 : i32
    %688 = arith.index_cast %687 : i32 to index
    %c0_179 = arith.constant 0 : index
    %c0_180 = arith.constant 0 : index
    %689 = vector.load %arg9[%688, %c0_179, %c0_180] : memref<16x16x384xf32, #tpu.memory_space<vmem>>, vector<1x16x384xf32>
    %690 = vector.shape_cast %689 : vector<1x16x384xf32> to vector<16x384xf32>
    %691 = vector.extract_strided_slice %690 {offsets = [0, 0], sizes = [14, 384], strides = [1, 1]} : vector<16x384xf32> to vector<14x384xf32>
    %692 = vector.broadcast %41 : vector<1x384xf32> to vector<14x384xf32>
    %693 = arith.mulf %691, %692 : vector<14x384xf32>
    %694 = arith.addf %686, %693 : vector<14x384xf32>
    %695 = vector.extract_strided_slice %690 {offsets = [1, 0], sizes = [14, 384], strides = [1, 1]} : vector<16x384xf32> to vector<14x384xf32>
    %696 = vector.broadcast %42 : vector<1x384xf32> to vector<14x384xf32>
    %697 = arith.mulf %695, %696 : vector<14x384xf32>
    %698 = arith.addf %694, %697 : vector<14x384xf32>
    %699 = vector.extract_strided_slice %690 {offsets = [2, 0], sizes = [14, 384], strides = [1, 1]} : vector<16x384xf32> to vector<14x384xf32>
    %700 = vector.broadcast %43 : vector<1x384xf32> to vector<14x384xf32>
    %701 = arith.mulf %699, %700 : vector<14x384xf32>
    %702 = arith.addf %698, %701 : vector<14x384xf32>
    %c1_i32_181 = arith.constant 1 : i32
    %703 = arith.addi %c12_i32, %c1_i32_181 : i32
    %704 = arith.index_cast %703 : i32 to index
    %c0_182 = arith.constant 0 : index
    %c0_183 = arith.constant 0 : index
    %705 = vector.load %arg9[%704, %c0_182, %c0_183] : memref<16x16x384xf32, #tpu.memory_space<vmem>>, vector<1x16x384xf32>
    %706 = vector.shape_cast %705 : vector<1x16x384xf32> to vector<16x384xf32>
    %707 = vector.extract_strided_slice %706 {offsets = [0, 0], sizes = [14, 384], strides = [1, 1]} : vector<16x384xf32> to vector<14x384xf32>
    %708 = vector.broadcast %44 : vector<1x384xf32> to vector<14x384xf32>
    %709 = arith.mulf %707, %708 : vector<14x384xf32>
    %710 = arith.addf %702, %709 : vector<14x384xf32>
    %711 = vector.extract_strided_slice %706 {offsets = [1, 0], sizes = [14, 384], strides = [1, 1]} : vector<16x384xf32> to vector<14x384xf32>
    %712 = vector.broadcast %45 : vector<1x384xf32> to vector<14x384xf32>
    %713 = arith.mulf %711, %712 : vector<14x384xf32>
    %714 = arith.addf %710, %713 : vector<14x384xf32>
    %715 = vector.extract_strided_slice %706 {offsets = [2, 0], sizes = [14, 384], strides = [1, 1]} : vector<16x384xf32> to vector<14x384xf32>
    %716 = vector.broadcast %46 : vector<1x384xf32> to vector<14x384xf32>
    %717 = arith.mulf %715, %716 : vector<14x384xf32>
    %718 = arith.addf %714, %717 : vector<14x384xf32>
    %c2_i32_184 = arith.constant 2 : i32
    %719 = arith.addi %c12_i32, %c2_i32_184 : i32
    %720 = arith.index_cast %719 : i32 to index
    %c0_185 = arith.constant 0 : index
    %c0_186 = arith.constant 0 : index
    %721 = vector.load %arg9[%720, %c0_185, %c0_186] : memref<16x16x384xf32, #tpu.memory_space<vmem>>, vector<1x16x384xf32>
    %722 = vector.shape_cast %721 : vector<1x16x384xf32> to vector<16x384xf32>
    %723 = vector.extract_strided_slice %722 {offsets = [0, 0], sizes = [14, 384], strides = [1, 1]} : vector<16x384xf32> to vector<14x384xf32>
    %724 = vector.broadcast %47 : vector<1x384xf32> to vector<14x384xf32>
    %725 = arith.mulf %723, %724 : vector<14x384xf32>
    %726 = arith.addf %718, %725 : vector<14x384xf32>
    %727 = vector.extract_strided_slice %722 {offsets = [1, 0], sizes = [14, 384], strides = [1, 1]} : vector<16x384xf32> to vector<14x384xf32>
    %728 = vector.broadcast %48 : vector<1x384xf32> to vector<14x384xf32>
    %729 = arith.mulf %727, %728 : vector<14x384xf32>
    %730 = arith.addf %726, %729 : vector<14x384xf32>
    %731 = vector.extract_strided_slice %722 {offsets = [2, 0], sizes = [14, 384], strides = [1, 1]} : vector<16x384xf32> to vector<14x384xf32>
    %732 = vector.broadcast %49 : vector<1x384xf32> to vector<14x384xf32>
    %733 = arith.mulf %731, %732 : vector<14x384xf32>
    %734 = arith.addf %730, %733 : vector<14x384xf32>
    %735 = arith.index_cast %c12_i32 : i32 to index
    %c0_187 = arith.constant 0 : index
    %c0_188 = arith.constant 0 : index
    %736 = vector.load %arg8[%735, %c0_187, %c0_188] : memref<14x14x384xf32, #tpu.memory_space<vmem>>, vector<1x14x384xf32>
    %737 = vector.shape_cast %736 : vector<1x14x384xf32> to vector<14x384xf32>
    %738 = vector.shape_cast %734 : vector<14x384xf32> to vector<1x14x384xf32>
    tpu.vector_store %arg8[%735, %c0_187, %c0_188], %738 {strides = array<i32>} : memref<14x14x384xf32, #tpu.memory_space<vmem>>, vector<1x14x384xf32>,
    %c13_i32 = arith.constant 13 : i32
    %cst_189 = arith.constant 0.000000e+00 : f32
    %739 = vector.broadcast %cst_189 : f32 to vector<14x384xf32>
    %c0_i32_190 = arith.constant 0 : i32
    %740 = arith.addi %c13_i32, %c0_i32_190 : i32
    %741 = arith.index_cast %740 : i32 to index
    %c0_191 = arith.constant 0 : index
    %c0_192 = arith.constant 0 : index
    %742 = vector.load %arg9[%741, %c0_191, %c0_192] : memref<16x16x384xf32, #tpu.memory_space<vmem>>, vector<1x16x384xf32>
    %743 = vector.shape_cast %742 : vector<1x16x384xf32> to vector<16x384xf32>
    %744 = vector.extract_strided_slice %743 {offsets = [0, 0], sizes = [14, 384], strides = [1, 1]} : vector<16x384xf32> to vector<14x384xf32>
    %745 = vector.broadcast %41 : vector<1x384xf32> to vector<14x384xf32>
    %746 = arith.mulf %744, %745 : vector<14x384xf32>
    %747 = arith.addf %739, %746 : vector<14x384xf32>
    %748 = vector.extract_strided_slice %743 {offsets = [1, 0], sizes = [14, 384], strides = [1, 1]} : vector<16x384xf32> to vector<14x384xf32>
    %749 = vector.broadcast %42 : vector<1x384xf32> to vector<14x384xf32>
    %750 = arith.mulf %748, %749 : vector<14x384xf32>
    %751 = arith.addf %747, %750 : vector<14x384xf32>
    %752 = vector.extract_strided_slice %743 {offsets = [2, 0], sizes = [14, 384], strides = [1, 1]} : vector<16x384xf32> to vector<14x384xf32>
    %753 = vector.broadcast %43 : vector<1x384xf32> to vector<14x384xf32>
    %754 = arith.mulf %752, %753 : vector<14x384xf32>
    %755 = arith.addf %751, %754 : vector<14x384xf32>
    %c1_i32_193 = arith.constant 1 : i32
    %756 = arith.addi %c13_i32, %c1_i32_193 : i32
    %757 = arith.index_cast %756 : i32 to index
    %c0_194 = arith.constant 0 : index
    %c0_195 = arith.constant 0 : index
    %758 = vector.load %arg9[%757, %c0_194, %c0_195] : memref<16x16x384xf32, #tpu.memory_space<vmem>>, vector<1x16x384xf32>
    %759 = vector.shape_cast %758 : vector<1x16x384xf32> to vector<16x384xf32>
    %760 = vector.extract_strided_slice %759 {offsets = [0, 0], sizes = [14, 384], strides = [1, 1]} : vector<16x384xf32> to vector<14x384xf32>
    %761 = vector.broadcast %44 : vector<1x384xf32> to vector<14x384xf32>
    %762 = arith.mulf %760, %761 : vector<14x384xf32>
    %763 = arith.addf %755, %762 : vector<14x384xf32>
    %764 = vector.extract_strided_slice %759 {offsets = [1, 0], sizes = [14, 384], strides = [1, 1]} : vector<16x384xf32> to vector<14x384xf32>
    %765 = vector.broadcast %45 : vector<1x384xf32> to vector<14x384xf32>
    %766 = arith.mulf %764, %765 : vector<14x384xf32>
    %767 = arith.addf %763, %766 : vector<14x384xf32>
    %768 = vector.extract_strided_slice %759 {offsets = [2, 0], sizes = [14, 384], strides = [1, 1]} : vector<16x384xf32> to vector<14x384xf32>
    %769 = vector.broadcast %46 : vector<1x384xf32> to vector<14x384xf32>
    %770 = arith.mulf %768, %769 : vector<14x384xf32>
    %771 = arith.addf %767, %770 : vector<14x384xf32>
    %c2_i32_196 = arith.constant 2 : i32
    %772 = arith.addi %c13_i32, %c2_i32_196 : i32
    %773 = arith.index_cast %772 : i32 to index
    %c0_197 = arith.constant 0 : index
    %c0_198 = arith.constant 0 : index
    %774 = vector.load %arg9[%773, %c0_197, %c0_198] : memref<16x16x384xf32, #tpu.memory_space<vmem>>, vector<1x16x384xf32>
    %775 = vector.shape_cast %774 : vector<1x16x384xf32> to vector<16x384xf32>
    %776 = vector.extract_strided_slice %775 {offsets = [0, 0], sizes = [14, 384], strides = [1, 1]} : vector<16x384xf32> to vector<14x384xf32>
    %777 = vector.broadcast %47 : vector<1x384xf32> to vector<14x384xf32>
    %778 = arith.mulf %776, %777 : vector<14x384xf32>
    %779 = arith.addf %771, %778 : vector<14x384xf32>
    %780 = vector.extract_strided_slice %775 {offsets = [1, 0], sizes = [14, 384], strides = [1, 1]} : vector<16x384xf32> to vector<14x384xf32>
    %781 = vector.broadcast %48 : vector<1x384xf32> to vector<14x384xf32>
    %782 = arith.mulf %780, %781 : vector<14x384xf32>
    %783 = arith.addf %779, %782 : vector<14x384xf32>
    %784 = vector.extract_strided_slice %775 {offsets = [2, 0], sizes = [14, 384], strides = [1, 1]} : vector<16x384xf32> to vector<14x384xf32>
    %785 = vector.broadcast %49 : vector<1x384xf32> to vector<14x384xf32>
    %786 = arith.mulf %784, %785 : vector<14x384xf32>
    %787 = arith.addf %783, %786 : vector<14x384xf32>
    %788 = arith.index_cast %c13_i32 : i32 to index
    %c0_199 = arith.constant 0 : index
    %c0_200 = arith.constant 0 : index
    %789 = vector.load %arg8[%788, %c0_199, %c0_200] : memref<14x14x384xf32, #tpu.memory_space<vmem>>, vector<1x14x384xf32>
    %790 = vector.shape_cast %789 : vector<1x14x384xf32> to vector<14x384xf32>
    %791 = vector.shape_cast %787 : vector<14x384xf32> to vector<1x14x384xf32>
    tpu.vector_store %arg8[%788, %c0_199, %c0_200], %791 {strides = array<i32>} : memref<14x14x384xf32, #tpu.memory_space<vmem>>, vector<1x14x384xf32>,
    %c14_i32 = arith.constant 14 : i32
    %cst_201 = arith.constant 0.000000e+00 : f32
    %792 = vector.broadcast %cst_201 : f32 to vector<14x384xf32>
    %cst_202 = arith.constant 0.000000e+00 : f32
    %793 = vector.broadcast %cst_202 : f32 to vector<14x384xf32>
    %c0_i32_203 = arith.constant 0 : i32
    %794 = arith.index_cast %c0_i32_203 : i32 to index
    %c0_204 = arith.constant 0 : index
    %c0_205 = arith.constant 0 : index
    %795 = vector.load %arg8[%794, %c0_204, %c0_205] : memref<14x14x384xf32, #tpu.memory_space<vmem>>, vector<1x14x384xf32>
    %796 = vector.shape_cast %795 : vector<1x14x384xf32> to vector<14x384xf32>
    %797 = arith.addf %792, %796 : vector<14x384xf32>
    %798 = arith.mulf %796, %796 : vector<14x384xf32>
    %799 = arith.addf %793, %798 : vector<14x384xf32>
    %c1_i32_206 = arith.constant 1 : i32
    %800 = arith.index_cast %c1_i32_206 : i32 to index
    %c0_207 = arith.constant 0 : index
    %c0_208 = arith.constant 0 : index
    %801 = vector.load %arg8[%800, %c0_207, %c0_208] : memref<14x14x384xf32, #tpu.memory_space<vmem>>, vector<1x14x384xf32>
    %802 = vector.shape_cast %801 : vector<1x14x384xf32> to vector<14x384xf32>
    %803 = arith.addf %797, %802 : vector<14x384xf32>
    %804 = arith.mulf %802, %802 : vector<14x384xf32>
    %805 = arith.addf %799, %804 : vector<14x384xf32>
    %c2_i32_209 = arith.constant 2 : i32
    %806 = arith.index_cast %c2_i32_209 : i32 to index
    %c0_210 = arith.constant 0 : index
    %c0_211 = arith.constant 0 : index
    %807 = vector.load %arg8[%806, %c0_210, %c0_211] : memref<14x14x384xf32, #tpu.memory_space<vmem>>, vector<1x14x384xf32>
    %808 = vector.shape_cast %807 : vector<1x14x384xf32> to vector<14x384xf32>
    %809 = arith.addf %803, %808 : vector<14x384xf32>
    %810 = arith.mulf %808, %808 : vector<14x384xf32>
    %811 = arith.addf %805, %810 : vector<14x384xf32>
    %c3_i32_212 = arith.constant 3 : i32
    %812 = arith.index_cast %c3_i32_212 : i32 to index
    %c0_213 = arith.constant 0 : index
    %c0_214 = arith.constant 0 : index
    %813 = vector.load %arg8[%812, %c0_213, %c0_214] : memref<14x14x384xf32, #tpu.memory_space<vmem>>, vector<1x14x384xf32>
    %814 = vector.shape_cast %813 : vector<1x14x384xf32> to vector<14x384xf32>
    %815 = arith.addf %809, %814 : vector<14x384xf32>
    %816 = arith.mulf %814, %814 : vector<14x384xf32>
    %817 = arith.addf %811, %816 : vector<14x384xf32>
    %c4_i32_215 = arith.constant 4 : i32
    %818 = arith.index_cast %c4_i32_215 : i32 to index
    %c0_216 = arith.constant 0 : index
    %c0_217 = arith.constant 0 : index
    %819 = vector.load %arg8[%818, %c0_216, %c0_217] : memref<14x14x384xf32, #tpu.memory_space<vmem>>, vector<1x14x384xf32>
    %820 = vector.shape_cast %819 : vector<1x14x384xf32> to vector<14x384xf32>
    %821 = arith.addf %815, %820 : vector<14x384xf32>
    %822 = arith.mulf %820, %820 : vector<14x384xf32>
    %823 = arith.addf %817, %822 : vector<14x384xf32>
    %c5_i32_218 = arith.constant 5 : i32
    %824 = arith.index_cast %c5_i32_218 : i32 to index
    %c0_219 = arith.constant 0 : index
    %c0_220 = arith.constant 0 : index
    %825 = vector.load %arg8[%824, %c0_219, %c0_220] : memref<14x14x384xf32, #tpu.memory_space<vmem>>, vector<1x14x384xf32>
    %826 = vector.shape_cast %825 : vector<1x14x384xf32> to vector<14x384xf32>
    %827 = arith.addf %821, %826 : vector<14x384xf32>
    %828 = arith.mulf %826, %826 : vector<14x384xf32>
    %829 = arith.addf %823, %828 : vector<14x384xf32>
    %c6_i32_221 = arith.constant 6 : i32
    %830 = arith.index_cast %c6_i32_221 : i32 to index
    %c0_222 = arith.constant 0 : index
    %c0_223 = arith.constant 0 : index
    %831 = vector.load %arg8[%830, %c0_222, %c0_223] : memref<14x14x384xf32, #tpu.memory_space<vmem>>, vector<1x14x384xf32>
    %832 = vector.shape_cast %831 : vector<1x14x384xf32> to vector<14x384xf32>
    %833 = arith.addf %827, %832 : vector<14x384xf32>
    %834 = arith.mulf %832, %832 : vector<14x384xf32>
    %835 = arith.addf %829, %834 : vector<14x384xf32>
    %c7_i32_224 = arith.constant 7 : i32
    %836 = arith.index_cast %c7_i32_224 : i32 to index
    %c0_225 = arith.constant 0 : index
    %c0_226 = arith.constant 0 : index
    %837 = vector.load %arg8[%836, %c0_225, %c0_226] : memref<14x14x384xf32, #tpu.memory_space<vmem>>, vector<1x14x384xf32>
    %838 = vector.shape_cast %837 : vector<1x14x384xf32> to vector<14x384xf32>
    %839 = arith.addf %833, %838 : vector<14x384xf32>
    %840 = arith.mulf %838, %838 : vector<14x384xf32>
    %841 = arith.addf %835, %840 : vector<14x384xf32>
    %c8_i32_227 = arith.constant 8 : i32
    %842 = arith.index_cast %c8_i32_227 : i32 to index
    %c0_228 = arith.constant 0 : index
    %c0_229 = arith.constant 0 : index
    %843 = vector.load %arg8[%842, %c0_228, %c0_229] : memref<14x14x384xf32, #tpu.memory_space<vmem>>, vector<1x14x384xf32>
    %844 = vector.shape_cast %843 : vector<1x14x384xf32> to vector<14x384xf32>
    %845 = arith.addf %839, %844 : vector<14x384xf32>
    %846 = arith.mulf %844, %844 : vector<14x384xf32>
    %847 = arith.addf %841, %846 : vector<14x384xf32>
    %c9_i32_230 = arith.constant 9 : i32
    %848 = arith.index_cast %c9_i32_230 : i32 to index
    %c0_231 = arith.constant 0 : index
    %c0_232 = arith.constant 0 : index
    %849 = vector.load %arg8[%848, %c0_231, %c0_232] : memref<14x14x384xf32, #tpu.memory_space<vmem>>, vector<1x14x384xf32>
    %850 = vector.shape_cast %849 : vector<1x14x384xf32> to vector<14x384xf32>
    %851 = arith.addf %845, %850 : vector<14x384xf32>
    %852 = arith.mulf %850, %850 : vector<14x384xf32>
    %853 = arith.addf %847, %852 : vector<14x384xf32>
    %c10_i32_233 = arith.constant 10 : i32
    %854 = arith.index_cast %c10_i32_233 : i32 to index
    %c0_234 = arith.constant 0 : index
    %c0_235 = arith.constant 0 : index
    %855 = vector.load %arg8[%854, %c0_234, %c0_235] : memref<14x14x384xf32, #tpu.memory_space<vmem>>, vector<1x14x384xf32>
    %856 = vector.shape_cast %855 : vector<1x14x384xf32> to vector<14x384xf32>
    %857 = arith.addf %851, %856 : vector<14x384xf32>
    %858 = arith.mulf %856, %856 : vector<14x384xf32>
    %859 = arith.addf %853, %858 : vector<14x384xf32>
    %c11_i32_236 = arith.constant 11 : i32
    %860 = arith.index_cast %c11_i32_236 : i32 to index
    %c0_237 = arith.constant 0 : index
    %c0_238 = arith.constant 0 : index
    %861 = vector.load %arg8[%860, %c0_237, %c0_238] : memref<14x14x384xf32, #tpu.memory_space<vmem>>, vector<1x14x384xf32>
    %862 = vector.shape_cast %861 : vector<1x14x384xf32> to vector<14x384xf32>
    %863 = arith.addf %857, %862 : vector<14x384xf32>
    %864 = arith.mulf %862, %862 : vector<14x384xf32>
    %865 = arith.addf %859, %864 : vector<14x384xf32>
    %c12_i32_239 = arith.constant 12 : i32
    %866 = arith.index_cast %c12_i32_239 : i32 to index
    %c0_240 = arith.constant 0 : index
    %c0_241 = arith.constant 0 : index
    %867 = vector.load %arg8[%866, %c0_240, %c0_241] : memref<14x14x384xf32, #tpu.memory_space<vmem>>, vector<1x14x384xf32>
    %868 = vector.shape_cast %867 : vector<1x14x384xf32> to vector<14x384xf32>
    %869 = arith.addf %863, %868 : vector<14x384xf32>
    %870 = arith.mulf %868, %868 : vector<14x384xf32>
    %871 = arith.addf %865, %870 : vector<14x384xf32>
    %c13_i32_242 = arith.constant 13 : i32
    %872 = arith.index_cast %c13_i32_242 : i32 to index
    %c0_243 = arith.constant 0 : index
    %c0_244 = arith.constant 0 : index
    %873 = vector.load %arg8[%872, %c0_243, %c0_244] : memref<14x14x384xf32, #tpu.memory_space<vmem>>, vector<1x14x384xf32>
    %874 = vector.shape_cast %873 : vector<1x14x384xf32> to vector<14x384xf32>
    %875 = arith.addf %869, %874 : vector<14x384xf32>
    %876 = arith.mulf %874, %874 : vector<14x384xf32>
    %877 = arith.addf %871, %876 : vector<14x384xf32>
    %c14_i32_245 = arith.constant 14 : i32
    %cst_246 = arith.constant dense<0.000000e+00> : vector<384xf32>
    %878 = vector.multi_reduction <add>, %875, %cst_246 [0] : vector<14x384xf32> to vector<384xf32>
    %879 = vector.shape_cast %878 : vector<384xf32> to vector<1x384xf32>
    %cst_247 = arith.constant dense<0.000000e+00> : vector<384xf32>
    %880 = vector.multi_reduction <add>, %877, %cst_247 [0] : vector<14x384xf32> to vector<384xf32>
    %881 = vector.shape_cast %880 : vector<384xf32> to vector<1x384xf32>
    %cst_248 = arith.constant 0.00510204071 : f32
    %882 = vector.broadcast %cst_248 : f32 to vector<1x384xf32>
    %883 = arith.mulf %879, %882 : vector<1x384xf32>
    %cst_249 = arith.constant 0.00510204071 : f32
    %884 = vector.broadcast %cst_249 : f32 to vector<1x384xf32>
    %885 = arith.mulf %881, %884 : vector<1x384xf32>
    %886 = arith.mulf %883, %883 : vector<1x384xf32>
    %887 = arith.subf %885, %886 : vector<1x384xf32>
    %c0_250 = arith.constant 0 : index
    %c0_251 = arith.constant 0 : index
    %888 = vector.load %arg6[%c0_250, %c0_251] : memref<1x384xf32, #tpu.memory_space<vmem>>, vector<1x384xf32>
    %cst_252 = arith.constant 9.99999974E-6 : f32
    %889 = vector.broadcast %cst_252 : f32 to vector<1x384xf32>
    %890 = arith.addf %887, %889 : vector<1x384xf32>
    %891 = math.rsqrt %890 : vector<1x384xf32>
    %892 = arith.mulf %888, %891 : vector<1x384xf32>
    %c0_253 = arith.constant 0 : index
    %c0_254 = arith.constant 0 : index
    %893 = vector.load %arg7[%c0_253, %c0_254] : memref<1x384xf32, #tpu.memory_space<vmem>>, vector<1x384xf32>
    %894 = arith.mulf %883, %892 : vector<1x384xf32>
    %895 = arith.subf %893, %894 : vector<1x384xf32>
    %c0_255 = arith.constant 0 : index
    %c0_256 = arith.constant 0 : index
    %c0_257 = arith.constant 0 : index
    %896 = vector.load %arg8[%c0_255, %c0_256, %c0_257] : memref<14x14x384xf32, #tpu.memory_space<vmem>>, vector<14x14x384xf32>
    %897 = vector.shape_cast %892 : vector<1x384xf32> to vector<1x1x384xf32>
    %898 = vector.broadcast %897 : vector<1x1x384xf32> to vector<14x14x384xf32>
    %899 = arith.mulf %896, %898 : vector<14x14x384xf32>
    %900 = vector.shape_cast %895 : vector<1x384xf32> to vector<1x1x384xf32>
    %901 = vector.broadcast %900 : vector<1x1x384xf32> to vector<14x14x384xf32>
    %902 = arith.addf %899, %901 : vector<14x14x384xf32>
    %c0_258 = arith.constant 0 : index
    %c0_259 = arith.constant 0 : index
    %c0_260 = arith.constant 0 : index
    %903 = vector.load %arg8[%c0_258, %c0_259, %c0_260] : memref<14x14x384xf32, #tpu.memory_space<vmem>>, vector<14x14x384xf32>
    tpu.vector_store %arg8[%c0_258, %c0_259, %c0_260], %902 {strides = array<i32>} : memref<14x14x384xf32, #tpu.memory_space<vmem>>, vector<14x14x384xf32>,
    return
  }
  func.func @transform_0(%arg0: i32) -> (i32, i32) {
    %c0_i32 = arith.constant 0 : i32
    %c0_i32_0 = arith.constant 0 : i32
    %c0_i32_1 = arith.constant 0 : i32
    return %c0_i32, %c0_i32_0 : i32, i32
  }
  func.func @transform_1(%arg0: i32) -> (i32, i32) {
    %c0_i32 = arith.constant 0 : i32
    %c0_i32_0 = arith.constant 0 : i32
    return %c0_i32, %arg0 : i32, i32
  }
  func.func @transform_2(%arg0: i32) -> (i32, i32) {
    %c0_i32 = arith.constant 0 : i32
    %c0_i32_0 = arith.constant 0 : i32
    return %c0_i32, %arg0 : i32, i32
  }
  func.func @transform_3(%arg0: i32) -> (i32, i32) {
    %c0_i32 = arith.constant 0 : i32
    %c0_i32_0 = arith.constant 0 : i32
    return %c0_i32, %arg0 : i32, i32
  }
  func.func @transform_4(%arg0: i32) -> (i32, i32) {
    %c0_i32 = arith.constant 0 : i32
    %c0_i32_0 = arith.constant 0 : i32
    return %c0_i32, %arg0 : i32, i32
  }
  func.func @transform_5(%arg0: i32) -> (i32, i32) {
    %c0_i32 = arith.constant 0 : i32
    %c0_i32_0 = arith.constant 0 : i32
    return %c0_i32, %arg0 : i32, i32
  }
  func.func @transform_6(%arg0: i32) -> (i32, i32) {
    %c0_i32 = arith.constant 0 : i32
    %c0_i32_0 = arith.constant 0 : i32
    return %c0_i32, %arg0 : i32, i32
  }
  func.func @transform_7(%arg0: i32) -> (i32, i32, i32) {
    %c0_i32 = arith.constant 0 : i32
    %c0_i32_0 = arith.constant 0 : i32
    %c0_i32_1 = arith.constant 0 : i32
    return %c0_i32, %c0_i32_0, %arg0 : i32, i32, i32
  }
}

</mosaic_0001>

<llo_original>
// kernel: tpu_custom_call.1
$region0: #{tpu_custom_call.1}
  #allocation0 [shape = 'u32[]', space=smem, size = 0x4, offset = 0x4, fixed_abs, tag = 'smem constant byte address 0x4 - core index']
  #allocation1 [shape = 'u32[72,128]{1,0:T(1,128)}', space=vmem, size = 0x9000, scoped, tag = 'internal scratch']
  #allocation2 [shape = 'f32[16,16,384]{2,1,0:T(8,128)}', space=vmem, size = 0x60000, scoped, tag = 'scratch operand']
  %s0 = inlined_call_operand.vmem [shape: f32[196,96], index: 0, kind: input, shape index: {}]
  %s1 = inlined_call_operand.hbm [shape: f32[96,768], index: 1, kind: input, shape index: {}]
  %s2 = inlined_call_operand.vmem [shape: f32[1,768], index: 2, kind: input, shape index: {}]
  %s3 = inlined_call_operand.vmem [shape: f32[1,768], index: 3, kind: input, shape index: {}]
  %s4 = inlined_call_operand.vmem [shape: f32[9,768], index: 4, kind: input, shape index: {}]
  %s5 = inlined_call_operand.vmem [shape: f32[1,768], index: 5, kind: input, shape index: {}]
  %s6 = inlined_call_operand.vmem [shape: f32[1,768], index: 6, kind: input, shape index: {}]
  %s7 = inlined_call_operand.hbm [shape: f32[14,14,768], index: 7, kind: output, shape index: {}]
  %s8 = sld [smem:[#allocation0]]
  $region88: #{tpu_custom_call.1} parent=0
    _
  %s10 = ssub.s32 1, %s8
  %s11 = scalar_select 0, %s10, %s8
  $region1: #{tpu_custom_call.1} parent=0
    #allocation3 [shape = 'u8[294912]{0}', space=vmem, size = 0x48000, scoped, tag = 'input window, operand 1']
    #allocation4 [shape = 's32[2]{0}', space=sflag, size = 0x8, scoped, tag = 'scoped memory for tpu_custom_call.1']
    #allocation5 [shape = 's32[2]{0}', space=sflag, size = 0x8, scoped, tag = 'scoped memory for tpu_custom_call.1']
    #allocation6 [shape = 'u8[49152]{0}', space=vmem, size = 0xc000, scoped, tag = 'input window, operand 4']
    #allocation7 [shape = 'u8[688128]{0}', space=vmem, size = 0xa8000, scoped, tag = 'output window, operand 0']
    %12 = vsyncpa [#allocation4], 0
    %s13 = scalar_lea.sflag [#allocation4], 1
    %14 = vsyncpa %s13, 0
    %15 = vsyncpa [#allocation5], 0
    %s16 = scalar_lea.sflag [#allocation5], 1
    %17 = vsyncpa %s16, 0
    loop: start=0, step=1, limit=4
    $region2: #{tpu_custom_call.1} parent=1 // loop_pre_header
      _
    $region3: #{tpu_custom_call.1} parent=1 // loop_header
      %s19 = sphi 0, %s23
      %p20 = scmp.ge.s32.totalorder %s19, 4
      %s27 = sphi 0, %s27
      %s29 = sphi 0, %s27
      %s30 = sphi 0, %s29
      %s44 = sphi 0, %s30
      %s50 = sphi 0, %s52
      %s53 = sphi 0, %s50
      %s54 = sphi 0, %s53
      %s70 = sphi 0, %s54
      %s76 = sphi 0, %s78
      %s79 = sphi 0, %s76
      %s80 = sphi 0, %s79
      %s96 = sphi 0, %s80
      %s102 = sphi 0, %s104
      %s105 = sphi 0, %s102
      %s106 = sphi 0, %s105
      %s122 = sphi 0, %s106
      %s128 = sphi 0, %s130
      %s131 = sphi 0, %s128
      %s132 = sphi 0, %s131
      %s148 = sphi 0, %s132
      %s154 = sphi 0, %s156
      %s157 = sphi 0, %s154
      %s158 = sphi 0, %s157
      %s174 = sphi 0, %s158
      %s180 = sphi 0, %s182
      %s183 = sphi 0, %s180
      %s184 = sphi 0, %s183
      %s200 = sphi 0, %s184
      %s206 = sphi 0, %s208
      %s209 = sphi 0, %s206
      %s210 = sphi 0, %s209
      %s226 = sphi 0, %s210
    $region4: #{tpu_custom_call.1} parent=1 // loop_header_branch
      %22 = sbr.rel (%p20) target = $region8
    $region5: #{tpu_custom_call.1} parent=1 // loop_body
      %s24 = ssub.s32 %s19, 1
      %s25 = ssub.s32 %s19, 2
      %s26 = sadd.s32 %s19, 1
      %s28 = sadd.s32 %s27, 1
      %p31 = scmp.eq.s32.totalorder %s19, 1
      %p32 = scmp.ne.s32.totalorder %s27, %s29
      %p33 = scmp.eq.s32.totalorder %s19, 0
      %p34 = por %p32, %p33
      %p35 = scmp.ne.s32.totalorder %s27, %s29
      %p36 = scmp.eq.s32.totalorder %s24, 1
      %p37 = por %p35, %p36
      %p38 = scmp.ne.s32.totalorder %s29, %s30
      %p39 = scmp.eq.s32.totalorder %s24, 0
      %p40 = por %p38, %p39
      %p41 = scmp.ne.s32.totalorder %s29, %s30
      %p42 = scmp.eq.s32.totalorder %s25, 1
      %p43 = por %p41, %p42
      %p45 = scmp.ne.s32.totalorder %s30, %s44
      %p46 = scmp.eq.s32.totalorder %s25, 0
      %p47 = por %p45, %p46
      %s48 = ssub.s32 %s19, %s26
      %p49 = scmp.eq.s32.totalorder %s48, 0
      %s51 = sadd.s32 %s50, 1
      %s52 = scalar_select %p49, %s50, %s51
      %p55 = pneg %p49
      %p56 = scmp.eq.s32.totalorder %s19, 1
      %p57 = por %p55, %p56
      %p58 = scmp.ne.s32.totalorder %s50, %s53
      %p59 = scmp.eq.s32.totalorder %s19, 0
      %p60 = por %p58, %p59
      %p61 = scmp.ne.s32.totalorder %s50, %s53
      %p62 = scmp.eq.s32.totalorder %s24, 1
      %p63 = por %p61, %p62
      %p64 = scmp.ne.s32.totalorder %s53, %s54
      %p65 = scmp.eq.s32.totalorder %s24, 0
      %p66 = por %p64, %p65
      %p67 = scmp.ne.s32.totalorder %s53, %s54
      %p68 = scmp.eq.s32.totalorder %s25, 1
      %p69 = por %p67, %p68
      %p71 = scmp.ne.s32.totalorder %s54, %s70
      %p72 = scmp.eq.s32.totalorder %s25, 0
      %p73 = por %p71, %p72
      %s74 = ssub.s32 %s19, %s26
      %p75 = scmp.eq.s32.totalorder %s74, 0
      %s77 = sadd.s32 %s76, 1
      %s78 = scalar_select %p75, %s76, %s77
      %p81 = pneg %p75
      %p82 = scmp.eq.s32.totalorder %s19, 1
      %p83 = por %p81, %p82
      %p84 = scmp.ne.s32.totalorder %s76, %s79
      %p85 = scmp.eq.s32.totalorder %s19, 0
      %p86 = por %p84, %p85
      %p87 = scmp.ne.s32.totalorder %s76, %s79
      %p88 = scmp.eq.s32.totalorder %s24, 1
      %p89 = por %p87, %p88
      %p90 = scmp.ne.s32.totalorder %s79, %s80
      %p91 = scmp.eq.s32.totalorder %s24, 0
      %p92 = por %p90, %p91
      %p93 = scmp.ne.s32.totalorder %s79, %s80
      %p94 = scmp.eq.s32.totalorder %s25, 1
      %p95 = por %p93, %p94
      %p97 = scmp.ne.s32.totalorder %s80, %s96
      %p98 = scmp.eq.s32.totalorder %s25, 0
      %p99 = por %p97, %p98
      %s100 = ssub.s32 %s19, %s26
      %p101 = scmp.eq.s32.totalorder %s100, 0
      %s103 = sadd.s32 %s102, 1
      %s104 = scalar_select %p101, %s102, %s103
      %p107 = pneg %p101
      %p108 = scmp.eq.s32.totalorder %s19, 1
      %p109 = por %p107, %p108
      %p110 = scmp.ne.s32.totalorder %s102, %s105
      %p111 = scmp.eq.s32.totalorder %s19, 0
      %p112 = por %p110, %p111
      %p113 = scmp.ne.s32.totalorder %s102, %s105
      %p114 = scmp.eq.s32.totalorder %s24, 1
      %p115 = por %p113, %p114
      %p116 = scmp.ne.s32.totalorder %s105, %s106
      %p117 = scmp.eq.s32.totalorder %s24, 0
      %p118 = por %p116, %p117
      %p119 = scmp.ne.s32.totalorder %s105, %s106
      %p120 = scmp.eq.s32.totalorder %s25, 1
      %p121 = por %p119, %p120
      %p123 = scmp.ne.s32.totalorder %s106, %s122
      %p124 = scmp.eq.s32.totalorder %s25, 0
      %p125 = por %p123, %p124
      %s126 = ssub.s32 %s19, %s26
      %p127 = scmp.eq.s32.totalorder %s126, 0
      %s129 = sadd.s32 %s128, 1
      %s130 = scalar_select %p127, %s128, %s129
      %p133 = pneg %p127
      %p134 = scmp.eq.s32.totalorder %s19, 1
      %p135 = por %p133, %p134
      %p136 = scmp.ne.s32.totalorder %s128, %s131
      %p137 = scmp.eq.s32.totalorder %s19, 0
      %p138 = por %p136, %p137
      %p139 = scmp.ne.s32.totalorder %s128, %s131
      %p140 = scmp.eq.s32.totalorder %s24, 1
      %p141 = por %p139, %p140
      %p142 = scmp.ne.s32.totalorder %s131, %s132
      %p143 = scmp.eq.s32.totalorder %s24, 0
      %p144 = por %p142, %p143
      %p145 = scmp.ne.s32.totalorder %s131, %s132
      %p146 = scmp.eq.s32.totalorder %s25, 1
      %p147 = por %p145, %p146
      %p149 = scmp.ne.s32.totalorder %s132, %s148
      %p150 = scmp.eq.s32.totalorder %s25, 0
      %p151 = por %p149, %p150
      %s152 = ssub.s32 %s19, %s26
      %p153 = scmp.eq.s32.totalorder %s152, 0
      %s155 = sadd.s32 %s154, 1
      %s156 = scalar_select %p153, %s154, %s155
      %p159 = pneg %p153
      %p160 = scmp.eq.s32.totalorder %s19, 1
      %p161 = por %p159, %p160
      %p162 = scmp.ne.s32.totalorder %s154, %s157
      %p163 = scmp.eq.s32.totalorder %s19, 0
      %p164 = por %p162, %p163
      %p165 = scmp.ne.s32.totalorder %s154, %s157
      %p166 = scmp.eq.s32.totalorder %s24, 1
      %p167 = por %p165, %p166
      %p168 = scmp.ne.s32.totalorder %s157, %s158
      %p169 = scmp.eq.s32.totalorder %s24, 0
      %p170 = por %p168, %p169
      %p171 = scmp.ne.s32.totalorder %s157, %s158
      %p172 = scmp.eq.s32.totalorder %s25, 1
      %p173 = por %p171, %p172
      %p175 = scmp.ne.s32.totalorder %s158, %s174
      %p176 = scmp.eq.s32.totalorder %s25, 0
      %p177 = por %p175, %p176
      %s178 = ssub.s32 %s19, %s26
      %p179 = scmp.eq.s32.totalorder %s178, 0
      %s181 = sadd.s32 %s180, 1
      %s182 = scalar_select %p179, %s180, %s181
      %p185 = pneg %p179
      %p186 = scmp.eq.s32.totalorder %s19, 1
      %p187 = por %p185, %p186
      %p188 = scmp.ne.s32.totalorder %s180, %s183
      %p189 = scmp.eq.s32.totalorder %s19, 0
      %p190 = por %p188, %p189
      %p191 = scmp.ne.s32.totalorder %s180, %s183
      %p192 = scmp.eq.s32.totalorder %s24, 1
      %p193 = por %p191, %p192
      %p194 = scmp.ne.s32.totalorder %s183, %s184
      %p195 = scmp.eq.s32.totalorder %s24, 0
      %p196 = por %p194, %p195
      %p197 = scmp.ne.s32.totalorder %s183, %s184
      %p198 = scmp.eq.s32.totalorder %s25, 1
      %p199 = por %p197, %p198
      %p201 = scmp.ne.s32.totalorder %s184, %s200
      %p202 = scmp.eq.s32.totalorder %s25, 0
      %p203 = por %p201, %p202
      %s204 = ssub.s32 %s19, %s26
      %p205 = scmp.eq.s32.totalorder %s204, 0
      %s207 = sadd.s32 %s206, 1
      %s208 = scalar_select %p205, %s206, %s207
      %p211 = pneg %p205
      %p212 = scmp.eq.s32.totalorder %s19, 1
      %p213 = por %p211, %p212
      %p214 = scmp.ne.s32.totalorder %s206, %s209
      %p215 = scmp.eq.s32.totalorder %s19, 0
      %p216 = por %p214, %p215
      %p217 = scmp.ne.s32.totalorder %s206, %s209
      %p218 = scmp.eq.s32.totalorder %s24, 1
      %p219 = por %p217, %p218
      %p220 = scmp.ne.s32.totalorder %s209, %s210
      %p221 = scmp.eq.s32.totalorder %s24, 0
      %p222 = por %p220, %p221
      %p223 = scmp.ne.s32.totalorder %s209, %s210
      %p224 = scmp.eq.s32.totalorder %s25, 1
      %p225 = por %p223, %p224
      %p227 = scmp.ne.s32.totalorder %s210, %s226
      %p228 = scmp.eq.s32.totalorder %s25, 0
      %p229 = por %p227, %p228
      %p230 = scmp.le.s32.totalorder 1, %s19
      %p231 = scmp.lt.s32.totalorder %s19, 3
      %p232 = pnand %p230, %p231
      %p233 = pneg %p232
      // Predicated region
      $region9: #{tpu_custom_call.1} parent=5 // pred_check
        _
      $region10: #{tpu_custom_call.1} parent=5 // pred_check_branch
        %235 = sbr.rel (%p232) target = $region12
      $region11: #{tpu_custom_call.1} parent=5 // pred_region
        %s236 = ssub.s32 %s19, 1
        // Predicated region
        $region13: #{tpu_custom_call.1} parent=11 // pred_check
          %p237 = pneg %p40
        $region14: #{tpu_custom_call.1} parent=11 // pred_check_branch
          %239 = sbr.rel (%p237) target = $region16
        $region15: #{tpu_custom_call.1} parent=11 // pred_region
          _
        $region16: #{tpu_custom_call.1} parent=11 // pred_fallthru
          _
      $region12: #{tpu_custom_call.1} parent=5 // pred_fallthru
        _
      %p240 = scmp.lt.s32.totalorder %s19, 2
      // Predicated region
      $region17: #{tpu_custom_call.1} parent=5 // pred_check
        %p241 = pneg %p240
      $region18: #{tpu_custom_call.1} parent=5 // pred_check_branch
        %243 = sbr.rel (%p241) target = $region20
      $region19: #{tpu_custom_call.1} parent=5 // pred_region
        // Predicated region
        $region21: #{tpu_custom_call.1} parent=19 // pred_check
          %p244 = pneg %p60
        $region22: #{tpu_custom_call.1} parent=19 // pred_check_branch
          %246 = sbr.rel (%p244) target = $region24
        $region23: #{tpu_custom_call.1} parent=19 // pred_region
          %s247 = sand.u32 %s50, 1
          %s248 = scalar_lea.sflag [#allocation4], %s247
          %s249 = sand.u32 %s50, 1
          %s250 = smul.addr %s249, 288
          %s251 = scalar_lea.vmem [#allocation3], %s250
          %s252 = smul.u32 3, %s19
          %254 = vsyncadd %s248, 0
          %s255 = smul.addr %s252, 8
          %s256 = scalar_lea.hbm %s1, %s255
          %s257 = sshll.u32 %s256, 4
          %s258 = int_to_ptr.hbm [resolvable:$true] %s257
          %s259 = sshll.u32 %s251, 4
          %s260 = int_to_ptr.vmem [resolvable:$true] %s259
          %265 = dma.hbm_to_vmem [thread:$0]  %s258, 4608, %s260, %s248, 768, 384, 24
        $region24: #{tpu_custom_call.1} parent=19 // pred_fallthru
          _
        // Predicated region
        $region25: #{tpu_custom_call.1} parent=19 // pred_check
          %p266 = pneg %p86
        $region26: #{tpu_custom_call.1} parent=19 // pred_check_branch
          %268 = sbr.rel (%p266) target = $region28
        $region27: #{tpu_custom_call.1} parent=19 // pred_region
          %s269 = smul.u32 3, %s19
          %p270 = scmp.lt.s32.totalorder %s269, 5
          %s271 = scalar_select %p270, %s269, 5
          %s272 = scalar_lea.vmem %s2, %s271
          %s273 = smul.u32 3, %s19
        $region28: #{tpu_custom_call.1} parent=19 // pred_fallthru
          _
        // Predicated region
        $region29: #{tpu_custom_call.1} parent=19 // pred_check
          %p274 = pneg %p112
        $region30: #{tpu_custom_call.1} parent=19 // pred_check_branch
          %276 = sbr.rel (%p274) target = $region32
        $region31: #{tpu_custom_call.1} parent=19 // pred_region
          %s277 = smul.u32 3, %s19
          %p278 = scmp.lt.s32.totalorder %s277, 5
          %s279 = scalar_select %p278, %s277, 5
          %s280 = scalar_lea.vmem %s3, %s279
          %s281 = smul.u32 3, %s19
        $region32: #{tpu_custom_call.1} parent=19 // pred_fallthru
          _
        // Predicated region
        $region33: #{tpu_custom_call.1} parent=19 // pred_check
          %p282 = pneg %p138
        $region34: #{tpu_custom_call.1} parent=19 // pred_check_branch
          %284 = sbr.rel (%p282) target = $region36
        $region35: #{tpu_custom_call.1} parent=19 // pred_region
          %s285 = sand.u32 %s128, 1
          %s286 = sand.u32 %s128, 1
          %s287 = smul.addr %s286, 48
          %s288 = scalar_lea.vmem [#allocation6], %s287
          %s289 = smul.u32 3, %s19
          %s290 = smul.addr %s289, 8
          %s291 = scalar_lea.vmem %s4, %s290
          // Predicated region
          $region37: #{tpu_custom_call.1} parent=35 // pred_check
            _
          $region38: #{tpu_custom_call.1} parent=35 // pred_check_branch
            %293 = sbr.rel (0) target = $region40
          $region39: #{tpu_custom_call.1} parent=35 // pred_region
            // Predicated region
            $region41: #{tpu_custom_call.1} parent=39 // pred_check
              _
            $region42: #{tpu_custom_call.1} parent=39 // pred_check_branch
              %295 = sbr.rel (0) target = $region44
            $region43: #{tpu_custom_call.1} parent=39 // pred_region
              loop: start=0, step=1, limit=1
              $region45: #{tpu_custom_call.1} parent=43 // loop_pre_header
                _
              $region46: #{tpu_custom_call.1} parent=43 // loop_header
                %s297 = sphi 0, %s301
                %p298 = scmp.ge.s32.totalorder %s297, 1
                %s302 = sphi %s291, %s291
                %s303 = sphi %s288, %s288
              $region47: #{tpu_custom_call.1} parent=43 // loop_header_branch
                %300 = sbr.rel (%p298) target = $region51
              $region48: #{tpu_custom_call.1} parent=43 // loop_body
                %v304 = vld [vmem:[%s302] sm:$0xff]
                %305 = vst [vmem:[%s303] sm:$0xff] %v304
                %v306 = vld [vmem:[%s302 + $0x8] sm:$0xff]
                %307 = vst [vmem:[%s303 + $0x8] sm:$0xff] %v306
                %v308 = vld [vmem:[%s302 + $0x10] sm:$0xff]
                %309 = vst [vmem:[%s303 + $0x10] sm:$0xff] %v308
                %v310 = vld [vmem:[%s302 + $0x30] sm:$0xff]
                %311 = vst [vmem:[%s303 + $0x18] sm:$0xff] %v310
                %v312 = vld [vmem:[%s302 + $0x38] sm:$0xff]
                %313 = vst [vmem:[%s303 + $0x20] sm:$0xff] %v312
                %v314 = vld [vmem:[%s302 + $0x40] sm:$0xff]
                %315 = vst [vmem:[%s303 + $0x28] sm:$0xff] %v314
              $region49: #{tpu_custom_call.1} parent=43 // loop_footer
                %s301 = sadd.s32 1, %s297
              $region50: #{tpu_custom_call.1} parent=43 // loop_footer_branch
                %296 = sbr.rel target = $region46
              $region51: #{tpu_custom_call.1} parent=43 // loop_exit
                _
            $region44: #{tpu_custom_call.1} parent=39 // pred_fallthru
              _
            // Predicated region
            $region52: #{tpu_custom_call.1} parent=39 // pred_check
              _
            $region53: #{tpu_custom_call.1} parent=39 // pred_check_branch
              %317 = sbr.rel target = $region55
            $region54: #{tpu_custom_call.1} parent=39 // pred_region
              _
            $region55: #{tpu_custom_call.1} parent=39 // pred_fallthru
              _
          $region40: #{tpu_custom_call.1} parent=35 // pred_fallthru
            _
          %318 = vnop
        $region36: #{tpu_custom_call.1} parent=19 // pred_fallthru
          _
        // Predicated region
        $region56: #{tpu_custom_call.1} parent=19 // pred_check
          %p319 = pneg %p164
        $region57: #{tpu_custom_call.1} parent=19 // pred_check_branch
          %321 = sbr.rel (%p319) target = $region59
        $region58: #{tpu_custom_call.1} parent=19 // pred_region
          %s322 = smul.u32 3, %s19
          %p323 = scmp.lt.s32.totalorder %s322, 5
          %s324 = scalar_select %p323, %s322, 5
          %s325 = scalar_lea.vmem %s5, %s324
          %s326 = smul.u32 3, %s19
        $region59: #{tpu_custom_call.1} parent=19 // pred_fallthru
          _
        // Predicated region
        $region60: #{tpu_custom_call.1} parent=19 // pred_check
          %p327 = pneg %p190
        $region61: #{tpu_custom_call.1} parent=19 // pred_check_branch
          %329 = sbr.rel (%p327) target = $region63
        $region62: #{tpu_custom_call.1} parent=19 // pred_region
          %s330 = smul.u32 3, %s19
          %p331 = scmp.lt.s32.totalorder %s330, 5
          %s332 = scalar_select %p331, %s330, 5
          %s333 = scalar_lea.vmem %s6, %s332
          %s334 = smul.u32 3, %s19
        $region63: #{tpu_custom_call.1} parent=19 // pred_fallthru
          _
      $region20: #{tpu_custom_call.1} parent=5 // pred_fallthru
        _
      %p335 = scmp.le.s32.totalorder 1, %s19
      %p336 = scmp.lt.s32.totalorder %s19, 3
      %p337 = pnand %p335, %p336
      %p338 = pneg %p337
      // Predicated region
      $region64: #{tpu_custom_call.1} parent=5 // pred_check
        _
      $region65: #{tpu_custom_call.1} parent=5 // pred_check_branch
        %340 = sbr.rel (%p337) target = $region67
      $region66: #{tpu_custom_call.1} parent=5 // pred_region
        %s341 = ssub.s32 %s19, 1
        %s342 = sand.u32 %s53, 1
        %s343 = scalar_lea.sflag [#allocation4], %s342
        %s344 = sand.u32 %s53, 1
        %s345 = smul.addr %s344, 288
        %s346 = scalar_lea.vmem [#allocation3], %s345
        // Predicated region
        $region68: #{tpu_custom_call.1} parent=66 // pred_check
          %p347 = pneg %p66
        $region69: #{tpu_custom_call.1} parent=66 // pred_check_branch
          %349 = sbr.rel (%p347) target = $region71
        $region70: #{tpu_custom_call.1} parent=66 // pred_region
          %351 = dma.done %s343, 4608
        $region71: #{tpu_custom_call.1} parent=66 // pred_fallthru
          _
        %s352 = sand.u32 %s131, 1
        %s353 = sand.u32 %s131, 1
        %s354 = smul.addr %s353, 48
        %s355 = scalar_lea.vmem [#allocation6], %s354
        // Predicated region
        $region72: #{tpu_custom_call.1} parent=66 // pred_check
          %p356 = pneg %p144
        $region73: #{tpu_custom_call.1} parent=66 // pred_check_branch
          %358 = sbr.rel (%p356) target = $region75
        $region74: #{tpu_custom_call.1} parent=66 // pred_region
          _
        $region75: #{tpu_custom_call.1} parent=66 // pred_fallthru
          _
        %p359 = pneg %p40
        %p360 = pneg %p37
        %s361 = sand.u32 %s53, 1
        %s362 = scalar_lea.sflag [#allocation4], %s361
        %s363 = sand.u32 %s53, 1
        %s364 = smul.addr %s363, 288
        %s365 = scalar_lea.vmem [#allocation3], %s364
        %p366 = pneg %p66
        %p367 = pneg %p63
        %s368 = smul.u32 3, %s24
        %p369 = scmp.lt.s32.totalorder %s368, 5
        %s370 = scalar_select %p369, %s368, 5
        %s371 = scalar_lea.vmem %s2, %s370
        %p372 = pneg %p92
        %p373 = pneg %p89
        %s374 = smul.u32 3, %s24
        %p375 = scmp.lt.s32.totalorder %s374, 5
        %s376 = scalar_select %p375, %s374, 5
        %s377 = scalar_lea.vmem %s3, %s376
        %p378 = pneg %p118
        %p379 = pneg %p115
        %s380 = sand.u32 %s131, 1
        %s381 = sand.u32 %s131, 1
        %s382 = smul.addr %s381, 48
        %s383 = scalar_lea.vmem [#allocation6], %s382
        %p384 = pneg %p144
        %p385 = pneg %p141
        %s386 = smul.u32 3, %s24
        %p387 = scmp.lt.s32.totalorder %s386, 5
        %s388 = scalar_select %p387, %s386, 5
        %s389 = scalar_lea.vmem %s5, %s388
        %p390 = pneg %p170
        %p391 = pneg %p167
        %s392 = smul.u32 3, %s24
        %p393 = scmp.lt.s32.totalorder %s392, 5
        %s394 = scalar_select %p393, %s392, 5
        %s395 = scalar_lea.vmem %s6, %s394
        %p396 = pneg %p196
        %p397 = pneg %p193
        %p398 = pneg %p222
        %p399 = pneg %p219
        %s400 = sand.u32 %s209, 1
        %s401 = scalar_lea.sflag [#allocation5], %s400
        %s402 = sand.u32 %s209, 1
        %s403 = smul.addr %s402, 672
        %s404 = scalar_lea.vmem [#allocation7], %s403
        %s405 = smul.u32 3, %s24
        %s406 = smul.u32 3, %s24
        %p407 = scmp.lt.s32.totalorder %s406, 5
        %s408 = scalar_select %p407, %s406, 5
        %s409 = scalar_lea.vmem %s2, %s408
        %s410 = smul.u32 3, %s24
        %s411 = smul.u32 3, %s24
        %p412 = scmp.lt.s32.totalorder %s411, 5
        %s413 = scalar_select %p412, %s411, 5
        %s414 = scalar_lea.vmem %s3, %s413
        %s415 = smul.u32 3, %s24
        %s416 = smul.u32 3, %s24
        %s417 = smul.u32 3, %s24
        %p418 = scmp.lt.s32.totalorder %s417, 5
        %s419 = scalar_select %p418, %s417, 5
        %s420 = scalar_lea.vmem %s5, %s419
        %s421 = smul.u32 3, %s24
        %s422 = smul.u32 3, %s24
        %p423 = scmp.lt.s32.totalorder %s422, 5
        %s424 = scalar_select %p423, %s422, 5
        %s425 = scalar_lea.vmem %s6, %s424
        %s426 = smul.u32 3, %s24
        %s427 = smul.u32 3, %s24
        %v428 = vld [vmem:[%s0] sm:$0xff]
        %v429 = vld [vmem:[%s0 + $0x8] sm:$0xff]
        %v430 = vld [vmem:[%s0 + $0x10] sm:$0xff]
        %v431 = vld [vmem:[%s0 + $0x18] sm:$0xff]
        %v432 = vld [vmem:[%s0 + $0x20] sm:$0xff]
        %v433 = vld [vmem:[%s0 + $0x28] sm:$0xff]
        %v434 = vld [vmem:[%s0 + $0x30] sm:$0xff]
        %v435 = vld [vmem:[%s0 + $0x38] sm:$0xff]
        %v436 = vld [vmem:[%s0 + $0x40] sm:$0xff]
        %v437 = vld [vmem:[%s0 + $0x48] sm:$0xff]
        %v438 = vld [vmem:[%s0 + $0x50] sm:$0xff]
        %v439 = vld [vmem:[%s0 + $0x58] sm:$0xff]
        %v440 = vld [vmem:[%s0 + $0x60] sm:$0xff]
        %v441 = vld [vmem:[%s0 + $0x68] sm:$0xff]
        %v442 = vld [vmem:[%s0 + $0x70] sm:$0xff]
        %v443 = vld [vmem:[%s0 + $0x78] sm:$0xff]
        %v444 = vld [vmem:[%s0 + $0x80] sm:$0xff]
        %v445 = vld [vmem:[%s0 + $0x88] sm:$0xff]
        %v446 = vld [vmem:[%s0 + $0x90] sm:$0xff]
        %v447 = vld [vmem:[%s0 + $0x98] sm:$0xff]
        %v448 = vld [vmem:[%s0 + $0xa0] sm:$0xff]
        %v449 = vld [vmem:[%s0 + $0xa8] sm:$0xff]
        %v450 = vld [vmem:[%s0 + $0xb0] sm:$0xff]
        %v451 = vld [vmem:[%s0 + $0xb8] sm:$0xff]
        %v452 = vld [vmem:[%s0 + $0xc0] sm:$0xf]
        %v453 = vld [vmem:[%s346] sm:$0xff]
        %v454 = vld [vmem:[%s346 + $0x8] sm:$0xff]
        %v455 = vld [vmem:[%s346 + $0x10] sm:$0xff]
        %v456 = vld [vmem:[%s346 + $0x18] sm:$0xff]
        %v457 = vld [vmem:[%s346 + $0x20] sm:$0xff]
        %v458 = vld [vmem:[%s346 + $0x28] sm:$0xff]
        %v459 = vld [vmem:[%s346 + $0x30] sm:$0xff]
        %v460 = vld [vmem:[%s346 + $0x38] sm:$0xff]
        %v461 = vld [vmem:[%s346 + $0x40] sm:$0xff]
        %v462 = vld [vmem:[%s346 + $0x48] sm:$0xff]
        %v463 = vld [vmem:[%s346 + $0x50] sm:$0xff]
        %v464 = vld [vmem:[%s346 + $0x58] sm:$0xff]
        %v465 = vld [vmem:[%s346 + $0x60] sm:$0xff]
        %v466 = vld [vmem:[%s346 + $0x68] sm:$0xff]
        %v467 = vld [vmem:[%s346 + $0x70] sm:$0xff]
        %v468 = vld [vmem:[%s346 + $0x78] sm:$0xff]
        %v469 = vld [vmem:[%s346 + $0x80] sm:$0xff]
        %v470 = vld [vmem:[%s346 + $0x88] sm:$0xff]
        %v471 = vld [vmem:[%s346 + $0x90] sm:$0xff]
        %v472 = vld [vmem:[%s346 + $0x98] sm:$0xff]
        %v473 = vld [vmem:[%s346 + $0xa0] sm:$0xff]
        %v474 = vld [vmem:[%s346 + $0xa8] sm:$0xff]
        %v475 = vld [vmem:[%s346 + $0xb0] sm:$0xff]
        %v476 = vld [vmem:[%s346 + $0xb8] sm:$0xff]
        %v477 = vld [vmem:[%s346 + $0xc0] sm:$0xff]
        %v478 = vld [vmem:[%s346 + $0xc8] sm:$0xff]
        %v479 = vld [vmem:[%s346 + $0xd0] sm:$0xff]
        %v480 = vld [vmem:[%s346 + $0xd8] sm:$0xff]
        %v481 = vld [vmem:[%s346 + $0xe0] sm:$0xff]
        %v482 = vld [vmem:[%s346 + $0xe8] sm:$0xff]
        %v483 = vld [vmem:[%s346 + $0xf0] sm:$0xff]
        %v484 = vld [vmem:[%s346 + $0xf8] sm:$0xff]
        %v485 = vld [vmem:[%s346 + $0x100] sm:$0xff]
        %v486 = vld [vmem:[%s346 + $0x108] sm:$0xff]
        %v487 = vld [vmem:[%s346 + $0x110] sm:$0xff]
        %v488 = vld [vmem:[%s346 + $0x118] sm:$0xff]
        %vm489 = vcmask 785408
        %v491 = vsel %vm489, %v428, 0
        %v494 = vsel %vm489, %v429, 0
        %v497 = vsel %vm489, %v430, 0
        %v500 = vsel %vm489, %v431, 0
        %v503 = vsel %vm489, %v432, 0
        %v506 = vsel %vm489, %v433, 0
        %v509 = vsel %vm489, %v434, 0
        %v512 = vsel %vm489, %v435, 0
        %v515 = vsel %vm489, %v436, 0
        %v518 = vsel %vm489, %v437, 0
        %v521 = vsel %vm489, %v438, 0
        %v524 = vsel %vm489, %v439, 0
        %v527 = vsel %vm489, %v440, 0
        %v530 = vsel %vm489, %v441, 0
        %v533 = vsel %vm489, %v442, 0
        %v536 = vsel %vm489, %v443, 0
        %v539 = vsel %vm489, %v444, 0
        %v542 = vsel %vm489, %v445, 0
        %v545 = vsel %vm489, %v446, 0
        %v548 = vsel %vm489, %v447, 0
        %v551 = vsel %vm489, %v448, 0
        %v554 = vsel %vm489, %v449, 0
        %v557 = vsel %vm489, %v450, 0
        %v560 = vsel %vm489, %v451, 0
        %v563 = vsel %vm489, %v452, 0
        %565 = vmatpush.msra.mxu0 0.0
        %566 = vmatpush.msra.mxu0 0.0
        %567 = vmatpush.msra.mxu0 0.0
        %568 = vmatpush.msra.mxu0 0.0
        %569 = vmatpush.msra.mxu0 %v486
        %570 = vmatpush.msra.mxu0 %v483
        %571 = vmatpush.msra.mxu0 %v480
        %572 = vmatpush.msra.mxu0 %v477
        %573 = vmatpush.msra.mxu0 %v474
        %574 = vmatpush.msra.mxu0 %v471
        %575 = vmatpush.msra.mxu0 %v468
        %576 = vmatpush.msra.mxu0 %v465
        %577 = vmatpush.msra.mxu0 %v462
        %578 = vmatpush.msra.mxu0 %v459
        %579 = vmatpush.msra.mxu0 %v456
        %580 = vmatpush.msra.mxu0 %v453
        %581 = vmatmul.f32.gmra.mxu0 %v491
        %v582 = vpop.f32.mrf.mxu0
        %v583 = vadd.f32 0.0, %v582
        %584 = vmatmul.f32.gmra.mxu0 %v494
        %v585 = vpop.f32.mrf.mxu0
        %v586 = vadd.f32 0.0, %v585
        %587 = vmatmul.f32.gmra.mxu0 %v497
        %v588 = vpop.f32.mrf.mxu0
        %v589 = vadd.f32 0.0, %v588
        %590 = vmatmul.f32.gmra.mxu0 %v500
        %v591 = vpop.f32.mrf.mxu0
        %v592 = vadd.f32 0.0, %v591
        %593 = vmatmul.f32.gmra.mxu0 %v503
        %v594 = vpop.f32.mrf.mxu0
        %v595 = vadd.f32 0.0, %v594
        %596 = vmatmul.f32.gmra.mxu0 %v506
        %v597 = vpop.f32.mrf.mxu0
        %v598 = vadd.f32 0.0, %v597
        %599 = vmatmul.f32.gmra.mxu0 %v509
        %v600 = vpop.f32.mrf.mxu0
        %v601 = vadd.f32 0.0, %v600
        %602 = vmatmul.f32.gmra.mxu0 %v512
        %v603 = vpop.f32.mrf.mxu0
        %v604 = vadd.f32 0.0, %v603
        %605 = vmatmul.f32.gmra.mxu0 %v515
        %v606 = vpop.f32.mrf.mxu0
        %v607 = vadd.f32 0.0, %v606
        %608 = vmatmul.f32.gmra.mxu0 %v518
        %v609 = vpop.f32.mrf.mxu0
        %v610 = vadd.f32 0.0, %v609
        %611 = vmatmul.f32.gmra.mxu0 %v521
        %v612 = vpop.f32.mrf.mxu0
        %v613 = vadd.f32 0.0, %v612
        %614 = vmatmul.f32.gmra.mxu0 %v524
        %v615 = vpop.f32.mrf.mxu0
        %v616 = vadd.f32 0.0, %v615
        %617 = vmatmul.f32.gmra.mxu0 %v527
        %v618 = vpop.f32.mrf.mxu0
        %v619 = vadd.f32 0.0, %v618
        %620 = vmatmul.f32.gmra.mxu0 %v530
        %v621 = vpop.f32.mrf.mxu0
        %v622 = vadd.f32 0.0, %v621
        %623 = vmatmul.f32.gmra.mxu0 %v533
        %v624 = vpop.f32.mrf.mxu0
        %v625 = vadd.f32 0.0, %v624
        %626 = vmatmul.f32.gmra.mxu0 %v536
        %v627 = vpop.f32.mrf.mxu0
        %v628 = vadd.f32 0.0, %v627
        %629 = vmatmul.f32.gmra.mxu0 %v539
        %v630 = vpop.f32.mrf.mxu0
        %v631 = vadd.f32 0.0, %v630
        %632 = vmatmul.f32.gmra.mxu0 %v542
        %v633 = vpop.f32.mrf.mxu0
        %v634 = vadd.f32 0.0, %v633
        %635 = vmatmul.f32.gmra.mxu0 %v545
        %v636 = vpop.f32.mrf.mxu0
        %v637 = vadd.f32 0.0, %v636
        %638 = vmatmul.f32.gmra.mxu0 %v548
        %v639 = vpop.f32.mrf.mxu0
        %v640 = vadd.f32 0.0, %v639
        %641 = vmatmul.f32.gmra.mxu0 %v551
        %v642 = vpop.f32.mrf.mxu0
        %v643 = vadd.f32 0.0, %v642
        %644 = vmatmul.f32.gmra.mxu0 %v554
        %v645 = vpop.f32.mrf.mxu0
        %v646 = vadd.f32 0.0, %v645
        %647 = vmatmul.f32.gmra.mxu0 %v557
        %v648 = vpop.f32.mrf.mxu0
        %v649 = vadd.f32 0.0, %v648
        %650 = vmatmul.f32.gmra.mxu0 %v560
        %v651 = vpop.f32.mrf.mxu0
        %v652 = vadd.f32 0.0, %v651
        %653 = vmatmul.f32.gmra.mxu0 %v563
        %v654 = vpop.f32.mrf.mxu0
        %v655 = vadd.f32 0.0, %v654
        %656 = vdwg.mxu0
        %657 = vmatpush.msra.mxu0 0.0
        %658 = vmatpush.msra.mxu0 0.0
        %659 = vmatpush.msra.mxu0 0.0
        %660 = vmatpush.msra.mxu0 0.0
        %661 = vmatpush.msra.mxu0 %v487
        %662 = vmatpush.msra.mxu0 %v484
        %663 = vmatpush.msra.mxu0 %v481
        %664 = vmatpush.msra.mxu0 %v478
        %665 = vmatpush.msra.mxu0 %v475
        %666 = vmatpush.msra.mxu0 %v472
        %667 = vmatpush.msra.mxu0 %v469
        %668 = vmatpush.msra.mxu0 %v466
        %669 = vmatpush.msra.mxu0 %v463
        %670 = vmatpush.msra.mxu0 %v460
        %671 = vmatpush.msra.mxu0 %v457
        %672 = vmatpush.msra.mxu0 %v454
        %673 = vmatmul.f32.gmra.mxu0 %v491
        %v674 = vpop.f32.mrf.mxu0
        %v675 = vadd.f32 0.0, %v674
        %676 = vmatmul.f32.gmra.mxu0 %v494
        %v677 = vpop.f32.mrf.mxu0
        %v678 = vadd.f32 0.0, %v677
        %679 = vmatmul.f32.gmra.mxu0 %v497
        %v680 = vpop.f32.mrf.mxu0
        %v681 = vadd.f32 0.0, %v680
        %682 = vmatmul.f32.gmra.mxu0 %v500
        %v683 = vpop.f32.mrf.mxu0
        %v684 = vadd.f32 0.0, %v683
        %685 = vmatmul.f32.gmra.mxu0 %v503
        %v686 = vpop.f32.mrf.mxu0
        %v687 = vadd.f32 0.0, %v686
        %688 = vmatmul.f32.gmra.mxu0 %v506
        %v689 = vpop.f32.mrf.mxu0
        %v690 = vadd.f32 0.0, %v689
        %691 = vmatmul.f32.gmra.mxu0 %v509
        %v692 = vpop.f32.mrf.mxu0
        %v693 = vadd.f32 0.0, %v692
        %694 = vmatmul.f32.gmra.mxu0 %v512
        %v695 = vpop.f32.mrf.mxu0
        %v696 = vadd.f32 0.0, %v695
        %697 = vmatmul.f32.gmra.mxu0 %v515
        %v698 = vpop.f32.mrf.mxu0
        %v699 = vadd.f32 0.0, %v698
        %700 = vmatmul.f32.gmra.mxu0 %v518
        %v701 = vpop.f32.mrf.mxu0
        %v702 = vadd.f32 0.0, %v701
        %703 = vmatmul.f32.gmra.mxu0 %v521
        %v704 = vpop.f32.mrf.mxu0
        %v705 = vadd.f32 0.0, %v704
        %706 = vmatmul.f32.gmra.mxu0 %v524
        %v707 = vpop.f32.mrf.mxu0
        %v708 = vadd.f32 0.0, %v707
        %709 = vmatmul.f32.gmra.mxu0 %v527
        %v710 = vpop.f32.mrf.mxu0
        %v711 = vadd.f32 0.0, %v710
        %712 = vmatmul.f32.gmra.mxu0 %v530
        %v713 = vpop.f32.mrf.mxu0
        %v714 = vadd.f32 0.0, %v713
        %715 = vmatmul.f32.gmra.mxu0 %v533
        %v716 = vpop.f32.mrf.mxu0
        %v717 = vadd.f32 0.0, %v716
        %718 = vmatmul.f32.gmra.mxu0 %v536
        %v719 = vpop.f32.mrf.mxu0
        %v720 = vadd.f32 0.0, %v719
        %721 = vmatmul.f32.gmra.mxu0 %v539
        %v722 = vpop.f32.mrf.mxu0
        %v723 = vadd.f32 0.0, %v722
        %724 = vmatmul.f32.gmra.mxu0 %v542
        %v725 = vpop.f32.mrf.mxu0
        %v726 = vadd.f32 0.0, %v725
        %727 = vmatmul.f32.gmra.mxu0 %v545
        %v728 = vpop.f32.mrf.mxu0
        %v729 = vadd.f32 0.0, %v728
        %730 = vmatmul.f32.gmra.mxu0 %v548
        %v731 = vpop.f32.mrf.mxu0
        %v732 = vadd.f32 0.0, %v731
        %733 = vmatmul.f32.gmra.mxu0 %v551
        %v734 = vpop.f32.mrf.mxu0
        %v735 = vadd.f32 0.0, %v734
        %736 = vmatmul.f32.gmra.mxu0 %v554
        %v737 = vpop.f32.mrf.mxu0
        %v738 = vadd.f32 0.0, %v737
        %739 = vmatmul.f32.gmra.mxu0 %v557
        %v740 = vpop.f32.mrf.mxu0
        %v741 = vadd.f32 0.0, %v740
        %742 = vmatmul.f32.gmra.mxu0 %v560
        %v743 = vpop.f32.mrf.mxu0
        %v744 = vadd.f32 0.0, %v743
        %745 = vmatmul.f32.gmra.mxu0 %v563
        %v746 = vpop.f32.mrf.mxu0
        %v747 = vadd.f32 0.0, %v746
        %748 = vdwg.mxu0
        %749 = vmatpush.msra.mxu0 0.0
        %750 = vmatpush.msra.mxu0 0.0
        %751 = vmatpush.msra.mxu0 0.0
        %752 = vmatpush.msra.mxu0 0.0
        %753 = vmatpush.msra.mxu0 %v488
        %754 = vmatpush.msra.mxu0 %v485
        %755 = vmatpush.msra.mxu0 %v482
        %756 = vmatpush.msra.mxu0 %v479
        %757 = vmatpush.msra.mxu0 %v476
        %758 = vmatpush.msra.mxu0 %v473
        %759 = vmatpush.msra.mxu0 %v470
        %760 = vmatpush.msra.mxu0 %v467
        %761 = vmatpush.msra.mxu0 %v464
        %762 = vmatpush.msra.mxu0 %v461
        %763 = vmatpush.msra.mxu0 %v458
        %764 = vmatpush.msra.mxu0 %v455
        %765 = vmatmul.f32.gmra.mxu0 %v491
        %v766 = vpop.f32.mrf.mxu0
        %v767 = vadd.f32 0.0, %v766
        %768 = vmatmul.f32.gmra.mxu0 %v494
        %v769 = vpop.f32.mrf.mxu0
        %v770 = vadd.f32 0.0, %v769
        %771 = vmatmul.f32.gmra.mxu0 %v497
        %v772 = vpop.f32.mrf.mxu0
        %v773 = vadd.f32 0.0, %v772
        %774 = vmatmul.f32.gmra.mxu0 %v500
        %v775 = vpop.f32.mrf.mxu0
        %v776 = vadd.f32 0.0, %v775
        %777 = vmatmul.f32.gmra.mxu0 %v503
        %v778 = vpop.f32.mrf.mxu0
        %v779 = vadd.f32 0.0, %v778
        %780 = vmatmul.f32.gmra.mxu0 %v506
        %v781 = vpop.f32.mrf.mxu0
        %v782 = vadd.f32 0.0, %v781
        %783 = vmatmul.f32.gmra.mxu0 %v509
        %v784 = vpop.f32.mrf.mxu0
        %v785 = vadd.f32 0.0, %v784
        %786 = vmatmul.f32.gmra.mxu0 %v512
        %v787 = vpop.f32.mrf.mxu0
        %v788 = vadd.f32 0.0, %v787
        %789 = vmatmul.f32.gmra.mxu0 %v515
        %v790 = vpop.f32.mrf.mxu0
        %v791 = vadd.f32 0.0, %v790
        %792 = vmatmul.f32.gmra.mxu0 %v518
        %v793 = vpop.f32.mrf.mxu0
        %v794 = vadd.f32 0.0, %v793
        %795 = vmatmul.f32.gmra.mxu0 %v521
        %v796 = vpop.f32.mrf.mxu0
        %v797 = vadd.f32 0.0, %v796
        %798 = vmatmul.f32.gmra.mxu0 %v524
        %v799 = vpop.f32.mrf.mxu0
        %v800 = vadd.f32 0.0, %v799
        %801 = vmatmul.f32.gmra.mxu0 %v527
        %v802 = vpop.f32.mrf.mxu0
        %v803 = vadd.f32 0.0, %v802
        %804 = vmatmul.f32.gmra.mxu0 %v530
        %v805 = vpop.f32.mrf.mxu0
        %v806 = vadd.f32 0.0, %v805
        %807 = vmatmul.f32.gmra.mxu0 %v533
        %v808 = vpop.f32.mrf.mxu0
        %v809 = vadd.f32 0.0, %v808
        %810 = vmatmul.f32.gmra.mxu0 %v536
        %v811 = vpop.f32.mrf.mxu0
        %v812 = vadd.f32 0.0, %v811
        %813 = vmatmul.f32.gmra.mxu0 %v539
        %v814 = vpop.f32.mrf.mxu0
        %v815 = vadd.f32 0.0, %v814
        %816 = vmatmul.f32.gmra.mxu0 %v542
        %v817 = vpop.f32.mrf.mxu0
        %v818 = vadd.f32 0.0, %v817
        %819 = vmatmul.f32.gmra.mxu0 %v545
        %v820 = vpop.f32.mrf.mxu0
        %v821 = vadd.f32 0.0, %v820
        %822 = vmatmul.f32.gmra.mxu0 %v548
        %v823 = vpop.f32.mrf.mxu0
        %v824 = vadd.f32 0.0, %v823
        %825 = vmatmul.f32.gmra.mxu0 %v551
        %v826 = vpop.f32.mrf.mxu0
        %v827 = vadd.f32 0.0, %v826
        %828 = vmatmul.f32.gmra.mxu0 %v554
        %v829 = vpop.f32.mrf.mxu0
        %v830 = vadd.f32 0.0, %v829
        %831 = vmatmul.f32.gmra.mxu0 %v557
        %v832 = vpop.f32.mrf.mxu0
        %v833 = vadd.f32 0.0, %v832
        %834 = vmatmul.f32.gmra.mxu0 %v560
        %v835 = vpop.f32.mrf.mxu0
        %v836 = vadd.f32 0.0, %v835
        %837 = vmatmul.f32.gmra.mxu0 %v563
        %v838 = vpop.f32.mrf.mxu0
        %v839 = vadd.f32 0.0, %v838
        %840 = vdwg.mxu0
        %v841 = vadd.f32 %v583, %v586
        %v842 = vadd.f32 %v841, %v589
        %v843 = vadd.f32 %v842, %v592
        %v844 = vadd.f32 %v843, %v595
        %v845 = vadd.f32 %v844, %v598
        %v846 = vadd.f32 %v845, %v601
        %v847 = vadd.f32 %v846, %v604
        %v848 = vadd.f32 %v847, %v607
        %v849 = vadd.f32 %v848, %v610
        %v850 = vadd.f32 %v849, %v613
        %v851 = vadd.f32 %v850, %v616
        %v852 = vadd.f32 %v851, %v619
        %v853 = vadd.f32 %v852, %v622
        %v854 = vadd.f32 %v853, %v625
        %v855 = vadd.f32 %v854, %v628
        %v856 = vadd.f32 %v855, %v631
        %v857 = vadd.f32 %v856, %v634
        %v858 = vadd.f32 %v857, %v637
        %v859 = vadd.f32 %v858, %v640
        %v860 = vadd.f32 %v859, %v643
        %v861 = vadd.f32 %v860, %v646
        %v862 = vadd.f32 %v861, %v649
        %v863 = vadd.f32 %v862, %v652
        %vm864 = vcmask 1043456
        %v865 = vsel %vm864, %v655, 0.0
        %v866 = vadd.f32 %v863, %v865
        %v867 = vrot.slane %v866, 4
        %v868 = vadd.f32 %v866, %v867
        %v869 = vrot.slane %v868, 2
        %v870 = vadd.f32 %v868, %v869
        %v871 = vrot.slane %v870, 1
        %v872 = vadd.f32 %v870, %v871
        %v873 = vadd.f32 %v675, %v678
        %v874 = vadd.f32 %v873, %v681
        %v875 = vadd.f32 %v874, %v684
        %v876 = vadd.f32 %v875, %v687
        %v877 = vadd.f32 %v876, %v690
        %v878 = vadd.f32 %v877, %v693
        %v879 = vadd.f32 %v878, %v696
        %v880 = vadd.f32 %v879, %v699
        %v881 = vadd.f32 %v880, %v702
        %v882 = vadd.f32 %v881, %v705
        %v883 = vadd.f32 %v882, %v708
        %v884 = vadd.f32 %v883, %v711
        %v885 = vadd.f32 %v884, %v714
        %v886 = vadd.f32 %v885, %v717
        %v887 = vadd.f32 %v886, %v720
        %v888 = vadd.f32 %v887, %v723
        %v889 = vadd.f32 %v888, %v726
        %v890 = vadd.f32 %v889, %v729
        %v891 = vadd.f32 %v890, %v732
        %v892 = vadd.f32 %v891, %v735
        %v893 = vadd.f32 %v892, %v738
        %v894 = vadd.f32 %v893, %v741
        %v895 = vadd.f32 %v894, %v744
        %v896 = vsel %vm864, %v747, 0.0
        %v897 = vadd.f32 %v895, %v896
        %v898 = vrot.slane %v897, 4
        %v899 = vadd.f32 %v897, %v898
        %v900 = vrot.slane %v899, 2
        %v901 = vadd.f32 %v899, %v900
        %v902 = vrot.slane %v901, 1
        %v903 = vadd.f32 %v901, %v902
        %v904 = vadd.f32 %v767, %v770
        %v905 = vadd.f32 %v904, %v773
        %v906 = vadd.f32 %v905, %v776
        %v907 = vadd.f32 %v906, %v779
        %v908 = vadd.f32 %v907, %v782
        %v909 = vadd.f32 %v908, %v785
        %v910 = vadd.f32 %v909, %v788
        %v911 = vadd.f32 %v910, %v791
        %v912 = vadd.f32 %v911, %v794
        %v913 = vadd.f32 %v912, %v797
        %v914 = vadd.f32 %v913, %v800
        %v915 = vadd.f32 %v914, %v803
        %v916 = vadd.f32 %v915, %v806
        %v917 = vadd.f32 %v916, %v809
        %v918 = vadd.f32 %v917, %v812
        %v919 = vadd.f32 %v918, %v815
        %v920 = vadd.f32 %v919, %v818
        %v921 = vadd.f32 %v920, %v821
        %v922 = vadd.f32 %v921, %v824
        %v923 = vadd.f32 %v922, %v827
        %v924 = vadd.f32 %v923, %v830
        %v925 = vadd.f32 %v924, %v833
        %v926 = vadd.f32 %v925, %v836
        %v927 = vsel %vm864, %v839, 0.0
        %v928 = vadd.f32 %v926, %v927
        %v929 = vrot.slane %v928, 4
        %v930 = vadd.f32 %v928, %v929
        %v931 = vrot.slane %v930, 2
        %v932 = vadd.f32 %v930, %v931
        %v933 = vrot.slane %v932, 1
        %v934 = vadd.f32 %v932, %v933
        %v935 = vmul.f32 %v583, %v583
        %v936 = vmul.f32 %v675, %v675
        %v937 = vmul.f32 %v767, %v767
        %v938 = vmul.f32 %v586, %v586
        %v939 = vmul.f32 %v678, %v678
        %v940 = vmul.f32 %v770, %v770
        %v941 = vmul.f32 %v589, %v589
        %v942 = vmul.f32 %v681, %v681
        %v943 = vmul.f32 %v773, %v773
        %v944 = vmul.f32 %v592, %v592
        %v945 = vmul.f32 %v684, %v684
        %v946 = vmul.f32 %v776, %v776
        %v947 = vmul.f32 %v595, %v595
        %v948 = vmul.f32 %v687, %v687
        %v949 = vmul.f32 %v779, %v779
        %v950 = vmul.f32 %v598, %v598
        %v951 = vmul.f32 %v690, %v690
        %v952 = vmul.f32 %v782, %v782
        %v953 = vmul.f32 %v601, %v601
        %v954 = vmul.f32 %v693, %v693
        %v955 = vmul.f32 %v785, %v785
        %v956 = vmul.f32 %v604, %v604
        %v957 = vmul.f32 %v696, %v696
        %v958 = vmul.f32 %v788, %v788
        %v959 = vmul.f32 %v607, %v607
        %v960 = vmul.f32 %v699, %v699
        %v961 = vmul.f32 %v791, %v791
        %v962 = vmul.f32 %v610, %v610
        %v963 = vmul.f32 %v702, %v702
        %v964 = vmul.f32 %v794, %v794
        %v965 = vmul.f32 %v613, %v613
        %v966 = vmul.f32 %v705, %v705
        %v967 = vmul.f32 %v797, %v797
        %v968 = vmul.f32 %v616, %v616
        %v969 = vmul.f32 %v708, %v708
        %v970 = vmul.f32 %v800, %v800
        %v971 = vmul.f32 %v619, %v619
        %v972 = vmul.f32 %v711, %v711
        %v973 = vmul.f32 %v803, %v803
        %v974 = vmul.f32 %v622, %v622
        %v975 = vmul.f32 %v714, %v714
        %v976 = vmul.f32 %v806, %v806
        %v977 = vmul.f32 %v625, %v625
        %v978 = vmul.f32 %v717, %v717
        %v979 = vmul.f32 %v809, %v809
        %v980 = vmul.f32 %v628, %v628
        %v981 = vmul.f32 %v720, %v720
        %v982 = vmul.f32 %v812, %v812
        %v983 = vmul.f32 %v631, %v631
        %v984 = vmul.f32 %v723, %v723
        %v985 = vmul.f32 %v815, %v815
        %v986 = vmul.f32 %v634, %v634
        %v987 = vmul.f32 %v726, %v726
        %v988 = vmul.f32 %v818, %v818
        %v989 = vmul.f32 %v637, %v637
        %v990 = vmul.f32 %v729, %v729
        %v991 = vmul.f32 %v821, %v821
        %v992 = vmul.f32 %v640, %v640
        %v993 = vmul.f32 %v732, %v732
        %v994 = vmul.f32 %v824, %v824
        %v995 = vmul.f32 %v643, %v643
        %v996 = vmul.f32 %v735, %v735
        %v997 = vmul.f32 %v827, %v827
        %v998 = vmul.f32 %v646, %v646
        %v999 = vmul.f32 %v738, %v738
        %v1000 = vmul.f32 %v830, %v830
        %v1001 = vmul.f32 %v649, %v649
        %v1002 = vmul.f32 %v741, %v741
        %v1003 = vmul.f32 %v833, %v833
        %v1004 = vmul.f32 %v652, %v652
        %v1005 = vmul.f32 %v744, %v744
        %v1006 = vmul.f32 %v836, %v836
        %v1007 = vmul.f32 %v655, %v655
        %v1008 = vmul.f32 %v747, %v747
        %v1009 = vmul.f32 %v839, %v839
        %v1010 = vadd.f32 %v935, %v938
        %v1011 = vadd.f32 %v1010, %v941
        %v1012 = vadd.f32 %v1011, %v944
        %v1013 = vadd.f32 %v1012, %v947
        %v1014 = vadd.f32 %v1013, %v950
        %v1015 = vadd.f32 %v1014, %v953
        %v1016 = vadd.f32 %v1015, %v956
        %v1017 = vadd.f32 %v1016, %v959
        %v1018 = vadd.f32 %v1017, %v962
        %v1019 = vadd.f32 %v1018, %v965
        %v1020 = vadd.f32 %v1019, %v968
        %v1021 = vadd.f32 %v1020, %v971
        %v1022 = vadd.f32 %v1021, %v974
        %v1023 = vadd.f32 %v1022, %v977
        %v1024 = vadd.f32 %v1023, %v980
        %v1025 = vadd.f32 %v1024, %v983
        %v1026 = vadd.f32 %v1025, %v986
        %v1027 = vadd.f32 %v1026, %v989
        %v1028 = vadd.f32 %v1027, %v992
        %v1029 = vadd.f32 %v1028, %v995
        %v1030 = vadd.f32 %v1029, %v998
        %v1031 = vadd.f32 %v1030, %v1001
        %v1032 = vadd.f32 %v1031, %v1004
        %v1033 = vsel %vm864, %v1007, 0.0
        %v1034 = vadd.f32 %v1032, %v1033
        %v1035 = vrot.slane %v1034, 4
        %v1036 = vadd.f32 %v1034, %v1035
        %v1037 = vrot.slane %v1036, 2
        %v1038 = vadd.f32 %v1036, %v1037
        %v1039 = vrot.slane %v1038, 1
        %v1040 = vadd.f32 %v1038, %v1039
        %v1041 = vadd.f32 %v936, %v939
        %v1042 = vadd.f32 %v1041, %v942
        %v1043 = vadd.f32 %v1042, %v945
        %v1044 = vadd.f32 %v1043, %v948
        %v1045 = vadd.f32 %v1044, %v951
        %v1046 = vadd.f32 %v1045, %v954
        %v1047 = vadd.f32 %v1046, %v957
        %v1048 = vadd.f32 %v1047, %v960
        %v1049 = vadd.f32 %v1048, %v963
        %v1050 = vadd.f32 %v1049, %v966
        %v1051 = vadd.f32 %v1050, %v969
        %v1052 = vadd.f32 %v1051, %v972
        %v1053 = vadd.f32 %v1052, %v975
        %v1054 = vadd.f32 %v1053, %v978
        %v1055 = vadd.f32 %v1054, %v981
        %v1056 = vadd.f32 %v1055, %v984
        %v1057 = vadd.f32 %v1056, %v987
        %v1058 = vadd.f32 %v1057, %v990
        %v1059 = vadd.f32 %v1058, %v993
        %v1060 = vadd.f32 %v1059, %v996
        %v1061 = vadd.f32 %v1060, %v999
        %v1062 = vadd.f32 %v1061, %v1002
        %v1063 = vadd.f32 %v1062, %v1005
        %v1064 = vsel %vm864, %v1008, 0.0
        %v1065 = vadd.f32 %v1063, %v1064
        %v1066 = vrot.slane %v1065, 4
        %v1067 = vadd.f32 %v1065, %v1066
        %v1068 = vrot.slane %v1067, 2
        %v1069 = vadd.f32 %v1067, %v1068
        %v1070 = vrot.slane %v1069, 1
        %v1071 = vadd.f32 %v1069, %v1070
        %v1072 = vadd.f32 %v937, %v940
        %v1073 = vadd.f32 %v1072, %v943
        %v1074 = vadd.f32 %v1073, %v946
        %v1075 = vadd.f32 %v1074, %v949
        %v1076 = vadd.f32 %v1075, %v952
        %v1077 = vadd.f32 %v1076, %v955
        %v1078 = vadd.f32 %v1077, %v958
        %v1079 = vadd.f32 %v1078, %v961
        %v1080 = vadd.f32 %v1079, %v964
        %v1081 = vadd.f32 %v1080, %v967
        %v1082 = vadd.f32 %v1081, %v970
        %v1083 = vadd.f32 %v1082, %v973
        %v1084 = vadd.f32 %v1083, %v976
        %v1085 = vadd.f32 %v1084, %v979
        %v1086 = vadd.f32 %v1085, %v982
        %v1087 = vadd.f32 %v1086, %v985
        %v1088 = vadd.f32 %v1087, %v988
        %v1089 = vadd.f32 %v1088, %v991
        %v1090 = vadd.f32 %v1089, %v994
        %v1091 = vadd.f32 %v1090, %v997
        %v1092 = vadd.f32 %v1091, %v1000
        %v1093 = vadd.f32 %v1092, %v1003
        %v1094 = vadd.f32 %v1093, %v1006
        %v1095 = vsel %vm864, %v1009, 0.0
        %v1096 = vadd.f32 %v1094, %v1095
        %v1097 = vrot.slane %v1096, 4
        %v1098 = vadd.f32 %v1096, %v1097
        %v1099 = vrot.slane %v1098, 2
        %v1100 = vadd.f32 %v1098, %v1099
        %v1101 = vrot.slane %v1100, 1
        %v1102 = vadd.f32 %v1100, %v1101
        %v1103 = vmul.f32 %v872, 0.0051020407
        %v1104 = vmul.f32 %v903, 0.0051020407
        %v1105 = vmul.f32 %v934, 0.0051020407
        %v1106 = vmul.f32 %v1040, 0.0051020407
        %v1107 = vmul.f32 %v1071, 0.0051020407
        %v1108 = vmul.f32 %v1102, 0.0051020407
        %v1109 = vmul.f32 %v1103, %v1103
        %v1110 = vmul.f32 %v1104, %v1104
        %v1111 = vmul.f32 %v1105, %v1105
        %v1112 = vsub.f32 %v1106, %v1109
        %v1113 = vsub.f32 %v1107, %v1110
        %v1114 = vsub.f32 %v1108, %v1111
        %v1115 = vld [vmem:[%s409] sm:$0x7]
        %v1116 = vadd.f32 %v1112, 1e-05
        %v1117 = vadd.f32 %v1113, 1e-05
        %v1118 = vadd.f32 %v1114, 1e-05
        %v1119 = vrsqrt.pop %v1116
        %v1120 = vmul.f32 %v1119, %v1116
        %v1121 = vmul.f32 %v1120, %v1119
        %v1122 = vmul.f32 0.5, %v1121
        %v1123 = vsub.f32 1.5, %v1122
        %v1124 = vmul.f32 %v1119, %v1123
        %vm1125 = vweird.f32 %v1116
        %vm1126 = vweird.f32 %v1119
        %vm1127 = vmor %vm1125, %vm1126
        %v1128 = vsel %vm1127, %v1119, %v1124
        %v1129 = vrsqrt.pop %v1117
        %v1130 = vmul.f32 %v1129, %v1117
        %v1131 = vmul.f32 %v1130, %v1129
        %v1132 = vmul.f32 0.5, %v1131
        %v1133 = vsub.f32 1.5, %v1132
        %v1134 = vmul.f32 %v1129, %v1133
        %vm1135 = vweird.f32 %v1117
        %vm1136 = vweird.f32 %v1129
        %vm1137 = vmor %vm1135, %vm1136
        %v1138 = vsel %vm1137, %v1129, %v1134
        %v1139 = vrsqrt.pop %v1118
        %v1140 = vmul.f32 %v1139, %v1118
        %v1141 = vmul.f32 %v1140, %v1139
        %v1142 = vmul.f32 0.5, %v1141
        %v1143 = vsub.f32 1.5, %v1142
        %v1144 = vmul.f32 %v1139, %v1143
        %vm1145 = vweird.f32 %v1118
        %vm1146 = vweird.f32 %v1139
        %vm1147 = vmor %vm1145, %vm1146
        %v1148 = vsel %vm1147, %v1139, %v1144
        %v1152 = vrot.slane %v1138, 7
        %v1153 = vrot.slane %v1148, 6
        %vm1154 = vcmask 1040384
        %v1155 = vsel %vm1154, %v1128, %v1152
        %vm1156 = vcmask 1041408
        %v1157 = vsel %vm1156, %v1155, %v1153
        %v1159 = vmul.f32 %v1115, %v1157
        %v1160 = vld [vmem:[%s414] sm:$0x7]
        %v1162 = vperm.slane %v1159, 0
        %v1163 = vperm.slane %v1159, 1
        %v1164 = vperm.slane %v1159, 2
        %v1168 = vmul.f32 %v1103, %v1162
        %v1169 = vmul.f32 %v1104, %v1163
        %v1170 = vmul.f32 %v1105, %v1164
        %v1174 = vrot.slane %v1169, 7
        %v1175 = vrot.slane %v1170, 6
        %v1176 = vsel %vm1154, %v1168, %v1174
        %v1177 = vsel %vm1156, %v1176, %v1175
        %v1179 = vsub.f32 %v1160, %v1177
        %v1180 = vmul.f32 %v583, %v1162
        %v1181 = vmul.f32 %v675, %v1163
        %v1182 = vmul.f32 %v767, %v1164
        %v1183 = vmul.f32 %v586, %v1162
        %v1184 = vmul.f32 %v678, %v1163
        %v1185 = vmul.f32 %v770, %v1164
        %v1186 = vmul.f32 %v589, %v1162
        %v1187 = vmul.f32 %v681, %v1163
        %v1188 = vmul.f32 %v773, %v1164
        %v1189 = vmul.f32 %v592, %v1162
        %v1190 = vmul.f32 %v684, %v1163
        %v1191 = vmul.f32 %v776, %v1164
        %v1192 = vmul.f32 %v595, %v1162
        %v1193 = vmul.f32 %v687, %v1163
        %v1194 = vmul.f32 %v779, %v1164
        %v1195 = vmul.f32 %v598, %v1162
        %v1196 = vmul.f32 %v690, %v1163
        %v1197 = vmul.f32 %v782, %v1164
        %v1198 = vmul.f32 %v601, %v1162
        %v1199 = vmul.f32 %v693, %v1163
        %v1200 = vmul.f32 %v785, %v1164
        %v1201 = vmul.f32 %v604, %v1162
        %v1202 = vmul.f32 %v696, %v1163
        %v1203 = vmul.f32 %v788, %v1164
        %v1204 = vmul.f32 %v607, %v1162
        %v1205 = vmul.f32 %v699, %v1163
        %v1206 = vmul.f32 %v791, %v1164
        %v1207 = vmul.f32 %v610, %v1162
        %v1208 = vmul.f32 %v702, %v1163
        %v1209 = vmul.f32 %v794, %v1164
        %v1210 = vmul.f32 %v613, %v1162
        %v1211 = vmul.f32 %v705, %v1163
        %v1212 = vmul.f32 %v797, %v1164
        %v1213 = vmul.f32 %v616, %v1162
        %v1214 = vmul.f32 %v708, %v1163
        %v1215 = vmul.f32 %v800, %v1164
        %v1216 = vmul.f32 %v619, %v1162
        %v1217 = vmul.f32 %v711, %v1163
        %v1218 = vmul.f32 %v803, %v1164
        %v1219 = vmul.f32 %v622, %v1162
        %v1220 = vmul.f32 %v714, %v1163
        %v1221 = vmul.f32 %v806, %v1164
        %v1222 = vmul.f32 %v625, %v1162
        %v1223 = vmul.f32 %v717, %v1163
        %v1224 = vmul.f32 %v809, %v1164
        %v1225 = vmul.f32 %v628, %v1162
        %v1226 = vmul.f32 %v720, %v1163
        %v1227 = vmul.f32 %v812, %v1164
        %v1228 = vmul.f32 %v631, %v1162
        %v1229 = vmul.f32 %v723, %v1163
        %v1230 = vmul.f32 %v815, %v1164
        %v1231 = vmul.f32 %v634, %v1162
        %v1232 = vmul.f32 %v726, %v1163
        %v1233 = vmul.f32 %v818, %v1164
        %v1234 = vmul.f32 %v637, %v1162
        %v1235 = vmul.f32 %v729, %v1163
        %v1236 = vmul.f32 %v821, %v1164
        %v1237 = vmul.f32 %v640, %v1162
        %v1238 = vmul.f32 %v732, %v1163
        %v1239 = vmul.f32 %v824, %v1164
        %v1240 = vmul.f32 %v643, %v1162
        %v1241 = vmul.f32 %v735, %v1163
        %v1242 = vmul.f32 %v827, %v1164
        %v1243 = vmul.f32 %v646, %v1162
        %v1244 = vmul.f32 %v738, %v1163
        %v1245 = vmul.f32 %v830, %v1164
        %v1246 = vmul.f32 %v649, %v1162
        %v1247 = vmul.f32 %v741, %v1163
        %v1248 = vmul.f32 %v833, %v1164
        %v1249 = vmul.f32 %v652, %v1162
        %v1250 = vmul.f32 %v744, %v1163
        %v1251 = vmul.f32 %v836, %v1164
        %v1252 = vmul.f32 %v655, %v1162
        %v1253 = vmul.f32 %v747, %v1163
        %v1254 = vmul.f32 %v839, %v1164
        %v1256 = vperm.slane %v1179, 0
        %v1257 = vperm.slane %v1179, 1
        %v1258 = vperm.slane %v1179, 2
        %v1262 = vadd.f32 %v1180, %v1256
        %v1263 = vadd.f32 %v1181, %v1257
        %v1264 = vadd.f32 %v1182, %v1258
        %v1265 = vadd.f32 %v1183, %v1256
        %v1266 = vadd.f32 %v1184, %v1257
        %v1267 = vadd.f32 %v1185, %v1258
        %v1268 = vadd.f32 %v1186, %v1256
        %v1269 = vadd.f32 %v1187, %v1257
        %v1270 = vadd.f32 %v1188, %v1258
        %v1271 = vadd.f32 %v1189, %v1256
        %v1272 = vadd.f32 %v1190, %v1257
        %v1273 = vadd.f32 %v1191, %v1258
        %v1274 = vadd.f32 %v1192, %v1256
        %v1275 = vadd.f32 %v1193, %v1257
        %v1276 = vadd.f32 %v1194, %v1258
        %v1277 = vadd.f32 %v1195, %v1256
        %v1278 = vadd.f32 %v1196, %v1257
        %v1279 = vadd.f32 %v1197, %v1258
        %v1280 = vadd.f32 %v1198, %v1256
        %v1281 = vadd.f32 %v1199, %v1257
        %v1282 = vadd.f32 %v1200, %v1258
        %v1283 = vadd.f32 %v1201, %v1256
        %v1284 = vadd.f32 %v1202, %v1257
        %v1285 = vadd.f32 %v1203, %v1258
        %v1286 = vadd.f32 %v1204, %v1256
        %v1287 = vadd.f32 %v1205, %v1257
        %v1288 = vadd.f32 %v1206, %v1258
        %v1289 = vadd.f32 %v1207, %v1256
        %v1290 = vadd.f32 %v1208, %v1257
        %v1291 = vadd.f32 %v1209, %v1258
        %v1292 = vadd.f32 %v1210, %v1256
        %v1293 = vadd.f32 %v1211, %v1257
        %v1294 = vadd.f32 %v1212, %v1258
        %v1295 = vadd.f32 %v1213, %v1256
        %v1296 = vadd.f32 %v1214, %v1257
        %v1297 = vadd.f32 %v1215, %v1258
        %v1298 = vadd.f32 %v1216, %v1256
        %v1299 = vadd.f32 %v1217, %v1257
        %v1300 = vadd.f32 %v1218, %v1258
        %v1301 = vadd.f32 %v1219, %v1256
        %v1302 = vadd.f32 %v1220, %v1257
        %v1303 = vadd.f32 %v1221, %v1258
        %v1304 = vadd.f32 %v1222, %v1256
        %v1305 = vadd.f32 %v1223, %v1257
        %v1306 = vadd.f32 %v1224, %v1258
        %v1307 = vadd.f32 %v1225, %v1256
        %v1308 = vadd.f32 %v1226, %v1257
        %v1309 = vadd.f32 %v1227, %v1258
        %v1310 = vadd.f32 %v1228, %v1256
        %v1311 = vadd.f32 %v1229, %v1257
        %v1312 = vadd.f32 %v1230, %v1258
        %v1313 = vadd.f32 %v1231, %v1256
        %v1314 = vadd.f32 %v1232, %v1257
        %v1315 = vadd.f32 %v1233, %v1258
        %v1316 = vadd.f32 %v1234, %v1256
        %v1317 = vadd.f32 %v1235, %v1257
        %v1318 = vadd.f32 %v1236, %v1258
        %v1319 = vadd.f32 %v1237, %v1256
        %v1320 = vadd.f32 %v1238, %v1257
        %v1321 = vadd.f32 %v1239, %v1258
        %v1322 = vadd.f32 %v1240, %v1256
        %v1323 = vadd.f32 %v1241, %v1257
        %v1324 = vadd.f32 %v1242, %v1258
        %v1325 = vadd.f32 %v1243, %v1256
        %v1326 = vadd.f32 %v1244, %v1257
        %v1327 = vadd.f32 %v1245, %v1258
        %v1328 = vadd.f32 %v1246, %v1256
        %v1329 = vadd.f32 %v1247, %v1257
        %v1330 = vadd.f32 %v1248, %v1258
        %v1331 = vadd.f32 %v1249, %v1256
        %v1332 = vadd.f32 %v1250, %v1257
        %v1333 = vadd.f32 %v1251, %v1258
        %v1334 = vadd.f32 %v1252, %v1256
        %v1335 = vadd.f32 %v1253, %v1257
        %v1336 = vadd.f32 %v1254, %v1258
        %v1337 = vmax.f32 %v1262, 0.0
        %v1338 = vmax.f32 %v1263, 0.0
        %v1339 = vmax.f32 %v1264, 0.0
        %v1340 = vmax.f32 %v1265, 0.0
        %v1341 = vmax.f32 %v1266, 0.0
        %v1342 = vmax.f32 %v1267, 0.0
        %v1343 = vmax.f32 %v1268, 0.0
        %v1344 = vmax.f32 %v1269, 0.0
        %v1345 = vmax.f32 %v1270, 0.0
        %v1346 = vmax.f32 %v1271, 0.0
        %v1347 = vmax.f32 %v1272, 0.0
        %v1348 = vmax.f32 %v1273, 0.0
        %v1349 = vmax.f32 %v1274, 0.0
        %v1350 = vmax.f32 %v1275, 0.0
        %v1351 = vmax.f32 %v1276, 0.0
        %v1352 = vmax.f32 %v1277, 0.0
        %v1353 = vmax.f32 %v1278, 0.0
        %v1354 = vmax.f32 %v1279, 0.0
        %v1355 = vmax.f32 %v1280, 0.0
        %v1356 = vmax.f32 %v1281, 0.0
        %v1357 = vmax.f32 %v1282, 0.0
        %v1358 = vmax.f32 %v1283, 0.0
        %v1359 = vmax.f32 %v1284, 0.0
        %v1360 = vmax.f32 %v1285, 0.0
        %v1361 = vmax.f32 %v1286, 0.0
        %v1362 = vmax.f32 %v1287, 0.0
        %v1363 = vmax.f32 %v1288, 0.0
        %v1364 = vmax.f32 %v1289, 0.0
        %v1365 = vmax.f32 %v1290, 0.0
        %v1366 = vmax.f32 %v1291, 0.0
        %v1367 = vmax.f32 %v1292, 0.0
        %v1368 = vmax.f32 %v1293, 0.0
        %v1369 = vmax.f32 %v1294, 0.0
        %v1370 = vmax.f32 %v1295, 0.0
        %v1371 = vmax.f32 %v1296, 0.0
        %v1372 = vmax.f32 %v1297, 0.0
        %v1373 = vmax.f32 %v1298, 0.0
        %v1374 = vmax.f32 %v1299, 0.0
        %v1375 = vmax.f32 %v1300, 0.0
        %v1376 = vmax.f32 %v1301, 0.0
        %v1377 = vmax.f32 %v1302, 0.0
        %v1378 = vmax.f32 %v1303, 0.0
        %v1379 = vmax.f32 %v1304, 0.0
        %v1380 = vmax.f32 %v1305, 0.0
        %v1381 = vmax.f32 %v1306, 0.0
        %v1382 = vmax.f32 %v1307, 0.0
        %v1383 = vmax.f32 %v1308, 0.0
        %v1384 = vmax.f32 %v1309, 0.0
        %v1385 = vmax.f32 %v1310, 0.0
        %v1386 = vmax.f32 %v1311, 0.0
        %v1387 = vmax.f32 %v1312, 0.0
        %v1388 = vmax.f32 %v1313, 0.0
        %v1389 = vmax.f32 %v1314, 0.0
        %v1390 = vmax.f32 %v1315, 0.0
        %v1391 = vmax.f32 %v1316, 0.0
        %v1392 = vmax.f32 %v1317, 0.0
        %v1393 = vmax.f32 %v1318, 0.0
        %v1394 = vmax.f32 %v1319, 0.0
        %v1395 = vmax.f32 %v1320, 0.0
        %v1396 = vmax.f32 %v1321, 0.0
        %v1397 = vmax.f32 %v1322, 0.0
        %v1398 = vmax.f32 %v1323, 0.0
        %v1399 = vmax.f32 %v1324, 0.0
        %v1400 = vmax.f32 %v1325, 0.0
        %v1401 = vmax.f32 %v1326, 0.0
        %v1402 = vmax.f32 %v1327, 0.0
        %v1403 = vmax.f32 %v1328, 0.0
        %v1404 = vmax.f32 %v1329, 0.0
        %v1405 = vmax.f32 %v1330, 0.0
        %v1406 = vmax.f32 %v1331, 0.0
        %v1407 = vmax.f32 %v1332, 0.0
        %v1408 = vmax.f32 %v1333, 0.0
        %v1409 = vmax.f32 %v1334, 0.0
        %v1410 = vmax.f32 %v1335, 0.0
        %v1411 = vmax.f32 %v1336, 0.0
        %v1412 = vmin.f32 %v1337, 6.0
        %v1413 = vmin.f32 %v1338, 6.0
        %v1414 = vmin.f32 %v1339, 6.0
        %v1415 = vmin.f32 %v1340, 6.0
        %v1416 = vmin.f32 %v1341, 6.0
        %v1417 = vmin.f32 %v1342, 6.0
        %v1418 = vmin.f32 %v1343, 6.0
        %v1419 = vmin.f32 %v1344, 6.0
        %v1420 = vmin.f32 %v1345, 6.0
        %v1421 = vmin.f32 %v1346, 6.0
        %v1422 = vmin.f32 %v1347, 6.0
        %v1423 = vmin.f32 %v1348, 6.0
        %v1424 = vmin.f32 %v1349, 6.0
        %v1425 = vmin.f32 %v1350, 6.0
        %v1426 = vmin.f32 %v1351, 6.0
        %v1427 = vmin.f32 %v1352, 6.0
        %v1428 = vmin.f32 %v1353, 6.0
        %v1429 = vmin.f32 %v1354, 6.0
        %v1430 = vmin.f32 %v1355, 6.0
        %v1431 = vmin.f32 %v1356, 6.0
        %v1432 = vmin.f32 %v1357, 6.0
        %v1433 = vmin.f32 %v1358, 6.0
        %v1434 = vmin.f32 %v1359, 6.0
        %v1435 = vmin.f32 %v1360, 6.0
        %v1436 = vmin.f32 %v1361, 6.0
        %v1437 = vmin.f32 %v1362, 6.0
        %v1438 = vmin.f32 %v1363, 6.0
        %v1439 = vmin.f32 %v1364, 6.0
        %v1440 = vmin.f32 %v1365, 6.0
        %v1441 = vmin.f32 %v1366, 6.0
        %v1442 = vmin.f32 %v1367, 6.0
        %v1443 = vmin.f32 %v1368, 6.0
        %v1444 = vmin.f32 %v1369, 6.0
        %v1445 = vmin.f32 %v1370, 6.0
        %v1446 = vmin.f32 %v1371, 6.0
        %v1447 = vmin.f32 %v1372, 6.0
        %v1448 = vmin.f32 %v1373, 6.0
        %v1449 = vmin.f32 %v1374, 6.0
        %v1450 = vmin.f32 %v1375, 6.0
        %v1451 = vmin.f32 %v1376, 6.0
        %v1452 = vmin.f32 %v1377, 6.0
        %v1453 = vmin.f32 %v1378, 6.0
        %v1454 = vmin.f32 %v1379, 6.0
        %v1455 = vmin.f32 %v1380, 6.0
        %v1456 = vmin.f32 %v1381, 6.0
        %v1457 = vmin.f32 %v1382, 6.0
        %v1458 = vmin.f32 %v1383, 6.0
        %v1459 = vmin.f32 %v1384, 6.0
        %v1460 = vmin.f32 %v1385, 6.0
        %v1461 = vmin.f32 %v1386, 6.0
        %v1462 = vmin.f32 %v1387, 6.0
        %v1463 = vmin.f32 %v1388, 6.0
        %v1464 = vmin.f32 %v1389, 6.0
        %v1465 = vmin.f32 %v1390, 6.0
        %v1466 = vmin.f32 %v1391, 6.0
        %v1467 = vmin.f32 %v1392, 6.0
        %v1468 = vmin.f32 %v1393, 6.0
        %v1469 = vmin.f32 %v1394, 6.0
        %v1470 = vmin.f32 %v1395, 6.0
        %v1471 = vmin.f32 %v1396, 6.0
        %v1472 = vmin.f32 %v1397, 6.0
        %v1473 = vmin.f32 %v1398, 6.0
        %v1474 = vmin.f32 %v1399, 6.0
        %v1475 = vmin.f32 %v1400, 6.0
        %v1476 = vmin.f32 %v1401, 6.0
        %v1477 = vmin.f32 %v1402, 6.0
        %v1478 = vmin.f32 %v1403, 6.0
        %v1479 = vmin.f32 %v1404, 6.0
        %v1480 = vmin.f32 %v1405, 6.0
        %v1481 = vmin.f32 %v1406, 6.0
        %v1482 = vmin.f32 %v1407, 6.0
        %v1483 = vmin.f32 %v1408, 6.0
        %v1484 = vmin.f32 %v1409, 6.0
        %v1485 = vmin.f32 %v1410, 6.0
        %v1486 = vmin.f32 %v1411, 6.0
        %1487 = vst [vmem:[#allocation2] sm:$0xff] 0.0
        %1488 = vst [vmem:[#allocation2 + $0x8] sm:$0xff] 0.0
        %1489 = vst [vmem:[#allocation2 + $0x10] sm:$0xff] 0.0
        %1490 = vst [vmem:[#allocation2 + $0x18] sm:$0xff] 0.0
        %1491 = vst [vmem:[#allocation2 + $0x20] sm:$0xff] 0.0
        %1492 = vst [vmem:[#allocation2 + $0x28] sm:$0xff] 0.0
        %s1493 = scalar_lea.vmem [#allocation2], 720
        %1494 = vst [vmem:[%s1493] sm:$0xff] 0.0
        %1495 = vst [vmem:[%s1493 + $0x8] sm:$0xff] 0.0
        %1496 = vst [vmem:[%s1493 + $0x10] sm:$0xff] 0.0
        %1497 = vst [vmem:[%s1493 + $0x18] sm:$0xff] 0.0
        %1498 = vst [vmem:[%s1493 + $0x20] sm:$0xff] 0.0
        %1499 = vst [vmem:[%s1493 + $0x28] sm:$0xff] 0.0
        %v1500 = vlaneseq
        %vm1501 = vcmp.ge.s32.totalorder %v1500, 0
        %vm1502 = vcmp.lt.s32.totalorder %v1500, 384
        %vm1503 = vmand %vm1501, %vm1502
        %1504 = vst.msk [vmem:[#allocation2] ss:$8 sm:$0x7] %vm1503, 0.0
        %1505 = vst.msk [vmem:[#allocation2] ss:$8 sm:$0x0] %vm1503, 0.0
        %s1506 = scalar_lea.vmem [#allocation2], 48
        %1507 = vst.msk [vmem:[%s1506] ss:$8 sm:$0x7] %vm1503, 0.0
        %1508 = vst.msk [vmem:[%s1506] ss:$8 sm:$0x0] %vm1503, 0.0
        %s1509 = scalar_lea.vmem [#allocation2], 96
        %1510 = vst.msk [vmem:[%s1509] ss:$8 sm:$0x7] %vm1503, 0.0
        %1511 = vst.msk [vmem:[%s1509] ss:$8 sm:$0x0] %vm1503, 0.0
        %s1512 = scalar_lea.vmem [#allocation2], 144
        %1513 = vst.msk [vmem:[%s1512] ss:$8 sm:$0x7] %vm1503, 0.0
        %1514 = vst.msk [vmem:[%s1512] ss:$8 sm:$0x0] %vm1503, 0.0
        %s1515 = scalar_lea.vmem [#allocation2], 192
        %1516 = vst.msk [vmem:[%s1515] ss:$8 sm:$0x7] %vm1503, 0.0
        %1517 = vst.msk [vmem:[%s1515] ss:$8 sm:$0x0] %vm1503, 0.0
        %s1518 = scalar_lea.vmem [#allocation2], 240
        %1519 = vst.msk [vmem:[%s1518] ss:$8 sm:$0x7] %vm1503, 0.0
        %1520 = vst.msk [vmem:[%s1518] ss:$8 sm:$0x0] %vm1503, 0.0
        %s1521 = scalar_lea.vmem [#allocation2], 288
        %1522 = vst.msk [vmem:[%s1521] ss:$8 sm:$0x7] %vm1503, 0.0
        %1523 = vst.msk [vmem:[%s1521] ss:$8 sm:$0x0] %vm1503, 0.0
        %s1524 = scalar_lea.vmem [#allocation2], 336
        %1525 = vst.msk [vmem:[%s1524] ss:$8 sm:$0x7] %vm1503, 0.0
        %1526 = vst.msk [vmem:[%s1524] ss:$8 sm:$0x0] %vm1503, 0.0
        %s1527 = scalar_lea.vmem [#allocation2], 384
        %1528 = vst.msk [vmem:[%s1527] ss:$8 sm:$0x7] %vm1503, 0.0
        %1529 = vst.msk [vmem:[%s1527] ss:$8 sm:$0x0] %vm1503, 0.0
        %s1530 = scalar_lea.vmem [#allocation2], 432
        %1531 = vst.msk [vmem:[%s1530] ss:$8 sm:$0x7] %vm1503, 0.0
        %1532 = vst.msk [vmem:[%s1530] ss:$8 sm:$0x0] %vm1503, 0.0
        %s1533 = scalar_lea.vmem [#allocation2], 480
        %1534 = vst.msk [vmem:[%s1533] ss:$8 sm:$0x7] %vm1503, 0.0
        %1535 = vst.msk [vmem:[%s1533] ss:$8 sm:$0x0] %vm1503, 0.0
        %s1536 = scalar_lea.vmem [#allocation2], 528
        %1537 = vst.msk [vmem:[%s1536] ss:$8 sm:$0x7] %vm1503, 0.0
        %1538 = vst.msk [vmem:[%s1536] ss:$8 sm:$0x0] %vm1503, 0.0
        %s1539 = scalar_lea.vmem [#allocation2], 576
        %1540 = vst.msk [vmem:[%s1539] ss:$8 sm:$0x7] %vm1503, 0.0
        %1541 = vst.msk [vmem:[%s1539] ss:$8 sm:$0x0] %vm1503, 0.0
        %s1542 = scalar_lea.vmem [#allocation2], 624
        %1543 = vst.msk [vmem:[%s1542] ss:$8 sm:$0x7] %vm1503, 0.0
        %1544 = vst.msk [vmem:[%s1542] ss:$8 sm:$0x0] %vm1503, 0.0
        %s1545 = scalar_lea.vmem [#allocation2], 672
        %1546 = vst.msk [vmem:[%s1545] ss:$8 sm:$0x7] %vm1503, 0.0
        %1547 = vst.msk [vmem:[%s1545] ss:$8 sm:$0x0] %vm1503, 0.0
        %s1548 = scalar_lea.vmem [#allocation2], 720
        %1549 = vst.msk [vmem:[%s1548] ss:$8 sm:$0x7] %vm1503, 0.0
        %1550 = vst.msk [vmem:[%s1548] ss:$8 sm:$0x0] %vm1503, 0.0
        %s1551 = scalar_lea.vmem [#allocation2], 31
        %1552 = vst.msk [vmem:[%s1551] ss:$8 sm:$0x7] %vm1503, 0.0
        %1553 = vst.msk [vmem:[%s1551] ss:$8 sm:$0x0] %vm1503, 0.0
        %s1554 = scalar_lea.vmem [#allocation2], 79
        %1555 = vst.msk [vmem:[%s1554] ss:$8 sm:$0x7] %vm1503, 0.0
        %1556 = vst.msk [vmem:[%s1554] ss:$8 sm:$0x0] %vm1503, 0.0
        %s1557 = scalar_lea.vmem [#allocation2], 127
        %1558 = vst.msk [vmem:[%s1557] ss:$8 sm:$0x7] %vm1503, 0.0
        %1559 = vst.msk [vmem:[%s1557] ss:$8 sm:$0x0] %vm1503, 0.0
        %s1560 = scalar_lea.vmem [#allocation2], 175
        %1561 = vst.msk [vmem:[%s1560] ss:$8 sm:$0x7] %vm1503, 0.0
        %1562 = vst.msk [vmem:[%s1560] ss:$8 sm:$0x0] %vm1503, 0.0
        %s1563 = scalar_lea.vmem [#allocation2], 223
        %1564 = vst.msk [vmem:[%s1563] ss:$8 sm:$0x7] %vm1503, 0.0
        %1565 = vst.msk [vmem:[%s1563] ss:$8 sm:$0x0] %vm1503, 0.0
        %s1566 = scalar_lea.vmem [#allocation2], 271
        %1567 = vst.msk [vmem:[%s1566] ss:$8 sm:$0x7] %vm1503, 0.0
        %1568 = vst.msk [vmem:[%s1566] ss:$8 sm:$0x0] %vm1503, 0.0
        %s1569 = scalar_lea.vmem [#allocation2], 319
        %1570 = vst.msk [vmem:[%s1569] ss:$8 sm:$0x7] %vm1503, 0.0
        %1571 = vst.msk [vmem:[%s1569] ss:$8 sm:$0x0] %vm1503, 0.0
        %s1572 = scalar_lea.vmem [#allocation2], 367
        %1573 = vst.msk [vmem:[%s1572] ss:$8 sm:$0x7] %vm1503, 0.0
        %1574 = vst.msk [vmem:[%s1572] ss:$8 sm:$0x0] %vm1503, 0.0
        %s1575 = scalar_lea.vmem [#allocation2], 415
        %1576 = vst.msk [vmem:[%s1575] ss:$8 sm:$0x7] %vm1503, 0.0
        %1577 = vst.msk [vmem:[%s1575] ss:$8 sm:$0x0] %vm1503, 0.0
        %s1578 = scalar_lea.vmem [#allocation2], 463
        %1579 = vst.msk [vmem:[%s1578] ss:$8 sm:$0x7] %vm1503, 0.0
        %1580 = vst.msk [vmem:[%s1578] ss:$8 sm:$0x0] %vm1503, 0.0
        %s1581 = scalar_lea.vmem [#allocation2], 511
        %1582 = vst.msk [vmem:[%s1581] ss:$8 sm:$0x7] %vm1503, 0.0
        %1583 = vst.msk [vmem:[%s1581] ss:$8 sm:$0x0] %vm1503, 0.0
        %s1584 = scalar_lea.vmem [#allocation2], 559
        %1585 = vst.msk [vmem:[%s1584] ss:$8 sm:$0x7] %vm1503, 0.0
        %1586 = vst.msk [vmem:[%s1584] ss:$8 sm:$0x0] %vm1503, 0.0
        %s1587 = scalar_lea.vmem [#allocation2], 607
        %1588 = vst.msk [vmem:[%s1587] ss:$8 sm:$0x7] %vm1503, 0.0
        %1589 = vst.msk [vmem:[%s1587] ss:$8 sm:$0x0] %vm1503, 0.0
        %s1590 = scalar_lea.vmem [#allocation2], 655
        %1591 = vst.msk [vmem:[%s1590] ss:$8 sm:$0x7] %vm1503, 0.0
        %1592 = vst.msk [vmem:[%s1590] ss:$8 sm:$0x0] %vm1503, 0.0
        %s1593 = scalar_lea.vmem [#allocation2], 703
        %1594 = vst.msk [vmem:[%s1593] ss:$8 sm:$0x7] %vm1503, 0.0
        %1595 = vst.msk [vmem:[%s1593] ss:$8 sm:$0x0] %vm1503, 0.0
        %s1596 = scalar_lea.vmem [#allocation2], 751
        %1597 = vst.msk [vmem:[%s1596] ss:$8 sm:$0x7] %vm1503, 0.0
        %1598 = vst.msk [vmem:[%s1596] ss:$8 sm:$0x0] %vm1503, 0.0
        %v1674 = vrot.slane %v1413, 6
        %v1675 = vrot.slane %v1414, 4
        %v1676 = vrot.slane %v1416, 6
        %v1677 = vrot.slane %v1417, 4
        %v1678 = vrot.slane %v1419, 6
        %v1679 = vrot.slane %v1420, 4
        %v1680 = vrot.slane %v1422, 6
        %v1681 = vrot.slane %v1423, 4
        %v1682 = vrot.slane %v1425, 6
        %v1683 = vrot.slane %v1426, 4
        %v1684 = vrot.slane %v1428, 6
        %v1685 = vrot.slane %v1429, 4
        %v1686 = vrot.slane %v1431, 6
        %v1687 = vrot.slane %v1432, 4
        %v1688 = vrot.slane %v1434, 6
        %v1689 = vrot.slane %v1435, 4
        %v1690 = vrot.slane %v1437, 6
        %v1691 = vrot.slane %v1438, 4
        %v1692 = vrot.slane %v1440, 6
        %v1693 = vrot.slane %v1441, 4
        %v1694 = vrot.slane %v1443, 6
        %v1695 = vrot.slane %v1444, 4
        %v1696 = vrot.slane %v1446, 6
        %v1697 = vrot.slane %v1447, 4
        %v1698 = vrot.slane %v1449, 6
        %v1699 = vrot.slane %v1450, 4
        %v1700 = vrot.slane %v1452, 6
        %v1701 = vrot.slane %v1453, 4
        %v1702 = vrot.slane %v1455, 6
        %v1703 = vrot.slane %v1456, 4
        %v1704 = vrot.slane %v1458, 6
        %v1705 = vrot.slane %v1459, 4
        %v1706 = vrot.slane %v1461, 6
        %v1707 = vrot.slane %v1462, 4
        %v1708 = vrot.slane %v1464, 6
        %v1709 = vrot.slane %v1465, 4
        %v1710 = vrot.slane %v1467, 6
        %v1711 = vrot.slane %v1468, 4
        %v1712 = vrot.slane %v1470, 6
        %v1713 = vrot.slane %v1471, 4
        %v1714 = vrot.slane %v1473, 6
        %v1715 = vrot.slane %v1474, 4
        %v1716 = vrot.slane %v1476, 6
        %v1717 = vrot.slane %v1477, 4
        %v1718 = vrot.slane %v1479, 6
        %v1719 = vrot.slane %v1480, 4
        %v1720 = vrot.slane %v1482, 6
        %v1721 = vrot.slane %v1483, 4
        %v1722 = vrot.slane %v1485, 6
        %v1723 = vrot.slane %v1486, 4
        %v1724 = vsel %vm1156, %v1412, %v1674
        %v1725 = vsel %vm864, %v1724, %v1675
        %vm1726 = vcmask 1043458
        %v1727 = vsel %vm1726, %v1412, %v1674
        %vm1728 = vcmask 1045506
        %v1729 = vsel %vm1728, %v1727, %v1675
        %v1730 = vrot.slane %v1729, 2
        %vm1731 = vcmask 1045508
        %v1732 = vsel %vm1731, %v1412, %v1674
        %v1733 = vsel %vm864, %v1675, %v1732
        %v1734 = vrot.slane %v1733, 4
        %vm1735 = vcmask 1045504
        %v1736 = vsel %vm1735, %v1674, %v1412
        %v1737 = vsel %vm1728, %v1675, %v1736
        %v1738 = vrot.slane %v1737, 6
        %v1739 = vsel %vm1156, %v1415, %v1676
        %v1740 = vsel %vm864, %v1739, %v1677
        %v1741 = vsel %vm1726, %v1415, %v1676
        %v1742 = vsel %vm1728, %v1741, %v1677
        %v1743 = vrot.slane %v1742, 2
        %v1744 = vsel %vm1731, %v1415, %v1676
        %v1745 = vsel %vm864, %v1677, %v1744
        %v1746 = vrot.slane %v1745, 4
        %v1747 = vsel %vm1735, %v1676, %v1415
        %v1748 = vsel %vm1728, %v1677, %v1747
        %v1749 = vrot.slane %v1748, 6
        %v1750 = vsel %vm1156, %v1418, %v1678
        %v1751 = vsel %vm864, %v1750, %v1679
        %v1752 = vsel %vm1726, %v1418, %v1678
        %v1753 = vsel %vm1728, %v1752, %v1679
        %v1754 = vrot.slane %v1753, 2
        %v1755 = vsel %vm1731, %v1418, %v1678
        %v1756 = vsel %vm864, %v1679, %v1755
        %v1757 = vrot.slane %v1756, 4
        %v1758 = vsel %vm1735, %v1678, %v1418
        %v1759 = vsel %vm1728, %v1679, %v1758
        %v1760 = vrot.slane %v1759, 6
        %v1761 = vsel %vm1156, %v1421, %v1680
        %v1762 = vsel %vm864, %v1761, %v1681
        %v1763 = vsel %vm1726, %v1421, %v1680
        %v1764 = vsel %vm1728, %v1763, %v1681
        %v1765 = vrot.slane %v1764, 2
        %v1766 = vsel %vm1731, %v1421, %v1680
        %v1767 = vsel %vm864, %v1681, %v1766
        %v1768 = vrot.slane %v1767, 4
        %v1769 = vsel %vm1735, %v1680, %v1421
        %v1770 = vsel %vm1728, %v1681, %v1769
        %v1771 = vrot.slane %v1770, 6
        %v1772 = vsel %vm1156, %v1424, %v1682
        %v1773 = vsel %vm864, %v1772, %v1683
        %v1774 = vsel %vm1726, %v1424, %v1682
        %v1775 = vsel %vm1728, %v1774, %v1683
        %v1776 = vrot.slane %v1775, 2
        %v1777 = vsel %vm1731, %v1424, %v1682
        %v1778 = vsel %vm864, %v1683, %v1777
        %v1779 = vrot.slane %v1778, 4
        %v1780 = vsel %vm1735, %v1682, %v1424
        %v1781 = vsel %vm1728, %v1683, %v1780
        %v1782 = vrot.slane %v1781, 6
        %v1783 = vsel %vm1156, %v1427, %v1684
        %v1784 = vsel %vm864, %v1783, %v1685
        %v1785 = vsel %vm1726, %v1427, %v1684
        %v1786 = vsel %vm1728, %v1785, %v1685
        %v1787 = vrot.slane %v1786, 2
        %v1788 = vsel %vm1731, %v1427, %v1684
        %v1789 = vsel %vm864, %v1685, %v1788
        %v1790 = vrot.slane %v1789, 4
        %v1791 = vsel %vm1735, %v1684, %v1427
        %v1792 = vsel %vm1728, %v1685, %v1791
        %v1793 = vrot.slane %v1792, 6
        %v1794 = vsel %vm1156, %v1430, %v1686
        %v1795 = vsel %vm864, %v1794, %v1687
        %v1796 = vsel %vm1726, %v1430, %v1686
        %v1797 = vsel %vm1728, %v1796, %v1687
        %v1798 = vrot.slane %v1797, 2
        %v1799 = vsel %vm1731, %v1430, %v1686
        %v1800 = vsel %vm864, %v1687, %v1799
        %v1801 = vrot.slane %v1800, 4
        %v1802 = vsel %vm1735, %v1686, %v1430
        %v1803 = vsel %vm1728, %v1687, %v1802
        %v1804 = vrot.slane %v1803, 6
        %v1805 = vsel %vm1156, %v1433, %v1688
        %v1806 = vsel %vm864, %v1805, %v1689
        %v1807 = vsel %vm1726, %v1433, %v1688
        %v1808 = vsel %vm1728, %v1807, %v1689
        %v1809 = vrot.slane %v1808, 2
        %v1810 = vsel %vm1731, %v1433, %v1688
        %v1811 = vsel %vm864, %v1689, %v1810
        %v1812 = vrot.slane %v1811, 4
        %v1813 = vsel %vm1735, %v1688, %v1433
        %v1814 = vsel %vm1728, %v1689, %v1813
        %v1815 = vrot.slane %v1814, 6
        %v1816 = vsel %vm1156, %v1436, %v1690
        %v1817 = vsel %vm864, %v1816, %v1691
        %v1818 = vsel %vm1726, %v1436, %v1690
        %v1819 = vsel %vm1728, %v1818, %v1691
        %v1820 = vrot.slane %v1819, 2
        %v1821 = vsel %vm1731, %v1436, %v1690
        %v1822 = vsel %vm864, %v1691, %v1821
        %v1823 = vrot.slane %v1822, 4
        %v1824 = vsel %vm1735, %v1690, %v1436
        %v1825 = vsel %vm1728, %v1691, %v1824
        %v1826 = vrot.slane %v1825, 6
        %v1827 = vsel %vm1156, %v1439, %v1692
        %v1828 = vsel %vm864, %v1827, %v1693
        %v1829 = vsel %vm1726, %v1439, %v1692
        %v1830 = vsel %vm1728, %v1829, %v1693
        %v1831 = vrot.slane %v1830, 2
        %v1832 = vsel %vm1731, %v1439, %v1692
        %v1833 = vsel %vm864, %v1693, %v1832
        %v1834 = vrot.slane %v1833, 4
        %v1835 = vsel %vm1735, %v1692, %v1439
        %v1836 = vsel %vm1728, %v1693, %v1835
        %v1837 = vrot.slane %v1836, 6
        %v1838 = vsel %vm1156, %v1442, %v1694
        %v1839 = vsel %vm864, %v1838, %v1695
        %v1840 = vsel %vm1726, %v1442, %v1694
        %v1841 = vsel %vm1728, %v1840, %v1695
        %v1842 = vrot.slane %v1841, 2
        %v1843 = vsel %vm1731, %v1442, %v1694
        %v1844 = vsel %vm864, %v1695, %v1843
        %v1845 = vrot.slane %v1844, 4
        %v1846 = vsel %vm1735, %v1694, %v1442
        %v1847 = vsel %vm1728, %v1695, %v1846
        %v1848 = vrot.slane %v1847, 6
        %v1849 = vsel %vm1156, %v1445, %v1696
        %v1850 = vsel %vm864, %v1849, %v1697
        %v1851 = vsel %vm1726, %v1445, %v1696
        %v1852 = vsel %vm1728, %v1851, %v1697
        %v1853 = vrot.slane %v1852, 2
        %v1854 = vsel %vm1731, %v1445, %v1696
        %v1855 = vsel %vm864, %v1697, %v1854
        %v1856 = vrot.slane %v1855, 4
        %v1857 = vsel %vm1735, %v1696, %v1445
        %v1858 = vsel %vm1728, %v1697, %v1857
        %v1859 = vrot.slane %v1858, 6
        %v1860 = vsel %vm1156, %v1448, %v1698
        %v1861 = vsel %vm864, %v1860, %v1699
        %v1862 = vsel %vm1726, %v1448, %v1698
        %v1863 = vsel %vm1728, %v1862, %v1699
        %v1864 = vrot.slane %v1863, 2
        %v1865 = vsel %vm1731, %v1448, %v1698
        %v1866 = vsel %vm864, %v1699, %v1865
        %v1867 = vrot.slane %v1866, 4
        %v1868 = vsel %vm1735, %v1698, %v1448
        %v1869 = vsel %vm1728, %v1699, %v1868
        %v1870 = vrot.slane %v1869, 6
        %v1871 = vsel %vm1156, %v1451, %v1700
        %v1872 = vsel %vm864, %v1871, %v1701
        %v1873 = vsel %vm1726, %v1451, %v1700
        %v1874 = vsel %vm1728, %v1873, %v1701
        %v1875 = vrot.slane %v1874, 2
        %v1876 = vsel %vm1731, %v1451, %v1700
        %v1877 = vsel %vm864, %v1701, %v1876
        %v1878 = vrot.slane %v1877, 4
        %v1879 = vsel %vm1735, %v1700, %v1451
        %v1880 = vsel %vm1728, %v1701, %v1879
        %v1881 = vrot.slane %v1880, 6
        %v1882 = vsel %vm1156, %v1454, %v1702
        %v1883 = vsel %vm864, %v1882, %v1703
        %v1884 = vsel %vm1726, %v1454, %v1702
        %v1885 = vsel %vm1728, %v1884, %v1703
        %v1886 = vrot.slane %v1885, 2
        %v1887 = vsel %vm1731, %v1454, %v1702
        %v1888 = vsel %vm864, %v1703, %v1887
        %v1889 = vrot.slane %v1888, 4
        %v1890 = vsel %vm1735, %v1702, %v1454
        %v1891 = vsel %vm1728, %v1703, %v1890
        %v1892 = vrot.slane %v1891, 6
        %v1893 = vsel %vm1156, %v1457, %v1704
        %v1894 = vsel %vm864, %v1893, %v1705
        %v1895 = vsel %vm1726, %v1457, %v1704
        %v1896 = vsel %vm1728, %v1895, %v1705
        %v1897 = vrot.slane %v1896, 2
        %v1898 = vsel %vm1731, %v1457, %v1704
        %v1899 = vsel %vm864, %v1705, %v1898
        %v1900 = vrot.slane %v1899, 4
        %v1901 = vsel %vm1735, %v1704, %v1457
        %v1902 = vsel %vm1728, %v1705, %v1901
        %v1903 = vrot.slane %v1902, 6
        %v1904 = vsel %vm1156, %v1460, %v1706
        %v1905 = vsel %vm864, %v1904, %v1707
        %v1906 = vsel %vm1726, %v1460, %v1706
        %v1907 = vsel %vm1728, %v1906, %v1707
        %v1908 = vrot.slane %v1907, 2
        %v1909 = vsel %vm1731, %v1460, %v1706
        %v1910 = vsel %vm864, %v1707, %v1909
        %v1911 = vrot.slane %v1910, 4
        %v1912 = vsel %vm1735, %v1706, %v1460
        %v1913 = vsel %vm1728, %v1707, %v1912
        %v1914 = vrot.slane %v1913, 6
        %v1915 = vsel %vm1156, %v1463, %v1708
        %v1916 = vsel %vm864, %v1915, %v1709
        %v1917 = vsel %vm1726, %v1463, %v1708
        %v1918 = vsel %vm1728, %v1917, %v1709
        %v1919 = vrot.slane %v1918, 2
        %v1920 = vsel %vm1731, %v1463, %v1708
        %v1921 = vsel %vm864, %v1709, %v1920
        %v1922 = vrot.slane %v1921, 4
        %v1923 = vsel %vm1735, %v1708, %v1463
        %v1924 = vsel %vm1728, %v1709, %v1923
        %v1925 = vrot.slane %v1924, 6
        %v1926 = vsel %vm1156, %v1466, %v1710
        %v1927 = vsel %vm864, %v1926, %v1711
        %v1928 = vsel %vm1726, %v1466, %v1710
        %v1929 = vsel %vm1728, %v1928, %v1711
        %v1930 = vrot.slane %v1929, 2
        %v1931 = vsel %vm1731, %v1466, %v1710
        %v1932 = vsel %vm864, %v1711, %v1931
        %v1933 = vrot.slane %v1932, 4
        %v1934 = vsel %vm1735, %v1710, %v1466
        %v1935 = vsel %vm1728, %v1711, %v1934
        %v1936 = vrot.slane %v1935, 6
        %v1937 = vsel %vm1156, %v1469, %v1712
        %v1938 = vsel %vm864, %v1937, %v1713
        %v1939 = vsel %vm1726, %v1469, %v1712
        %v1940 = vsel %vm1728, %v1939, %v1713
        %v1941 = vrot.slane %v1940, 2
        %v1942 = vsel %vm1731, %v1469, %v1712
        %v1943 = vsel %vm864, %v1713, %v1942
        %v1944 = vrot.slane %v1943, 4
        %v1945 = vsel %vm1735, %v1712, %v1469
        %v1946 = vsel %vm1728, %v1713, %v1945
        %v1947 = vrot.slane %v1946, 6
        %v1948 = vsel %vm1156, %v1472, %v1714
        %v1949 = vsel %vm864, %v1948, %v1715
        %v1950 = vsel %vm1726, %v1472, %v1714
        %v1951 = vsel %vm1728, %v1950, %v1715
        %v1952 = vrot.slane %v1951, 2
        %v1953 = vsel %vm1731, %v1472, %v1714
        %v1954 = vsel %vm864, %v1715, %v1953
        %v1955 = vrot.slane %v1954, 4
        %v1956 = vsel %vm1735, %v1714, %v1472
        %v1957 = vsel %vm1728, %v1715, %v1956
        %v1958 = vrot.slane %v1957, 6
        %v1959 = vsel %vm1156, %v1475, %v1716
        %v1960 = vsel %vm864, %v1959, %v1717
        %v1961 = vsel %vm1726, %v1475, %v1716
        %v1962 = vsel %vm1728, %v1961, %v1717
        %v1963 = vrot.slane %v1962, 2
        %v1964 = vsel %vm1731, %v1475, %v1716
        %v1965 = vsel %vm864, %v1717, %v1964
        %v1966 = vrot.slane %v1965, 4
        %v1967 = vsel %vm1735, %v1716, %v1475
        %v1968 = vsel %vm1728, %v1717, %v1967
        %v1969 = vrot.slane %v1968, 6
        %v1970 = vsel %vm1156, %v1478, %v1718
        %v1971 = vsel %vm864, %v1970, %v1719
        %v1972 = vsel %vm1726, %v1478, %v1718
        %v1973 = vsel %vm1728, %v1972, %v1719
        %v1974 = vrot.slane %v1973, 2
        %v1975 = vsel %vm1731, %v1478, %v1718
        %v1976 = vsel %vm864, %v1719, %v1975
        %v1977 = vrot.slane %v1976, 4
        %v1978 = vsel %vm1735, %v1718, %v1478
        %v1979 = vsel %vm1728, %v1719, %v1978
        %v1980 = vrot.slane %v1979, 6
        %v1981 = vsel %vm1156, %v1481, %v1720
        %v1982 = vsel %vm864, %v1981, %v1721
        %v1983 = vsel %vm1726, %v1481, %v1720
        %v1984 = vsel %vm1728, %v1983, %v1721
        %v1985 = vrot.slane %v1984, 2
        %v1986 = vsel %vm1731, %v1481, %v1720
        %v1987 = vsel %vm864, %v1721, %v1986
        %v1988 = vrot.slane %v1987, 4
        %v1989 = vsel %vm1735, %v1720, %v1481
        %v1990 = vsel %vm1728, %v1721, %v1989
        %v1991 = vrot.slane %v1990, 6
        %v1992 = vsel %vm1156, %v1484, %v1722
        %v1993 = vsel %vm864, %v1992, %v1723
        %v1994 = vsel %vm1726, %v1484, %v1722
        %v1995 = vsel %vm1728, %v1994, %v1723
        %v1996 = vrot.slane %v1995, 2
        %1997 = vst [vmem:[#allocation1] ss:$4 sm:$0xff] %v1725
        %s1998 = scalar_lea.vmem [#allocation1], 1
        %1999 = vst [vmem:[%s1998] ss:$4 sm:$0xff] %v1730
        %s2000 = scalar_lea.vmem [#allocation1], 2
        %2001 = vst [vmem:[%s2000] ss:$4 sm:$0xff] %v1734
        %s2002 = scalar_lea.vmem [#allocation1], 3
        %2003 = vst [vmem:[%s2002] ss:$4 sm:$0xff] %v1738
        %s2004 = scalar_lea.vmem [#allocation1], 32
        %2005 = vst [vmem:[%s2004] ss:$4 sm:$0xff] %v1740
        %s2006 = scalar_lea.vmem [#allocation1], 33
        %2007 = vst [vmem:[%s2006] ss:$4 sm:$0xff] %v1743
        %s2008 = scalar_lea.vmem [#allocation1], 34
        %2009 = vst [vmem:[%s2008] ss:$4 sm:$0xff] %v1746
        %v2010 = vld.sshfl [vmem:[#allocation1] sm:$0xff pattern:$0x73625140]
        %v2011 = vld.sshfl [vmem:[#allocation1 + $0x8] sm:$0xff pattern:$0x73625140]
        %v2012 = vld.sshfl [vmem:[#allocation1 + $0x10] sm:$0xff pattern:$0x73625140]
        %v2013 = vld.sshfl [vmem:[#allocation1 + $0x20] sm:$0xff pattern:$0x73625140]
        %v2014 = vld.sshfl [vmem:[#allocation1 + $0x28] sm:$0xff pattern:$0x73625140]
        %v2015 = vld.sshfl [vmem:[#allocation1 + $0x30] sm:$0xff pattern:$0x73625140]
        %2016 = vst [vmem:[#allocation1] ss:$4 sm:$0xff] %v1749
        %2017 = vst [vmem:[%s1998] ss:$4 sm:$0xff] %v1751
        %2018 = vst [vmem:[%s2000] ss:$4 sm:$0xff] %v1754
        %2019 = vst [vmem:[%s2002] ss:$4 sm:$0xff] %v1757
        %2020 = vst [vmem:[%s2004] ss:$4 sm:$0xff] %v1760
        %2021 = vst [vmem:[%s2006] ss:$4 sm:$0xff] %v1762
        %2022 = vst [vmem:[%s2008] ss:$4 sm:$0xff] %v1765
        %v2023 = vld.sshfl [vmem:[#allocation1] sm:$0xff pattern:$0x73625140]
        %v2024 = vld.sshfl [vmem:[#allocation1 + $0x8] sm:$0xff pattern:$0x73625140]
        %v2025 = vld.sshfl [vmem:[#allocation1 + $0x10] sm:$0xff pattern:$0x73625140]
        %v2026 = vld.sshfl [vmem:[#allocation1 + $0x20] sm:$0xff pattern:$0x73625140]
        %v2027 = vld.sshfl [vmem:[#allocation1 + $0x28] sm:$0xff pattern:$0x73625140]
        %v2028 = vld.sshfl [vmem:[#allocation1 + $0x30] sm:$0xff pattern:$0x73625140]
        %2029 = vst [vmem:[#allocation1] ss:$4 sm:$0xff] %v1768
        %2030 = vst [vmem:[%s1998] ss:$4 sm:$0xff] %v1771
        %2031 = vst [vmem:[%s2000] ss:$4 sm:$0xff] %v1773
        %2032 = vst [vmem:[%s2002] ss:$4 sm:$0xff] %v1776
        %2033 = vst [vmem:[%s2004] ss:$4 sm:$0xff] %v1779
        %2034 = vst [vmem:[%s2006] ss:$4 sm:$0xff] %v1782
        %2035 = vst [vmem:[%s2008] ss:$4 sm:$0xff] %v1784
        %v2036 = vld.sshfl [vmem:[#allocation1] sm:$0xff pattern:$0x73625140]
        %v2037 = vld.sshfl [vmem:[#allocation1 + $0x8] sm:$0xff pattern:$0x73625140]
        %v2038 = vld.sshfl [vmem:[#allocation1 + $0x10] sm:$0xff pattern:$0x73625140]
        %v2039 = vld.sshfl [vmem:[#allocation1 + $0x20] sm:$0xff pattern:$0x73625140]
        %v2040 = vld.sshfl [vmem:[#allocation1 + $0x28] sm:$0xff pattern:$0x73625140]
        %v2041 = vld.sshfl [vmem:[#allocation1 + $0x30] sm:$0xff pattern:$0x73625140]
        %2042 = vst [vmem:[#allocation1] ss:$4 sm:$0xff] %v1787
        %2043 = vst [vmem:[%s1998] ss:$4 sm:$0xff] %v1790
        %2044 = vst [vmem:[%s2000] ss:$4 sm:$0xff] %v1793
        %2045 = vst [vmem:[%s2002] ss:$4 sm:$0xff] %v1795
        %2046 = vst [vmem:[%s2004] ss:$4 sm:$0xff] %v1798
        %2047 = vst [vmem:[%s2006] ss:$4 sm:$0xff] %v1801
        %2048 = vst [vmem:[%s2008] ss:$4 sm:$0xff] %v1804
        %v2049 = vld.sshfl [vmem:[#allocation1] sm:$0xff pattern:$0x73625140]
        %v2050 = vld.sshfl [vmem:[#allocation1 + $0x8] sm:$0xff pattern:$0x73625140]
        %v2051 = vld.sshfl [vmem:[#allocation1 + $0x10] sm:$0xff pattern:$0x73625140]
        %v2052 = vld.sshfl [vmem:[#allocation1 + $0x20] sm:$0xff pattern:$0x73625140]
        %v2053 = vld.sshfl [vmem:[#allocation1 + $0x28] sm:$0xff pattern:$0x73625140]
        %v2054 = vld.sshfl [vmem:[#allocation1 + $0x30] sm:$0xff pattern:$0x73625140]
        %2055 = vst [vmem:[#allocation1] ss:$4 sm:$0xff] %v1806
        %2056 = vst [vmem:[%s1998] ss:$4 sm:$0xff] %v1809
        %2057 = vst [vmem:[%s2000] ss:$4 sm:$0xff] %v1812
        %2058 = vst [vmem:[%s2002] ss:$4 sm:$0xff] %v1815
        %2059 = vst [vmem:[%s2004] ss:$4 sm:$0xff] %v1817
        %2060 = vst [vmem:[%s2006] ss:$4 sm:$0xff] %v1820
        %2061 = vst [vmem:[%s2008] ss:$4 sm:$0xff] %v1823
        %v2062 = vld.sshfl [vmem:[#allocation1] sm:$0xff pattern:$0x73625140]
        %v2063 = vld.sshfl [vmem:[#allocation1 + $0x8] sm:$0xff pattern:$0x73625140]
        %v2064 = vld.sshfl [vmem:[#allocation1 + $0x10] sm:$0xff pattern:$0x73625140]
        %v2065 = vld.sshfl [vmem:[#allocation1 + $0x20] sm:$0xff pattern:$0x73625140]
        %v2066 = vld.sshfl [vmem:[#allocation1 + $0x28] sm:$0xff pattern:$0x73625140]
        %v2067 = vld.sshfl [vmem:[#allocation1 + $0x30] sm:$0xff pattern:$0x73625140]
        %2068 = vst [vmem:[#allocation1] ss:$4 sm:$0xff] %v1826
        %2069 = vst [vmem:[%s1998] ss:$4 sm:$0xff] %v1828
        %2070 = vst [vmem:[%s2000] ss:$4 sm:$0xff] %v1831
        %2071 = vst [vmem:[%s2002] ss:$4 sm:$0xff] %v1834
        %2072 = vst [vmem:[%s2004] ss:$4 sm:$0xff] %v1837
        %2073 = vst [vmem:[%s2006] ss:$4 sm:$0xff] %v1839
        %2074 = vst [vmem:[%s2008] ss:$4 sm:$0xff] %v1842
        %v2075 = vld.sshfl [vmem:[#allocation1] sm:$0xff pattern:$0x73625140]
        %v2076 = vld.sshfl [vmem:[#allocation1 + $0x8] sm:$0xff pattern:$0x73625140]
        %v2077 = vld.sshfl [vmem:[#allocation1 + $0x10] sm:$0xff pattern:$0x73625140]
        %v2078 = vld.sshfl [vmem:[#allocation1 + $0x20] sm:$0xff pattern:$0x73625140]
        %v2079 = vld.sshfl [vmem:[#allocation1 + $0x28] sm:$0xff pattern:$0x73625140]
        %v2080 = vld.sshfl [vmem:[#allocation1 + $0x30] sm:$0xff pattern:$0x73625140]
        %2081 = vst [vmem:[#allocation1] ss:$4 sm:$0xff] %v1845
        %2082 = vst [vmem:[%s1998] ss:$4 sm:$0xff] %v1848
        %2083 = vst [vmem:[%s2000] ss:$4 sm:$0xff] %v1850
        %2084 = vst [vmem:[%s2002] ss:$4 sm:$0xff] %v1853
        %2085 = vst [vmem:[%s2004] ss:$4 sm:$0xff] %v1856
        %2086 = vst [vmem:[%s2006] ss:$4 sm:$0xff] %v1859
        %2087 = vst [vmem:[%s2008] ss:$4 sm:$0xff] %v1861
        %v2088 = vld.sshfl [vmem:[#allocation1] sm:$0xff pattern:$0x73625140]
        %v2089 = vld.sshfl [vmem:[#allocation1 + $0x8] sm:$0xff pattern:$0x73625140]
        %v2090 = vld.sshfl [vmem:[#allocation1 + $0x10] sm:$0xff pattern:$0x73625140]
        %v2091 = vld.sshfl [vmem:[#allocation1 + $0x20] sm:$0xff pattern:$0x73625140]
        %v2092 = vld.sshfl [vmem:[#allocation1 + $0x28] sm:$0xff pattern:$0x73625140]
        %v2093 = vld.sshfl [vmem:[#allocation1 + $0x30] sm:$0xff pattern:$0x73625140]
        %2094 = vst [vmem:[#allocation1] ss:$4 sm:$0xff] %v1864
        %2095 = vst [vmem:[%s1998] ss:$4 sm:$0xff] %v1867
        %2096 = vst [vmem:[%s2000] ss:$4 sm:$0xff] %v1870
        %2097 = vst [vmem:[%s2002] ss:$4 sm:$0xff] %v1872
        %2098 = vst [vmem:[%s2004] ss:$4 sm:$0xff] %v1875
        %2099 = vst [vmem:[%s2006] ss:$4 sm:$0xff] %v1878
        %2100 = vst [vmem:[%s2008] ss:$4 sm:$0xff] %v1881
        %v2101 = vld.sshfl [vmem:[#allocation1] sm:$0xff pattern:$0x73625140]
        %v2102 = vld.sshfl [vmem:[#allocation1 + $0x8] sm:$0xff pattern:$0x73625140]
        %v2103 = vld.sshfl [vmem:[#allocation1 + $0x10] sm:$0xff pattern:$0x73625140]
        %v2104 = vld.sshfl [vmem:[#allocation1 + $0x20] sm:$0xff pattern:$0x73625140]
        %v2105 = vld.sshfl [vmem:[#allocation1 + $0x28] sm:$0xff pattern:$0x73625140]
        %v2106 = vld.sshfl [vmem:[#allocation1 + $0x30] sm:$0xff pattern:$0x73625140]
        %2107 = vst [vmem:[#allocation1] ss:$4 sm:$0xff] %v1883
        %2108 = vst [vmem:[%s1998] ss:$4 sm:$0xff] %v1886
        %2109 = vst [vmem:[%s2000] ss:$4 sm:$0xff] %v1889
        %2110 = vst [vmem:[%s2002] ss:$4 sm:$0xff] %v1892
        %2111 = vst [vmem:[%s2004] ss:$4 sm:$0xff] %v1894
        %2112 = vst [vmem:[%s2006] ss:$4 sm:$0xff] %v1897
        %2113 = vst [vmem:[%s2008] ss:$4 sm:$0xff] %v1900
        %v2114 = vld.sshfl [vmem:[#allocation1] sm:$0xff pattern:$0x73625140]
        %v2115 = vld.sshfl [vmem:[#allocation1 + $0x8] sm:$0xff pattern:$0x73625140]
        %v2116 = vld.sshfl [vmem:[#allocation1 + $0x10] sm:$0xff pattern:$0x73625140]
        %v2117 = vld.sshfl [vmem:[#allocation1 + $0x20] sm:$0xff pattern:$0x73625140]
        %v2118 = vld.sshfl [vmem:[#allocation1 + $0x28] sm:$0xff pattern:$0x73625140]
        %v2119 = vld.sshfl [vmem:[#allocation1 + $0x30] sm:$0xff pattern:$0x73625140]
        %2120 = vst [vmem:[#allocation1] ss:$4 sm:$0xff] %v1903
        %2121 = vst [vmem:[%s1998] ss:$4 sm:$0xff] %v1905
        %2122 = vst [vmem:[%s2000] ss:$4 sm:$0xff] %v1908
        %2123 = vst [vmem:[%s2002] ss:$4 sm:$0xff] %v1911
        %2124 = vst [vmem:[%s2004] ss:$4 sm:$0xff] %v1914
        %2125 = vst [vmem:[%s2006] ss:$4 sm:$0xff] %v1916
        %2126 = vst [vmem:[%s2008] ss:$4 sm:$0xff] %v1919
        %v2127 = vld.sshfl [vmem:[#allocation1] sm:$0xff pattern:$0x73625140]
        %v2128 = vld.sshfl [vmem:[#allocation1 + $0x8] sm:$0xff pattern:$0x73625140]
        %v2129 = vld.sshfl [vmem:[#allocation1 + $0x10] sm:$0xff pattern:$0x73625140]
        %v2130 = vld.sshfl [vmem:[#allocation1 + $0x20] sm:$0xff pattern:$0x73625140]
        %v2131 = vld.sshfl [vmem:[#allocation1 + $0x28] sm:$0xff pattern:$0x73625140]
        %v2132 = vld.sshfl [vmem:[#allocation1 + $0x30] sm:$0xff pattern:$0x73625140]
        %2133 = vst [vmem:[#allocation1] ss:$4 sm:$0xff] %v1922
        %2134 = vst [vmem:[%s1998] ss:$4 sm:$0xff] %v1925
        %2135 = vst [vmem:[%s2000] ss:$4 sm:$0xff] %v1927
        %2136 = vst [vmem:[%s2002] ss:$4 sm:$0xff] %v1930
        %2137 = vst [vmem:[%s2004] ss:$4 sm:$0xff] %v1933
        %2138 = vst [vmem:[%s2006] ss:$4 sm:$0xff] %v1936
        %2139 = vst [vmem:[%s2008] ss:$4 sm:$0xff] %v1938
        %v2140 = vld.sshfl [vmem:[#allocation1] sm:$0xff pattern:$0x73625140]
        %v2141 = vld.sshfl [vmem:[#allocation1 + $0x8] sm:$0xff pattern:$0x73625140]
        %v2142 = vld.sshfl [vmem:[#allocation1 + $0x10] sm:$0xff pattern:$0x73625140]
        %v2143 = vld.sshfl [vmem:[#allocation1 + $0x20] sm:$0xff pattern:$0x73625140]
        %v2144 = vld.sshfl [vmem:[#allocation1 + $0x28] sm:$0xff pattern:$0x73625140]
        %v2145 = vld.sshfl [vmem:[#allocation1 + $0x30] sm:$0xff pattern:$0x73625140]
        %2146 = vst [vmem:[#allocation1] ss:$4 sm:$0xff] %v1941
        %2147 = vst [vmem:[%s1998] ss:$4 sm:$0xff] %v1944
        %2148 = vst [vmem:[%s2000] ss:$4 sm:$0xff] %v1947
        %2149 = vst [vmem:[%s2002] ss:$4 sm:$0xff] %v1949
        %2150 = vst [vmem:[%s2004] ss:$4 sm:$0xff] %v1952
        %2151 = vst [vmem:[%s2006] ss:$4 sm:$0xff] %v1955
        %2152 = vst [vmem:[%s2008] ss:$4 sm:$0xff] %v1958
        %v2153 = vld.sshfl [vmem:[#allocation1] sm:$0xff pattern:$0x73625140]
        %v2154 = vld.sshfl [vmem:[#allocation1 + $0x8] sm:$0xff pattern:$0x73625140]
        %v2155 = vld.sshfl [vmem:[#allocation1 + $0x10] sm:$0xff pattern:$0x73625140]
        %v2156 = vld.sshfl [vmem:[#allocation1 + $0x20] sm:$0xff pattern:$0x73625140]
        %v2157 = vld.sshfl [vmem:[#allocation1 + $0x28] sm:$0xff pattern:$0x73625140]
        %v2158 = vld.sshfl [vmem:[#allocation1 + $0x30] sm:$0xff pattern:$0x73625140]
        %2159 = vst [vmem:[#allocation1] ss:$4 sm:$0xff] %v1960
        %2160 = vst [vmem:[%s1998] ss:$4 sm:$0xff] %v1963
        %2161 = vst [vmem:[%s2000] ss:$4 sm:$0xff] %v1966
        %2162 = vst [vmem:[%s2002] ss:$4 sm:$0xff] %v1969
        %2163 = vst [vmem:[%s2004] ss:$4 sm:$0xff] %v1971
        %2164 = vst [vmem:[%s2006] ss:$4 sm:$0xff] %v1974
        %2165 = vst [vmem:[%s2008] ss:$4 sm:$0xff] %v1977
        %v2166 = vld.sshfl [vmem:[#allocation1] sm:$0xff pattern:$0x73625140]
        %v2167 = vld.sshfl [vmem:[#allocation1 + $0x8] sm:$0xff pattern:$0x73625140]
        %v2168 = vld.sshfl [vmem:[#allocation1 + $0x10] sm:$0xff pattern:$0x73625140]
        %v2169 = vld.sshfl [vmem:[#allocation1 + $0x20] sm:$0xff pattern:$0x73625140]
        %v2170 = vld.sshfl [vmem:[#allocation1 + $0x28] sm:$0xff pattern:$0x73625140]
        %v2171 = vld.sshfl [vmem:[#allocation1 + $0x30] sm:$0xff pattern:$0x73625140]
        %2172 = vst [vmem:[#allocation1] ss:$4 sm:$0xff] %v1980
        %2173 = vst [vmem:[%s1998] ss:$4 sm:$0xff] %v1982
        %2174 = vst [vmem:[%s2000] ss:$4 sm:$0xff] %v1985
        %2175 = vst [vmem:[%s2002] ss:$4 sm:$0xff] %v1988
        %2176 = vst [vmem:[%s2004] ss:$4 sm:$0xff] %v1991
        %2177 = vst [vmem:[%s2006] ss:$4 sm:$0xff] %v1993
        %2178 = vst [vmem:[%s2008] ss:$4 sm:$0xff] %v1996
        %v2179 = vld.sshfl [vmem:[#allocation1] sm:$0xff pattern:$0x73625140]
        %v2180 = vld.sshfl [vmem:[#allocation1 + $0x8] sm:$0xff pattern:$0x73625140]
        %v2181 = vld.sshfl [vmem:[#allocation1 + $0x10] sm:$0xff pattern:$0x73625140]
        %v2182 = vld.sshfl [vmem:[#allocation1 + $0x20] sm:$0xff pattern:$0x73625140]
        %v2183 = vld.sshfl [vmem:[#allocation1 + $0x28] sm:$0xff pattern:$0x73625140]
        %v2184 = vld.sshfl [vmem:[#allocation1 + $0x30] sm:$0xff pattern:$0x73625140]
        %v2185 = vrot.slane %v2010, 7
        %v2186 = vrot.slane %v2011, 7
        %v2187 = vrot.slane %v2012, 7
        %v2188 = vrot.slane %v2013, 7
        %v2189 = vsel %vm1154, %v2185, %v2188
        %v2190 = vrot.slane %v2014, 7
        %v2191 = vsel %vm1154, %v2186, %v2190
        %v2192 = vrot.slane %v2015, 7
        %v2193 = vsel %vm1154, %v2187, %v2192
        %v2194 = vrot.slane %v2023, 7
        %v2195 = vrot.slane %v2024, 7
        %v2196 = vrot.slane %v2025, 7
        %v2197 = vrot.slane %v2026, 7
        %v2198 = vsel %vm1154, %v2194, %v2197
        %v2199 = vrot.slane %v2027, 7
        %v2200 = vsel %vm1154, %v2195, %v2199
        %v2201 = vrot.slane %v2028, 7
        %v2202 = vsel %vm1154, %v2196, %v2201
        %v2203 = vrot.slane %v2036, 7
        %v2204 = vrot.slane %v2037, 7
        %v2205 = vrot.slane %v2038, 7
        %v2206 = vrot.slane %v2039, 7
        %v2207 = vsel %vm1154, %v2203, %v2206
        %v2208 = vrot.slane %v2040, 7
        %v2209 = vsel %vm1154, %v2204, %v2208
        %v2210 = vrot.slane %v2041, 7
        %v2211 = vsel %vm1154, %v2205, %v2210
        %v2212 = vrot.slane %v2049, 7
        %v2213 = vrot.slane %v2050, 7
        %v2214 = vrot.slane %v2051, 7
        %v2215 = vrot.slane %v2052, 7
        %v2216 = vsel %vm1154, %v2212, %v2215
        %v2217 = vrot.slane %v2053, 7
        %v2218 = vsel %vm1154, %v2213, %v2217
        %v2219 = vrot.slane %v2054, 7
        %v2220 = vsel %vm1154, %v2214, %v2219
        %v2221 = vrot.slane %v2062, 7
        %v2222 = vrot.slane %v2063, 7
        %v2223 = vrot.slane %v2064, 7
        %v2224 = vrot.slane %v2065, 7
        %v2225 = vsel %vm1154, %v2221, %v2224
        %v2226 = vrot.slane %v2066, 7
        %v2227 = vsel %vm1154, %v2222, %v2226
        %v2228 = vrot.slane %v2067, 7
        %v2229 = vsel %vm1154, %v2223, %v2228
        %v2230 = vrot.slane %v2075, 7
        %v2231 = vrot.slane %v2076, 7
        %v2232 = vrot.slane %v2077, 7
        %v2233 = vrot.slane %v2078, 7
        %v2234 = vsel %vm1154, %v2230, %v2233
        %v2235 = vrot.slane %v2079, 7
        %v2236 = vsel %vm1154, %v2231, %v2235
        %v2237 = vrot.slane %v2080, 7
        %v2238 = vsel %vm1154, %v2232, %v2237
        %v2239 = vrot.slane %v2088, 7
        %v2240 = vrot.slane %v2089, 7
        %v2241 = vrot.slane %v2090, 7
        %v2242 = vrot.slane %v2091, 7
        %v2243 = vsel %vm1154, %v2239, %v2242
        %v2244 = vrot.slane %v2092, 7
        %v2245 = vsel %vm1154, %v2240, %v2244
        %v2246 = vrot.slane %v2093, 7
        %v2247 = vsel %vm1154, %v2241, %v2246
        %v2248 = vrot.slane %v2101, 7
        %v2249 = vrot.slane %v2102, 7
        %v2250 = vrot.slane %v2103, 7
        %v2251 = vrot.slane %v2104, 7
        %v2252 = vsel %vm1154, %v2248, %v2251
        %v2253 = vrot.slane %v2105, 7
        %v2254 = vsel %vm1154, %v2249, %v2253
        %v2255 = vrot.slane %v2106, 7
        %v2256 = vsel %vm1154, %v2250, %v2255
        %v2257 = vrot.slane %v2114, 7
        %v2258 = vrot.slane %v2115, 7
        %v2259 = vrot.slane %v2116, 7
        %v2260 = vrot.slane %v2117, 7
        %v2261 = vsel %vm1154, %v2257, %v2260
        %v2262 = vrot.slane %v2118, 7
        %v2263 = vsel %vm1154, %v2258, %v2262
        %v2264 = vrot.slane %v2119, 7
        %v2265 = vsel %vm1154, %v2259, %v2264
        %v2266 = vrot.slane %v2127, 7
        %v2267 = vrot.slane %v2128, 7
        %v2268 = vrot.slane %v2129, 7
        %v2269 = vrot.slane %v2130, 7
        %v2270 = vsel %vm1154, %v2266, %v2269
        %v2271 = vrot.slane %v2131, 7
        %v2272 = vsel %vm1154, %v2267, %v2271
        %v2273 = vrot.slane %v2132, 7
        %v2274 = vsel %vm1154, %v2268, %v2273
        %v2275 = vrot.slane %v2140, 7
        %v2276 = vrot.slane %v2141, 7
        %v2277 = vrot.slane %v2142, 7
        %v2278 = vrot.slane %v2143, 7
        %v2279 = vsel %vm1154, %v2275, %v2278
        %v2280 = vrot.slane %v2144, 7
        %v2281 = vsel %vm1154, %v2276, %v2280
        %v2282 = vrot.slane %v2145, 7
        %v2283 = vsel %vm1154, %v2277, %v2282
        %v2284 = vrot.slane %v2153, 7
        %v2285 = vrot.slane %v2154, 7
        %v2286 = vrot.slane %v2155, 7
        %v2287 = vrot.slane %v2156, 7
        %v2288 = vsel %vm1154, %v2284, %v2287
        %v2289 = vrot.slane %v2157, 7
        %v2290 = vsel %vm1154, %v2285, %v2289
        %v2291 = vrot.slane %v2158, 7
        %v2292 = vsel %vm1154, %v2286, %v2291
        %v2293 = vrot.slane %v2166, 7
        %v2294 = vrot.slane %v2167, 7
        %v2295 = vrot.slane %v2168, 7
        %v2296 = vrot.slane %v2169, 7
        %v2297 = vsel %vm1154, %v2293, %v2296
        %v2298 = vrot.slane %v2170, 7
        %v2299 = vsel %vm1154, %v2294, %v2298
        %v2300 = vrot.slane %v2171, 7
        %v2301 = vsel %vm1154, %v2295, %v2300
        %v2302 = vrot.slane %v2179, 7
        %v2303 = vrot.slane %v2180, 7
        %v2304 = vrot.slane %v2181, 7
        %v2305 = vrot.slane %v2182, 7
        %v2306 = vsel %vm1154, %v2302, %v2305
        %v2307 = vrot.slane %v2183, 7
        %v2308 = vsel %vm1154, %v2303, %v2307
        %v2309 = vrot.slane %v2184, 7
        %v2310 = vsel %vm1154, %v2304, %v2309
        %s2395 = scalar_lea.vmem [#allocation2], 48
        %2396 = vst [vmem:[%s2395] sm:$0xfe] %v2185
        %2397 = vst [vmem:[%s2395 + $0x8] sm:$0xfe] %v2186
        %2398 = vst [vmem:[%s2395 + $0x10] sm:$0xfe] %v2187
        %2399 = vst [vmem:[%s2395 + $0x18] sm:$0x7f] %v2189
        %2400 = vst [vmem:[%s2395 + $0x20] sm:$0x7f] %v2191
        %2401 = vst [vmem:[%s2395 + $0x28] sm:$0x7f] %v2193
        %2402 = vst [vmem:[%s2395 + $0x30] sm:$0xfe] %v2194
        %2403 = vst [vmem:[%s2395 + $0x38] sm:$0xfe] %v2195
        %2404 = vst [vmem:[%s2395 + $0x40] sm:$0xfe] %v2196
        %2405 = vst [vmem:[%s2395 + $0x48] sm:$0x7f] %v2198
        %2406 = vst [vmem:[%s2395 + $0x50] sm:$0x7f] %v2200
        %2407 = vst [vmem:[%s2395 + $0x58] sm:$0x7f] %v2202
        %2408 = vst [vmem:[%s2395 + $0x60] sm:$0xfe] %v2203
        %2409 = vst [vmem:[%s2395 + $0x68] sm:$0xfe] %v2204
        %2410 = vst [vmem:[%s2395 + $0x70] sm:$0xfe] %v2205
        %2411 = vst [vmem:[%s2395 + $0x78] sm:$0x7f] %v2207
        %2412 = vst [vmem:[%s2395 + $0x80] sm:$0x7f] %v2209
        %2413 = vst [vmem:[%s2395 + $0x88] sm:$0x7f] %v2211
        %2414 = vst [vmem:[%s2395 + $0x90] sm:$0xfe] %v2212
        %2415 = vst [vmem:[%s2395 + $0x98] sm:$0xfe] %v2213
        %2416 = vst [vmem:[%s2395 + $0xa0] sm:$0xfe] %v2214
        %2417 = vst [vmem:[%s2395 + $0xa8] sm:$0x7f] %v2216
        %2418 = vst [vmem:[%s2395 + $0xb0] sm:$0x7f] %v2218
        %2419 = vst [vmem:[%s2395 + $0xb8] sm:$0x7f] %v2220
        %2420 = vst [vmem:[%s2395 + $0xc0] sm:$0xfe] %v2221
        %2421 = vst [vmem:[%s2395 + $0xc8] sm:$0xfe] %v2222
        %2422 = vst [vmem:[%s2395 + $0xd0] sm:$0xfe] %v2223
        %2423 = vst [vmem:[%s2395 + $0xd8] sm:$0x7f] %v2225
        %2424 = vst [vmem:[%s2395 + $0xe0] sm:$0x7f] %v2227
        %2425 = vst [vmem:[%s2395 + $0xe8] sm:$0x7f] %v2229
        %2426 = vst [vmem:[%s2395 + $0xf0] sm:$0xfe] %v2230
        %2427 = vst [vmem:[%s2395 + $0xf8] sm:$0xfe] %v2231
        %2428 = vst [vmem:[%s2395 + $0x100] sm:$0xfe] %v2232
        %2429 = vst [vmem:[%s2395 + $0x108] sm:$0x7f] %v2234
        %2430 = vst [vmem:[%s2395 + $0x110] sm:$0x7f] %v2236
        %2431 = vst [vmem:[%s2395 + $0x118] sm:$0x7f] %v2238
        %2432 = vst [vmem:[%s2395 + $0x120] sm:$0xfe] %v2239
        %2433 = vst [vmem:[%s2395 + $0x128] sm:$0xfe] %v2240
        %2434 = vst [vmem:[%s2395 + $0x130] sm:$0xfe] %v2241
        %2435 = vst [vmem:[%s2395 + $0x138] sm:$0x7f] %v2243
        %2436 = vst [vmem:[%s2395 + $0x140] sm:$0x7f] %v2245
        %2437 = vst [vmem:[%s2395 + $0x148] sm:$0x7f] %v2247
        %2438 = vst [vmem:[%s2395 + $0x150] sm:$0xfe] %v2248
        %2439 = vst [vmem:[%s2395 + $0x158] sm:$0xfe] %v2249
        %2440 = vst [vmem:[%s2395 + $0x160] sm:$0xfe] %v2250
        %2441 = vst [vmem:[%s2395 + $0x168] sm:$0x7f] %v2252
        %2442 = vst [vmem:[%s2395 + $0x170] sm:$0x7f] %v2254
        %2443 = vst [vmem:[%s2395 + $0x178] sm:$0x7f] %v2256
        %2444 = vst [vmem:[%s2395 + $0x180] sm:$0xfe] %v2257
        %2445 = vst [vmem:[%s2395 + $0x188] sm:$0xfe] %v2258
        %2446 = vst [vmem:[%s2395 + $0x190] sm:$0xfe] %v2259
        %2447 = vst [vmem:[%s2395 + $0x198] sm:$0x7f] %v2261
        %2448 = vst [vmem:[%s2395 + $0x1a0] sm:$0x7f] %v2263
        %2449 = vst [vmem:[%s2395 + $0x1a8] sm:$0x7f] %v2265
        %2450 = vst [vmem:[%s2395 + $0x1b0] sm:$0xfe] %v2266
        %2451 = vst [vmem:[%s2395 + $0x1b8] sm:$0xfe] %v2267
        %2452 = vst [vmem:[%s2395 + $0x1c0] sm:$0xfe] %v2268
        %2453 = vst [vmem:[%s2395 + $0x1c8] sm:$0x7f] %v2270
        %2454 = vst [vmem:[%s2395 + $0x1d0] sm:$0x7f] %v2272
        %2455 = vst [vmem:[%s2395 + $0x1d8] sm:$0x7f] %v2274
        %2456 = vst [vmem:[%s2395 + $0x1e0] sm:$0xfe] %v2275
        %2457 = vst [vmem:[%s2395 + $0x1e8] sm:$0xfe] %v2276
        %2458 = vst [vmem:[%s2395 + $0x1f0] sm:$0xfe] %v2277
        %2459 = vst [vmem:[%s2395 + $0x1f8] sm:$0x7f] %v2279
        %2460 = vst [vmem:[%s2395 + $0x200] sm:$0x7f] %v2281
        %2461 = vst [vmem:[%s2395 + $0x208] sm:$0x7f] %v2283
        %2462 = vst [vmem:[%s2395 + $0x210] sm:$0xfe] %v2284
        %2463 = vst [vmem:[%s2395 + $0x218] sm:$0xfe] %v2285
        %2464 = vst [vmem:[%s2395 + $0x220] sm:$0xfe] %v2286
        %2465 = vst [vmem:[%s2395 + $0x228] sm:$0x7f] %v2288
        %2466 = vst [vmem:[%s2395 + $0x230] sm:$0x7f] %v2290
        %2467 = vst [vmem:[%s2395 + $0x238] sm:$0x7f] %v2292
        %2468 = vst [vmem:[%s2395 + $0x240] sm:$0xfe] %v2293
        %2469 = vst [vmem:[%s2395 + $0x248] sm:$0xfe] %v2294
        %2470 = vst [vmem:[%s2395 + $0x250] sm:$0xfe] %v2295
        %2471 = vst [vmem:[%s2395 + $0x258] sm:$0x7f] %v2297
        %2472 = vst [vmem:[%s2395 + $0x260] sm:$0x7f] %v2299
        %2473 = vst [vmem:[%s2395 + $0x268] sm:$0x7f] %v2301
        %2474 = vst [vmem:[%s2395 + $0x270] sm:$0xfe] %v2302
        %2475 = vst [vmem:[%s2395 + $0x278] sm:$0xfe] %v2303
        %2476 = vst [vmem:[%s2395 + $0x280] sm:$0xfe] %v2304
        %2477 = vst [vmem:[%s2395 + $0x288] sm:$0x7f] %v2306
        %2478 = vst [vmem:[%s2395 + $0x290] sm:$0x7f] %v2308
        %2479 = vst [vmem:[%s2395 + $0x298] sm:$0x7f] %v2310
        %v2480 = vld [vmem:[%s355] sm:$0xff]
        %v2481 = vld [vmem:[%s355 + $0x8] sm:$0xff]
        %v2482 = vld [vmem:[%s355 + $0x10] sm:$0xff]
        %v2483 = vld [vmem:[%s355 + $0x18] sm:$0x1]
        %v2484 = vld [vmem:[%s355 + $0x20] sm:$0x1]
        %v2485 = vld [vmem:[%s355 + $0x28] sm:$0x1]
        %v2486 = vld [vmem:[#allocation2] sm:$0xff]
        %v2487 = vld [vmem:[#allocation2 + $0x8] sm:$0xff]
        %v2488 = vld [vmem:[#allocation2 + $0x10] sm:$0xff]
        %v2489 = vld [vmem:[#allocation2 + $0x18] sm:$0xff]
        %v2490 = vld [vmem:[#allocation2 + $0x20] sm:$0xff]
        %v2491 = vld [vmem:[#allocation2 + $0x28] sm:$0xff]
        %v2492 = vperm.slane %v2480, 0
        %v2493 = vperm.slane %v2481, 0
        %v2494 = vperm.slane %v2482, 0
        %v2495 = vmul.f32 %v2486, %v2492
        %v2496 = vmul.f32 %v2487, %v2493
        %v2497 = vmul.f32 %v2488, %v2494
        %v2498 = vmul.f32 %v2489, %v2492
        %v2499 = vmul.f32 %v2490, %v2493
        %v2500 = vmul.f32 %v2491, %v2494
        %v2501 = vadd.f32 %v2495, 0.0
        %v2502 = vadd.f32 %v2496, 0.0
        %v2503 = vadd.f32 %v2497, 0.0
        %v2504 = vadd.f32 %v2498, 0.0
        %v2505 = vadd.f32 %v2499, 0.0
        %v2506 = vadd.f32 %v2500, 0.0
        %v2507 = vperm.slane %v2480, 1
        %v2508 = vperm.slane %v2481, 1
        %v2509 = vperm.slane %v2482, 1
        %v2510 = vmul.f32 %v2486, %v2507
        %v2511 = vmul.f32 %v2487, %v2508
        %v2512 = vmul.f32 %v2488, %v2509
        %v2513 = vmul.f32 %v2489, %v2507
        %v2514 = vmul.f32 %v2490, %v2508
        %v2515 = vmul.f32 %v2491, %v2509
        %vm2522 = vcmask 1046528
        %v2523 = vrot.slane %v2510, 1
        %v2524 = vrot.slane %v2513, 1
        %v2525 = vsel %vm2522, %v2523, %v2524
        %v2526 = vrot.slane %v2511, 1
        %v2527 = vrot.slane %v2514, 1
        %v2528 = vsel %vm2522, %v2526, %v2527
        %v2529 = vrot.slane %v2512, 1
        %v2530 = vrot.slane %v2515, 1
        %v2531 = vsel %vm2522, %v2529, %v2530
        %v2538 = vadd.f32 %v2501, %v2525
        %v2539 = vadd.f32 %v2502, %v2528
        %v2540 = vadd.f32 %v2503, %v2531
        %v2541 = vadd.f32 %v2504, %v2524
        %v2542 = vadd.f32 %v2505, %v2527
        %v2543 = vadd.f32 %v2506, %v2530
        %v2544 = vperm.slane %v2480, 2
        %v2545 = vperm.slane %v2481, 2
        %v2546 = vperm.slane %v2482, 2
        %v2547 = vmul.f32 %v2486, %v2544
        %v2548 = vmul.f32 %v2487, %v2545
        %v2549 = vmul.f32 %v2488, %v2546
        %v2550 = vmul.f32 %v2489, %v2544
        %v2551 = vmul.f32 %v2490, %v2545
        %v2552 = vmul.f32 %v2491, %v2546
        %v2559 = vrot.slane %v2547, 2
        %v2560 = vrot.slane %v2550, 2
        %v2561 = vsel %vm1735, %v2559, %v2560
        %v2562 = vrot.slane %v2548, 2
        %v2563 = vrot.slane %v2551, 2
        %v2564 = vsel %vm1735, %v2562, %v2563
        %v2565 = vrot.slane %v2549, 2
        %v2566 = vrot.slane %v2552, 2
        %v2567 = vsel %vm1735, %v2565, %v2566
        %v2574 = vadd.f32 %v2538, %v2561
        %v2575 = vadd.f32 %v2539, %v2564
        %v2576 = vadd.f32 %v2540, %v2567
        %v2577 = vadd.f32 %v2541, %v2560
        %v2578 = vadd.f32 %v2542, %v2563
        %v2579 = vadd.f32 %v2543, %v2566
        %v2580 = vld [vmem:[%s2395] sm:$0xff]
        %v2581 = vld [vmem:[%s2395 + $0x8] sm:$0xff]
        %v2582 = vld [vmem:[%s2395 + $0x10] sm:$0xff]
        %v2583 = vld [vmem:[%s2395 + $0x18] sm:$0xff]
        %v2584 = vld [vmem:[%s2395 + $0x20] sm:$0xff]
        %v2585 = vld [vmem:[%s2395 + $0x28] sm:$0xff]
        %v2586 = vperm.slane %v2480, 3
        %v2587 = vperm.slane %v2481, 3
        %v2588 = vperm.slane %v2482, 3
        %v2589 = vmul.f32 %v2580, %v2586
        %v2590 = vmul.f32 %v2581, %v2587
        %v2591 = vmul.f32 %v2582, %v2588
        %v2592 = vmul.f32 %v2583, %v2586
        %v2593 = vmul.f32 %v2584, %v2587
        %v2594 = vmul.f32 %v2585, %v2588
        %v2595 = vadd.f32 %v2574, %v2589
        %v2596 = vadd.f32 %v2575, %v2590
        %v2597 = vadd.f32 %v2576, %v2591
        %v2598 = vadd.f32 %v2577, %v2592
        %v2599 = vadd.f32 %v2578, %v2593
        %v2600 = vadd.f32 %v2579, %v2594
        %v2601 = vperm.slane %v2480, 4
        %v2602 = vperm.slane %v2481, 4
        %v2603 = vperm.slane %v2482, 4
        %v2604 = vmul.f32 %v2580, %v2601
        %v2605 = vmul.f32 %v2581, %v2602
        %v2606 = vmul.f32 %v2582, %v2603
        %v2607 = vmul.f32 %v2583, %v2601
        %v2608 = vmul.f32 %v2584, %v2602
        %v2609 = vmul.f32 %v2585, %v2603
        %v2616 = vrot.slane %v2604, 1
        %v2617 = vrot.slane %v2607, 1
        %v2618 = vsel %vm2522, %v2616, %v2617
        %v2619 = vrot.slane %v2605, 1
        %v2620 = vrot.slane %v2608, 1
        %v2621 = vsel %vm2522, %v2619, %v2620
        %v2622 = vrot.slane %v2606, 1
        %v2623 = vrot.slane %v2609, 1
        %v2624 = vsel %vm2522, %v2622, %v2623
        %v2631 = vadd.f32 %v2595, %v2618
        %v2632 = vadd.f32 %v2596, %v2621
        %v2633 = vadd.f32 %v2597, %v2624
        %v2634 = vadd.f32 %v2598, %v2617
        %v2635 = vadd.f32 %v2599, %v2620
        %v2636 = vadd.f32 %v2600, %v2623
        %v2637 = vperm.slane %v2480, 5
        %v2638 = vperm.slane %v2481, 5
        %v2639 = vperm.slane %v2482, 5
        %v2640 = vmul.f32 %v2580, %v2637
        %v2641 = vmul.f32 %v2581, %v2638
        %v2642 = vmul.f32 %v2582, %v2639
        %v2643 = vmul.f32 %v2583, %v2637
        %v2644 = vmul.f32 %v2584, %v2638
        %v2645 = vmul.f32 %v2585, %v2639
        %v2652 = vrot.slane %v2640, 2
        %v2653 = vrot.slane %v2643, 2
        %v2654 = vsel %vm1735, %v2652, %v2653
        %v2655 = vrot.slane %v2641, 2
        %v2656 = vrot.slane %v2644, 2
        %v2657 = vsel %vm1735, %v2655, %v2656
        %v2658 = vrot.slane %v2642, 2
        %v2659 = vrot.slane %v2645, 2
        %v2660 = vsel %vm1735, %v2658, %v2659
        %v2667 = vadd.f32 %v2631, %v2654
        %v2668 = vadd.f32 %v2632, %v2657
        %v2669 = vadd.f32 %v2633, %v2660
        %v2670 = vadd.f32 %v2634, %v2653
        %v2671 = vadd.f32 %v2635, %v2656
        %v2672 = vadd.f32 %v2636, %v2659
        %s2673 = scalar_lea.vmem [#allocation2], 96
        %v2674 = vld [vmem:[%s2673] sm:$0xff]
        %v2675 = vld [vmem:[%s2673 + $0x8] sm:$0xff]
        %v2676 = vld [vmem:[%s2673 + $0x10] sm:$0xff]
        %v2677 = vld [vmem:[%s2673 + $0x18] sm:$0xff]
        %v2678 = vld [vmem:[%s2673 + $0x20] sm:$0xff]
        %v2679 = vld [vmem:[%s2673 + $0x28] sm:$0xff]
        %v2680 = vperm.slane %v2480, 6
        %v2681 = vperm.slane %v2481, 6
        %v2682 = vperm.slane %v2482, 6
        %v2683 = vmul.f32 %v2674, %v2680
        %v2684 = vmul.f32 %v2675, %v2681
        %v2685 = vmul.f32 %v2676, %v2682
        %v2686 = vmul.f32 %v2677, %v2680
        %v2687 = vmul.f32 %v2678, %v2681
        %v2688 = vmul.f32 %v2679, %v2682
        %v2689 = vadd.f32 %v2667, %v2683
        %v2690 = vadd.f32 %v2668, %v2684
        %v2691 = vadd.f32 %v2669, %v2685
        %v2692 = vadd.f32 %v2670, %v2686
        %v2693 = vadd.f32 %v2671, %v2687
        %v2694 = vadd.f32 %v2672, %v2688
        %v2695 = vperm.slane %v2480, 7
        %v2696 = vperm.slane %v2481, 7
        %v2697 = vperm.slane %v2482, 7
        %v2698 = vmul.f32 %v2674, %v2695
        %v2699 = vmul.f32 %v2675, %v2696
        %v2700 = vmul.f32 %v2676, %v2697
        %v2701 = vmul.f32 %v2677, %v2695
        %v2702 = vmul.f32 %v2678, %v2696
        %v2703 = vmul.f32 %v2679, %v2697
        %v2710 = vrot.slane %v2698, 1
        %v2711 = vrot.slane %v2701, 1
        %v2712 = vsel %vm2522, %v2710, %v2711
        %v2713 = vrot.slane %v2699, 1
        %v2714 = vrot.slane %v2702, 1
        %v2715 = vsel %vm2522, %v2713, %v2714
        %v2716 = vrot.slane %v2700, 1
        %v2717 = vrot.slane %v2703, 1
        %v2718 = vsel %vm2522, %v2716, %v2717
        %v2725 = vadd.f32 %v2689, %v2712
        %v2726 = vadd.f32 %v2690, %v2715
        %v2727 = vadd.f32 %v2691, %v2718
        %v2728 = vadd.f32 %v2692, %v2711
        %v2729 = vadd.f32 %v2693, %v2714
        %v2730 = vadd.f32 %v2694, %v2717
        %v2731 = vperm.slane %v2483, 0
        %v2732 = vperm.slane %v2484, 0
        %v2733 = vperm.slane %v2485, 0
        %v2734 = vmul.f32 %v2674, %v2731
        %v2735 = vmul.f32 %v2675, %v2732
        %v2736 = vmul.f32 %v2676, %v2733
        %v2737 = vmul.f32 %v2677, %v2731
        %v2738 = vmul.f32 %v2678, %v2732
        %v2739 = vmul.f32 %v2679, %v2733
        %v2746 = vrot.slane %v2734, 2
        %v2747 = vrot.slane %v2737, 2
        %v2748 = vsel %vm1735, %v2746, %v2747
        %v2749 = vrot.slane %v2735, 2
        %v2750 = vrot.slane %v2738, 2
        %v2751 = vsel %vm1735, %v2749, %v2750
        %v2752 = vrot.slane %v2736, 2
        %v2753 = vrot.slane %v2739, 2
        %v2754 = vsel %vm1735, %v2752, %v2753
        %v2761 = vadd.f32 %v2725, %v2748
        %v2762 = vadd.f32 %v2726, %v2751
        %v2763 = vadd.f32 %v2727, %v2754
        %v2764 = vadd.f32 %v2728, %v2747
        %v2765 = vadd.f32 %v2729, %v2750
        %v2766 = vadd.f32 %v2730, %v2753
        %2767 = vst [vmem:[%s404] sm:$0xff] %v2761
        %2768 = vst [vmem:[%s404 + $0x8] sm:$0xff] %v2762
        %2769 = vst [vmem:[%s404 + $0x10] sm:$0xff] %v2763
        %2770 = vst [vmem:[%s404 + $0x18] sm:$0x3f] %v2764
        %2771 = vst [vmem:[%s404 + $0x20] sm:$0x3f] %v2765
        %2772 = vst [vmem:[%s404 + $0x28] sm:$0x3f] %v2766
        %v2773 = vld [vmem:[%s2395] sm:$0xff]
        %v2774 = vld [vmem:[%s2395 + $0x8] sm:$0xff]
        %v2775 = vld [vmem:[%s2395 + $0x10] sm:$0xff]
        %v2776 = vld [vmem:[%s2395 + $0x18] sm:$0xff]
        %v2777 = vld [vmem:[%s2395 + $0x20] sm:$0xff]
        %v2778 = vld [vmem:[%s2395 + $0x28] sm:$0xff]
        %v2779 = vmul.f32 %v2773, %v2492
        %v2780 = vmul.f32 %v2774, %v2493
        %v2781 = vmul.f32 %v2775, %v2494
        %v2782 = vmul.f32 %v2776, %v2492
        %v2783 = vmul.f32 %v2777, %v2493
        %v2784 = vmul.f32 %v2778, %v2494
        %v2785 = vadd.f32 %v2779, 0.0
        %v2786 = vadd.f32 %v2780, 0.0
        %v2787 = vadd.f32 %v2781, 0.0
        %v2788 = vadd.f32 %v2782, 0.0
        %v2789 = vadd.f32 %v2783, 0.0
        %v2790 = vadd.f32 %v2784, 0.0
        %v2791 = vmul.f32 %v2773, %v2507
        %v2792 = vmul.f32 %v2774, %v2508
        %v2793 = vmul.f32 %v2775, %v2509
        %v2794 = vmul.f32 %v2776, %v2507
        %v2795 = vmul.f32 %v2777, %v2508
        %v2796 = vmul.f32 %v2778, %v2509
        %v2803 = vrot.slane %v2791, 1
        %v2804 = vrot.slane %v2794, 1
        %v2805 = vsel %vm2522, %v2803, %v2804
        %v2806 = vrot.slane %v2792, 1
        %v2807 = vrot.slane %v2795, 1
        %v2808 = vsel %vm2522, %v2806, %v2807
        %v2809 = vrot.slane %v2793, 1
        %v2810 = vrot.slane %v2796, 1
        %v2811 = vsel %vm2522, %v2809, %v2810
        %v2818 = vadd.f32 %v2785, %v2805
        %v2819 = vadd.f32 %v2786, %v2808
        %v2820 = vadd.f32 %v2787, %v2811
        %v2821 = vadd.f32 %v2788, %v2804
        %v2822 = vadd.f32 %v2789, %v2807
        %v2823 = vadd.f32 %v2790, %v2810
        %v2824 = vmul.f32 %v2773, %v2544
        %v2825 = vmul.f32 %v2774, %v2545
        %v2826 = vmul.f32 %v2775, %v2546
        %v2827 = vmul.f32 %v2776, %v2544
        %v2828 = vmul.f32 %v2777, %v2545
        %v2829 = vmul.f32 %v2778, %v2546
        %v2836 = vrot.slane %v2824, 2
        %v2837 = vrot.slane %v2827, 2
        %v2838 = vsel %vm1735, %v2836, %v2837
        %v2839 = vrot.slane %v2825, 2
        %v2840 = vrot.slane %v2828, 2
        %v2841 = vsel %vm1735, %v2839, %v2840
        %v2842 = vrot.slane %v2826, 2
        %v2843 = vrot.slane %v2829, 2
        %v2844 = vsel %vm1735, %v2842, %v2843
        %v2851 = vadd.f32 %v2818, %v2838
        %v2852 = vadd.f32 %v2819, %v2841
        %v2853 = vadd.f32 %v2820, %v2844
        %v2854 = vadd.f32 %v2821, %v2837
        %v2855 = vadd.f32 %v2822, %v2840
        %v2856 = vadd.f32 %v2823, %v2843
        %v2857 = vld [vmem:[%s2673] sm:$0xff]
        %v2858 = vld [vmem:[%s2673 + $0x8] sm:$0xff]
        %v2859 = vld [vmem:[%s2673 + $0x10] sm:$0xff]
        %v2860 = vld [vmem:[%s2673 + $0x18] sm:$0xff]
        %v2861 = vld [vmem:[%s2673 + $0x20] sm:$0xff]
        %v2862 = vld [vmem:[%s2673 + $0x28] sm:$0xff]
        %v2863 = vmul.f32 %v2857, %v2586
        %v2864 = vmul.f32 %v2858, %v2587
        %v2865 = vmul.f32 %v2859, %v2588
        %v2866 = vmul.f32 %v2860, %v2586
        %v2867 = vmul.f32 %v2861, %v2587
        %v2868 = vmul.f32 %v2862, %v2588
        %v2869 = vadd.f32 %v2851, %v2863
        %v2870 = vadd.f32 %v2852, %v2864
        %v2871 = vadd.f32 %v2853, %v2865
        %v2872 = vadd.f32 %v2854, %v2866
        %v2873 = vadd.f32 %v2855, %v2867
        %v2874 = vadd.f32 %v2856, %v2868
        %v2875 = vmul.f32 %v2857, %v2601
        %v2876 = vmul.f32 %v2858, %v2602
        %v2877 = vmul.f32 %v2859, %v2603
        %v2878 = vmul.f32 %v2860, %v2601
        %v2879 = vmul.f32 %v2861, %v2602
        %v2880 = vmul.f32 %v2862, %v2603
        %v2887 = vrot.slane %v2875, 1
        %v2888 = vrot.slane %v2878, 1
        %v2889 = vsel %vm2522, %v2887, %v2888
        %v2890 = vrot.slane %v2876, 1
        %v2891 = vrot.slane %v2879, 1
        %v2892 = vsel %vm2522, %v2890, %v2891
        %v2893 = vrot.slane %v2877, 1
        %v2894 = vrot.slane %v2880, 1
        %v2895 = vsel %vm2522, %v2893, %v2894
        %v2902 = vadd.f32 %v2869, %v2889
        %v2903 = vadd.f32 %v2870, %v2892
        %v2904 = vadd.f32 %v2871, %v2895
        %v2905 = vadd.f32 %v2872, %v2888
        %v2906 = vadd.f32 %v2873, %v2891
        %v2907 = vadd.f32 %v2874, %v2894
        %v2908 = vmul.f32 %v2857, %v2637
        %v2909 = vmul.f32 %v2858, %v2638
        %v2910 = vmul.f32 %v2859, %v2639
        %v2911 = vmul.f32 %v2860, %v2637
        %v2912 = vmul.f32 %v2861, %v2638
        %v2913 = vmul.f32 %v2862, %v2639
        %v2920 = vrot.slane %v2908, 2
        %v2921 = vrot.slane %v2911, 2
        %v2922 = vsel %vm1735, %v2920, %v2921
        %v2923 = vrot.slane %v2909, 2
        %v2924 = vrot.slane %v2912, 2
        %v2925 = vsel %vm1735, %v2923, %v2924
        %v2926 = vrot.slane %v2910, 2
        %v2927 = vrot.slane %v2913, 2
        %v2928 = vsel %vm1735, %v2926, %v2927
        %v2935 = vadd.f32 %v2902, %v2922
        %v2936 = vadd.f32 %v2903, %v2925
        %v2937 = vadd.f32 %v2904, %v2928
        %v2938 = vadd.f32 %v2905, %v2921
        %v2939 = vadd.f32 %v2906, %v2924
        %v2940 = vadd.f32 %v2907, %v2927
        %s2941 = scalar_lea.vmem [#allocation2], 144
        %v2942 = vld [vmem:[%s2941] sm:$0xff]
        %v2943 = vld [vmem:[%s2941 + $0x8] sm:$0xff]
        %v2944 = vld [vmem:[%s2941 + $0x10] sm:$0xff]
        %v2945 = vld [vmem:[%s2941 + $0x18] sm:$0xff]
        %v2946 = vld [vmem:[%s2941 + $0x20] sm:$0xff]
        %v2947 = vld [vmem:[%s2941 + $0x28] sm:$0xff]
        %v2948 = vmul.f32 %v2942, %v2680
        %v2949 = vmul.f32 %v2943, %v2681
        %v2950 = vmul.f32 %v2944, %v2682
        %v2951 = vmul.f32 %v2945, %v2680
        %v2952 = vmul.f32 %v2946, %v2681
        %v2953 = vmul.f32 %v2947, %v2682
        %v2954 = vadd.f32 %v2935, %v2948
        %v2955 = vadd.f32 %v2936, %v2949
        %v2956 = vadd.f32 %v2937, %v2950
        %v2957 = vadd.f32 %v2938, %v2951
        %v2958 = vadd.f32 %v2939, %v2952
        %v2959 = vadd.f32 %v2940, %v2953
        %v2960 = vmul.f32 %v2942, %v2695
        %v2961 = vmul.f32 %v2943, %v2696
        %v2962 = vmul.f32 %v2944, %v2697
        %v2963 = vmul.f32 %v2945, %v2695
        %v2964 = vmul.f32 %v2946, %v2696
        %v2965 = vmul.f32 %v2947, %v2697
        %v2972 = vrot.slane %v2960, 1
        %v2973 = vrot.slane %v2963, 1
        %v2974 = vsel %vm2522, %v2972, %v2973
        %v2975 = vrot.slane %v2961, 1
        %v2976 = vrot.slane %v2964, 1
        %v2977 = vsel %vm2522, %v2975, %v2976
        %v2978 = vrot.slane %v2962, 1
        %v2979 = vrot.slane %v2965, 1
        %v2980 = vsel %vm2522, %v2978, %v2979
        %v2987 = vadd.f32 %v2954, %v2974
        %v2988 = vadd.f32 %v2955, %v2977
        %v2989 = vadd.f32 %v2956, %v2980
        %v2990 = vadd.f32 %v2957, %v2973
        %v2991 = vadd.f32 %v2958, %v2976
        %v2992 = vadd.f32 %v2959, %v2979
        %v2993 = vmul.f32 %v2942, %v2731
        %v2994 = vmul.f32 %v2943, %v2732
        %v2995 = vmul.f32 %v2944, %v2733
        %v2996 = vmul.f32 %v2945, %v2731
        %v2997 = vmul.f32 %v2946, %v2732
        %v2998 = vmul.f32 %v2947, %v2733
        %v3005 = vrot.slane %v2993, 2
        %v3006 = vrot.slane %v2996, 2
        %v3007 = vsel %vm1735, %v3005, %v3006
        %v3008 = vrot.slane %v2994, 2
        %v3009 = vrot.slane %v2997, 2
        %v3010 = vsel %vm1735, %v3008, %v3009
        %v3011 = vrot.slane %v2995, 2
        %v3012 = vrot.slane %v2998, 2
        %v3013 = vsel %vm1735, %v3011, %v3012
        %v3020 = vadd.f32 %v2987, %v3007
        %v3021 = vadd.f32 %v2988, %v3010
        %v3022 = vadd.f32 %v2989, %v3013
        %v3023 = vadd.f32 %v2990, %v3006
        %v3024 = vadd.f32 %v2991, %v3009
        %v3025 = vadd.f32 %v2992, %v3012
        %s3026 = scalar_lea.vmem %s404, 48 [#allocation7]
        %3027 = vst [vmem:[%s3026] sm:$0xff] %v3020
        %3028 = vst [vmem:[%s3026 + $0x8] sm:$0xff] %v3021
        %3029 = vst [vmem:[%s3026 + $0x10] sm:$0xff] %v3022
        %3030 = vst [vmem:[%s3026 + $0x18] sm:$0x3f] %v3023
        %3031 = vst [vmem:[%s3026 + $0x20] sm:$0x3f] %v3024
        %3032 = vst [vmem:[%s3026 + $0x28] sm:$0x3f] %v3025
        %v3033 = vld [vmem:[%s2673] sm:$0xff]
        %v3034 = vld [vmem:[%s2673 + $0x8] sm:$0xff]
        %v3035 = vld [vmem:[%s2673 + $0x10] sm:$0xff]
        %v3036 = vld [vmem:[%s2673 + $0x18] sm:$0xff]
        %v3037 = vld [vmem:[%s2673 + $0x20] sm:$0xff]
        %v3038 = vld [vmem:[%s2673 + $0x28] sm:$0xff]
        %v3039 = vmul.f32 %v3033, %v2492
        %v3040 = vmul.f32 %v3034, %v2493
        %v3041 = vmul.f32 %v3035, %v2494
        %v3042 = vmul.f32 %v3036, %v2492
        %v3043 = vmul.f32 %v3037, %v2493
        %v3044 = vmul.f32 %v3038, %v2494
        %v3045 = vadd.f32 %v3039, 0.0
        %v3046 = vadd.f32 %v3040, 0.0
        %v3047 = vadd.f32 %v3041, 0.0
        %v3048 = vadd.f32 %v3042, 0.0
        %v3049 = vadd.f32 %v3043, 0.0
        %v3050 = vadd.f32 %v3044, 0.0
        %v3051 = vmul.f32 %v3033, %v2507
        %v3052 = vmul.f32 %v3034, %v2508
        %v3053 = vmul.f32 %v3035, %v2509
        %v3054 = vmul.f32 %v3036, %v2507
        %v3055 = vmul.f32 %v3037, %v2508
        %v3056 = vmul.f32 %v3038, %v2509
        %v3063 = vrot.slane %v3051, 1
        %v3064 = vrot.slane %v3054, 1
        %v3065 = vsel %vm2522, %v3063, %v3064
        %v3066 = vrot.slane %v3052, 1
        %v3067 = vrot.slane %v3055, 1
        %v3068 = vsel %vm2522, %v3066, %v3067
        %v3069 = vrot.slane %v3053, 1
        %v3070 = vrot.slane %v3056, 1
        %v3071 = vsel %vm2522, %v3069, %v3070
        %v3078 = vadd.f32 %v3045, %v3065
        %v3079 = vadd.f32 %v3046, %v3068
        %v3080 = vadd.f32 %v3047, %v3071
        %v3081 = vadd.f32 %v3048, %v3064
        %v3082 = vadd.f32 %v3049, %v3067
        %v3083 = vadd.f32 %v3050, %v3070
        %v3084 = vmul.f32 %v3033, %v2544
        %v3085 = vmul.f32 %v3034, %v2545
        %v3086 = vmul.f32 %v3035, %v2546
        %v3087 = vmul.f32 %v3036, %v2544
        %v3088 = vmul.f32 %v3037, %v2545
        %v3089 = vmul.f32 %v3038, %v2546
        %v3096 = vrot.slane %v3084, 2
        %v3097 = vrot.slane %v3087, 2
        %v3098 = vsel %vm1735, %v3096, %v3097
        %v3099 = vrot.slane %v3085, 2
        %v3100 = vrot.slane %v3088, 2
        %v3101 = vsel %vm1735, %v3099, %v3100
        %v3102 = vrot.slane %v3086, 2
        %v3103 = vrot.slane %v3089, 2
        %v3104 = vsel %vm1735, %v3102, %v3103
        %v3111 = vadd.f32 %v3078, %v3098
        %v3112 = vadd.f32 %v3079, %v3101
        %v3113 = vadd.f32 %v3080, %v3104
        %v3114 = vadd.f32 %v3081, %v3097
        %v3115 = vadd.f32 %v3082, %v3100
        %v3116 = vadd.f32 %v3083, %v3103
        %v3117 = vld [vmem:[%s2941] sm:$0xff]
        %v3118 = vld [vmem:[%s2941 + $0x8] sm:$0xff]
        %v3119 = vld [vmem:[%s2941 + $0x10] sm:$0xff]
        %v3120 = vld [vmem:[%s2941 + $0x18] sm:$0xff]
        %v3121 = vld [vmem:[%s2941 + $0x20] sm:$0xff]
        %v3122 = vld [vmem:[%s2941 + $0x28] sm:$0xff]
        %v3123 = vmul.f32 %v3117, %v2586
        %v3124 = vmul.f32 %v3118, %v2587
        %v3125 = vmul.f32 %v3119, %v2588
        %v3126 = vmul.f32 %v3120, %v2586
        %v3127 = vmul.f32 %v3121, %v2587
        %v3128 = vmul.f32 %v3122, %v2588
        %v3129 = vadd.f32 %v3111, %v3123
        %v3130 = vadd.f32 %v3112, %v3124
        %v3131 = vadd.f32 %v3113, %v3125
        %v3132 = vadd.f32 %v3114, %v3126
        %v3133 = vadd.f32 %v3115, %v3127
        %v3134 = vadd.f32 %v3116, %v3128
        %v3135 = vmul.f32 %v3117, %v2601
        %v3136 = vmul.f32 %v3118, %v2602
        %v3137 = vmul.f32 %v3119, %v2603
        %v3138 = vmul.f32 %v3120, %v2601
        %v3139 = vmul.f32 %v3121, %v2602
        %v3140 = vmul.f32 %v3122, %v2603
        %v3147 = vrot.slane %v3135, 1
        %v3148 = vrot.slane %v3138, 1
        %v3149 = vsel %vm2522, %v3147, %v3148
        %v3150 = vrot.slane %v3136, 1
        %v3151 = vrot.slane %v3139, 1
        %v3152 = vsel %vm2522, %v3150, %v3151
        %v3153 = vrot.slane %v3137, 1
        %v3154 = vrot.slane %v3140, 1
        %v3155 = vsel %vm2522, %v3153, %v3154
        %v3162 = vadd.f32 %v3129, %v3149
        %v3163 = vadd.f32 %v3130, %v3152
        %v3164 = vadd.f32 %v3131, %v3155
        %v3165 = vadd.f32 %v3132, %v3148
        %v3166 = vadd.f32 %v3133, %v3151
        %v3167 = vadd.f32 %v3134, %v3154
        %v3168 = vmul.f32 %v3117, %v2637
        %v3169 = vmul.f32 %v3118, %v2638
        %v3170 = vmul.f32 %v3119, %v2639
        %v3171 = vmul.f32 %v3120, %v2637
        %v3172 = vmul.f32 %v3121, %v2638
        %v3173 = vmul.f32 %v3122, %v2639
        %v3180 = vrot.slane %v3168, 2
        %v3181 = vrot.slane %v3171, 2
        %v3182 = vsel %vm1735, %v3180, %v3181
        %v3183 = vrot.slane %v3169, 2
        %v3184 = vrot.slane %v3172, 2
        %v3185 = vsel %vm1735, %v3183, %v3184
        %v3186 = vrot.slane %v3170, 2
        %v3187 = vrot.slane %v3173, 2
        %v3188 = vsel %vm1735, %v3186, %v3187
        %v3195 = vadd.f32 %v3162, %v3182
        %v3196 = vadd.f32 %v3163, %v3185
        %v3197 = vadd.f32 %v3164, %v3188
        %v3198 = vadd.f32 %v3165, %v3181
        %v3199 = vadd.f32 %v3166, %v3184
        %v3200 = vadd.f32 %v3167, %v3187
        %s3201 = scalar_lea.vmem [#allocation2], 192
        %v3202 = vld [vmem:[%s3201] sm:$0xff]
        %v3203 = vld [vmem:[%s3201 + $0x8] sm:$0xff]
        %v3204 = vld [vmem:[%s3201 + $0x10] sm:$0xff]
        %v3205 = vld [vmem:[%s3201 + $0x18] sm:$0xff]
        %v3206 = vld [vmem:[%s3201 + $0x20] sm:$0xff]
        %v3207 = vld [vmem:[%s3201 + $0x28] sm:$0xff]
        %v3208 = vmul.f32 %v3202, %v2680
        %v3209 = vmul.f32 %v3203, %v2681
        %v3210 = vmul.f32 %v3204, %v2682
        %v3211 = vmul.f32 %v3205, %v2680
        %v3212 = vmul.f32 %v3206, %v2681
        %v3213 = vmul.f32 %v3207, %v2682
        %v3214 = vadd.f32 %v3195, %v3208
        %v3215 = vadd.f32 %v3196, %v3209
        %v3216 = vadd.f32 %v3197, %v3210
        %v3217 = vadd.f32 %v3198, %v3211
        %v3218 = vadd.f32 %v3199, %v3212
        %v3219 = vadd.f32 %v3200, %v3213
        %v3220 = vmul.f32 %v3202, %v2695
        %v3221 = vmul.f32 %v3203, %v2696
        %v3222 = vmul.f32 %v3204, %v2697
        %v3223 = vmul.f32 %v3205, %v2695
        %v3224 = vmul.f32 %v3206, %v2696
        %v3225 = vmul.f32 %v3207, %v2697
        %v3232 = vrot.slane %v3220, 1
        %v3233 = vrot.slane %v3223, 1
        %v3234 = vsel %vm2522, %v3232, %v3233
        %v3235 = vrot.slane %v3221, 1
        %v3236 = vrot.slane %v3224, 1
        %v3237 = vsel %vm2522, %v3235, %v3236
        %v3238 = vrot.slane %v3222, 1
        %v3239 = vrot.slane %v3225, 1
        %v3240 = vsel %vm2522, %v3238, %v3239
        %v3247 = vadd.f32 %v3214, %v3234
        %v3248 = vadd.f32 %v3215, %v3237
        %v3249 = vadd.f32 %v3216, %v3240
        %v3250 = vadd.f32 %v3217, %v3233
        %v3251 = vadd.f32 %v3218, %v3236
        %v3252 = vadd.f32 %v3219, %v3239
        %v3253 = vmul.f32 %v3202, %v2731
        %v3254 = vmul.f32 %v3203, %v2732
        %v3255 = vmul.f32 %v3204, %v2733
        %v3256 = vmul.f32 %v3205, %v2731
        %v3257 = vmul.f32 %v3206, %v2732
        %v3258 = vmul.f32 %v3207, %v2733
        %v3265 = vrot.slane %v3253, 2
        %v3266 = vrot.slane %v3256, 2
        %v3267 = vsel %vm1735, %v3265, %v3266
        %v3268 = vrot.slane %v3254, 2
        %v3269 = vrot.slane %v3257, 2
        %v3270 = vsel %vm1735, %v3268, %v3269
        %v3271 = vrot.slane %v3255, 2
        %v3272 = vrot.slane %v3258, 2
        %v3273 = vsel %vm1735, %v3271, %v3272
        %v3280 = vadd.f32 %v3247, %v3267
        %v3281 = vadd.f32 %v3248, %v3270
        %v3282 = vadd.f32 %v3249, %v3273
        %v3283 = vadd.f32 %v3250, %v3266
        %v3284 = vadd.f32 %v3251, %v3269
        %v3285 = vadd.f32 %v3252, %v3272
        %s3286 = scalar_lea.vmem %s404, 96 [#allocation7]
        %3287 = vst [vmem:[%s3286] sm:$0xff] %v3280
        %3288 = vst [vmem:[%s3286 + $0x8] sm:$0xff] %v3281
        %3289 = vst [vmem:[%s3286 + $0x10] sm:$0xff] %v3282
        %3290 = vst [vmem:[%s3286 + $0x18] sm:$0x3f] %v3283
        %3291 = vst [vmem:[%s3286 + $0x20] sm:$0x3f] %v3284
        %3292 = vst [vmem:[%s3286 + $0x28] sm:$0x3f] %v3285
        %v3293 = vld [vmem:[%s2941] sm:$0xff]
        %v3294 = vld [vmem:[%s2941 + $0x8] sm:$0xff]
        %v3295 = vld [vmem:[%s2941 + $0x10] sm:$0xff]
        %v3296 = vld [vmem:[%s2941 + $0x18] sm:$0xff]
        %v3297 = vld [vmem:[%s2941 + $0x20] sm:$0xff]
        %v3298 = vld [vmem:[%s2941 + $0x28] sm:$0xff]
        %v3299 = vmul.f32 %v3293, %v2492
        %v3300 = vmul.f32 %v3294, %v2493
        %v3301 = vmul.f32 %v3295, %v2494
        %v3302 = vmul.f32 %v3296, %v2492
        %v3303 = vmul.f32 %v3297, %v2493
        %v3304 = vmul.f32 %v3298, %v2494
        %v3305 = vadd.f32 %v3299, 0.0
        %v3306 = vadd.f32 %v3300, 0.0
        %v3307 = vadd.f32 %v3301, 0.0
        %v3308 = vadd.f32 %v3302, 0.0
        %v3309 = vadd.f32 %v3303, 0.0
        %v3310 = vadd.f32 %v3304, 0.0
        %v3311 = vmul.f32 %v3293, %v2507
        %v3312 = vmul.f32 %v3294, %v2508
        %v3313 = vmul.f32 %v3295, %v2509
        %v3314 = vmul.f32 %v3296, %v2507
        %v3315 = vmul.f32 %v3297, %v2508
        %v3316 = vmul.f32 %v3298, %v2509
        %v3323 = vrot.slane %v3311, 1
        %v3324 = vrot.slane %v3314, 1
        %v3325 = vsel %vm2522, %v3323, %v3324
        %v3326 = vrot.slane %v3312, 1
        %v3327 = vrot.slane %v3315, 1
        %v3328 = vsel %vm2522, %v3326, %v3327
        %v3329 = vrot.slane %v3313, 1
        %v3330 = vrot.slane %v3316, 1
        %v3331 = vsel %vm2522, %v3329, %v3330
        %v3338 = vadd.f32 %v3305, %v3325
        %v3339 = vadd.f32 %v3306, %v3328
        %v3340 = vadd.f32 %v3307, %v3331
        %v3341 = vadd.f32 %v3308, %v3324
        %v3342 = vadd.f32 %v3309, %v3327
        %v3343 = vadd.f32 %v3310, %v3330
        %v3344 = vmul.f32 %v3293, %v2544
        %v3345 = vmul.f32 %v3294, %v2545
        %v3346 = vmul.f32 %v3295, %v2546
        %v3347 = vmul.f32 %v3296, %v2544
        %v3348 = vmul.f32 %v3297, %v2545
        %v3349 = vmul.f32 %v3298, %v2546
        %v3356 = vrot.slane %v3344, 2
        %v3357 = vrot.slane %v3347, 2
        %v3358 = vsel %vm1735, %v3356, %v3357
        %v3359 = vrot.slane %v3345, 2
        %v3360 = vrot.slane %v3348, 2
        %v3361 = vsel %vm1735, %v3359, %v3360
        %v3362 = vrot.slane %v3346, 2
        %v3363 = vrot.slane %v3349, 2
        %v3364 = vsel %vm1735, %v3362, %v3363
        %v3371 = vadd.f32 %v3338, %v3358
        %v3372 = vadd.f32 %v3339, %v3361
        %v3373 = vadd.f32 %v3340, %v3364
        %v3374 = vadd.f32 %v3341, %v3357
        %v3375 = vadd.f32 %v3342, %v3360
        %v3376 = vadd.f32 %v3343, %v3363
        %v3377 = vld [vmem:[%s3201] sm:$0xff]
        %v3378 = vld [vmem:[%s3201 + $0x8] sm:$0xff]
        %v3379 = vld [vmem:[%s3201 + $0x10] sm:$0xff]
        %v3380 = vld [vmem:[%s3201 + $0x18] sm:$0xff]
        %v3381 = vld [vmem:[%s3201 + $0x20] sm:$0xff]
        %v3382 = vld [vmem:[%s3201 + $0x28] sm:$0xff]
        %v3383 = vmul.f32 %v3377, %v2586
        %v3384 = vmul.f32 %v3378, %v2587
        %v3385 = vmul.f32 %v3379, %v2588
        %v3386 = vmul.f32 %v3380, %v2586
        %v3387 = vmul.f32 %v3381, %v2587
        %v3388 = vmul.f32 %v3382, %v2588
        %v3389 = vadd.f32 %v3371, %v3383
        %v3390 = vadd.f32 %v3372, %v3384
        %v3391 = vadd.f32 %v3373, %v3385
        %v3392 = vadd.f32 %v3374, %v3386
        %v3393 = vadd.f32 %v3375, %v3387
        %v3394 = vadd.f32 %v3376, %v3388
        %v3395 = vmul.f32 %v3377, %v2601
        %v3396 = vmul.f32 %v3378, %v2602
        %v3397 = vmul.f32 %v3379, %v2603
        %v3398 = vmul.f32 %v3380, %v2601
        %v3399 = vmul.f32 %v3381, %v2602
        %v3400 = vmul.f32 %v3382, %v2603
        %v3407 = vrot.slane %v3395, 1
        %v3408 = vrot.slane %v3398, 1
        %v3409 = vsel %vm2522, %v3407, %v3408
        %v3410 = vrot.slane %v3396, 1
        %v3411 = vrot.slane %v3399, 1
        %v3412 = vsel %vm2522, %v3410, %v3411
        %v3413 = vrot.slane %v3397, 1
        %v3414 = vrot.slane %v3400, 1
        %v3415 = vsel %vm2522, %v3413, %v3414
        %v3422 = vadd.f32 %v3389, %v3409
        %v3423 = vadd.f32 %v3390, %v3412
        %v3424 = vadd.f32 %v3391, %v3415
        %v3425 = vadd.f32 %v3392, %v3408
        %v3426 = vadd.f32 %v3393, %v3411
        %v3427 = vadd.f32 %v3394, %v3414
        %v3428 = vmul.f32 %v3377, %v2637
        %v3429 = vmul.f32 %v3378, %v2638
        %v3430 = vmul.f32 %v3379, %v2639
        %v3431 = vmul.f32 %v3380, %v2637
        %v3432 = vmul.f32 %v3381, %v2638
        %v3433 = vmul.f32 %v3382, %v2639
        %v3440 = vrot.slane %v3428, 2
        %v3441 = vrot.slane %v3431, 2
        %v3442 = vsel %vm1735, %v3440, %v3441
        %v3443 = vrot.slane %v3429, 2
        %v3444 = vrot.slane %v3432, 2
        %v3445 = vsel %vm1735, %v3443, %v3444
        %v3446 = vrot.slane %v3430, 2
        %v3447 = vrot.slane %v3433, 2
        %v3448 = vsel %vm1735, %v3446, %v3447
        %v3455 = vadd.f32 %v3422, %v3442
        %v3456 = vadd.f32 %v3423, %v3445
        %v3457 = vadd.f32 %v3424, %v3448
        %v3458 = vadd.f32 %v3425, %v3441
        %v3459 = vadd.f32 %v3426, %v3444
        %v3460 = vadd.f32 %v3427, %v3447
        %s3461 = scalar_lea.vmem [#allocation2], 240
        %v3462 = vld [vmem:[%s3461] sm:$0xff]
        %v3463 = vld [vmem:[%s3461 + $0x8] sm:$0xff]
        %v3464 = vld [vmem:[%s3461 + $0x10] sm:$0xff]
        %v3465 = vld [vmem:[%s3461 + $0x18] sm:$0xff]
        %v3466 = vld [vmem:[%s3461 + $0x20] sm:$0xff]
        %v3467 = vld [vmem:[%s3461 + $0x28] sm:$0xff]
        %v3468 = vmul.f32 %v3462, %v2680
        %v3469 = vmul.f32 %v3463, %v2681
        %v3470 = vmul.f32 %v3464, %v2682
        %v3471 = vmul.f32 %v3465, %v2680
        %v3472 = vmul.f32 %v3466, %v2681
        %v3473 = vmul.f32 %v3467, %v2682
        %v3474 = vadd.f32 %v3455, %v3468
        %v3475 = vadd.f32 %v3456, %v3469
        %v3476 = vadd.f32 %v3457, %v3470
        %v3477 = vadd.f32 %v3458, %v3471
        %v3478 = vadd.f32 %v3459, %v3472
        %v3479 = vadd.f32 %v3460, %v3473
        %v3480 = vmul.f32 %v3462, %v2695
        %v3481 = vmul.f32 %v3463, %v2696
        %v3482 = vmul.f32 %v3464, %v2697
        %v3483 = vmul.f32 %v3465, %v2695
        %v3484 = vmul.f32 %v3466, %v2696
        %v3485 = vmul.f32 %v3467, %v2697
        %v3492 = vrot.slane %v3480, 1
        %v3493 = vrot.slane %v3483, 1
        %v3494 = vsel %vm2522, %v3492, %v3493
        %v3495 = vrot.slane %v3481, 1
        %v3496 = vrot.slane %v3484, 1
        %v3497 = vsel %vm2522, %v3495, %v3496
        %v3498 = vrot.slane %v3482, 1
        %v3499 = vrot.slane %v3485, 1
        %v3500 = vsel %vm2522, %v3498, %v3499
        %v3507 = vadd.f32 %v3474, %v3494
        %v3508 = vadd.f32 %v3475, %v3497
        %v3509 = vadd.f32 %v3476, %v3500
        %v3510 = vadd.f32 %v3477, %v3493
        %v3511 = vadd.f32 %v3478, %v3496
        %v3512 = vadd.f32 %v3479, %v3499
        %v3513 = vmul.f32 %v3462, %v2731
        %v3514 = vmul.f32 %v3463, %v2732
        %v3515 = vmul.f32 %v3464, %v2733
        %v3516 = vmul.f32 %v3465, %v2731
        %v3517 = vmul.f32 %v3466, %v2732
        %v3518 = vmul.f32 %v3467, %v2733
        %v3525 = vrot.slane %v3513, 2
        %v3526 = vrot.slane %v3516, 2
        %v3527 = vsel %vm1735, %v3525, %v3526
        %v3528 = vrot.slane %v3514, 2
        %v3529 = vrot.slane %v3517, 2
        %v3530 = vsel %vm1735, %v3528, %v3529
        %v3531 = vrot.slane %v3515, 2
        %v3532 = vrot.slane %v3518, 2
        %v3533 = vsel %vm1735, %v3531, %v3532
        %v3540 = vadd.f32 %v3507, %v3527
        %v3541 = vadd.f32 %v3508, %v3530
        %v3542 = vadd.f32 %v3509, %v3533
        %v3543 = vadd.f32 %v3510, %v3526
        %v3544 = vadd.f32 %v3511, %v3529
        %v3545 = vadd.f32 %v3512, %v3532
        %s3546 = scalar_lea.vmem %s404, 144 [#allocation7]
        %3547 = vst [vmem:[%s3546] sm:$0xff] %v3540
        %3548 = vst [vmem:[%s3546 + $0x8] sm:$0xff] %v3541
        %3549 = vst [vmem:[%s3546 + $0x10] sm:$0xff] %v3542
        %3550 = vst [vmem:[%s3546 + $0x18] sm:$0x3f] %v3543
        %3551 = vst [vmem:[%s3546 + $0x20] sm:$0x3f] %v3544
        %3552 = vst [vmem:[%s3546 + $0x28] sm:$0x3f] %v3545
        %v3553 = vld [vmem:[%s3201] sm:$0xff]
        %v3554 = vld [vmem:[%s3201 + $0x8] sm:$0xff]
        %v3555 = vld [vmem:[%s3201 + $0x10] sm:$0xff]
        %v3556 = vld [vmem:[%s3201 + $0x18] sm:$0xff]
        %v3557 = vld [vmem:[%s3201 + $0x20] sm:$0xff]
        %v3558 = vld [vmem:[%s3201 + $0x28] sm:$0xff]
        %v3559 = vmul.f32 %v3553, %v2492
        %v3560 = vmul.f32 %v3554, %v2493
        %v3561 = vmul.f32 %v3555, %v2494
        %v3562 = vmul.f32 %v3556, %v2492
        %v3563 = vmul.f32 %v3557, %v2493
        %v3564 = vmul.f32 %v3558, %v2494
        %v3565 = vadd.f32 %v3559, 0.0
        %v3566 = vadd.f32 %v3560, 0.0
        %v3567 = vadd.f32 %v3561, 0.0
        %v3568 = vadd.f32 %v3562, 0.0
        %v3569 = vadd.f32 %v3563, 0.0
        %v3570 = vadd.f32 %v3564, 0.0
        %v3571 = vmul.f32 %v3553, %v2507
        %v3572 = vmul.f32 %v3554, %v2508
        %v3573 = vmul.f32 %v3555, %v2509
        %v3574 = vmul.f32 %v3556, %v2507
        %v3575 = vmul.f32 %v3557, %v2508
        %v3576 = vmul.f32 %v3558, %v2509
        %v3583 = vrot.slane %v3571, 1
        %v3584 = vrot.slane %v3574, 1
        %v3585 = vsel %vm2522, %v3583, %v3584
        %v3586 = vrot.slane %v3572, 1
        %v3587 = vrot.slane %v3575, 1
        %v3588 = vsel %vm2522, %v3586, %v3587
        %v3589 = vrot.slane %v3573, 1
        %v3590 = vrot.slane %v3576, 1
        %v3591 = vsel %vm2522, %v3589, %v3590
        %v3598 = vadd.f32 %v3565, %v3585
        %v3599 = vadd.f32 %v3566, %v3588
        %v3600 = vadd.f32 %v3567, %v3591
        %v3601 = vadd.f32 %v3568, %v3584
        %v3602 = vadd.f32 %v3569, %v3587
        %v3603 = vadd.f32 %v3570, %v3590
        %v3604 = vmul.f32 %v3553, %v2544
        %v3605 = vmul.f32 %v3554, %v2545
        %v3606 = vmul.f32 %v3555, %v2546
        %v3607 = vmul.f32 %v3556, %v2544
        %v3608 = vmul.f32 %v3557, %v2545
        %v3609 = vmul.f32 %v3558, %v2546
        %v3616 = vrot.slane %v3604, 2
        %v3617 = vrot.slane %v3607, 2
        %v3618 = vsel %vm1735, %v3616, %v3617
        %v3619 = vrot.slane %v3605, 2
        %v3620 = vrot.slane %v3608, 2
        %v3621 = vsel %vm1735, %v3619, %v3620
        %v3622 = vrot.slane %v3606, 2
        %v3623 = vrot.slane %v3609, 2
        %v3624 = vsel %vm1735, %v3622, %v3623
        %v3631 = vadd.f32 %v3598, %v3618
        %v3632 = vadd.f32 %v3599, %v3621
        %v3633 = vadd.f32 %v3600, %v3624
        %v3634 = vadd.f32 %v3601, %v3617
        %v3635 = vadd.f32 %v3602, %v3620
        %v3636 = vadd.f32 %v3603, %v3623
        %v3637 = vld [vmem:[%s3461] sm:$0xff]
        %v3638 = vld [vmem:[%s3461 + $0x8] sm:$0xff]
        %v3639 = vld [vmem:[%s3461 + $0x10] sm:$0xff]
        %v3640 = vld [vmem:[%s3461 + $0x18] sm:$0xff]
        %v3641 = vld [vmem:[%s3461 + $0x20] sm:$0xff]
        %v3642 = vld [vmem:[%s3461 + $0x28] sm:$0xff]
        %v3643 = vmul.f32 %v3637, %v2586
        %v3644 = vmul.f32 %v3638, %v2587
        %v3645 = vmul.f32 %v3639, %v2588
        %v3646 = vmul.f32 %v3640, %v2586
        %v3647 = vmul.f32 %v3641, %v2587
        %v3648 = vmul.f32 %v3642, %v2588
        %v3649 = vadd.f32 %v3631, %v3643
        %v3650 = vadd.f32 %v3632, %v3644
        %v3651 = vadd.f32 %v3633, %v3645
        %v3652 = vadd.f32 %v3634, %v3646
        %v3653 = vadd.f32 %v3635, %v3647
        %v3654 = vadd.f32 %v3636, %v3648
        %v3655 = vmul.f32 %v3637, %v2601
        %v3656 = vmul.f32 %v3638, %v2602
        %v3657 = vmul.f32 %v3639, %v2603
        %v3658 = vmul.f32 %v3640, %v2601
        %v3659 = vmul.f32 %v3641, %v2602
        %v3660 = vmul.f32 %v3642, %v2603
        %v3667 = vrot.slane %v3655, 1
        %v3668 = vrot.slane %v3658, 1
        %v3669 = vsel %vm2522, %v3667, %v3668
        %v3670 = vrot.slane %v3656, 1
        %v3671 = vrot.slane %v3659, 1
        %v3672 = vsel %vm2522, %v3670, %v3671
        %v3673 = vrot.slane %v3657, 1
        %v3674 = vrot.slane %v3660, 1
        %v3675 = vsel %vm2522, %v3673, %v3674
        %v3682 = vadd.f32 %v3649, %v3669
        %v3683 = vadd.f32 %v3650, %v3672
        %v3684 = vadd.f32 %v3651, %v3675
        %v3685 = vadd.f32 %v3652, %v3668
        %v3686 = vadd.f32 %v3653, %v3671
        %v3687 = vadd.f32 %v3654, %v3674
        %v3688 = vmul.f32 %v3637, %v2637
        %v3689 = vmul.f32 %v3638, %v2638
        %v3690 = vmul.f32 %v3639, %v2639
        %v3691 = vmul.f32 %v3640, %v2637
        %v3692 = vmul.f32 %v3641, %v2638
        %v3693 = vmul.f32 %v3642, %v2639
        %v3700 = vrot.slane %v3688, 2
        %v3701 = vrot.slane %v3691, 2
        %v3702 = vsel %vm1735, %v3700, %v3701
        %v3703 = vrot.slane %v3689, 2
        %v3704 = vrot.slane %v3692, 2
        %v3705 = vsel %vm1735, %v3703, %v3704
        %v3706 = vrot.slane %v3690, 2
        %v3707 = vrot.slane %v3693, 2
        %v3708 = vsel %vm1735, %v3706, %v3707
        %v3715 = vadd.f32 %v3682, %v3702
        %v3716 = vadd.f32 %v3683, %v3705
        %v3717 = vadd.f32 %v3684, %v3708
        %v3718 = vadd.f32 %v3685, %v3701
        %v3719 = vadd.f32 %v3686, %v3704
        %v3720 = vadd.f32 %v3687, %v3707
        %s3721 = scalar_lea.vmem [#allocation2], 288
        %v3722 = vld [vmem:[%s3721] sm:$0xff]
        %v3723 = vld [vmem:[%s3721 + $0x8] sm:$0xff]
        %v3724 = vld [vmem:[%s3721 + $0x10] sm:$0xff]
        %v3725 = vld [vmem:[%s3721 + $0x18] sm:$0xff]
        %v3726 = vld [vmem:[%s3721 + $0x20] sm:$0xff]
        %v3727 = vld [vmem:[%s3721 + $0x28] sm:$0xff]
        %v3728 = vmul.f32 %v3722, %v2680
        %v3729 = vmul.f32 %v3723, %v2681
        %v3730 = vmul.f32 %v3724, %v2682
        %v3731 = vmul.f32 %v3725, %v2680
        %v3732 = vmul.f32 %v3726, %v2681
        %v3733 = vmul.f32 %v3727, %v2682
        %v3734 = vadd.f32 %v3715, %v3728
        %v3735 = vadd.f32 %v3716, %v3729
        %v3736 = vadd.f32 %v3717, %v3730
        %v3737 = vadd.f32 %v3718, %v3731
        %v3738 = vadd.f32 %v3719, %v3732
        %v3739 = vadd.f32 %v3720, %v3733
        %v3740 = vmul.f32 %v3722, %v2695
        %v3741 = vmul.f32 %v3723, %v2696
        %v3742 = vmul.f32 %v3724, %v2697
        %v3743 = vmul.f32 %v3725, %v2695
        %v3744 = vmul.f32 %v3726, %v2696
        %v3745 = vmul.f32 %v3727, %v2697
        %v3752 = vrot.slane %v3740, 1
        %v3753 = vrot.slane %v3743, 1
        %v3754 = vsel %vm2522, %v3752, %v3753
        %v3755 = vrot.slane %v3741, 1
        %v3756 = vrot.slane %v3744, 1
        %v3757 = vsel %vm2522, %v3755, %v3756
        %v3758 = vrot.slane %v3742, 1
        %v3759 = vrot.slane %v3745, 1
        %v3760 = vsel %vm2522, %v3758, %v3759
        %v3767 = vadd.f32 %v3734, %v3754
        %v3768 = vadd.f32 %v3735, %v3757
        %v3769 = vadd.f32 %v3736, %v3760
        %v3770 = vadd.f32 %v3737, %v3753
        %v3771 = vadd.f32 %v3738, %v3756
        %v3772 = vadd.f32 %v3739, %v3759
        %v3773 = vmul.f32 %v3722, %v2731
        %v3774 = vmul.f32 %v3723, %v2732
        %v3775 = vmul.f32 %v3724, %v2733
        %v3776 = vmul.f32 %v3725, %v2731
        %v3777 = vmul.f32 %v3726, %v2732
        %v3778 = vmul.f32 %v3727, %v2733
        %v3785 = vrot.slane %v3773, 2
        %v3786 = vrot.slane %v3776, 2
        %v3787 = vsel %vm1735, %v3785, %v3786
        %v3788 = vrot.slane %v3774, 2
        %v3789 = vrot.slane %v3777, 2
        %v3790 = vsel %vm1735, %v3788, %v3789
        %v3791 = vrot.slane %v3775, 2
        %v3792 = vrot.slane %v3778, 2
        %v3793 = vsel %vm1735, %v3791, %v3792
        %v3800 = vadd.f32 %v3767, %v3787
        %v3801 = vadd.f32 %v3768, %v3790
        %v3802 = vadd.f32 %v3769, %v3793
        %v3803 = vadd.f32 %v3770, %v3786
        %v3804 = vadd.f32 %v3771, %v3789
        %v3805 = vadd.f32 %v3772, %v3792
        %s3806 = scalar_lea.vmem %s404, 192 [#allocation7]
        %3807 = vst [vmem:[%s3806] sm:$0xff] %v3800
        %3808 = vst [vmem:[%s3806 + $0x8] sm:$0xff] %v3801
        %3809 = vst [vmem:[%s3806 + $0x10] sm:$0xff] %v3802
        %3810 = vst [vmem:[%s3806 + $0x18] sm:$0x3f] %v3803
        %3811 = vst [vmem:[%s3806 + $0x20] sm:$0x3f] %v3804
        %3812 = vst [vmem:[%s3806 + $0x28] sm:$0x3f] %v3805
        %v3813 = vld [vmem:[%s3461] sm:$0xff]
        %v3814 = vld [vmem:[%s3461 + $0x8] sm:$0xff]
        %v3815 = vld [vmem:[%s3461 + $0x10] sm:$0xff]
        %v3816 = vld [vmem:[%s3461 + $0x18] sm:$0xff]
        %v3817 = vld [vmem:[%s3461 + $0x20] sm:$0xff]
        %v3818 = vld [vmem:[%s3461 + $0x28] sm:$0xff]
        %v3819 = vmul.f32 %v3813, %v2492
        %v3820 = vmul.f32 %v3814, %v2493
        %v3821 = vmul.f32 %v3815, %v2494
        %v3822 = vmul.f32 %v3816, %v2492
        %v3823 = vmul.f32 %v3817, %v2493
        %v3824 = vmul.f32 %v3818, %v2494
        %v3825 = vadd.f32 %v3819, 0.0
        %v3826 = vadd.f32 %v3820, 0.0
        %v3827 = vadd.f32 %v3821, 0.0
        %v3828 = vadd.f32 %v3822, 0.0
        %v3829 = vadd.f32 %v3823, 0.0
        %v3830 = vadd.f32 %v3824, 0.0
        %v3831 = vmul.f32 %v3813, %v2507
        %v3832 = vmul.f32 %v3814, %v2508
        %v3833 = vmul.f32 %v3815, %v2509
        %v3834 = vmul.f32 %v3816, %v2507
        %v3835 = vmul.f32 %v3817, %v2508
        %v3836 = vmul.f32 %v3818, %v2509
        %v3843 = vrot.slane %v3831, 1
        %v3844 = vrot.slane %v3834, 1
        %v3845 = vsel %vm2522, %v3843, %v3844
        %v3846 = vrot.slane %v3832, 1
        %v3847 = vrot.slane %v3835, 1
        %v3848 = vsel %vm2522, %v3846, %v3847
        %v3849 = vrot.slane %v3833, 1
        %v3850 = vrot.slane %v3836, 1
        %v3851 = vsel %vm2522, %v3849, %v3850
        %v3858 = vadd.f32 %v3825, %v3845
        %v3859 = vadd.f32 %v3826, %v3848
        %v3860 = vadd.f32 %v3827, %v3851
        %v3861 = vadd.f32 %v3828, %v3844
        %v3862 = vadd.f32 %v3829, %v3847
        %v3863 = vadd.f32 %v3830, %v3850
        %v3864 = vmul.f32 %v3813, %v2544
        %v3865 = vmul.f32 %v3814, %v2545
        %v3866 = vmul.f32 %v3815, %v2546
        %v3867 = vmul.f32 %v3816, %v2544
        %v3868 = vmul.f32 %v3817, %v2545
        %v3869 = vmul.f32 %v3818, %v2546
        %v3876 = vrot.slane %v3864, 2
        %v3877 = vrot.slane %v3867, 2
        %v3878 = vsel %vm1735, %v3876, %v3877
        %v3879 = vrot.slane %v3865, 2
        %v3880 = vrot.slane %v3868, 2
        %v3881 = vsel %vm1735, %v3879, %v3880
        %v3882 = vrot.slane %v3866, 2
        %v3883 = vrot.slane %v3869, 2
        %v3884 = vsel %vm1735, %v3882, %v3883
        %v3891 = vadd.f32 %v3858, %v3878
        %v3892 = vadd.f32 %v3859, %v3881
        %v3893 = vadd.f32 %v3860, %v3884
        %v3894 = vadd.f32 %v3861, %v3877
        %v3895 = vadd.f32 %v3862, %v3880
        %v3896 = vadd.f32 %v3863, %v3883
        %v3897 = vld [vmem:[%s3721] sm:$0xff]
        %v3898 = vld [vmem:[%s3721 + $0x8] sm:$0xff]
        %v3899 = vld [vmem:[%s3721 + $0x10] sm:$0xff]
        %v3900 = vld [vmem:[%s3721 + $0x18] sm:$0xff]
        %v3901 = vld [vmem:[%s3721 + $0x20] sm:$0xff]
        %v3902 = vld [vmem:[%s3721 + $0x28] sm:$0xff]
        %v3903 = vmul.f32 %v3897, %v2586
        %v3904 = vmul.f32 %v3898, %v2587
        %v3905 = vmul.f32 %v3899, %v2588
        %v3906 = vmul.f32 %v3900, %v2586
        %v3907 = vmul.f32 %v3901, %v2587
        %v3908 = vmul.f32 %v3902, %v2588
        %v3909 = vadd.f32 %v3891, %v3903
        %v3910 = vadd.f32 %v3892, %v3904
        %v3911 = vadd.f32 %v3893, %v3905
        %v3912 = vadd.f32 %v3894, %v3906
        %v3913 = vadd.f32 %v3895, %v3907
        %v3914 = vadd.f32 %v3896, %v3908
        %v3915 = vmul.f32 %v3897, %v2601
        %v3916 = vmul.f32 %v3898, %v2602
        %v3917 = vmul.f32 %v3899, %v2603
        %v3918 = vmul.f32 %v3900, %v2601
        %v3919 = vmul.f32 %v3901, %v2602
        %v3920 = vmul.f32 %v3902, %v2603
        %v3927 = vrot.slane %v3915, 1
        %v3928 = vrot.slane %v3918, 1
        %v3929 = vsel %vm2522, %v3927, %v3928
        %v3930 = vrot.slane %v3916, 1
        %v3931 = vrot.slane %v3919, 1
        %v3932 = vsel %vm2522, %v3930, %v3931
        %v3933 = vrot.slane %v3917, 1
        %v3934 = vrot.slane %v3920, 1
        %v3935 = vsel %vm2522, %v3933, %v3934
        %v3942 = vadd.f32 %v3909, %v3929
        %v3943 = vadd.f32 %v3910, %v3932
        %v3944 = vadd.f32 %v3911, %v3935
        %v3945 = vadd.f32 %v3912, %v3928
        %v3946 = vadd.f32 %v3913, %v3931
        %v3947 = vadd.f32 %v3914, %v3934
        %v3948 = vmul.f32 %v3897, %v2637
        %v3949 = vmul.f32 %v3898, %v2638
        %v3950 = vmul.f32 %v3899, %v2639
        %v3951 = vmul.f32 %v3900, %v2637
        %v3952 = vmul.f32 %v3901, %v2638
        %v3953 = vmul.f32 %v3902, %v2639
        %v3960 = vrot.slane %v3948, 2
        %v3961 = vrot.slane %v3951, 2
        %v3962 = vsel %vm1735, %v3960, %v3961
        %v3963 = vrot.slane %v3949, 2
        %v3964 = vrot.slane %v3952, 2
        %v3965 = vsel %vm1735, %v3963, %v3964
        %v3966 = vrot.slane %v3950, 2
        %v3967 = vrot.slane %v3953, 2
        %v3968 = vsel %vm1735, %v3966, %v3967
        %v3975 = vadd.f32 %v3942, %v3962
        %v3976 = vadd.f32 %v3943, %v3965
        %v3977 = vadd.f32 %v3944, %v3968
        %v3978 = vadd.f32 %v3945, %v3961
        %v3979 = vadd.f32 %v3946, %v3964
        %v3980 = vadd.f32 %v3947, %v3967
        %s3981 = scalar_lea.vmem [#allocation2], 336
        %v3982 = vld [vmem:[%s3981] sm:$0xff]
        %v3983 = vld [vmem:[%s3981 + $0x8] sm:$0xff]
        %v3984 = vld [vmem:[%s3981 + $0x10] sm:$0xff]
        %v3985 = vld [vmem:[%s3981 + $0x18] sm:$0xff]
        %v3986 = vld [vmem:[%s3981 + $0x20] sm:$0xff]
        %v3987 = vld [vmem:[%s3981 + $0x28] sm:$0xff]
        %v3988 = vmul.f32 %v3982, %v2680
        %v3989 = vmul.f32 %v3983, %v2681
        %v3990 = vmul.f32 %v3984, %v2682
        %v3991 = vmul.f32 %v3985, %v2680
        %v3992 = vmul.f32 %v3986, %v2681
        %v3993 = vmul.f32 %v3987, %v2682
        %v3994 = vadd.f32 %v3975, %v3988
        %v3995 = vadd.f32 %v3976, %v3989
        %v3996 = vadd.f32 %v3977, %v3990
        %v3997 = vadd.f32 %v3978, %v3991
        %v3998 = vadd.f32 %v3979, %v3992
        %v3999 = vadd.f32 %v3980, %v3993
        %v4000 = vmul.f32 %v3982, %v2695
        %v4001 = vmul.f32 %v3983, %v2696
        %v4002 = vmul.f32 %v3984, %v2697
        %v4003 = vmul.f32 %v3985, %v2695
        %v4004 = vmul.f32 %v3986, %v2696
        %v4005 = vmul.f32 %v3987, %v2697
        %v4012 = vrot.slane %v4000, 1
        %v4013 = vrot.slane %v4003, 1
        %v4014 = vsel %vm2522, %v4012, %v4013
        %v4015 = vrot.slane %v4001, 1
        %v4016 = vrot.slane %v4004, 1
        %v4017 = vsel %vm2522, %v4015, %v4016
        %v4018 = vrot.slane %v4002, 1
        %v4019 = vrot.slane %v4005, 1
        %v4020 = vsel %vm2522, %v4018, %v4019
        %v4027 = vadd.f32 %v3994, %v4014
        %v4028 = vadd.f32 %v3995, %v4017
        %v4029 = vadd.f32 %v3996, %v4020
        %v4030 = vadd.f32 %v3997, %v4013
        %v4031 = vadd.f32 %v3998, %v4016
        %v4032 = vadd.f32 %v3999, %v4019
        %v4033 = vmul.f32 %v3982, %v2731
        %v4034 = vmul.f32 %v3983, %v2732
        %v4035 = vmul.f32 %v3984, %v2733
        %v4036 = vmul.f32 %v3985, %v2731
        %v4037 = vmul.f32 %v3986, %v2732
        %v4038 = vmul.f32 %v3987, %v2733
        %v4045 = vrot.slane %v4033, 2
        %v4046 = vrot.slane %v4036, 2
        %v4047 = vsel %vm1735, %v4045, %v4046
        %v4048 = vrot.slane %v4034, 2
        %v4049 = vrot.slane %v4037, 2
        %v4050 = vsel %vm1735, %v4048, %v4049
        %v4051 = vrot.slane %v4035, 2
        %v4052 = vrot.slane %v4038, 2
        %v4053 = vsel %vm1735, %v4051, %v4052
        %v4060 = vadd.f32 %v4027, %v4047
        %v4061 = vadd.f32 %v4028, %v4050
        %v4062 = vadd.f32 %v4029, %v4053
        %v4063 = vadd.f32 %v4030, %v4046
        %v4064 = vadd.f32 %v4031, %v4049
        %v4065 = vadd.f32 %v4032, %v4052
        %s4066 = scalar_lea.vmem %s404, 240 [#allocation7]
        %4067 = vst [vmem:[%s4066] sm:$0xff] %v4060
        %4068 = vst [vmem:[%s4066 + $0x8] sm:$0xff] %v4061
        %4069 = vst [vmem:[%s4066 + $0x10] sm:$0xff] %v4062
        %4070 = vst [vmem:[%s4066 + $0x18] sm:$0x3f] %v4063
        %4071 = vst [vmem:[%s4066 + $0x20] sm:$0x3f] %v4064
        %4072 = vst [vmem:[%s4066 + $0x28] sm:$0x3f] %v4065
        %v4073 = vld [vmem:[%s3721] sm:$0xff]
        %v4074 = vld [vmem:[%s3721 + $0x8] sm:$0xff]
        %v4075 = vld [vmem:[%s3721 + $0x10] sm:$0xff]
        %v4076 = vld [vmem:[%s3721 + $0x18] sm:$0xff]
        %v4077 = vld [vmem:[%s3721 + $0x20] sm:$0xff]
        %v4078 = vld [vmem:[%s3721 + $0x28] sm:$0xff]
        %v4079 = vmul.f32 %v4073, %v2492
        %v4080 = vmul.f32 %v4074, %v2493
        %v4081 = vmul.f32 %v4075, %v2494
        %v4082 = vmul.f32 %v4076, %v2492
        %v4083 = vmul.f32 %v4077, %v2493
        %v4084 = vmul.f32 %v4078, %v2494
        %v4085 = vadd.f32 %v4079, 0.0
        %v4086 = vadd.f32 %v4080, 0.0
        %v4087 = vadd.f32 %v4081, 0.0
        %v4088 = vadd.f32 %v4082, 0.0
        %v4089 = vadd.f32 %v4083, 0.0
        %v4090 = vadd.f32 %v4084, 0.0
        %v4091 = vmul.f32 %v4073, %v2507
        %v4092 = vmul.f32 %v4074, %v2508
        %v4093 = vmul.f32 %v4075, %v2509
        %v4094 = vmul.f32 %v4076, %v2507
        %v4095 = vmul.f32 %v4077, %v2508
        %v4096 = vmul.f32 %v4078, %v2509
        %v4103 = vrot.slane %v4091, 1
        %v4104 = vrot.slane %v4094, 1
        %v4105 = vsel %vm2522, %v4103, %v4104
        %v4106 = vrot.slane %v4092, 1
        %v4107 = vrot.slane %v4095, 1
        %v4108 = vsel %vm2522, %v4106, %v4107
        %v4109 = vrot.slane %v4093, 1
        %v4110 = vrot.slane %v4096, 1
        %v4111 = vsel %vm2522, %v4109, %v4110
        %v4118 = vadd.f32 %v4085, %v4105
        %v4119 = vadd.f32 %v4086, %v4108
        %v4120 = vadd.f32 %v4087, %v4111
        %v4121 = vadd.f32 %v4088, %v4104
        %v4122 = vadd.f32 %v4089, %v4107
        %v4123 = vadd.f32 %v4090, %v4110
        %v4124 = vmul.f32 %v4073, %v2544
        %v4125 = vmul.f32 %v4074, %v2545
        %v4126 = vmul.f32 %v4075, %v2546
        %v4127 = vmul.f32 %v4076, %v2544
        %v4128 = vmul.f32 %v4077, %v2545
        %v4129 = vmul.f32 %v4078, %v2546
        %v4136 = vrot.slane %v4124, 2
        %v4137 = vrot.slane %v4127, 2
        %v4138 = vsel %vm1735, %v4136, %v4137
        %v4139 = vrot.slane %v4125, 2
        %v4140 = vrot.slane %v4128, 2
        %v4141 = vsel %vm1735, %v4139, %v4140
        %v4142 = vrot.slane %v4126, 2
        %v4143 = vrot.slane %v4129, 2
        %v4144 = vsel %vm1735, %v4142, %v4143
        %v4151 = vadd.f32 %v4118, %v4138
        %v4152 = vadd.f32 %v4119, %v4141
        %v4153 = vadd.f32 %v4120, %v4144
        %v4154 = vadd.f32 %v4121, %v4137
        %v4155 = vadd.f32 %v4122, %v4140
        %v4156 = vadd.f32 %v4123, %v4143
        %v4157 = vld [vmem:[%s3981] sm:$0xff]
        %v4158 = vld [vmem:[%s3981 + $0x8] sm:$0xff]
        %v4159 = vld [vmem:[%s3981 + $0x10] sm:$0xff]
        %v4160 = vld [vmem:[%s3981 + $0x18] sm:$0xff]
        %v4161 = vld [vmem:[%s3981 + $0x20] sm:$0xff]
        %v4162 = vld [vmem:[%s3981 + $0x28] sm:$0xff]
        %v4163 = vmul.f32 %v4157, %v2586
        %v4164 = vmul.f32 %v4158, %v2587
        %v4165 = vmul.f32 %v4159, %v2588
        %v4166 = vmul.f32 %v4160, %v2586
        %v4167 = vmul.f32 %v4161, %v2587
        %v4168 = vmul.f32 %v4162, %v2588
        %v4169 = vadd.f32 %v4151, %v4163
        %v4170 = vadd.f32 %v4152, %v4164
        %v4171 = vadd.f32 %v4153, %v4165
        %v4172 = vadd.f32 %v4154, %v4166
        %v4173 = vadd.f32 %v4155, %v4167
        %v4174 = vadd.f32 %v4156, %v4168
        %v4175 = vmul.f32 %v4157, %v2601
        %v4176 = vmul.f32 %v4158, %v2602
        %v4177 = vmul.f32 %v4159, %v2603
        %v4178 = vmul.f32 %v4160, %v2601
        %v4179 = vmul.f32 %v4161, %v2602
        %v4180 = vmul.f32 %v4162, %v2603
        %v4187 = vrot.slane %v4175, 1
        %v4188 = vrot.slane %v4178, 1
        %v4189 = vsel %vm2522, %v4187, %v4188
        %v4190 = vrot.slane %v4176, 1
        %v4191 = vrot.slane %v4179, 1
        %v4192 = vsel %vm2522, %v4190, %v4191
        %v4193 = vrot.slane %v4177, 1
        %v4194 = vrot.slane %v4180, 1
        %v4195 = vsel %vm2522, %v4193, %v4194
        %v4202 = vadd.f32 %v4169, %v4189
        %v4203 = vadd.f32 %v4170, %v4192
        %v4204 = vadd.f32 %v4171, %v4195
        %v4205 = vadd.f32 %v4172, %v4188
        %v4206 = vadd.f32 %v4173, %v4191
        %v4207 = vadd.f32 %v4174, %v4194
        %v4208 = vmul.f32 %v4157, %v2637
        %v4209 = vmul.f32 %v4158, %v2638
        %v4210 = vmul.f32 %v4159, %v2639
        %v4211 = vmul.f32 %v4160, %v2637
        %v4212 = vmul.f32 %v4161, %v2638
        %v4213 = vmul.f32 %v4162, %v2639
        %v4220 = vrot.slane %v4208, 2
        %v4221 = vrot.slane %v4211, 2
        %v4222 = vsel %vm1735, %v4220, %v4221
        %v4223 = vrot.slane %v4209, 2
        %v4224 = vrot.slane %v4212, 2
        %v4225 = vsel %vm1735, %v4223, %v4224
        %v4226 = vrot.slane %v4210, 2
        %v4227 = vrot.slane %v4213, 2
        %v4228 = vsel %vm1735, %v4226, %v4227
        %v4235 = vadd.f32 %v4202, %v4222
        %v4236 = vadd.f32 %v4203, %v4225
        %v4237 = vadd.f32 %v4204, %v4228
        %v4238 = vadd.f32 %v4205, %v4221
        %v4239 = vadd.f32 %v4206, %v4224
        %v4240 = vadd.f32 %v4207, %v4227
        %s4241 = scalar_lea.vmem [#allocation2], 384
        %v4242 = vld [vmem:[%s4241] sm:$0xff]
        %v4243 = vld [vmem:[%s4241 + $0x8] sm:$0xff]
        %v4244 = vld [vmem:[%s4241 + $0x10] sm:$0xff]
        %v4245 = vld [vmem:[%s4241 + $0x18] sm:$0xff]
        %v4246 = vld [vmem:[%s4241 + $0x20] sm:$0xff]
        %v4247 = vld [vmem:[%s4241 + $0x28] sm:$0xff]
        %v4248 = vmul.f32 %v4242, %v2680
        %v4249 = vmul.f32 %v4243, %v2681
        %v4250 = vmul.f32 %v4244, %v2682
        %v4251 = vmul.f32 %v4245, %v2680
        %v4252 = vmul.f32 %v4246, %v2681
        %v4253 = vmul.f32 %v4247, %v2682
        %v4254 = vadd.f32 %v4235, %v4248
        %v4255 = vadd.f32 %v4236, %v4249
        %v4256 = vadd.f32 %v4237, %v4250
        %v4257 = vadd.f32 %v4238, %v4251
        %v4258 = vadd.f32 %v4239, %v4252
        %v4259 = vadd.f32 %v4240, %v4253
        %v4260 = vmul.f32 %v4242, %v2695
        %v4261 = vmul.f32 %v4243, %v2696
        %v4262 = vmul.f32 %v4244, %v2697
        %v4263 = vmul.f32 %v4245, %v2695
        %v4264 = vmul.f32 %v4246, %v2696
        %v4265 = vmul.f32 %v4247, %v2697
        %v4272 = vrot.slane %v4260, 1
        %v4273 = vrot.slane %v4263, 1
        %v4274 = vsel %vm2522, %v4272, %v4273
        %v4275 = vrot.slane %v4261, 1
        %v4276 = vrot.slane %v4264, 1
        %v4277 = vsel %vm2522, %v4275, %v4276
        %v4278 = vrot.slane %v4262, 1
        %v4279 = vrot.slane %v4265, 1
        %v4280 = vsel %vm2522, %v4278, %v4279
        %v4287 = vadd.f32 %v4254, %v4274
        %v4288 = vadd.f32 %v4255, %v4277
        %v4289 = vadd.f32 %v4256, %v4280
        %v4290 = vadd.f32 %v4257, %v4273
        %v4291 = vadd.f32 %v4258, %v4276
        %v4292 = vadd.f32 %v4259, %v4279
        %v4293 = vmul.f32 %v4242, %v2731
        %v4294 = vmul.f32 %v4243, %v2732
        %v4295 = vmul.f32 %v4244, %v2733
        %v4296 = vmul.f32 %v4245, %v2731
        %v4297 = vmul.f32 %v4246, %v2732
        %v4298 = vmul.f32 %v4247, %v2733
        %v4305 = vrot.slane %v4293, 2
        %v4306 = vrot.slane %v4296, 2
        %v4307 = vsel %vm1735, %v4305, %v4306
        %v4308 = vrot.slane %v4294, 2
        %v4309 = vrot.slane %v4297, 2
        %v4310 = vsel %vm1735, %v4308, %v4309
        %v4311 = vrot.slane %v4295, 2
        %v4312 = vrot.slane %v4298, 2
        %v4313 = vsel %vm1735, %v4311, %v4312
        %v4320 = vadd.f32 %v4287, %v4307
        %v4321 = vadd.f32 %v4288, %v4310
        %v4322 = vadd.f32 %v4289, %v4313
        %v4323 = vadd.f32 %v4290, %v4306
        %v4324 = vadd.f32 %v4291, %v4309
        %v4325 = vadd.f32 %v4292, %v4312
        %s4326 = scalar_lea.vmem %s404, 288 [#allocation7]
        %4327 = vst [vmem:[%s4326] sm:$0xff] %v4320
        %4328 = vst [vmem:[%s4326 + $0x8] sm:$0xff] %v4321
        %4329 = vst [vmem:[%s4326 + $0x10] sm:$0xff] %v4322
        %4330 = vst [vmem:[%s4326 + $0x18] sm:$0x3f] %v4323
        %4331 = vst [vmem:[%s4326 + $0x20] sm:$0x3f] %v4324
        %4332 = vst [vmem:[%s4326 + $0x28] sm:$0x3f] %v4325
        %v4333 = vld [vmem:[%s3981] sm:$0xff]
        %v4334 = vld [vmem:[%s3981 + $0x8] sm:$0xff]
        %v4335 = vld [vmem:[%s3981 + $0x10] sm:$0xff]
        %v4336 = vld [vmem:[%s3981 + $0x18] sm:$0xff]
        %v4337 = vld [vmem:[%s3981 + $0x20] sm:$0xff]
        %v4338 = vld [vmem:[%s3981 + $0x28] sm:$0xff]
        %v4339 = vmul.f32 %v4333, %v2492
        %v4340 = vmul.f32 %v4334, %v2493
        %v4341 = vmul.f32 %v4335, %v2494
        %v4342 = vmul.f32 %v4336, %v2492
        %v4343 = vmul.f32 %v4337, %v2493
        %v4344 = vmul.f32 %v4338, %v2494
        %v4345 = vadd.f32 %v4339, 0.0
        %v4346 = vadd.f32 %v4340, 0.0
        %v4347 = vadd.f32 %v4341, 0.0
        %v4348 = vadd.f32 %v4342, 0.0
        %v4349 = vadd.f32 %v4343, 0.0
        %v4350 = vadd.f32 %v4344, 0.0
        %v4351 = vmul.f32 %v4333, %v2507
        %v4352 = vmul.f32 %v4334, %v2508
        %v4353 = vmul.f32 %v4335, %v2509
        %v4354 = vmul.f32 %v4336, %v2507
        %v4355 = vmul.f32 %v4337, %v2508
        %v4356 = vmul.f32 %v4338, %v2509
        %v4363 = vrot.slane %v4351, 1
        %v4364 = vrot.slane %v4354, 1
        %v4365 = vsel %vm2522, %v4363, %v4364
        %v4366 = vrot.slane %v4352, 1
        %v4367 = vrot.slane %v4355, 1
        %v4368 = vsel %vm2522, %v4366, %v4367
        %v4369 = vrot.slane %v4353, 1
        %v4370 = vrot.slane %v4356, 1
        %v4371 = vsel %vm2522, %v4369, %v4370
        %v4378 = vadd.f32 %v4345, %v4365
        %v4379 = vadd.f32 %v4346, %v4368
        %v4380 = vadd.f32 %v4347, %v4371
        %v4381 = vadd.f32 %v4348, %v4364
        %v4382 = vadd.f32 %v4349, %v4367
        %v4383 = vadd.f32 %v4350, %v4370
        %v4384 = vmul.f32 %v4333, %v2544
        %v4385 = vmul.f32 %v4334, %v2545
        %v4386 = vmul.f32 %v4335, %v2546
        %v4387 = vmul.f32 %v4336, %v2544
        %v4388 = vmul.f32 %v4337, %v2545
        %v4389 = vmul.f32 %v4338, %v2546
        %v4396 = vrot.slane %v4384, 2
        %v4397 = vrot.slane %v4387, 2
        %v4398 = vsel %vm1735, %v4396, %v4397
        %v4399 = vrot.slane %v4385, 2
        %v4400 = vrot.slane %v4388, 2
        %v4401 = vsel %vm1735, %v4399, %v4400
        %v4402 = vrot.slane %v4386, 2
        %v4403 = vrot.slane %v4389, 2
        %v4404 = vsel %vm1735, %v4402, %v4403
        %v4411 = vadd.f32 %v4378, %v4398
        %v4412 = vadd.f32 %v4379, %v4401
        %v4413 = vadd.f32 %v4380, %v4404
        %v4414 = vadd.f32 %v4381, %v4397
        %v4415 = vadd.f32 %v4382, %v4400
        %v4416 = vadd.f32 %v4383, %v4403
        %v4417 = vld [vmem:[%s4241] sm:$0xff]
        %v4418 = vld [vmem:[%s4241 + $0x8] sm:$0xff]
        %v4419 = vld [vmem:[%s4241 + $0x10] sm:$0xff]
        %v4420 = vld [vmem:[%s4241 + $0x18] sm:$0xff]
        %v4421 = vld [vmem:[%s4241 + $0x20] sm:$0xff]
        %v4422 = vld [vmem:[%s4241 + $0x28] sm:$0xff]
        %v4423 = vmul.f32 %v4417, %v2586
        %v4424 = vmul.f32 %v4418, %v2587
        %v4425 = vmul.f32 %v4419, %v2588
        %v4426 = vmul.f32 %v4420, %v2586
        %v4427 = vmul.f32 %v4421, %v2587
        %v4428 = vmul.f32 %v4422, %v2588
        %v4429 = vadd.f32 %v4411, %v4423
        %v4430 = vadd.f32 %v4412, %v4424
        %v4431 = vadd.f32 %v4413, %v4425
        %v4432 = vadd.f32 %v4414, %v4426
        %v4433 = vadd.f32 %v4415, %v4427
        %v4434 = vadd.f32 %v4416, %v4428
        %v4435 = vmul.f32 %v4417, %v2601
        %v4436 = vmul.f32 %v4418, %v2602
        %v4437 = vmul.f32 %v4419, %v2603
        %v4438 = vmul.f32 %v4420, %v2601
        %v4439 = vmul.f32 %v4421, %v2602
        %v4440 = vmul.f32 %v4422, %v2603
        %v4447 = vrot.slane %v4435, 1
        %v4448 = vrot.slane %v4438, 1
        %v4449 = vsel %vm2522, %v4447, %v4448
        %v4450 = vrot.slane %v4436, 1
        %v4451 = vrot.slane %v4439, 1
        %v4452 = vsel %vm2522, %v4450, %v4451
        %v4453 = vrot.slane %v4437, 1
        %v4454 = vrot.slane %v4440, 1
        %v4455 = vsel %vm2522, %v4453, %v4454
        %v4462 = vadd.f32 %v4429, %v4449
        %v4463 = vadd.f32 %v4430, %v4452
        %v4464 = vadd.f32 %v4431, %v4455
        %v4465 = vadd.f32 %v4432, %v4448
        %v4466 = vadd.f32 %v4433, %v4451
        %v4467 = vadd.f32 %v4434, %v4454
        %v4468 = vmul.f32 %v4417, %v2637
        %v4469 = vmul.f32 %v4418, %v2638
        %v4470 = vmul.f32 %v4419, %v2639
        %v4471 = vmul.f32 %v4420, %v2637
        %v4472 = vmul.f32 %v4421, %v2638
        %v4473 = vmul.f32 %v4422, %v2639
        %v4480 = vrot.slane %v4468, 2
        %v4481 = vrot.slane %v4471, 2
        %v4482 = vsel %vm1735, %v4480, %v4481
        %v4483 = vrot.slane %v4469, 2
        %v4484 = vrot.slane %v4472, 2
        %v4485 = vsel %vm1735, %v4483, %v4484
        %v4486 = vrot.slane %v4470, 2
        %v4487 = vrot.slane %v4473, 2
        %v4488 = vsel %vm1735, %v4486, %v4487
        %v4495 = vadd.f32 %v4462, %v4482
        %v4496 = vadd.f32 %v4463, %v4485
        %v4497 = vadd.f32 %v4464, %v4488
        %v4498 = vadd.f32 %v4465, %v4481
        %v4499 = vadd.f32 %v4466, %v4484
        %v4500 = vadd.f32 %v4467, %v4487
        %s4501 = scalar_lea.vmem [#allocation2], 432
        %v4502 = vld [vmem:[%s4501] sm:$0xff]
        %v4503 = vld [vmem:[%s4501 + $0x8] sm:$0xff]
        %v4504 = vld [vmem:[%s4501 + $0x10] sm:$0xff]
        %v4505 = vld [vmem:[%s4501 + $0x18] sm:$0xff]
        %v4506 = vld [vmem:[%s4501 + $0x20] sm:$0xff]
        %v4507 = vld [vmem:[%s4501 + $0x28] sm:$0xff]
        %v4508 = vmul.f32 %v4502, %v2680
        %v4509 = vmul.f32 %v4503, %v2681
        %v4510 = vmul.f32 %v4504, %v2682
        %v4511 = vmul.f32 %v4505, %v2680
        %v4512 = vmul.f32 %v4506, %v2681
        %v4513 = vmul.f32 %v4507, %v2682
        %v4514 = vadd.f32 %v4495, %v4508
        %v4515 = vadd.f32 %v4496, %v4509
        %v4516 = vadd.f32 %v4497, %v4510
        %v4517 = vadd.f32 %v4498, %v4511
        %v4518 = vadd.f32 %v4499, %v4512
        %v4519 = vadd.f32 %v4500, %v4513
        %v4520 = vmul.f32 %v4502, %v2695
        %v4521 = vmul.f32 %v4503, %v2696
        %v4522 = vmul.f32 %v4504, %v2697
        %v4523 = vmul.f32 %v4505, %v2695
        %v4524 = vmul.f32 %v4506, %v2696
        %v4525 = vmul.f32 %v4507, %v2697
        %v4532 = vrot.slane %v4520, 1
        %v4533 = vrot.slane %v4523, 1
        %v4534 = vsel %vm2522, %v4532, %v4533
        %v4535 = vrot.slane %v4521, 1
        %v4536 = vrot.slane %v4524, 1
        %v4537 = vsel %vm2522, %v4535, %v4536
        %v4538 = vrot.slane %v4522, 1
        %v4539 = vrot.slane %v4525, 1
        %v4540 = vsel %vm2522, %v4538, %v4539
        %v4547 = vadd.f32 %v4514, %v4534
        %v4548 = vadd.f32 %v4515, %v4537
        %v4549 = vadd.f32 %v4516, %v4540
        %v4550 = vadd.f32 %v4517, %v4533
        %v4551 = vadd.f32 %v4518, %v4536
        %v4552 = vadd.f32 %v4519, %v4539
        %v4553 = vmul.f32 %v4502, %v2731
        %v4554 = vmul.f32 %v4503, %v2732
        %v4555 = vmul.f32 %v4504, %v2733
        %v4556 = vmul.f32 %v4505, %v2731
        %v4557 = vmul.f32 %v4506, %v2732
        %v4558 = vmul.f32 %v4507, %v2733
        %v4565 = vrot.slane %v4553, 2
        %v4566 = vrot.slane %v4556, 2
        %v4567 = vsel %vm1735, %v4565, %v4566
        %v4568 = vrot.slane %v4554, 2
        %v4569 = vrot.slane %v4557, 2
        %v4570 = vsel %vm1735, %v4568, %v4569
        %v4571 = vrot.slane %v4555, 2
        %v4572 = vrot.slane %v4558, 2
        %v4573 = vsel %vm1735, %v4571, %v4572
        %v4580 = vadd.f32 %v4547, %v4567
        %v4581 = vadd.f32 %v4548, %v4570
        %v4582 = vadd.f32 %v4549, %v4573
        %v4583 = vadd.f32 %v4550, %v4566
        %v4584 = vadd.f32 %v4551, %v4569
        %v4585 = vadd.f32 %v4552, %v4572
        %s4586 = scalar_lea.vmem %s404, 336 [#allocation7]
        %4587 = vst [vmem:[%s4586] sm:$0xff] %v4580
        %4588 = vst [vmem:[%s4586 + $0x8] sm:$0xff] %v4581
        %4589 = vst [vmem:[%s4586 + $0x10] sm:$0xff] %v4582
        %4590 = vst [vmem:[%s4586 + $0x18] sm:$0x3f] %v4583
        %4591 = vst [vmem:[%s4586 + $0x20] sm:$0x3f] %v4584
        %4592 = vst [vmem:[%s4586 + $0x28] sm:$0x3f] %v4585
        %v4593 = vld [vmem:[%s4241] sm:$0xff]
        %v4594 = vld [vmem:[%s4241 + $0x8] sm:$0xff]
        %v4595 = vld [vmem:[%s4241 + $0x10] sm:$0xff]
        %v4596 = vld [vmem:[%s4241 + $0x18] sm:$0xff]
        %v4597 = vld [vmem:[%s4241 + $0x20] sm:$0xff]
        %v4598 = vld [vmem:[%s4241 + $0x28] sm:$0xff]
        %v4599 = vmul.f32 %v4593, %v2492
        %v4600 = vmul.f32 %v4594, %v2493
        %v4601 = vmul.f32 %v4595, %v2494
        %v4602 = vmul.f32 %v4596, %v2492
        %v4603 = vmul.f32 %v4597, %v2493
        %v4604 = vmul.f32 %v4598, %v2494
        %v4605 = vadd.f32 %v4599, 0.0
        %v4606 = vadd.f32 %v4600, 0.0
        %v4607 = vadd.f32 %v4601, 0.0
        %v4608 = vadd.f32 %v4602, 0.0
        %v4609 = vadd.f32 %v4603, 0.0
        %v4610 = vadd.f32 %v4604, 0.0
        %v4611 = vmul.f32 %v4593, %v2507
        %v4612 = vmul.f32 %v4594, %v2508
        %v4613 = vmul.f32 %v4595, %v2509
        %v4614 = vmul.f32 %v4596, %v2507
        %v4615 = vmul.f32 %v4597, %v2508
        %v4616 = vmul.f32 %v4598, %v2509
        %v4623 = vrot.slane %v4611, 1
        %v4624 = vrot.slane %v4614, 1
        %v4625 = vsel %vm2522, %v4623, %v4624
        %v4626 = vrot.slane %v4612, 1
        %v4627 = vrot.slane %v4615, 1
        %v4628 = vsel %vm2522, %v4626, %v4627
        %v4629 = vrot.slane %v4613, 1
        %v4630 = vrot.slane %v4616, 1
        %v4631 = vsel %vm2522, %v4629, %v4630
        %v4638 = vadd.f32 %v4605, %v4625
        %v4639 = vadd.f32 %v4606, %v4628
        %v4640 = vadd.f32 %v4607, %v4631
        %v4641 = vadd.f32 %v4608, %v4624
        %v4642 = vadd.f32 %v4609, %v4627
        %v4643 = vadd.f32 %v4610, %v4630
        %v4644 = vmul.f32 %v4593, %v2544
        %v4645 = vmul.f32 %v4594, %v2545
        %v4646 = vmul.f32 %v4595, %v2546
        %v4647 = vmul.f32 %v4596, %v2544
        %v4648 = vmul.f32 %v4597, %v2545
        %v4649 = vmul.f32 %v4598, %v2546
        %v4656 = vrot.slane %v4644, 2
        %v4657 = vrot.slane %v4647, 2
        %v4658 = vsel %vm1735, %v4656, %v4657
        %v4659 = vrot.slane %v4645, 2
        %v4660 = vrot.slane %v4648, 2
        %v4661 = vsel %vm1735, %v4659, %v4660
        %v4662 = vrot.slane %v4646, 2
        %v4663 = vrot.slane %v4649, 2
        %v4664 = vsel %vm1735, %v4662, %v4663
        %v4671 = vadd.f32 %v4638, %v4658
        %v4672 = vadd.f32 %v4639, %v4661
        %v4673 = vadd.f32 %v4640, %v4664
        %v4674 = vadd.f32 %v4641, %v4657
        %v4675 = vadd.f32 %v4642, %v4660
        %v4676 = vadd.f32 %v4643, %v4663
        %v4677 = vld [vmem:[%s4501] sm:$0xff]
        %v4678 = vld [vmem:[%s4501 + $0x8] sm:$0xff]
        %v4679 = vld [vmem:[%s4501 + $0x10] sm:$0xff]
        %v4680 = vld [vmem:[%s4501 + $0x18] sm:$0xff]
        %v4681 = vld [vmem:[%s4501 + $0x20] sm:$0xff]
        %v4682 = vld [vmem:[%s4501 + $0x28] sm:$0xff]
        %v4683 = vmul.f32 %v4677, %v2586
        %v4684 = vmul.f32 %v4678, %v2587
        %v4685 = vmul.f32 %v4679, %v2588
        %v4686 = vmul.f32 %v4680, %v2586
        %v4687 = vmul.f32 %v4681, %v2587
        %v4688 = vmul.f32 %v4682, %v2588
        %v4689 = vadd.f32 %v4671, %v4683
        %v4690 = vadd.f32 %v4672, %v4684
        %v4691 = vadd.f32 %v4673, %v4685
        %v4692 = vadd.f32 %v4674, %v4686
        %v4693 = vadd.f32 %v4675, %v4687
        %v4694 = vadd.f32 %v4676, %v4688
        %v4695 = vmul.f32 %v4677, %v2601
        %v4696 = vmul.f32 %v4678, %v2602
        %v4697 = vmul.f32 %v4679, %v2603
        %v4698 = vmul.f32 %v4680, %v2601
        %v4699 = vmul.f32 %v4681, %v2602
        %v4700 = vmul.f32 %v4682, %v2603
        %v4707 = vrot.slane %v4695, 1
        %v4708 = vrot.slane %v4698, 1
        %v4709 = vsel %vm2522, %v4707, %v4708
        %v4710 = vrot.slane %v4696, 1
        %v4711 = vrot.slane %v4699, 1
        %v4712 = vsel %vm2522, %v4710, %v4711
        %v4713 = vrot.slane %v4697, 1
        %v4714 = vrot.slane %v4700, 1
        %v4715 = vsel %vm2522, %v4713, %v4714
        %v4722 = vadd.f32 %v4689, %v4709
        %v4723 = vadd.f32 %v4690, %v4712
        %v4724 = vadd.f32 %v4691, %v4715
        %v4725 = vadd.f32 %v4692, %v4708
        %v4726 = vadd.f32 %v4693, %v4711
        %v4727 = vadd.f32 %v4694, %v4714
        %v4728 = vmul.f32 %v4677, %v2637
        %v4729 = vmul.f32 %v4678, %v2638
        %v4730 = vmul.f32 %v4679, %v2639
        %v4731 = vmul.f32 %v4680, %v2637
        %v4732 = vmul.f32 %v4681, %v2638
        %v4733 = vmul.f32 %v4682, %v2639
        %v4740 = vrot.slane %v4728, 2
        %v4741 = vrot.slane %v4731, 2
        %v4742 = vsel %vm1735, %v4740, %v4741
        %v4743 = vrot.slane %v4729, 2
        %v4744 = vrot.slane %v4732, 2
        %v4745 = vsel %vm1735, %v4743, %v4744
        %v4746 = vrot.slane %v4730, 2
        %v4747 = vrot.slane %v4733, 2
        %v4748 = vsel %vm1735, %v4746, %v4747
        %v4755 = vadd.f32 %v4722, %v4742
        %v4756 = vadd.f32 %v4723, %v4745
        %v4757 = vadd.f32 %v4724, %v4748
        %v4758 = vadd.f32 %v4725, %v4741
        %v4759 = vadd.f32 %v4726, %v4744
        %v4760 = vadd.f32 %v4727, %v4747
        %s4761 = scalar_lea.vmem [#allocation2], 480
        %v4762 = vld [vmem:[%s4761] sm:$0xff]
        %v4763 = vld [vmem:[%s4761 + $0x8] sm:$0xff]
        %v4764 = vld [vmem:[%s4761 + $0x10] sm:$0xff]
        %v4765 = vld [vmem:[%s4761 + $0x18] sm:$0xff]
        %v4766 = vld [vmem:[%s4761 + $0x20] sm:$0xff]
        %v4767 = vld [vmem:[%s4761 + $0x28] sm:$0xff]
        %v4768 = vmul.f32 %v4762, %v2680
        %v4769 = vmul.f32 %v4763, %v2681
        %v4770 = vmul.f32 %v4764, %v2682
        %v4771 = vmul.f32 %v4765, %v2680
        %v4772 = vmul.f32 %v4766, %v2681
        %v4773 = vmul.f32 %v4767, %v2682
        %v4774 = vadd.f32 %v4755, %v4768
        %v4775 = vadd.f32 %v4756, %v4769
        %v4776 = vadd.f32 %v4757, %v4770
        %v4777 = vadd.f32 %v4758, %v4771
        %v4778 = vadd.f32 %v4759, %v4772
        %v4779 = vadd.f32 %v4760, %v4773
        %v4780 = vmul.f32 %v4762, %v2695
        %v4781 = vmul.f32 %v4763, %v2696
        %v4782 = vmul.f32 %v4764, %v2697
        %v4783 = vmul.f32 %v4765, %v2695
        %v4784 = vmul.f32 %v4766, %v2696
        %v4785 = vmul.f32 %v4767, %v2697
        %v4792 = vrot.slane %v4780, 1
        %v4793 = vrot.slane %v4783, 1
        %v4794 = vsel %vm2522, %v4792, %v4793
        %v4795 = vrot.slane %v4781, 1
        %v4796 = vrot.slane %v4784, 1
        %v4797 = vsel %vm2522, %v4795, %v4796
        %v4798 = vrot.slane %v4782, 1
        %v4799 = vrot.slane %v4785, 1
        %v4800 = vsel %vm2522, %v4798, %v4799
        %v4807 = vadd.f32 %v4774, %v4794
        %v4808 = vadd.f32 %v4775, %v4797
        %v4809 = vadd.f32 %v4776, %v4800
        %v4810 = vadd.f32 %v4777, %v4793
        %v4811 = vadd.f32 %v4778, %v4796
        %v4812 = vadd.f32 %v4779, %v4799
        %v4813 = vmul.f32 %v4762, %v2731
        %v4814 = vmul.f32 %v4763, %v2732
        %v4815 = vmul.f32 %v4764, %v2733
        %v4816 = vmul.f32 %v4765, %v2731
        %v4817 = vmul.f32 %v4766, %v2732
        %v4818 = vmul.f32 %v4767, %v2733
        %v4825 = vrot.slane %v4813, 2
        %v4826 = vrot.slane %v4816, 2
        %v4827 = vsel %vm1735, %v4825, %v4826
        %v4828 = vrot.slane %v4814, 2
        %v4829 = vrot.slane %v4817, 2
        %v4830 = vsel %vm1735, %v4828, %v4829
        %v4831 = vrot.slane %v4815, 2
        %v4832 = vrot.slane %v4818, 2
        %v4833 = vsel %vm1735, %v4831, %v4832
        %v4840 = vadd.f32 %v4807, %v4827
        %v4841 = vadd.f32 %v4808, %v4830
        %v4842 = vadd.f32 %v4809, %v4833
        %v4843 = vadd.f32 %v4810, %v4826
        %v4844 = vadd.f32 %v4811, %v4829
        %v4845 = vadd.f32 %v4812, %v4832
        %s4846 = scalar_lea.vmem %s404, 384 [#allocation7]
        %4847 = vst [vmem:[%s4846] sm:$0xff] %v4840
        %4848 = vst [vmem:[%s4846 + $0x8] sm:$0xff] %v4841
        %4849 = vst [vmem:[%s4846 + $0x10] sm:$0xff] %v4842
        %4850 = vst [vmem:[%s4846 + $0x18] sm:$0x3f] %v4843
        %4851 = vst [vmem:[%s4846 + $0x20] sm:$0x3f] %v4844
        %4852 = vst [vmem:[%s4846 + $0x28] sm:$0x3f] %v4845
        %v4853 = vld [vmem:[%s4501] sm:$0xff]
        %v4854 = vld [vmem:[%s4501 + $0x8] sm:$0xff]
        %v4855 = vld [vmem:[%s4501 + $0x10] sm:$0xff]
        %v4856 = vld [vmem:[%s4501 + $0x18] sm:$0xff]
        %v4857 = vld [vmem:[%s4501 + $0x20] sm:$0xff]
        %v4858 = vld [vmem:[%s4501 + $0x28] sm:$0xff]
        %v4859 = vmul.f32 %v4853, %v2492
        %v4860 = vmul.f32 %v4854, %v2493
        %v4861 = vmul.f32 %v4855, %v2494
        %v4862 = vmul.f32 %v4856, %v2492
        %v4863 = vmul.f32 %v4857, %v2493
        %v4864 = vmul.f32 %v4858, %v2494
        %v4865 = vadd.f32 %v4859, 0.0
        %v4866 = vadd.f32 %v4860, 0.0
        %v4867 = vadd.f32 %v4861, 0.0
        %v4868 = vadd.f32 %v4862, 0.0
        %v4869 = vadd.f32 %v4863, 0.0
        %v4870 = vadd.f32 %v4864, 0.0
        %v4871 = vmul.f32 %v4853, %v2507
        %v4872 = vmul.f32 %v4854, %v2508
        %v4873 = vmul.f32 %v4855, %v2509
        %v4874 = vmul.f32 %v4856, %v2507
        %v4875 = vmul.f32 %v4857, %v2508
        %v4876 = vmul.f32 %v4858, %v2509
        %v4883 = vrot.slane %v4871, 1
        %v4884 = vrot.slane %v4874, 1
        %v4885 = vsel %vm2522, %v4883, %v4884
        %v4886 = vrot.slane %v4872, 1
        %v4887 = vrot.slane %v4875, 1
        %v4888 = vsel %vm2522, %v4886, %v4887
        %v4889 = vrot.slane %v4873, 1
        %v4890 = vrot.slane %v4876, 1
        %v4891 = vsel %vm2522, %v4889, %v4890
        %v4898 = vadd.f32 %v4865, %v4885
        %v4899 = vadd.f32 %v4866, %v4888
        %v4900 = vadd.f32 %v4867, %v4891
        %v4901 = vadd.f32 %v4868, %v4884
        %v4902 = vadd.f32 %v4869, %v4887
        %v4903 = vadd.f32 %v4870, %v4890
        %v4904 = vmul.f32 %v4853, %v2544
        %v4905 = vmul.f32 %v4854, %v2545
        %v4906 = vmul.f32 %v4855, %v2546
        %v4907 = vmul.f32 %v4856, %v2544
        %v4908 = vmul.f32 %v4857, %v2545
        %v4909 = vmul.f32 %v4858, %v2546
        %v4916 = vrot.slane %v4904, 2
        %v4917 = vrot.slane %v4907, 2
        %v4918 = vsel %vm1735, %v4916, %v4917
        %v4919 = vrot.slane %v4905, 2
        %v4920 = vrot.slane %v4908, 2
        %v4921 = vsel %vm1735, %v4919, %v4920
        %v4922 = vrot.slane %v4906, 2
        %v4923 = vrot.slane %v4909, 2
        %v4924 = vsel %vm1735, %v4922, %v4923
        %v4931 = vadd.f32 %v4898, %v4918
        %v4932 = vadd.f32 %v4899, %v4921
        %v4933 = vadd.f32 %v4900, %v4924
        %v4934 = vadd.f32 %v4901, %v4917
        %v4935 = vadd.f32 %v4902, %v4920
        %v4936 = vadd.f32 %v4903, %v4923
        %v4937 = vld [vmem:[%s4761] sm:$0xff]
        %v4938 = vld [vmem:[%s4761 + $0x8] sm:$0xff]
        %v4939 = vld [vmem:[%s4761 + $0x10] sm:$0xff]
        %v4940 = vld [vmem:[%s4761 + $0x18] sm:$0xff]
        %v4941 = vld [vmem:[%s4761 + $0x20] sm:$0xff]
        %v4942 = vld [vmem:[%s4761 + $0x28] sm:$0xff]
        %v4943 = vmul.f32 %v4937, %v2586
        %v4944 = vmul.f32 %v4938, %v2587
        %v4945 = vmul.f32 %v4939, %v2588
        %v4946 = vmul.f32 %v4940, %v2586
        %v4947 = vmul.f32 %v4941, %v2587
        %v4948 = vmul.f32 %v4942, %v2588
        %v4949 = vadd.f32 %v4931, %v4943
        %v4950 = vadd.f32 %v4932, %v4944
        %v4951 = vadd.f32 %v4933, %v4945
        %v4952 = vadd.f32 %v4934, %v4946
        %v4953 = vadd.f32 %v4935, %v4947
        %v4954 = vadd.f32 %v4936, %v4948
        %v4955 = vmul.f32 %v4937, %v2601
        %v4956 = vmul.f32 %v4938, %v2602
        %v4957 = vmul.f32 %v4939, %v2603
        %v4958 = vmul.f32 %v4940, %v2601
        %v4959 = vmul.f32 %v4941, %v2602
        %v4960 = vmul.f32 %v4942, %v2603
        %v4967 = vrot.slane %v4955, 1
        %v4968 = vrot.slane %v4958, 1
        %v4969 = vsel %vm2522, %v4967, %v4968
        %v4970 = vrot.slane %v4956, 1
        %v4971 = vrot.slane %v4959, 1
        %v4972 = vsel %vm2522, %v4970, %v4971
        %v4973 = vrot.slane %v4957, 1
        %v4974 = vrot.slane %v4960, 1
        %v4975 = vsel %vm2522, %v4973, %v4974
        %v4982 = vadd.f32 %v4949, %v4969
        %v4983 = vadd.f32 %v4950, %v4972
        %v4984 = vadd.f32 %v4951, %v4975
        %v4985 = vadd.f32 %v4952, %v4968
        %v4986 = vadd.f32 %v4953, %v4971
        %v4987 = vadd.f32 %v4954, %v4974
        %v4988 = vmul.f32 %v4937, %v2637
        %v4989 = vmul.f32 %v4938, %v2638
        %v4990 = vmul.f32 %v4939, %v2639
        %v4991 = vmul.f32 %v4940, %v2637
        %v4992 = vmul.f32 %v4941, %v2638
        %v4993 = vmul.f32 %v4942, %v2639
        %v5000 = vrot.slane %v4988, 2
        %v5001 = vrot.slane %v4991, 2
        %v5002 = vsel %vm1735, %v5000, %v5001
        %v5003 = vrot.slane %v4989, 2
        %v5004 = vrot.slane %v4992, 2
        %v5005 = vsel %vm1735, %v5003, %v5004
        %v5006 = vrot.slane %v4990, 2
        %v5007 = vrot.slane %v4993, 2
        %v5008 = vsel %vm1735, %v5006, %v5007
        %v5015 = vadd.f32 %v4982, %v5002
        %v5016 = vadd.f32 %v4983, %v5005
        %v5017 = vadd.f32 %v4984, %v5008
        %v5018 = vadd.f32 %v4985, %v5001
        %v5019 = vadd.f32 %v4986, %v5004
        %v5020 = vadd.f32 %v4987, %v5007
        %s5021 = scalar_lea.vmem [#allocation2], 528
        %v5022 = vld [vmem:[%s5021] sm:$0xff]
        %v5023 = vld [vmem:[%s5021 + $0x8] sm:$0xff]
        %v5024 = vld [vmem:[%s5021 + $0x10] sm:$0xff]
        %v5025 = vld [vmem:[%s5021 + $0x18] sm:$0xff]
        %v5026 = vld [vmem:[%s5021 + $0x20] sm:$0xff]
        %v5027 = vld [vmem:[%s5021 + $0x28] sm:$0xff]
        %v5028 = vmul.f32 %v5022, %v2680
        %v5029 = vmul.f32 %v5023, %v2681
        %v5030 = vmul.f32 %v5024, %v2682
        %v5031 = vmul.f32 %v5025, %v2680
        %v5032 = vmul.f32 %v5026, %v2681
        %v5033 = vmul.f32 %v5027, %v2682
        %v5034 = vadd.f32 %v5015, %v5028
        %v5035 = vadd.f32 %v5016, %v5029
        %v5036 = vadd.f32 %v5017, %v5030
        %v5037 = vadd.f32 %v5018, %v5031
        %v5038 = vadd.f32 %v5019, %v5032
        %v5039 = vadd.f32 %v5020, %v5033
        %v5040 = vmul.f32 %v5022, %v2695
        %v5041 = vmul.f32 %v5023, %v2696
        %v5042 = vmul.f32 %v5024, %v2697
        %v5043 = vmul.f32 %v5025, %v2695
        %v5044 = vmul.f32 %v5026, %v2696
        %v5045 = vmul.f32 %v5027, %v2697
        %v5052 = vrot.slane %v5040, 1
        %v5053 = vrot.slane %v5043, 1
        %v5054 = vsel %vm2522, %v5052, %v5053
        %v5055 = vrot.slane %v5041, 1
        %v5056 = vrot.slane %v5044, 1
        %v5057 = vsel %vm2522, %v5055, %v5056
        %v5058 = vrot.slane %v5042, 1
        %v5059 = vrot.slane %v5045, 1
        %v5060 = vsel %vm2522, %v5058, %v5059
        %v5067 = vadd.f32 %v5034, %v5054
        %v5068 = vadd.f32 %v5035, %v5057
        %v5069 = vadd.f32 %v5036, %v5060
        %v5070 = vadd.f32 %v5037, %v5053
        %v5071 = vadd.f32 %v5038, %v5056
        %v5072 = vadd.f32 %v5039, %v5059
        %v5073 = vmul.f32 %v5022, %v2731
        %v5074 = vmul.f32 %v5023, %v2732
        %v5075 = vmul.f32 %v5024, %v2733
        %v5076 = vmul.f32 %v5025, %v2731
        %v5077 = vmul.f32 %v5026, %v2732
        %v5078 = vmul.f32 %v5027, %v2733
        %v5085 = vrot.slane %v5073, 2
        %v5086 = vrot.slane %v5076, 2
        %v5087 = vsel %vm1735, %v5085, %v5086
        %v5088 = vrot.slane %v5074, 2
        %v5089 = vrot.slane %v5077, 2
        %v5090 = vsel %vm1735, %v5088, %v5089
        %v5091 = vrot.slane %v5075, 2
        %v5092 = vrot.slane %v5078, 2
        %v5093 = vsel %vm1735, %v5091, %v5092
        %v5100 = vadd.f32 %v5067, %v5087
        %v5101 = vadd.f32 %v5068, %v5090
        %v5102 = vadd.f32 %v5069, %v5093
        %v5103 = vadd.f32 %v5070, %v5086
        %v5104 = vadd.f32 %v5071, %v5089
        %v5105 = vadd.f32 %v5072, %v5092
        %s5106 = scalar_lea.vmem %s404, 432 [#allocation7]
        %5107 = vst [vmem:[%s5106] sm:$0xff] %v5100
        %5108 = vst [vmem:[%s5106 + $0x8] sm:$0xff] %v5101
        %5109 = vst [vmem:[%s5106 + $0x10] sm:$0xff] %v5102
        %5110 = vst [vmem:[%s5106 + $0x18] sm:$0x3f] %v5103
        %5111 = vst [vmem:[%s5106 + $0x20] sm:$0x3f] %v5104
        %5112 = vst [vmem:[%s5106 + $0x28] sm:$0x3f] %v5105
        %v5113 = vld [vmem:[%s4761] sm:$0xff]
        %v5114 = vld [vmem:[%s4761 + $0x8] sm:$0xff]
        %v5115 = vld [vmem:[%s4761 + $0x10] sm:$0xff]
        %v5116 = vld [vmem:[%s4761 + $0x18] sm:$0xff]
        %v5117 = vld [vmem:[%s4761 + $0x20] sm:$0xff]
        %v5118 = vld [vmem:[%s4761 + $0x28] sm:$0xff]
        %v5119 = vmul.f32 %v5113, %v2492
        %v5120 = vmul.f32 %v5114, %v2493
        %v5121 = vmul.f32 %v5115, %v2494
        %v5122 = vmul.f32 %v5116, %v2492
        %v5123 = vmul.f32 %v5117, %v2493
        %v5124 = vmul.f32 %v5118, %v2494
        %v5125 = vadd.f32 %v5119, 0.0
        %v5126 = vadd.f32 %v5120, 0.0
        %v5127 = vadd.f32 %v5121, 0.0
        %v5128 = vadd.f32 %v5122, 0.0
        %v5129 = vadd.f32 %v5123, 0.0
        %v5130 = vadd.f32 %v5124, 0.0
        %v5131 = vmul.f32 %v5113, %v2507
        %v5132 = vmul.f32 %v5114, %v2508
        %v5133 = vmul.f32 %v5115, %v2509
        %v5134 = vmul.f32 %v5116, %v2507
        %v5135 = vmul.f32 %v5117, %v2508
        %v5136 = vmul.f32 %v5118, %v2509
        %v5143 = vrot.slane %v5131, 1
        %v5144 = vrot.slane %v5134, 1
        %v5145 = vsel %vm2522, %v5143, %v5144
        %v5146 = vrot.slane %v5132, 1
        %v5147 = vrot.slane %v5135, 1
        %v5148 = vsel %vm2522, %v5146, %v5147
        %v5149 = vrot.slane %v5133, 1
        %v5150 = vrot.slane %v5136, 1
        %v5151 = vsel %vm2522, %v5149, %v5150
        %v5158 = vadd.f32 %v5125, %v5145
        %v5159 = vadd.f32 %v5126, %v5148
        %v5160 = vadd.f32 %v5127, %v5151
        %v5161 = vadd.f32 %v5128, %v5144
        %v5162 = vadd.f32 %v5129, %v5147
        %v5163 = vadd.f32 %v5130, %v5150
        %v5164 = vmul.f32 %v5113, %v2544
        %v5165 = vmul.f32 %v5114, %v2545
        %v5166 = vmul.f32 %v5115, %v2546
        %v5167 = vmul.f32 %v5116, %v2544
        %v5168 = vmul.f32 %v5117, %v2545
        %v5169 = vmul.f32 %v5118, %v2546
        %v5176 = vrot.slane %v5164, 2
        %v5177 = vrot.slane %v5167, 2
        %v5178 = vsel %vm1735, %v5176, %v5177
        %v5179 = vrot.slane %v5165, 2
        %v5180 = vrot.slane %v5168, 2
        %v5181 = vsel %vm1735, %v5179, %v5180
        %v5182 = vrot.slane %v5166, 2
        %v5183 = vrot.slane %v5169, 2
        %v5184 = vsel %vm1735, %v5182, %v5183
        %v5191 = vadd.f32 %v5158, %v5178
        %v5192 = vadd.f32 %v5159, %v5181
        %v5193 = vadd.f32 %v5160, %v5184
        %v5194 = vadd.f32 %v5161, %v5177
        %v5195 = vadd.f32 %v5162, %v5180
        %v5196 = vadd.f32 %v5163, %v5183
        %v5197 = vld [vmem:[%s5021] sm:$0xff]
        %v5198 = vld [vmem:[%s5021 + $0x8] sm:$0xff]
        %v5199 = vld [vmem:[%s5021 + $0x10] sm:$0xff]
        %v5200 = vld [vmem:[%s5021 + $0x18] sm:$0xff]
        %v5201 = vld [vmem:[%s5021 + $0x20] sm:$0xff]
        %v5202 = vld [vmem:[%s5021 + $0x28] sm:$0xff]
        %v5203 = vmul.f32 %v5197, %v2586
        %v5204 = vmul.f32 %v5198, %v2587
        %v5205 = vmul.f32 %v5199, %v2588
        %v5206 = vmul.f32 %v5200, %v2586
        %v5207 = vmul.f32 %v5201, %v2587
        %v5208 = vmul.f32 %v5202, %v2588
        %v5209 = vadd.f32 %v5191, %v5203
        %v5210 = vadd.f32 %v5192, %v5204
        %v5211 = vadd.f32 %v5193, %v5205
        %v5212 = vadd.f32 %v5194, %v5206
        %v5213 = vadd.f32 %v5195, %v5207
        %v5214 = vadd.f32 %v5196, %v5208
        %v5215 = vmul.f32 %v5197, %v2601
        %v5216 = vmul.f32 %v5198, %v2602
        %v5217 = vmul.f32 %v5199, %v2603
        %v5218 = vmul.f32 %v5200, %v2601
        %v5219 = vmul.f32 %v5201, %v2602
        %v5220 = vmul.f32 %v5202, %v2603
        %v5227 = vrot.slane %v5215, 1
        %v5228 = vrot.slane %v5218, 1
        %v5229 = vsel %vm2522, %v5227, %v5228
        %v5230 = vrot.slane %v5216, 1
        %v5231 = vrot.slane %v5219, 1
        %v5232 = vsel %vm2522, %v5230, %v5231
        %v5233 = vrot.slane %v5217, 1
        %v5234 = vrot.slane %v5220, 1
        %v5235 = vsel %vm2522, %v5233, %v5234
        %v5242 = vadd.f32 %v5209, %v5229
        %v5243 = vadd.f32 %v5210, %v5232
        %v5244 = vadd.f32 %v5211, %v5235
        %v5245 = vadd.f32 %v5212, %v5228
        %v5246 = vadd.f32 %v5213, %v5231
        %v5247 = vadd.f32 %v5214, %v5234
        %v5248 = vmul.f32 %v5197, %v2637
        %v5249 = vmul.f32 %v5198, %v2638
        %v5250 = vmul.f32 %v5199, %v2639
        %v5251 = vmul.f32 %v5200, %v2637
        %v5252 = vmul.f32 %v5201, %v2638
        %v5253 = vmul.f32 %v5202, %v2639
        %v5260 = vrot.slane %v5248, 2
        %v5261 = vrot.slane %v5251, 2
        %v5262 = vsel %vm1735, %v5260, %v5261
        %v5263 = vrot.slane %v5249, 2
        %v5264 = vrot.slane %v5252, 2
        %v5265 = vsel %vm1735, %v5263, %v5264
        %v5266 = vrot.slane %v5250, 2
        %v5267 = vrot.slane %v5253, 2
        %v5268 = vsel %vm1735, %v5266, %v5267
        %v5275 = vadd.f32 %v5242, %v5262
        %v5276 = vadd.f32 %v5243, %v5265
        %v5277 = vadd.f32 %v5244, %v5268
        %v5278 = vadd.f32 %v5245, %v5261
        %v5279 = vadd.f32 %v5246, %v5264
        %v5280 = vadd.f32 %v5247, %v5267
        %s5281 = scalar_lea.vmem [#allocation2], 576
        %v5282 = vld [vmem:[%s5281] sm:$0xff]
        %v5283 = vld [vmem:[%s5281 + $0x8] sm:$0xff]
        %v5284 = vld [vmem:[%s5281 + $0x10] sm:$0xff]
        %v5285 = vld [vmem:[%s5281 + $0x18] sm:$0xff]
        %v5286 = vld [vmem:[%s5281 + $0x20] sm:$0xff]
        %v5287 = vld [vmem:[%s5281 + $0x28] sm:$0xff]
        %v5288 = vmul.f32 %v5282, %v2680
        %v5289 = vmul.f32 %v5283, %v2681
        %v5290 = vmul.f32 %v5284, %v2682
        %v5291 = vmul.f32 %v5285, %v2680
        %v5292 = vmul.f32 %v5286, %v2681
        %v5293 = vmul.f32 %v5287, %v2682
        %v5294 = vadd.f32 %v5275, %v5288
        %v5295 = vadd.f32 %v5276, %v5289
        %v5296 = vadd.f32 %v5277, %v5290
        %v5297 = vadd.f32 %v5278, %v5291
        %v5298 = vadd.f32 %v5279, %v5292
        %v5299 = vadd.f32 %v5280, %v5293
        %v5300 = vmul.f32 %v5282, %v2695
        %v5301 = vmul.f32 %v5283, %v2696
        %v5302 = vmul.f32 %v5284, %v2697
        %v5303 = vmul.f32 %v5285, %v2695
        %v5304 = vmul.f32 %v5286, %v2696
        %v5305 = vmul.f32 %v5287, %v2697
        %v5312 = vrot.slane %v5300, 1
        %v5313 = vrot.slane %v5303, 1
        %v5314 = vsel %vm2522, %v5312, %v5313
        %v5315 = vrot.slane %v5301, 1
        %v5316 = vrot.slane %v5304, 1
        %v5317 = vsel %vm2522, %v5315, %v5316
        %v5318 = vrot.slane %v5302, 1
        %v5319 = vrot.slane %v5305, 1
        %v5320 = vsel %vm2522, %v5318, %v5319
        %v5327 = vadd.f32 %v5294, %v5314
        %v5328 = vadd.f32 %v5295, %v5317
        %v5329 = vadd.f32 %v5296, %v5320
        %v5330 = vadd.f32 %v5297, %v5313
        %v5331 = vadd.f32 %v5298, %v5316
        %v5332 = vadd.f32 %v5299, %v5319
        %v5333 = vmul.f32 %v5282, %v2731
        %v5334 = vmul.f32 %v5283, %v2732
        %v5335 = vmul.f32 %v5284, %v2733
        %v5336 = vmul.f32 %v5285, %v2731
        %v5337 = vmul.f32 %v5286, %v2732
        %v5338 = vmul.f32 %v5287, %v2733
        %v5345 = vrot.slane %v5333, 2
        %v5346 = vrot.slane %v5336, 2
        %v5347 = vsel %vm1735, %v5345, %v5346
        %v5348 = vrot.slane %v5334, 2
        %v5349 = vrot.slane %v5337, 2
        %v5350 = vsel %vm1735, %v5348, %v5349
        %v5351 = vrot.slane %v5335, 2
        %v5352 = vrot.slane %v5338, 2
        %v5353 = vsel %vm1735, %v5351, %v5352
        %v5360 = vadd.f32 %v5327, %v5347
        %v5361 = vadd.f32 %v5328, %v5350
        %v5362 = vadd.f32 %v5329, %v5353
        %v5363 = vadd.f32 %v5330, %v5346
        %v5364 = vadd.f32 %v5331, %v5349
        %v5365 = vadd.f32 %v5332, %v5352
        %s5366 = scalar_lea.vmem %s404, 480 [#allocation7]
        %5367 = vst [vmem:[%s5366] sm:$0xff] %v5360
        %5368 = vst [vmem:[%s5366 + $0x8] sm:$0xff] %v5361
        %5369 = vst [vmem:[%s5366 + $0x10] sm:$0xff] %v5362
        %5370 = vst [vmem:[%s5366 + $0x18] sm:$0x3f] %v5363
        %5371 = vst [vmem:[%s5366 + $0x20] sm:$0x3f] %v5364
        %5372 = vst [vmem:[%s5366 + $0x28] sm:$0x3f] %v5365
        %v5373 = vld [vmem:[%s5021] sm:$0xff]
        %v5374 = vld [vmem:[%s5021 + $0x8] sm:$0xff]
        %v5375 = vld [vmem:[%s5021 + $0x10] sm:$0xff]
        %v5376 = vld [vmem:[%s5021 + $0x18] sm:$0xff]
        %v5377 = vld [vmem:[%s5021 + $0x20] sm:$0xff]
        %v5378 = vld [vmem:[%s5021 + $0x28] sm:$0xff]
        %v5379 = vmul.f32 %v5373, %v2492
        %v5380 = vmul.f32 %v5374, %v2493
        %v5381 = vmul.f32 %v5375, %v2494
        %v5382 = vmul.f32 %v5376, %v2492
        %v5383 = vmul.f32 %v5377, %v2493
        %v5384 = vmul.f32 %v5378, %v2494
        %v5385 = vadd.f32 %v5379, 0.0
        %v5386 = vadd.f32 %v5380, 0.0
        %v5387 = vadd.f32 %v5381, 0.0
        %v5388 = vadd.f32 %v5382, 0.0
        %v5389 = vadd.f32 %v5383, 0.0
        %v5390 = vadd.f32 %v5384, 0.0
        %v5391 = vmul.f32 %v5373, %v2507
        %v5392 = vmul.f32 %v5374, %v2508
        %v5393 = vmul.f32 %v5375, %v2509
        %v5394 = vmul.f32 %v5376, %v2507
        %v5395 = vmul.f32 %v5377, %v2508
        %v5396 = vmul.f32 %v5378, %v2509
        %v5403 = vrot.slane %v5391, 1
        %v5404 = vrot.slane %v5394, 1
        %v5405 = vsel %vm2522, %v5403, %v5404
        %v5406 = vrot.slane %v5392, 1
        %v5407 = vrot.slane %v5395, 1
        %v5408 = vsel %vm2522, %v5406, %v5407
        %v5409 = vrot.slane %v5393, 1
        %v5410 = vrot.slane %v5396, 1
        %v5411 = vsel %vm2522, %v5409, %v5410
        %v5418 = vadd.f32 %v5385, %v5405
        %v5419 = vadd.f32 %v5386, %v5408
        %v5420 = vadd.f32 %v5387, %v5411
        %v5421 = vadd.f32 %v5388, %v5404
        %v5422 = vadd.f32 %v5389, %v5407
        %v5423 = vadd.f32 %v5390, %v5410
        %v5424 = vmul.f32 %v5373, %v2544
        %v5425 = vmul.f32 %v5374, %v2545
        %v5426 = vmul.f32 %v5375, %v2546
        %v5427 = vmul.f32 %v5376, %v2544
        %v5428 = vmul.f32 %v5377, %v2545
        %v5429 = vmul.f32 %v5378, %v2546
        %v5436 = vrot.slane %v5424, 2
        %v5437 = vrot.slane %v5427, 2
        %v5438 = vsel %vm1735, %v5436, %v5437
        %v5439 = vrot.slane %v5425, 2
        %v5440 = vrot.slane %v5428, 2
        %v5441 = vsel %vm1735, %v5439, %v5440
        %v5442 = vrot.slane %v5426, 2
        %v5443 = vrot.slane %v5429, 2
        %v5444 = vsel %vm1735, %v5442, %v5443
        %v5451 = vadd.f32 %v5418, %v5438
        %v5452 = vadd.f32 %v5419, %v5441
        %v5453 = vadd.f32 %v5420, %v5444
        %v5454 = vadd.f32 %v5421, %v5437
        %v5455 = vadd.f32 %v5422, %v5440
        %v5456 = vadd.f32 %v5423, %v5443
        %v5457 = vld [vmem:[%s5281] sm:$0xff]
        %v5458 = vld [vmem:[%s5281 + $0x8] sm:$0xff]
        %v5459 = vld [vmem:[%s5281 + $0x10] sm:$0xff]
        %v5460 = vld [vmem:[%s5281 + $0x18] sm:$0xff]
        %v5461 = vld [vmem:[%s5281 + $0x20] sm:$0xff]
        %v5462 = vld [vmem:[%s5281 + $0x28] sm:$0xff]
        %v5463 = vmul.f32 %v5457, %v2586
        %v5464 = vmul.f32 %v5458, %v2587
        %v5465 = vmul.f32 %v5459, %v2588
        %v5466 = vmul.f32 %v5460, %v2586
        %v5467 = vmul.f32 %v5461, %v2587
        %v5468 = vmul.f32 %v5462, %v2588
        %v5469 = vadd.f32 %v5451, %v5463
        %v5470 = vadd.f32 %v5452, %v5464
        %v5471 = vadd.f32 %v5453, %v5465
        %v5472 = vadd.f32 %v5454, %v5466
        %v5473 = vadd.f32 %v5455, %v5467
        %v5474 = vadd.f32 %v5456, %v5468
        %v5475 = vmul.f32 %v5457, %v2601
        %v5476 = vmul.f32 %v5458, %v2602
        %v5477 = vmul.f32 %v5459, %v2603
        %v5478 = vmul.f32 %v5460, %v2601
        %v5479 = vmul.f32 %v5461, %v2602
        %v5480 = vmul.f32 %v5462, %v2603
        %v5487 = vrot.slane %v5475, 1
        %v5488 = vrot.slane %v5478, 1
        %v5489 = vsel %vm2522, %v5487, %v5488
        %v5490 = vrot.slane %v5476, 1
        %v5491 = vrot.slane %v5479, 1
        %v5492 = vsel %vm2522, %v5490, %v5491
        %v5493 = vrot.slane %v5477, 1
        %v5494 = vrot.slane %v5480, 1
        %v5495 = vsel %vm2522, %v5493, %v5494
        %v5502 = vadd.f32 %v5469, %v5489
        %v5503 = vadd.f32 %v5470, %v5492
        %v5504 = vadd.f32 %v5471, %v5495
        %v5505 = vadd.f32 %v5472, %v5488
        %v5506 = vadd.f32 %v5473, %v5491
        %v5507 = vadd.f32 %v5474, %v5494
        %v5508 = vmul.f32 %v5457, %v2637
        %v5509 = vmul.f32 %v5458, %v2638
        %v5510 = vmul.f32 %v5459, %v2639
        %v5511 = vmul.f32 %v5460, %v2637
        %v5512 = vmul.f32 %v5461, %v2638
        %v5513 = vmul.f32 %v5462, %v2639
        %v5520 = vrot.slane %v5508, 2
        %v5521 = vrot.slane %v5511, 2
        %v5522 = vsel %vm1735, %v5520, %v5521
        %v5523 = vrot.slane %v5509, 2
        %v5524 = vrot.slane %v5512, 2
        %v5525 = vsel %vm1735, %v5523, %v5524
        %v5526 = vrot.slane %v5510, 2
        %v5527 = vrot.slane %v5513, 2
        %v5528 = vsel %vm1735, %v5526, %v5527
        %v5535 = vadd.f32 %v5502, %v5522
        %v5536 = vadd.f32 %v5503, %v5525
        %v5537 = vadd.f32 %v5504, %v5528
        %v5538 = vadd.f32 %v5505, %v5521
        %v5539 = vadd.f32 %v5506, %v5524
        %v5540 = vadd.f32 %v5507, %v5527
        %s5541 = scalar_lea.vmem [#allocation2], 624
        %v5542 = vld [vmem:[%s5541] sm:$0xff]
        %v5543 = vld [vmem:[%s5541 + $0x8] sm:$0xff]
        %v5544 = vld [vmem:[%s5541 + $0x10] sm:$0xff]
        %v5545 = vld [vmem:[%s5541 + $0x18] sm:$0xff]
        %v5546 = vld [vmem:[%s5541 + $0x20] sm:$0xff]
        %v5547 = vld [vmem:[%s5541 + $0x28] sm:$0xff]
        %v5548 = vmul.f32 %v5542, %v2680
        %v5549 = vmul.f32 %v5543, %v2681
        %v5550 = vmul.f32 %v5544, %v2682
        %v5551 = vmul.f32 %v5545, %v2680
        %v5552 = vmul.f32 %v5546, %v2681
        %v5553 = vmul.f32 %v5547, %v2682
        %v5554 = vadd.f32 %v5535, %v5548
        %v5555 = vadd.f32 %v5536, %v5549
        %v5556 = vadd.f32 %v5537, %v5550
        %v5557 = vadd.f32 %v5538, %v5551
        %v5558 = vadd.f32 %v5539, %v5552
        %v5559 = vadd.f32 %v5540, %v5553
        %v5560 = vmul.f32 %v5542, %v2695
        %v5561 = vmul.f32 %v5543, %v2696
        %v5562 = vmul.f32 %v5544, %v2697
        %v5563 = vmul.f32 %v5545, %v2695
        %v5564 = vmul.f32 %v5546, %v2696
        %v5565 = vmul.f32 %v5547, %v2697
        %v5572 = vrot.slane %v5560, 1
        %v5573 = vrot.slane %v5563, 1
        %v5574 = vsel %vm2522, %v5572, %v5573
        %v5575 = vrot.slane %v5561, 1
        %v5576 = vrot.slane %v5564, 1
        %v5577 = vsel %vm2522, %v5575, %v5576
        %v5578 = vrot.slane %v5562, 1
        %v5579 = vrot.slane %v5565, 1
        %v5580 = vsel %vm2522, %v5578, %v5579
        %v5587 = vadd.f32 %v5554, %v5574
        %v5588 = vadd.f32 %v5555, %v5577
        %v5589 = vadd.f32 %v5556, %v5580
        %v5590 = vadd.f32 %v5557, %v5573
        %v5591 = vadd.f32 %v5558, %v5576
        %v5592 = vadd.f32 %v5559, %v5579
        %v5593 = vmul.f32 %v5542, %v2731
        %v5594 = vmul.f32 %v5543, %v2732
        %v5595 = vmul.f32 %v5544, %v2733
        %v5596 = vmul.f32 %v5545, %v2731
        %v5597 = vmul.f32 %v5546, %v2732
        %v5598 = vmul.f32 %v5547, %v2733
        %v5605 = vrot.slane %v5593, 2
        %v5606 = vrot.slane %v5596, 2
        %v5607 = vsel %vm1735, %v5605, %v5606
        %v5608 = vrot.slane %v5594, 2
        %v5609 = vrot.slane %v5597, 2
        %v5610 = vsel %vm1735, %v5608, %v5609
        %v5611 = vrot.slane %v5595, 2
        %v5612 = vrot.slane %v5598, 2
        %v5613 = vsel %vm1735, %v5611, %v5612
        %v5620 = vadd.f32 %v5587, %v5607
        %v5621 = vadd.f32 %v5588, %v5610
        %v5622 = vadd.f32 %v5589, %v5613
        %v5623 = vadd.f32 %v5590, %v5606
        %v5624 = vadd.f32 %v5591, %v5609
        %v5625 = vadd.f32 %v5592, %v5612
        %s5626 = scalar_lea.vmem %s404, 528 [#allocation7]
        %5627 = vst [vmem:[%s5626] sm:$0xff] %v5620
        %5628 = vst [vmem:[%s5626 + $0x8] sm:$0xff] %v5621
        %5629 = vst [vmem:[%s5626 + $0x10] sm:$0xff] %v5622
        %5630 = vst [vmem:[%s5626 + $0x18] sm:$0x3f] %v5623
        %5631 = vst [vmem:[%s5626 + $0x20] sm:$0x3f] %v5624
        %5632 = vst [vmem:[%s5626 + $0x28] sm:$0x3f] %v5625
        %v5633 = vld [vmem:[%s5281] sm:$0xff]
        %v5634 = vld [vmem:[%s5281 + $0x8] sm:$0xff]
        %v5635 = vld [vmem:[%s5281 + $0x10] sm:$0xff]
        %v5636 = vld [vmem:[%s5281 + $0x18] sm:$0xff]
        %v5637 = vld [vmem:[%s5281 + $0x20] sm:$0xff]
        %v5638 = vld [vmem:[%s5281 + $0x28] sm:$0xff]
        %v5639 = vmul.f32 %v5633, %v2492
        %v5640 = vmul.f32 %v5634, %v2493
        %v5641 = vmul.f32 %v5635, %v2494
        %v5642 = vmul.f32 %v5636, %v2492
        %v5643 = vmul.f32 %v5637, %v2493
        %v5644 = vmul.f32 %v5638, %v2494
        %v5645 = vadd.f32 %v5639, 0.0
        %v5646 = vadd.f32 %v5640, 0.0
        %v5647 = vadd.f32 %v5641, 0.0
        %v5648 = vadd.f32 %v5642, 0.0
        %v5649 = vadd.f32 %v5643, 0.0
        %v5650 = vadd.f32 %v5644, 0.0
        %v5651 = vmul.f32 %v5633, %v2507
        %v5652 = vmul.f32 %v5634, %v2508
        %v5653 = vmul.f32 %v5635, %v2509
        %v5654 = vmul.f32 %v5636, %v2507
        %v5655 = vmul.f32 %v5637, %v2508
        %v5656 = vmul.f32 %v5638, %v2509
        %v5663 = vrot.slane %v5651, 1
        %v5664 = vrot.slane %v5654, 1
        %v5665 = vsel %vm2522, %v5663, %v5664
        %v5666 = vrot.slane %v5652, 1
        %v5667 = vrot.slane %v5655, 1
        %v5668 = vsel %vm2522, %v5666, %v5667
        %v5669 = vrot.slane %v5653, 1
        %v5670 = vrot.slane %v5656, 1
        %v5671 = vsel %vm2522, %v5669, %v5670
        %v5678 = vadd.f32 %v5645, %v5665
        %v5679 = vadd.f32 %v5646, %v5668
        %v5680 = vadd.f32 %v5647, %v5671
        %v5681 = vadd.f32 %v5648, %v5664
        %v5682 = vadd.f32 %v5649, %v5667
        %v5683 = vadd.f32 %v5650, %v5670
        %v5684 = vmul.f32 %v5633, %v2544
        %v5685 = vmul.f32 %v5634, %v2545
        %v5686 = vmul.f32 %v5635, %v2546
        %v5687 = vmul.f32 %v5636, %v2544
        %v5688 = vmul.f32 %v5637, %v2545
        %v5689 = vmul.f32 %v5638, %v2546
        %v5696 = vrot.slane %v5684, 2
        %v5697 = vrot.slane %v5687, 2
        %v5698 = vsel %vm1735, %v5696, %v5697
        %v5699 = vrot.slane %v5685, 2
        %v5700 = vrot.slane %v5688, 2
        %v5701 = vsel %vm1735, %v5699, %v5700
        %v5702 = vrot.slane %v5686, 2
        %v5703 = vrot.slane %v5689, 2
        %v5704 = vsel %vm1735, %v5702, %v5703
        %v5711 = vadd.f32 %v5678, %v5698
        %v5712 = vadd.f32 %v5679, %v5701
        %v5713 = vadd.f32 %v5680, %v5704
        %v5714 = vadd.f32 %v5681, %v5697
        %v5715 = vadd.f32 %v5682, %v5700
        %v5716 = vadd.f32 %v5683, %v5703
        %v5717 = vld [vmem:[%s5541] sm:$0xff]
        %v5718 = vld [vmem:[%s5541 + $0x8] sm:$0xff]
        %v5719 = vld [vmem:[%s5541 + $0x10] sm:$0xff]
        %v5720 = vld [vmem:[%s5541 + $0x18] sm:$0xff]
        %v5721 = vld [vmem:[%s5541 + $0x20] sm:$0xff]
        %v5722 = vld [vmem:[%s5541 + $0x28] sm:$0xff]
        %v5723 = vmul.f32 %v5717, %v2586
        %v5724 = vmul.f32 %v5718, %v2587
        %v5725 = vmul.f32 %v5719, %v2588
        %v5726 = vmul.f32 %v5720, %v2586
        %v5727 = vmul.f32 %v5721, %v2587
        %v5728 = vmul.f32 %v5722, %v2588
        %v5729 = vadd.f32 %v5711, %v5723
        %v5730 = vadd.f32 %v5712, %v5724
        %v5731 = vadd.f32 %v5713, %v5725
        %v5732 = vadd.f32 %v5714, %v5726
        %v5733 = vadd.f32 %v5715, %v5727
        %v5734 = vadd.f32 %v5716, %v5728
        %v5735 = vmul.f32 %v5717, %v2601
        %v5736 = vmul.f32 %v5718, %v2602
        %v5737 = vmul.f32 %v5719, %v2603
        %v5738 = vmul.f32 %v5720, %v2601
        %v5739 = vmul.f32 %v5721, %v2602
        %v5740 = vmul.f32 %v5722, %v2603
        %v5747 = vrot.slane %v5735, 1
        %v5748 = vrot.slane %v5738, 1
        %v5749 = vsel %vm2522, %v5747, %v5748
        %v5750 = vrot.slane %v5736, 1
        %v5751 = vrot.slane %v5739, 1
        %v5752 = vsel %vm2522, %v5750, %v5751
        %v5753 = vrot.slane %v5737, 1
        %v5754 = vrot.slane %v5740, 1
        %v5755 = vsel %vm2522, %v5753, %v5754
        %v5762 = vadd.f32 %v5729, %v5749
        %v5763 = vadd.f32 %v5730, %v5752
        %v5764 = vadd.f32 %v5731, %v5755
        %v5765 = vadd.f32 %v5732, %v5748
        %v5766 = vadd.f32 %v5733, %v5751
        %v5767 = vadd.f32 %v5734, %v5754
        %v5768 = vmul.f32 %v5717, %v2637
        %v5769 = vmul.f32 %v5718, %v2638
        %v5770 = vmul.f32 %v5719, %v2639
        %v5771 = vmul.f32 %v5720, %v2637
        %v5772 = vmul.f32 %v5721, %v2638
        %v5773 = vmul.f32 %v5722, %v2639
        %v5780 = vrot.slane %v5768, 2
        %v5781 = vrot.slane %v5771, 2
        %v5782 = vsel %vm1735, %v5780, %v5781
        %v5783 = vrot.slane %v5769, 2
        %v5784 = vrot.slane %v5772, 2
        %v5785 = vsel %vm1735, %v5783, %v5784
        %v5786 = vrot.slane %v5770, 2
        %v5787 = vrot.slane %v5773, 2
        %v5788 = vsel %vm1735, %v5786, %v5787
        %v5795 = vadd.f32 %v5762, %v5782
        %v5796 = vadd.f32 %v5763, %v5785
        %v5797 = vadd.f32 %v5764, %v5788
        %v5798 = vadd.f32 %v5765, %v5781
        %v5799 = vadd.f32 %v5766, %v5784
        %v5800 = vadd.f32 %v5767, %v5787
        %s5801 = scalar_lea.vmem [#allocation2], 672
        %v5802 = vld [vmem:[%s5801] sm:$0xff]
        %v5803 = vld [vmem:[%s5801 + $0x8] sm:$0xff]
        %v5804 = vld [vmem:[%s5801 + $0x10] sm:$0xff]
        %v5805 = vld [vmem:[%s5801 + $0x18] sm:$0xff]
        %v5806 = vld [vmem:[%s5801 + $0x20] sm:$0xff]
        %v5807 = vld [vmem:[%s5801 + $0x28] sm:$0xff]
        %v5808 = vmul.f32 %v5802, %v2680
        %v5809 = vmul.f32 %v5803, %v2681
        %v5810 = vmul.f32 %v5804, %v2682
        %v5811 = vmul.f32 %v5805, %v2680
        %v5812 = vmul.f32 %v5806, %v2681
        %v5813 = vmul.f32 %v5807, %v2682
        %v5814 = vadd.f32 %v5795, %v5808
        %v5815 = vadd.f32 %v5796, %v5809
        %v5816 = vadd.f32 %v5797, %v5810
        %v5817 = vadd.f32 %v5798, %v5811
        %v5818 = vadd.f32 %v5799, %v5812
        %v5819 = vadd.f32 %v5800, %v5813
        %v5820 = vmul.f32 %v5802, %v2695
        %v5821 = vmul.f32 %v5803, %v2696
        %v5822 = vmul.f32 %v5804, %v2697
        %v5823 = vmul.f32 %v5805, %v2695
        %v5824 = vmul.f32 %v5806, %v2696
        %v5825 = vmul.f32 %v5807, %v2697
        %v5832 = vrot.slane %v5820, 1
        %v5833 = vrot.slane %v5823, 1
        %v5834 = vsel %vm2522, %v5832, %v5833
        %v5835 = vrot.slane %v5821, 1
        %v5836 = vrot.slane %v5824, 1
        %v5837 = vsel %vm2522, %v5835, %v5836
        %v5838 = vrot.slane %v5822, 1
        %v5839 = vrot.slane %v5825, 1
        %v5840 = vsel %vm2522, %v5838, %v5839
        %v5847 = vadd.f32 %v5814, %v5834
        %v5848 = vadd.f32 %v5815, %v5837
        %v5849 = vadd.f32 %v5816, %v5840
        %v5850 = vadd.f32 %v5817, %v5833
        %v5851 = vadd.f32 %v5818, %v5836
        %v5852 = vadd.f32 %v5819, %v5839
        %v5853 = vmul.f32 %v5802, %v2731
        %v5854 = vmul.f32 %v5803, %v2732
        %v5855 = vmul.f32 %v5804, %v2733
        %v5856 = vmul.f32 %v5805, %v2731
        %v5857 = vmul.f32 %v5806, %v2732
        %v5858 = vmul.f32 %v5807, %v2733
        %v5865 = vrot.slane %v5853, 2
        %v5866 = vrot.slane %v5856, 2
        %v5867 = vsel %vm1735, %v5865, %v5866
        %v5868 = vrot.slane %v5854, 2
        %v5869 = vrot.slane %v5857, 2
        %v5870 = vsel %vm1735, %v5868, %v5869
        %v5871 = vrot.slane %v5855, 2
        %v5872 = vrot.slane %v5858, 2
        %v5873 = vsel %vm1735, %v5871, %v5872
        %v5880 = vadd.f32 %v5847, %v5867
        %v5881 = vadd.f32 %v5848, %v5870
        %v5882 = vadd.f32 %v5849, %v5873
        %v5883 = vadd.f32 %v5850, %v5866
        %v5884 = vadd.f32 %v5851, %v5869
        %v5885 = vadd.f32 %v5852, %v5872
        %s5886 = scalar_lea.vmem %s404, 576 [#allocation7]
        %5887 = vst [vmem:[%s5886] sm:$0xff] %v5880
        %5888 = vst [vmem:[%s5886 + $0x8] sm:$0xff] %v5881
        %5889 = vst [vmem:[%s5886 + $0x10] sm:$0xff] %v5882
        %5890 = vst [vmem:[%s5886 + $0x18] sm:$0x3f] %v5883
        %5891 = vst [vmem:[%s5886 + $0x20] sm:$0x3f] %v5884
        %5892 = vst [vmem:[%s5886 + $0x28] sm:$0x3f] %v5885
        %v5893 = vld [vmem:[%s5541] sm:$0xff]
        %v5894 = vld [vmem:[%s5541 + $0x8] sm:$0xff]
        %v5895 = vld [vmem:[%s5541 + $0x10] sm:$0xff]
        %v5896 = vld [vmem:[%s5541 + $0x18] sm:$0xff]
        %v5897 = vld [vmem:[%s5541 + $0x20] sm:$0xff]
        %v5898 = vld [vmem:[%s5541 + $0x28] sm:$0xff]
        %v5899 = vmul.f32 %v5893, %v2492
        %v5900 = vmul.f32 %v5894, %v2493
        %v5901 = vmul.f32 %v5895, %v2494
        %v5902 = vmul.f32 %v5896, %v2492
        %v5903 = vmul.f32 %v5897, %v2493
        %v5904 = vmul.f32 %v5898, %v2494
        %v5905 = vadd.f32 %v5899, 0.0
        %v5906 = vadd.f32 %v5900, 0.0
        %v5907 = vadd.f32 %v5901, 0.0
        %v5908 = vadd.f32 %v5902, 0.0
        %v5909 = vadd.f32 %v5903, 0.0
        %v5910 = vadd.f32 %v5904, 0.0
        %v5911 = vmul.f32 %v5893, %v2507
        %v5912 = vmul.f32 %v5894, %v2508
        %v5913 = vmul.f32 %v5895, %v2509
        %v5914 = vmul.f32 %v5896, %v2507
        %v5915 = vmul.f32 %v5897, %v2508
        %v5916 = vmul.f32 %v5898, %v2509
        %v5923 = vrot.slane %v5911, 1
        %v5924 = vrot.slane %v5914, 1
        %v5925 = vsel %vm2522, %v5923, %v5924
        %v5926 = vrot.slane %v5912, 1
        %v5927 = vrot.slane %v5915, 1
        %v5928 = vsel %vm2522, %v5926, %v5927
        %v5929 = vrot.slane %v5913, 1
        %v5930 = vrot.slane %v5916, 1
        %v5931 = vsel %vm2522, %v5929, %v5930
        %v5938 = vadd.f32 %v5905, %v5925
        %v5939 = vadd.f32 %v5906, %v5928
        %v5940 = vadd.f32 %v5907, %v5931
        %v5941 = vadd.f32 %v5908, %v5924
        %v5942 = vadd.f32 %v5909, %v5927
        %v5943 = vadd.f32 %v5910, %v5930
        %v5944 = vmul.f32 %v5893, %v2544
        %v5945 = vmul.f32 %v5894, %v2545
        %v5946 = vmul.f32 %v5895, %v2546
        %v5947 = vmul.f32 %v5896, %v2544
        %v5948 = vmul.f32 %v5897, %v2545
        %v5949 = vmul.f32 %v5898, %v2546
        %v5956 = vrot.slane %v5944, 2
        %v5957 = vrot.slane %v5947, 2
        %v5958 = vsel %vm1735, %v5956, %v5957
        %v5959 = vrot.slane %v5945, 2
        %v5960 = vrot.slane %v5948, 2
        %v5961 = vsel %vm1735, %v5959, %v5960
        %v5962 = vrot.slane %v5946, 2
        %v5963 = vrot.slane %v5949, 2
        %v5964 = vsel %vm1735, %v5962, %v5963
        %v5971 = vadd.f32 %v5938, %v5958
        %v5972 = vadd.f32 %v5939, %v5961
        %v5973 = vadd.f32 %v5940, %v5964
        %v5974 = vadd.f32 %v5941, %v5957
        %v5975 = vadd.f32 %v5942, %v5960
        %v5976 = vadd.f32 %v5943, %v5963
        %v5977 = vld [vmem:[%s5801] sm:$0xff]
        %v5978 = vld [vmem:[%s5801 + $0x8] sm:$0xff]
        %v5979 = vld [vmem:[%s5801 + $0x10] sm:$0xff]
        %v5980 = vld [vmem:[%s5801 + $0x18] sm:$0xff]
        %v5981 = vld [vmem:[%s5801 + $0x20] sm:$0xff]
        %v5982 = vld [vmem:[%s5801 + $0x28] sm:$0xff]
        %v5983 = vmul.f32 %v5977, %v2586
        %v5984 = vmul.f32 %v5978, %v2587
        %v5985 = vmul.f32 %v5979, %v2588
        %v5986 = vmul.f32 %v5980, %v2586
        %v5987 = vmul.f32 %v5981, %v2587
        %v5988 = vmul.f32 %v5982, %v2588
        %v5989 = vadd.f32 %v5971, %v5983
        %v5990 = vadd.f32 %v5972, %v5984
        %v5991 = vadd.f32 %v5973, %v5985
        %v5992 = vadd.f32 %v5974, %v5986
        %v5993 = vadd.f32 %v5975, %v5987
        %v5994 = vadd.f32 %v5976, %v5988
        %v5995 = vmul.f32 %v5977, %v2601
        %v5996 = vmul.f32 %v5978, %v2602
        %v5997 = vmul.f32 %v5979, %v2603
        %v5998 = vmul.f32 %v5980, %v2601
        %v5999 = vmul.f32 %v5981, %v2602
        %v6000 = vmul.f32 %v5982, %v2603
        %v6007 = vrot.slane %v5995, 1
        %v6008 = vrot.slane %v5998, 1
        %v6009 = vsel %vm2522, %v6007, %v6008
        %v6010 = vrot.slane %v5996, 1
        %v6011 = vrot.slane %v5999, 1
        %v6012 = vsel %vm2522, %v6010, %v6011
        %v6013 = vrot.slane %v5997, 1
        %v6014 = vrot.slane %v6000, 1
        %v6015 = vsel %vm2522, %v6013, %v6014
        %v6022 = vadd.f32 %v5989, %v6009
        %v6023 = vadd.f32 %v5990, %v6012
        %v6024 = vadd.f32 %v5991, %v6015
        %v6025 = vadd.f32 %v5992, %v6008
        %v6026 = vadd.f32 %v5993, %v6011
        %v6027 = vadd.f32 %v5994, %v6014
        %v6028 = vmul.f32 %v5977, %v2637
        %v6029 = vmul.f32 %v5978, %v2638
        %v6030 = vmul.f32 %v5979, %v2639
        %v6031 = vmul.f32 %v5980, %v2637
        %v6032 = vmul.f32 %v5981, %v2638
        %v6033 = vmul.f32 %v5982, %v2639
        %v6040 = vrot.slane %v6028, 2
        %v6041 = vrot.slane %v6031, 2
        %v6042 = vsel %vm1735, %v6040, %v6041
        %v6043 = vrot.slane %v6029, 2
        %v6044 = vrot.slane %v6032, 2
        %v6045 = vsel %vm1735, %v6043, %v6044
        %v6046 = vrot.slane %v6030, 2
        %v6047 = vrot.slane %v6033, 2
        %v6048 = vsel %vm1735, %v6046, %v6047
        %v6055 = vadd.f32 %v6022, %v6042
        %v6056 = vadd.f32 %v6023, %v6045
        %v6057 = vadd.f32 %v6024, %v6048
        %v6058 = vadd.f32 %v6025, %v6041
        %v6059 = vadd.f32 %v6026, %v6044
        %v6060 = vadd.f32 %v6027, %v6047
        %v6061 = vld [vmem:[%s1493] sm:$0xff]
        %v6062 = vld [vmem:[%s1493 + $0x8] sm:$0xff]
        %v6063 = vld [vmem:[%s1493 + $0x10] sm:$0xff]
        %v6064 = vld [vmem:[%s1493 + $0x18] sm:$0xff]
        %v6065 = vld [vmem:[%s1493 + $0x20] sm:$0xff]
        %v6066 = vld [vmem:[%s1493 + $0x28] sm:$0xff]
        %v6067 = vmul.f32 %v6061, %v2680
        %v6068 = vmul.f32 %v6062, %v2681
        %v6069 = vmul.f32 %v6063, %v2682
        %v6070 = vmul.f32 %v6064, %v2680
        %v6071 = vmul.f32 %v6065, %v2681
        %v6072 = vmul.f32 %v6066, %v2682
        %v6073 = vadd.f32 %v6055, %v6067
        %v6074 = vadd.f32 %v6056, %v6068
        %v6075 = vadd.f32 %v6057, %v6069
        %v6076 = vadd.f32 %v6058, %v6070
        %v6077 = vadd.f32 %v6059, %v6071
        %v6078 = vadd.f32 %v6060, %v6072
        %v6079 = vmul.f32 %v6061, %v2695
        %v6080 = vmul.f32 %v6062, %v2696
        %v6081 = vmul.f32 %v6063, %v2697
        %v6082 = vmul.f32 %v6064, %v2695
        %v6083 = vmul.f32 %v6065, %v2696
        %v6084 = vmul.f32 %v6066, %v2697
        %v6091 = vrot.slane %v6079, 1
        %v6092 = vrot.slane %v6082, 1
        %v6093 = vsel %vm2522, %v6091, %v6092
        %v6094 = vrot.slane %v6080, 1
        %v6095 = vrot.slane %v6083, 1
        %v6096 = vsel %vm2522, %v6094, %v6095
        %v6097 = vrot.slane %v6081, 1
        %v6098 = vrot.slane %v6084, 1
        %v6099 = vsel %vm2522, %v6097, %v6098
        %v6106 = vadd.f32 %v6073, %v6093
        %v6107 = vadd.f32 %v6074, %v6096
        %v6108 = vadd.f32 %v6075, %v6099
        %v6109 = vadd.f32 %v6076, %v6092
        %v6110 = vadd.f32 %v6077, %v6095
        %v6111 = vadd.f32 %v6078, %v6098
        %v6112 = vmul.f32 %v6061, %v2731
        %v6113 = vmul.f32 %v6062, %v2732
        %v6114 = vmul.f32 %v6063, %v2733
        %v6115 = vmul.f32 %v6064, %v2731
        %v6116 = vmul.f32 %v6065, %v2732
        %v6117 = vmul.f32 %v6066, %v2733
        %v6124 = vrot.slane %v6112, 2
        %v6125 = vrot.slane %v6115, 2
        %v6126 = vsel %vm1735, %v6124, %v6125
        %v6127 = vrot.slane %v6113, 2
        %v6128 = vrot.slane %v6116, 2
        %v6129 = vsel %vm1735, %v6127, %v6128
        %v6130 = vrot.slane %v6114, 2
        %v6131 = vrot.slane %v6117, 2
        %v6132 = vsel %vm1735, %v6130, %v6131
        %v6139 = vadd.f32 %v6106, %v6126
        %v6140 = vadd.f32 %v6107, %v6129
        %v6141 = vadd.f32 %v6108, %v6132
        %v6142 = vadd.f32 %v6109, %v6125
        %v6143 = vadd.f32 %v6110, %v6128
        %v6144 = vadd.f32 %v6111, %v6131
        %s6145 = scalar_lea.vmem %s404, 624 [#allocation7]
        %6146 = vst [vmem:[%s6145] sm:$0xff] %v6139
        %6147 = vst [vmem:[%s6145 + $0x8] sm:$0xff] %v6140
        %6148 = vst [vmem:[%s6145 + $0x10] sm:$0xff] %v6141
        %6149 = vst [vmem:[%s6145 + $0x18] sm:$0x3f] %v6142
        %6150 = vst [vmem:[%s6145 + $0x20] sm:$0x3f] %v6143
        %6151 = vst [vmem:[%s6145 + $0x28] sm:$0x3f] %v6144
        %v6152 = vld [vmem:[%s404] sm:$0xff]
        %v6153 = vld [vmem:[%s404 + $0x8] sm:$0xff]
        %v6154 = vld [vmem:[%s404 + $0x10] sm:$0xff]
        %v6155 = vld [vmem:[%s404 + $0x18] sm:$0x3f]
        %v6156 = vld [vmem:[%s404 + $0x20] sm:$0x3f]
        %v6157 = vld [vmem:[%s404 + $0x28] sm:$0x3f]
        %v6158 = vadd.f32 %v6152, 0.0
        %v6159 = vadd.f32 %v6153, 0.0
        %v6160 = vadd.f32 %v6154, 0.0
        %v6161 = vadd.f32 %v6155, 0.0
        %v6162 = vadd.f32 %v6156, 0.0
        %v6163 = vadd.f32 %v6157, 0.0
        %v6164 = vmul.f32 %v6152, %v6152
        %v6165 = vmul.f32 %v6153, %v6153
        %v6166 = vmul.f32 %v6154, %v6154
        %v6167 = vmul.f32 %v6155, %v6155
        %v6168 = vmul.f32 %v6156, %v6156
        %v6169 = vmul.f32 %v6157, %v6157
        %v6170 = vadd.f32 %v6164, 0.0
        %v6171 = vadd.f32 %v6165, 0.0
        %v6172 = vadd.f32 %v6166, 0.0
        %v6173 = vadd.f32 %v6167, 0.0
        %v6174 = vadd.f32 %v6168, 0.0
        %v6175 = vadd.f32 %v6169, 0.0
        %v6176 = vld [vmem:[%s3026] sm:$0xff]
        %v6177 = vld [vmem:[%s3026 + $0x8] sm:$0xff]
        %v6178 = vld [vmem:[%s3026 + $0x10] sm:$0xff]
        %v6179 = vld [vmem:[%s3026 + $0x18] sm:$0x3f]
        %v6180 = vld [vmem:[%s3026 + $0x20] sm:$0x3f]
        %v6181 = vld [vmem:[%s3026 + $0x28] sm:$0x3f]
        %v6182 = vadd.f32 %v6158, %v6176
        %v6183 = vadd.f32 %v6159, %v6177
        %v6184 = vadd.f32 %v6160, %v6178
        %v6185 = vadd.f32 %v6161, %v6179
        %v6186 = vadd.f32 %v6162, %v6180
        %v6187 = vadd.f32 %v6163, %v6181
        %v6188 = vmul.f32 %v6176, %v6176
        %v6189 = vmul.f32 %v6177, %v6177
        %v6190 = vmul.f32 %v6178, %v6178
        %v6191 = vmul.f32 %v6179, %v6179
        %v6192 = vmul.f32 %v6180, %v6180
        %v6193 = vmul.f32 %v6181, %v6181
        %v6194 = vadd.f32 %v6170, %v6188
        %v6195 = vadd.f32 %v6171, %v6189
        %v6196 = vadd.f32 %v6172, %v6190
        %v6197 = vadd.f32 %v6173, %v6191
        %v6198 = vadd.f32 %v6174, %v6192
        %v6199 = vadd.f32 %v6175, %v6193
        %v6200 = vld [vmem:[%s3286] sm:$0xff]
        %v6201 = vld [vmem:[%s3286 + $0x8] sm:$0xff]
        %v6202 = vld [vmem:[%s3286 + $0x10] sm:$0xff]
        %v6203 = vld [vmem:[%s3286 + $0x18] sm:$0x3f]
        %v6204 = vld [vmem:[%s3286 + $0x20] sm:$0x3f]
        %v6205 = vld [vmem:[%s3286 + $0x28] sm:$0x3f]
        %v6206 = vadd.f32 %v6182, %v6200
        %v6207 = vadd.f32 %v6183, %v6201
        %v6208 = vadd.f32 %v6184, %v6202
        %v6209 = vadd.f32 %v6185, %v6203
        %v6210 = vadd.f32 %v6186, %v6204
        %v6211 = vadd.f32 %v6187, %v6205
        %v6212 = vmul.f32 %v6200, %v6200
        %v6213 = vmul.f32 %v6201, %v6201
        %v6214 = vmul.f32 %v6202, %v6202
        %v6215 = vmul.f32 %v6203, %v6203
        %v6216 = vmul.f32 %v6204, %v6204
        %v6217 = vmul.f32 %v6205, %v6205
        %v6218 = vadd.f32 %v6194, %v6212
        %v6219 = vadd.f32 %v6195, %v6213
        %v6220 = vadd.f32 %v6196, %v6214
        %v6221 = vadd.f32 %v6197, %v6215
        %v6222 = vadd.f32 %v6198, %v6216
        %v6223 = vadd.f32 %v6199, %v6217
        %v6224 = vld [vmem:[%s3546] sm:$0xff]
        %v6225 = vld [vmem:[%s3546 + $0x8] sm:$0xff]
        %v6226 = vld [vmem:[%s3546 + $0x10] sm:$0xff]
        %v6227 = vld [vmem:[%s3546 + $0x18] sm:$0x3f]
        %v6228 = vld [vmem:[%s3546 + $0x20] sm:$0x3f]
        %v6229 = vld [vmem:[%s3546 + $0x28] sm:$0x3f]
        %v6230 = vadd.f32 %v6206, %v6224
        %v6231 = vadd.f32 %v6207, %v6225
        %v6232 = vadd.f32 %v6208, %v6226
        %v6233 = vadd.f32 %v6209, %v6227
        %v6234 = vadd.f32 %v6210, %v6228
        %v6235 = vadd.f32 %v6211, %v6229
        %v6236 = vmul.f32 %v6224, %v6224
        %v6237 = vmul.f32 %v6225, %v6225
        %v6238 = vmul.f32 %v6226, %v6226
        %v6239 = vmul.f32 %v6227, %v6227
        %v6240 = vmul.f32 %v6228, %v6228
        %v6241 = vmul.f32 %v6229, %v6229
        %v6242 = vadd.f32 %v6218, %v6236
        %v6243 = vadd.f32 %v6219, %v6237
        %v6244 = vadd.f32 %v6220, %v6238
        %v6245 = vadd.f32 %v6221, %v6239
        %v6246 = vadd.f32 %v6222, %v6240
        %v6247 = vadd.f32 %v6223, %v6241
        %v6248 = vld [vmem:[%s3806] sm:$0xff]
        %v6249 = vld [vmem:[%s3806 + $0x8] sm:$0xff]
        %v6250 = vld [vmem:[%s3806 + $0x10] sm:$0xff]
        %v6251 = vld [vmem:[%s3806 + $0x18] sm:$0x3f]
        %v6252 = vld [vmem:[%s3806 + $0x20] sm:$0x3f]
        %v6253 = vld [vmem:[%s3806 + $0x28] sm:$0x3f]
        %v6254 = vadd.f32 %v6230, %v6248
        %v6255 = vadd.f32 %v6231, %v6249
        %v6256 = vadd.f32 %v6232, %v6250
        %v6257 = vadd.f32 %v6233, %v6251
        %v6258 = vadd.f32 %v6234, %v6252
        %v6259 = vadd.f32 %v6235, %v6253
        %v6260 = vmul.f32 %v6248, %v6248
        %v6261 = vmul.f32 %v6249, %v6249
        %v6262 = vmul.f32 %v6250, %v6250
        %v6263 = vmul.f32 %v6251, %v6251
        %v6264 = vmul.f32 %v6252, %v6252
        %v6265 = vmul.f32 %v6253, %v6253
        %v6266 = vadd.f32 %v6242, %v6260
        %v6267 = vadd.f32 %v6243, %v6261
        %v6268 = vadd.f32 %v6244, %v6262
        %v6269 = vadd.f32 %v6245, %v6263
        %v6270 = vadd.f32 %v6246, %v6264
        %v6271 = vadd.f32 %v6247, %v6265
        %v6272 = vld [vmem:[%s4066] sm:$0xff]
        %v6273 = vld [vmem:[%s4066 + $0x8] sm:$0xff]
        %v6274 = vld [vmem:[%s4066 + $0x10] sm:$0xff]
        %v6275 = vld [vmem:[%s4066 + $0x18] sm:$0x3f]
        %v6276 = vld [vmem:[%s4066 + $0x20] sm:$0x3f]
        %v6277 = vld [vmem:[%s4066 + $0x28] sm:$0x3f]
        %v6278 = vadd.f32 %v6254, %v6272
        %v6279 = vadd.f32 %v6255, %v6273
        %v6280 = vadd.f32 %v6256, %v6274
        %v6281 = vadd.f32 %v6257, %v6275
        %v6282 = vadd.f32 %v6258, %v6276
        %v6283 = vadd.f32 %v6259, %v6277
        %v6284 = vmul.f32 %v6272, %v6272
        %v6285 = vmul.f32 %v6273, %v6273
        %v6286 = vmul.f32 %v6274, %v6274
        %v6287 = vmul.f32 %v6275, %v6275
        %v6288 = vmul.f32 %v6276, %v6276
        %v6289 = vmul.f32 %v6277, %v6277
        %v6290 = vadd.f32 %v6266, %v6284
        %v6291 = vadd.f32 %v6267, %v6285
        %v6292 = vadd.f32 %v6268, %v6286
        %v6293 = vadd.f32 %v6269, %v6287
        %v6294 = vadd.f32 %v6270, %v6288
        %v6295 = vadd.f32 %v6271, %v6289
        %v6296 = vld [vmem:[%s4326] sm:$0xff]
        %v6297 = vld [vmem:[%s4326 + $0x8] sm:$0xff]
        %v6298 = vld [vmem:[%s4326 + $0x10] sm:$0xff]
        %v6299 = vld [vmem:[%s4326 + $0x18] sm:$0x3f]
        %v6300 = vld [vmem:[%s4326 + $0x20] sm:$0x3f]
        %v6301 = vld [vmem:[%s4326 + $0x28] sm:$0x3f]
        %v6302 = vadd.f32 %v6278, %v6296
        %v6303 = vadd.f32 %v6279, %v6297
        %v6304 = vadd.f32 %v6280, %v6298
        %v6305 = vadd.f32 %v6281, %v6299
        %v6306 = vadd.f32 %v6282, %v6300
        %v6307 = vadd.f32 %v6283, %v6301
        %v6308 = vmul.f32 %v6296, %v6296
        %v6309 = vmul.f32 %v6297, %v6297
        %v6310 = vmul.f32 %v6298, %v6298
        %v6311 = vmul.f32 %v6299, %v6299
        %v6312 = vmul.f32 %v6300, %v6300
        %v6313 = vmul.f32 %v6301, %v6301
        %v6314 = vadd.f32 %v6290, %v6308
        %v6315 = vadd.f32 %v6291, %v6309
        %v6316 = vadd.f32 %v6292, %v6310
        %v6317 = vadd.f32 %v6293, %v6311
        %v6318 = vadd.f32 %v6294, %v6312
        %v6319 = vadd.f32 %v6295, %v6313
        %v6320 = vld [vmem:[%s4586] sm:$0xff]
        %v6321 = vld [vmem:[%s4586 + $0x8] sm:$0xff]
        %v6322 = vld [vmem:[%s4586 + $0x10] sm:$0xff]
        %v6323 = vld [vmem:[%s4586 + $0x18] sm:$0x3f]
        %v6324 = vld [vmem:[%s4586 + $0x20] sm:$0x3f]
        %v6325 = vld [vmem:[%s4586 + $0x28] sm:$0x3f]
        %v6326 = vadd.f32 %v6302, %v6320
        %v6327 = vadd.f32 %v6303, %v6321
        %v6328 = vadd.f32 %v6304, %v6322
        %v6329 = vadd.f32 %v6305, %v6323
        %v6330 = vadd.f32 %v6306, %v6324
        %v6331 = vadd.f32 %v6307, %v6325
        %v6332 = vmul.f32 %v6320, %v6320
        %v6333 = vmul.f32 %v6321, %v6321
        %v6334 = vmul.f32 %v6322, %v6322
        %v6335 = vmul.f32 %v6323, %v6323
        %v6336 = vmul.f32 %v6324, %v6324
        %v6337 = vmul.f32 %v6325, %v6325
        %v6338 = vadd.f32 %v6314, %v6332
        %v6339 = vadd.f32 %v6315, %v6333
        %v6340 = vadd.f32 %v6316, %v6334
        %v6341 = vadd.f32 %v6317, %v6335
        %v6342 = vadd.f32 %v6318, %v6336
        %v6343 = vadd.f32 %v6319, %v6337
        %v6344 = vld [vmem:[%s4846] sm:$0xff]
        %v6345 = vld [vmem:[%s4846 + $0x8] sm:$0xff]
        %v6346 = vld [vmem:[%s4846 + $0x10] sm:$0xff]
        %v6347 = vld [vmem:[%s4846 + $0x18] sm:$0x3f]
        %v6348 = vld [vmem:[%s4846 + $0x20] sm:$0x3f]
        %v6349 = vld [vmem:[%s4846 + $0x28] sm:$0x3f]
        %v6350 = vadd.f32 %v6326, %v6344
        %v6351 = vadd.f32 %v6327, %v6345
        %v6352 = vadd.f32 %v6328, %v6346
        %v6353 = vadd.f32 %v6329, %v6347
        %v6354 = vadd.f32 %v6330, %v6348
        %v6355 = vadd.f32 %v6331, %v6349
        %v6356 = vmul.f32 %v6344, %v6344
        %v6357 = vmul.f32 %v6345, %v6345
        %v6358 = vmul.f32 %v6346, %v6346
        %v6359 = vmul.f32 %v6347, %v6347
        %v6360 = vmul.f32 %v6348, %v6348
        %v6361 = vmul.f32 %v6349, %v6349
        %v6362 = vadd.f32 %v6338, %v6356
        %v6363 = vadd.f32 %v6339, %v6357
        %v6364 = vadd.f32 %v6340, %v6358
        %v6365 = vadd.f32 %v6341, %v6359
        %v6366 = vadd.f32 %v6342, %v6360
        %v6367 = vadd.f32 %v6343, %v6361
        %v6368 = vld [vmem:[%s5106] sm:$0xff]
        %v6369 = vld [vmem:[%s5106 + $0x8] sm:$0xff]
        %v6370 = vld [vmem:[%s5106 + $0x10] sm:$0xff]
        %v6371 = vld [vmem:[%s5106 + $0x18] sm:$0x3f]
        %v6372 = vld [vmem:[%s5106 + $0x20] sm:$0x3f]
        %v6373 = vld [vmem:[%s5106 + $0x28] sm:$0x3f]
        %v6374 = vadd.f32 %v6350, %v6368
        %v6375 = vadd.f32 %v6351, %v6369
        %v6376 = vadd.f32 %v6352, %v6370
        %v6377 = vadd.f32 %v6353, %v6371
        %v6378 = vadd.f32 %v6354, %v6372
        %v6379 = vadd.f32 %v6355, %v6373
        %v6380 = vmul.f32 %v6368, %v6368
        %v6381 = vmul.f32 %v6369, %v6369
        %v6382 = vmul.f32 %v6370, %v6370
        %v6383 = vmul.f32 %v6371, %v6371
        %v6384 = vmul.f32 %v6372, %v6372
        %v6385 = vmul.f32 %v6373, %v6373
        %v6386 = vadd.f32 %v6362, %v6380
        %v6387 = vadd.f32 %v6363, %v6381
        %v6388 = vadd.f32 %v6364, %v6382
        %v6389 = vadd.f32 %v6365, %v6383
        %v6390 = vadd.f32 %v6366, %v6384
        %v6391 = vadd.f32 %v6367, %v6385
        %v6392 = vld [vmem:[%s5366] sm:$0xff]
        %v6393 = vld [vmem:[%s5366 + $0x8] sm:$0xff]
        %v6394 = vld [vmem:[%s5366 + $0x10] sm:$0xff]
        %v6395 = vld [vmem:[%s5366 + $0x18] sm:$0x3f]
        %v6396 = vld [vmem:[%s5366 + $0x20] sm:$0x3f]
        %v6397 = vld [vmem:[%s5366 + $0x28] sm:$0x3f]
        %v6398 = vadd.f32 %v6374, %v6392
        %v6399 = vadd.f32 %v6375, %v6393
        %v6400 = vadd.f32 %v6376, %v6394
        %v6401 = vadd.f32 %v6377, %v6395
        %v6402 = vadd.f32 %v6378, %v6396
        %v6403 = vadd.f32 %v6379, %v6397
        %v6404 = vmul.f32 %v6392, %v6392
        %v6405 = vmul.f32 %v6393, %v6393
        %v6406 = vmul.f32 %v6394, %v6394
        %v6407 = vmul.f32 %v6395, %v6395
        %v6408 = vmul.f32 %v6396, %v6396
        %v6409 = vmul.f32 %v6397, %v6397
        %v6410 = vadd.f32 %v6386, %v6404
        %v6411 = vadd.f32 %v6387, %v6405
        %v6412 = vadd.f32 %v6388, %v6406
        %v6413 = vadd.f32 %v6389, %v6407
        %v6414 = vadd.f32 %v6390, %v6408
        %v6415 = vadd.f32 %v6391, %v6409
        %v6416 = vld [vmem:[%s5626] sm:$0xff]
        %v6417 = vld [vmem:[%s5626 + $0x8] sm:$0xff]
        %v6418 = vld [vmem:[%s5626 + $0x10] sm:$0xff]
        %v6419 = vld [vmem:[%s5626 + $0x18] sm:$0x3f]
        %v6420 = vld [vmem:[%s5626 + $0x20] sm:$0x3f]
        %v6421 = vld [vmem:[%s5626 + $0x28] sm:$0x3f]
        %v6422 = vadd.f32 %v6398, %v6416
        %v6423 = vadd.f32 %v6399, %v6417
        %v6424 = vadd.f32 %v6400, %v6418
        %v6425 = vadd.f32 %v6401, %v6419
        %v6426 = vadd.f32 %v6402, %v6420
        %v6427 = vadd.f32 %v6403, %v6421
        %v6428 = vmul.f32 %v6416, %v6416
        %v6429 = vmul.f32 %v6417, %v6417
        %v6430 = vmul.f32 %v6418, %v6418
        %v6431 = vmul.f32 %v6419, %v6419
        %v6432 = vmul.f32 %v6420, %v6420
        %v6433 = vmul.f32 %v6421, %v6421
        %v6434 = vadd.f32 %v6410, %v6428
        %v6435 = vadd.f32 %v6411, %v6429
        %v6436 = vadd.f32 %v6412, %v6430
        %v6437 = vadd.f32 %v6413, %v6431
        %v6438 = vadd.f32 %v6414, %v6432
        %v6439 = vadd.f32 %v6415, %v6433
        %v6440 = vld [vmem:[%s5886] sm:$0xff]
        %v6441 = vld [vmem:[%s5886 + $0x8] sm:$0xff]
        %v6442 = vld [vmem:[%s5886 + $0x10] sm:$0xff]
        %v6443 = vld [vmem:[%s5886 + $0x18] sm:$0x3f]
        %v6444 = vld [vmem:[%s5886 + $0x20] sm:$0x3f]
        %v6445 = vld [vmem:[%s5886 + $0x28] sm:$0x3f]
        %v6446 = vadd.f32 %v6422, %v6440
        %v6447 = vadd.f32 %v6423, %v6441
        %v6448 = vadd.f32 %v6424, %v6442
        %v6449 = vadd.f32 %v6425, %v6443
        %v6450 = vadd.f32 %v6426, %v6444
        %v6451 = vadd.f32 %v6427, %v6445
        %v6452 = vmul.f32 %v6440, %v6440
        %v6453 = vmul.f32 %v6441, %v6441
        %v6454 = vmul.f32 %v6442, %v6442
        %v6455 = vmul.f32 %v6443, %v6443
        %v6456 = vmul.f32 %v6444, %v6444
        %v6457 = vmul.f32 %v6445, %v6445
        %v6458 = vadd.f32 %v6434, %v6452
        %v6459 = vadd.f32 %v6435, %v6453
        %v6460 = vadd.f32 %v6436, %v6454
        %v6461 = vadd.f32 %v6437, %v6455
        %v6462 = vadd.f32 %v6438, %v6456
        %v6463 = vadd.f32 %v6439, %v6457
        %v6464 = vld [vmem:[%s6145] sm:$0xff]
        %v6465 = vld [vmem:[%s6145 + $0x8] sm:$0xff]
        %v6466 = vld [vmem:[%s6145 + $0x10] sm:$0xff]
        %v6467 = vld [vmem:[%s6145 + $0x18] sm:$0x3f]
        %v6468 = vld [vmem:[%s6145 + $0x20] sm:$0x3f]
        %v6469 = vld [vmem:[%s6145 + $0x28] sm:$0x3f]
        %v6470 = vadd.f32 %v6446, %v6464
        %v6471 = vadd.f32 %v6447, %v6465
        %v6472 = vadd.f32 %v6448, %v6466
        %v6473 = vadd.f32 %v6449, %v6467
        %v6474 = vadd.f32 %v6450, %v6468
        %v6475 = vadd.f32 %v6451, %v6469
        %v6476 = vmul.f32 %v6464, %v6464
        %v6477 = vmul.f32 %v6465, %v6465
        %v6478 = vmul.f32 %v6466, %v6466
        %v6479 = vmul.f32 %v6467, %v6467
        %v6480 = vmul.f32 %v6468, %v6468
        %v6481 = vmul.f32 %v6469, %v6469
        %v6482 = vadd.f32 %v6458, %v6476
        %v6483 = vadd.f32 %v6459, %v6477
        %v6484 = vadd.f32 %v6460, %v6478
        %v6485 = vadd.f32 %v6461, %v6479
        %v6486 = vadd.f32 %v6462, %v6480
        %v6487 = vadd.f32 %v6463, %v6481
        %v6488 = vsel %vm1735, %v6473, 0.0
        %v6489 = vadd.f32 %v6470, %v6488
        %v6490 = vrot.slane %v6489, 4
        %v6491 = vadd.f32 %v6489, %v6490
        %v6492 = vrot.slane %v6491, 2
        %v6493 = vadd.f32 %v6491, %v6492
        %v6494 = vrot.slane %v6493, 1
        %v6495 = vadd.f32 %v6493, %v6494
        %v6496 = vsel %vm1735, %v6474, 0.0
        %v6497 = vadd.f32 %v6471, %v6496
        %v6498 = vrot.slane %v6497, 4
        %v6499 = vadd.f32 %v6497, %v6498
        %v6500 = vrot.slane %v6499, 2
        %v6501 = vadd.f32 %v6499, %v6500
        %v6502 = vrot.slane %v6501, 1
        %v6503 = vadd.f32 %v6501, %v6502
        %v6504 = vsel %vm1735, %v6475, 0.0
        %v6505 = vadd.f32 %v6472, %v6504
        %v6506 = vrot.slane %v6505, 4
        %v6507 = vadd.f32 %v6505, %v6506
        %v6508 = vrot.slane %v6507, 2
        %v6509 = vadd.f32 %v6507, %v6508
        %v6510 = vrot.slane %v6509, 1
        %v6511 = vadd.f32 %v6509, %v6510
        %v6512 = vsel %vm1735, %v6485, 0.0
        %v6513 = vadd.f32 %v6482, %v6512
        %v6514 = vrot.slane %v6513, 4
        %v6515 = vadd.f32 %v6513, %v6514
        %v6516 = vrot.slane %v6515, 2
        %v6517 = vadd.f32 %v6515, %v6516
        %v6518 = vrot.slane %v6517, 1
        %v6519 = vadd.f32 %v6517, %v6518
        %v6520 = vsel %vm1735, %v6486, 0.0
        %v6521 = vadd.f32 %v6483, %v6520
        %v6522 = vrot.slane %v6521, 4
        %v6523 = vadd.f32 %v6521, %v6522
        %v6524 = vrot.slane %v6523, 2
        %v6525 = vadd.f32 %v6523, %v6524
        %v6526 = vrot.slane %v6525, 1
        %v6527 = vadd.f32 %v6525, %v6526
        %v6528 = vsel %vm1735, %v6487, 0.0
        %v6529 = vadd.f32 %v6484, %v6528
        %v6530 = vrot.slane %v6529, 4
        %v6531 = vadd.f32 %v6529, %v6530
        %v6532 = vrot.slane %v6531, 2
        %v6533 = vadd.f32 %v6531, %v6532
        %v6534 = vrot.slane %v6533, 1
        %v6535 = vadd.f32 %v6533, %v6534
        %v6536 = vmul.f32 %v6495, 0.0051020407
        %v6537 = vmul.f32 %v6503, 0.0051020407
        %v6538 = vmul.f32 %v6511, 0.0051020407
        %v6539 = vmul.f32 %v6519, 0.0051020407
        %v6540 = vmul.f32 %v6527, 0.0051020407
        %v6541 = vmul.f32 %v6535, 0.0051020407
        %v6542 = vmul.f32 %v6536, %v6536
        %v6543 = vmul.f32 %v6537, %v6537
        %v6544 = vmul.f32 %v6538, %v6538
        %v6545 = vsub.f32 %v6539, %v6542
        %v6546 = vsub.f32 %v6540, %v6543
        %v6547 = vsub.f32 %v6541, %v6544
        %v6548 = vld [vmem:[%s420] sm:$0x7]
        %v6549 = vadd.f32 %v6545, 1e-05
        %v6550 = vadd.f32 %v6546, 1e-05
        %v6551 = vadd.f32 %v6547, 1e-05
        %v6552 = vrsqrt.pop %v6549
        %v6553 = vmul.f32 %v6552, %v6549
        %v6554 = vmul.f32 %v6553, %v6552
        %v6555 = vmul.f32 0.5, %v6554
        %v6556 = vsub.f32 1.5, %v6555
        %v6557 = vmul.f32 %v6552, %v6556
        %vm6558 = vweird.f32 %v6549
        %vm6559 = vweird.f32 %v6552
        %vm6560 = vmor %vm6558, %vm6559
        %v6561 = vsel %vm6560, %v6552, %v6557
        %v6562 = vrsqrt.pop %v6550
        %v6563 = vmul.f32 %v6562, %v6550
        %v6564 = vmul.f32 %v6563, %v6562
        %v6565 = vmul.f32 0.5, %v6564
        %v6566 = vsub.f32 1.5, %v6565
        %v6567 = vmul.f32 %v6562, %v6566
        %vm6568 = vweird.f32 %v6550
        %vm6569 = vweird.f32 %v6562
        %vm6570 = vmor %vm6568, %vm6569
        %v6571 = vsel %vm6570, %v6562, %v6567
        %v6572 = vrsqrt.pop %v6551
        %v6573 = vmul.f32 %v6572, %v6551
        %v6574 = vmul.f32 %v6573, %v6572
        %v6575 = vmul.f32 0.5, %v6574
        %v6576 = vsub.f32 1.5, %v6575
        %v6577 = vmul.f32 %v6572, %v6576
        %vm6578 = vweird.f32 %v6551
        %vm6579 = vweird.f32 %v6572
        %vm6580 = vmor %vm6578, %vm6579
        %v6581 = vsel %vm6580, %v6572, %v6577
        %v6585 = vrot.slane %v6571, 7
        %v6586 = vrot.slane %v6581, 6
        %v6587 = vsel %vm1154, %v6561, %v6585
        %v6588 = vsel %vm1156, %v6587, %v6586
        %v6590 = vmul.f32 %v6548, %v6588
        %v6591 = vld [vmem:[%s425] sm:$0x7]
        %v6593 = vperm.slane %v6590, 0
        %v6594 = vperm.slane %v6590, 1
        %v6595 = vperm.slane %v6590, 2
        %v6599 = vmul.f32 %v6536, %v6593
        %v6600 = vmul.f32 %v6537, %v6594
        %v6601 = vmul.f32 %v6538, %v6595
        %v6605 = vrot.slane %v6600, 7
        %v6606 = vrot.slane %v6601, 6
        %v6607 = vsel %vm1154, %v6599, %v6605
        %v6608 = vsel %vm1156, %v6607, %v6606
        %v6610 = vsub.f32 %v6591, %v6608
        %v6611 = vld [vmem:[%s404 + $0x30] sm:$0xff]
        %v6612 = vld [vmem:[%s404 + $0x38] sm:$0xff]
        %v6613 = vld [vmem:[%s404 + $0x40] sm:$0xff]
        %v6614 = vld [vmem:[%s404 + $0x48] sm:$0x3f]
        %v6615 = vld [vmem:[%s404 + $0x50] sm:$0x3f]
        %v6616 = vld [vmem:[%s404 + $0x58] sm:$0x3f]
        %v6617 = vld [vmem:[%s404 + $0x60] sm:$0xff]
        %v6618 = vld [vmem:[%s404 + $0x68] sm:$0xff]
        %v6619 = vld [vmem:[%s404 + $0x70] sm:$0xff]
        %v6620 = vld [vmem:[%s404 + $0x78] sm:$0x3f]
        %v6621 = vld [vmem:[%s404 + $0x80] sm:$0x3f]
        %v6622 = vld [vmem:[%s404 + $0x88] sm:$0x3f]
        %v6623 = vld [vmem:[%s404 + $0x90] sm:$0xff]
        %v6624 = vld [vmem:[%s404 + $0x98] sm:$0xff]
        %v6625 = vld [vmem:[%s404 + $0xa0] sm:$0xff]
        %v6626 = vld [vmem:[%s404 + $0xa8] sm:$0x3f]
        %v6627 = vld [vmem:[%s404 + $0xb0] sm:$0x3f]
        %v6628 = vld [vmem:[%s404 + $0xb8] sm:$0x3f]
        %v6629 = vld [vmem:[%s404 + $0xc0] sm:$0xff]
        %v6630 = vld [vmem:[%s404 + $0xc8] sm:$0xff]
        %v6631 = vld [vmem:[%s404 + $0xd0] sm:$0xff]
        %v6632 = vld [vmem:[%s404 + $0xd8] sm:$0x3f]
        %v6633 = vld [vmem:[%s404 + $0xe0] sm:$0x3f]
        %v6634 = vld [vmem:[%s404 + $0xe8] sm:$0x3f]
        %v6635 = vld [vmem:[%s404 + $0xf0] sm:$0xff]
        %v6636 = vld [vmem:[%s404 + $0xf8] sm:$0xff]
        %v6637 = vld [vmem:[%s404 + $0x100] sm:$0xff]
        %v6638 = vld [vmem:[%s404 + $0x108] sm:$0x3f]
        %v6639 = vld [vmem:[%s404 + $0x110] sm:$0x3f]
        %v6640 = vld [vmem:[%s404 + $0x118] sm:$0x3f]
        %v6641 = vld [vmem:[%s404 + $0x120] sm:$0xff]
        %v6642 = vld [vmem:[%s404 + $0x128] sm:$0xff]
        %v6643 = vld [vmem:[%s404 + $0x130] sm:$0xff]
        %v6644 = vld [vmem:[%s404 + $0x138] sm:$0x3f]
        %v6645 = vld [vmem:[%s404 + $0x140] sm:$0x3f]
        %v6646 = vld [vmem:[%s404 + $0x148] sm:$0x3f]
        %v6647 = vld [vmem:[%s404 + $0x150] sm:$0xff]
        %v6648 = vld [vmem:[%s404 + $0x158] sm:$0xff]
        %v6649 = vld [vmem:[%s404 + $0x160] sm:$0xff]
        %v6650 = vld [vmem:[%s404 + $0x168] sm:$0x3f]
        %v6651 = vld [vmem:[%s404 + $0x170] sm:$0x3f]
        %v6652 = vld [vmem:[%s404 + $0x178] sm:$0x3f]
        %v6653 = vld [vmem:[%s404 + $0x180] sm:$0xff]
        %v6654 = vld [vmem:[%s404 + $0x188] sm:$0xff]
        %v6655 = vld [vmem:[%s404 + $0x190] sm:$0xff]
        %v6656 = vld [vmem:[%s404 + $0x198] sm:$0x3f]
        %v6657 = vld [vmem:[%s404 + $0x1a0] sm:$0x3f]
        %v6658 = vld [vmem:[%s404 + $0x1a8] sm:$0x3f]
        %v6659 = vld [vmem:[%s404 + $0x1b0] sm:$0xff]
        %v6660 = vld [vmem:[%s404 + $0x1b8] sm:$0xff]
        %v6661 = vld [vmem:[%s404 + $0x1c0] sm:$0xff]
        %v6662 = vld [vmem:[%s404 + $0x1c8] sm:$0x3f]
        %v6663 = vld [vmem:[%s404 + $0x1d0] sm:$0x3f]
        %v6664 = vld [vmem:[%s404 + $0x1d8] sm:$0x3f]
        %v6665 = vld [vmem:[%s404 + $0x1e0] sm:$0xff]
        %v6666 = vld [vmem:[%s404 + $0x1e8] sm:$0xff]
        %v6667 = vld [vmem:[%s404 + $0x1f0] sm:$0xff]
        %v6668 = vld [vmem:[%s404 + $0x1f8] sm:$0x3f]
        %v6669 = vld [vmem:[%s404 + $0x200] sm:$0x3f]
        %v6670 = vld [vmem:[%s404 + $0x208] sm:$0x3f]
        %v6671 = vld [vmem:[%s404 + $0x210] sm:$0xff]
        %v6672 = vld [vmem:[%s404 + $0x218] sm:$0xff]
        %v6673 = vld [vmem:[%s404 + $0x220] sm:$0xff]
        %v6674 = vld [vmem:[%s404 + $0x228] sm:$0x3f]
        %v6675 = vld [vmem:[%s404 + $0x230] sm:$0x3f]
        %v6676 = vld [vmem:[%s404 + $0x238] sm:$0x3f]
        %v6677 = vld [vmem:[%s404 + $0x240] sm:$0xff]
        %v6678 = vld [vmem:[%s404 + $0x248] sm:$0xff]
        %v6679 = vld [vmem:[%s404 + $0x250] sm:$0xff]
        %v6680 = vld [vmem:[%s404 + $0x258] sm:$0x3f]
        %v6681 = vld [vmem:[%s404 + $0x260] sm:$0x3f]
        %v6682 = vld [vmem:[%s404 + $0x268] sm:$0x3f]
        %v6683 = vld [vmem:[%s404 + $0x270] sm:$0xff]
        %v6684 = vld [vmem:[%s404 + $0x278] sm:$0xff]
        %v6685 = vld [vmem:[%s404 + $0x280] sm:$0xff]
        %v6686 = vld [vmem:[%s404 + $0x288] sm:$0x3f]
        %v6687 = vld [vmem:[%s404 + $0x290] sm:$0x3f]
        %v6688 = vld [vmem:[%s404 + $0x298] sm:$0x3f]
        %v6689 = vmul.f32 %v6152, %v6593
        %v6690 = vmul.f32 %v6153, %v6594
        %v6691 = vmul.f32 %v6154, %v6595
        %v6692 = vmul.f32 %v6155, %v6593
        %v6693 = vmul.f32 %v6156, %v6594
        %v6694 = vmul.f32 %v6157, %v6595
        %v6695 = vmul.f32 %v6611, %v6593
        %v6696 = vmul.f32 %v6612, %v6594
        %v6697 = vmul.f32 %v6613, %v6595
        %v6698 = vmul.f32 %v6614, %v6593
        %v6699 = vmul.f32 %v6615, %v6594
        %v6700 = vmul.f32 %v6616, %v6595
        %v6701 = vmul.f32 %v6617, %v6593
        %v6702 = vmul.f32 %v6618, %v6594
        %v6703 = vmul.f32 %v6619, %v6595
        %v6704 = vmul.f32 %v6620, %v6593
        %v6705 = vmul.f32 %v6621, %v6594
        %v6706 = vmul.f32 %v6622, %v6595
        %v6707 = vmul.f32 %v6623, %v6593
        %v6708 = vmul.f32 %v6624, %v6594
        %v6709 = vmul.f32 %v6625, %v6595
        %v6710 = vmul.f32 %v6626, %v6593
        %v6711 = vmul.f32 %v6627, %v6594
        %v6712 = vmul.f32 %v6628, %v6595
        %v6713 = vmul.f32 %v6629, %v6593
        %v6714 = vmul.f32 %v6630, %v6594
        %v6715 = vmul.f32 %v6631, %v6595
        %v6716 = vmul.f32 %v6632, %v6593
        %v6717 = vmul.f32 %v6633, %v6594
        %v6718 = vmul.f32 %v6634, %v6595
        %v6719 = vmul.f32 %v6635, %v6593
        %v6720 = vmul.f32 %v6636, %v6594
        %v6721 = vmul.f32 %v6637, %v6595
        %v6722 = vmul.f32 %v6638, %v6593
        %v6723 = vmul.f32 %v6639, %v6594
        %v6724 = vmul.f32 %v6640, %v6595
        %v6725 = vmul.f32 %v6641, %v6593
        %v6726 = vmul.f32 %v6642, %v6594
        %v6727 = vmul.f32 %v6643, %v6595
        %v6728 = vmul.f32 %v6644, %v6593
        %v6729 = vmul.f32 %v6645, %v6594
        %v6730 = vmul.f32 %v6646, %v6595
        %v6731 = vmul.f32 %v6647, %v6593
        %v6732 = vmul.f32 %v6648, %v6594
        %v6733 = vmul.f32 %v6649, %v6595
        %v6734 = vmul.f32 %v6650, %v6593
        %v6735 = vmul.f32 %v6651, %v6594
        %v6736 = vmul.f32 %v6652, %v6595
        %v6737 = vmul.f32 %v6653, %v6593
        %v6738 = vmul.f32 %v6654, %v6594
        %v6739 = vmul.f32 %v6655, %v6595
        %v6740 = vmul.f32 %v6656, %v6593
        %v6741 = vmul.f32 %v6657, %v6594
        %v6742 = vmul.f32 %v6658, %v6595
        %v6743 = vmul.f32 %v6659, %v6593
        %v6744 = vmul.f32 %v6660, %v6594
        %v6745 = vmul.f32 %v6661, %v6595
        %v6746 = vmul.f32 %v6662, %v6593
        %v6747 = vmul.f32 %v6663, %v6594
        %v6748 = vmul.f32 %v6664, %v6595
        %v6749 = vmul.f32 %v6665, %v6593
        %v6750 = vmul.f32 %v6666, %v6594
        %v6751 = vmul.f32 %v6667, %v6595
        %v6752 = vmul.f32 %v6668, %v6593
        %v6753 = vmul.f32 %v6669, %v6594
        %v6754 = vmul.f32 %v6670, %v6595
        %v6755 = vmul.f32 %v6671, %v6593
        %v6756 = vmul.f32 %v6672, %v6594
        %v6757 = vmul.f32 %v6673, %v6595
        %v6758 = vmul.f32 %v6674, %v6593
        %v6759 = vmul.f32 %v6675, %v6594
        %v6760 = vmul.f32 %v6676, %v6595
        %v6761 = vmul.f32 %v6677, %v6593
        %v6762 = vmul.f32 %v6678, %v6594
        %v6763 = vmul.f32 %v6679, %v6595
        %v6764 = vmul.f32 %v6680, %v6593
        %v6765 = vmul.f32 %v6681, %v6594
        %v6766 = vmul.f32 %v6682, %v6595
        %v6767 = vmul.f32 %v6683, %v6593
        %v6768 = vmul.f32 %v6684, %v6594
        %v6769 = vmul.f32 %v6685, %v6595
        %v6770 = vmul.f32 %v6686, %v6593
        %v6771 = vmul.f32 %v6687, %v6594
        %v6772 = vmul.f32 %v6688, %v6595
        %v6774 = vperm.slane %v6610, 0
        %v6775 = vperm.slane %v6610, 1
        %v6776 = vperm.slane %v6610, 2
        %v6780 = vadd.f32 %v6689, %v6774
        %v6781 = vadd.f32 %v6690, %v6775
        %v6782 = vadd.f32 %v6691, %v6776
        %v6783 = vadd.f32 %v6692, %v6774
        %v6784 = vadd.f32 %v6693, %v6775
        %v6785 = vadd.f32 %v6694, %v6776
        %v6786 = vadd.f32 %v6695, %v6774
        %v6787 = vadd.f32 %v6696, %v6775
        %v6788 = vadd.f32 %v6697, %v6776
        %v6789 = vadd.f32 %v6698, %v6774
        %v6790 = vadd.f32 %v6699, %v6775
        %v6791 = vadd.f32 %v6700, %v6776
        %v6792 = vadd.f32 %v6701, %v6774
        %v6793 = vadd.f32 %v6702, %v6775
        %v6794 = vadd.f32 %v6703, %v6776
        %v6795 = vadd.f32 %v6704, %v6774
        %v6796 = vadd.f32 %v6705, %v6775
        %v6797 = vadd.f32 %v6706, %v6776
        %v6798 = vadd.f32 %v6707, %v6774
        %v6799 = vadd.f32 %v6708, %v6775
        %v6800 = vadd.f32 %v6709, %v6776
        %v6801 = vadd.f32 %v6710, %v6774
        %v6802 = vadd.f32 %v6711, %v6775
        %v6803 = vadd.f32 %v6712, %v6776
        %v6804 = vadd.f32 %v6713, %v6774
        %v6805 = vadd.f32 %v6714, %v6775
        %v6806 = vadd.f32 %v6715, %v6776
        %v6807 = vadd.f32 %v6716, %v6774
        %v6808 = vadd.f32 %v6717, %v6775
        %v6809 = vadd.f32 %v6718, %v6776
        %v6810 = vadd.f32 %v6719, %v6774
        %v6811 = vadd.f32 %v6720, %v6775
        %v6812 = vadd.f32 %v6721, %v6776
        %v6813 = vadd.f32 %v6722, %v6774
        %v6814 = vadd.f32 %v6723, %v6775
        %v6815 = vadd.f32 %v6724, %v6776
        %v6816 = vadd.f32 %v6725, %v6774
        %v6817 = vadd.f32 %v6726, %v6775
        %v6818 = vadd.f32 %v6727, %v6776
        %v6819 = vadd.f32 %v6728, %v6774
        %v6820 = vadd.f32 %v6729, %v6775
        %v6821 = vadd.f32 %v6730, %v6776
        %v6822 = vadd.f32 %v6731, %v6774
        %v6823 = vadd.f32 %v6732, %v6775
        %v6824 = vadd.f32 %v6733, %v6776
        %v6825 = vadd.f32 %v6734, %v6774
        %v6826 = vadd.f32 %v6735, %v6775
        %v6827 = vadd.f32 %v6736, %v6776
        %v6828 = vadd.f32 %v6737, %v6774
        %v6829 = vadd.f32 %v6738, %v6775
        %v6830 = vadd.f32 %v6739, %v6776
        %v6831 = vadd.f32 %v6740, %v6774
        %v6832 = vadd.f32 %v6741, %v6775
        %v6833 = vadd.f32 %v6742, %v6776
        %v6834 = vadd.f32 %v6743, %v6774
        %v6835 = vadd.f32 %v6744, %v6775
        %v6836 = vadd.f32 %v6745, %v6776
        %v6837 = vadd.f32 %v6746, %v6774
        %v6838 = vadd.f32 %v6747, %v6775
        %v6839 = vadd.f32 %v6748, %v6776
        %v6840 = vadd.f32 %v6749, %v6774
        %v6841 = vadd.f32 %v6750, %v6775
        %v6842 = vadd.f32 %v6751, %v6776
        %v6843 = vadd.f32 %v6752, %v6774
        %v6844 = vadd.f32 %v6753, %v6775
        %v6845 = vadd.f32 %v6754, %v6776
        %v6846 = vadd.f32 %v6755, %v6774
        %v6847 = vadd.f32 %v6756, %v6775
        %v6848 = vadd.f32 %v6757, %v6776
        %v6849 = vadd.f32 %v6758, %v6774
        %v6850 = vadd.f32 %v6759, %v6775
        %v6851 = vadd.f32 %v6760, %v6776
        %v6852 = vadd.f32 %v6761, %v6774
        %v6853 = vadd.f32 %v6762, %v6775
        %v6854 = vadd.f32 %v6763, %v6776
        %v6855 = vadd.f32 %v6764, %v6774
        %v6856 = vadd.f32 %v6765, %v6775
        %v6857 = vadd.f32 %v6766, %v6776
        %v6858 = vadd.f32 %v6767, %v6774
        %v6859 = vadd.f32 %v6768, %v6775
        %v6860 = vadd.f32 %v6769, %v6776
        %v6861 = vadd.f32 %v6770, %v6774
        %v6862 = vadd.f32 %v6771, %v6775
        %v6863 = vadd.f32 %v6772, %v6776
        %6864 = vst [vmem:[%s404] sm:$0xff] %v6780
        %6865 = vst [vmem:[%s404 + $0x8] sm:$0xff] %v6781
        %6866 = vst [vmem:[%s404 + $0x10] sm:$0xff] %v6782
        %6867 = vst [vmem:[%s404 + $0x18] sm:$0x3f] %v6783
        %6868 = vst [vmem:[%s404 + $0x20] sm:$0x3f] %v6784
        %6869 = vst [vmem:[%s404 + $0x28] sm:$0x3f] %v6785
        %6870 = vst [vmem:[%s404 + $0x30] sm:$0xff] %v6786
        %6871 = vst [vmem:[%s404 + $0x38] sm:$0xff] %v6787
        %6872 = vst [vmem:[%s404 + $0x40] sm:$0xff] %v6788
        %6873 = vst [vmem:[%s404 + $0x48] sm:$0x3f] %v6789
        %6874 = vst [vmem:[%s404 + $0x50] sm:$0x3f] %v6790
        %6875 = vst [vmem:[%s404 + $0x58] sm:$0x3f] %v6791
        %6876 = vst [vmem:[%s404 + $0x60] sm:$0xff] %v6792
        %6877 = vst [vmem:[%s404 + $0x68] sm:$0xff] %v6793
        %6878 = vst [vmem:[%s404 + $0x70] sm:$0xff] %v6794
        %6879 = vst [vmem:[%s404 + $0x78] sm:$0x3f] %v6795
        %6880 = vst [vmem:[%s404 + $0x80] sm:$0x3f] %v6796
        %6881 = vst [vmem:[%s404 + $0x88] sm:$0x3f] %v6797
        %6882 = vst [vmem:[%s404 + $0x90] sm:$0xff] %v6798
        %6883 = vst [vmem:[%s404 + $0x98] sm:$0xff] %v6799
        %6884 = vst [vmem:[%s404 + $0xa0] sm:$0xff] %v6800
        %6885 = vst [vmem:[%s404 + $0xa8] sm:$0x3f] %v6801
        %6886 = vst [vmem:[%s404 + $0xb0] sm:$0x3f] %v6802
        %6887 = vst [vmem:[%s404 + $0xb8] sm:$0x3f] %v6803
        %6888 = vst [vmem:[%s404 + $0xc0] sm:$0xff] %v6804
        %6889 = vst [vmem:[%s404 + $0xc8] sm:$0xff] %v6805
        %6890 = vst [vmem:[%s404 + $0xd0] sm:$0xff] %v6806
        %6891 = vst [vmem:[%s404 + $0xd8] sm:$0x3f] %v6807
        %6892 = vst [vmem:[%s404 + $0xe0] sm:$0x3f] %v6808
        %6893 = vst [vmem:[%s404 + $0xe8] sm:$0x3f] %v6809
        %6894 = vst [vmem:[%s404 + $0xf0] sm:$0xff] %v6810
        %6895 = vst [vmem:[%s404 + $0xf8] sm:$0xff] %v6811
        %6896 = vst [vmem:[%s404 + $0x100] sm:$0xff] %v6812
        %6897 = vst [vmem:[%s404 + $0x108] sm:$0x3f] %v6813
        %6898 = vst [vmem:[%s404 + $0x110] sm:$0x3f] %v6814
        %6899 = vst [vmem:[%s404 + $0x118] sm:$0x3f] %v6815
        %6900 = vst [vmem:[%s404 + $0x120] sm:$0xff] %v6816
        %6901 = vst [vmem:[%s404 + $0x128] sm:$0xff] %v6817
        %6902 = vst [vmem:[%s404 + $0x130] sm:$0xff] %v6818
        %6903 = vst [vmem:[%s404 + $0x138] sm:$0x3f] %v6819
        %6904 = vst [vmem:[%s404 + $0x140] sm:$0x3f] %v6820
        %6905 = vst [vmem:[%s404 + $0x148] sm:$0x3f] %v6821
        %6906 = vst [vmem:[%s404 + $0x150] sm:$0xff] %v6822
        %6907 = vst [vmem:[%s404 + $0x158] sm:$0xff] %v6823
        %6908 = vst [vmem:[%s404 + $0x160] sm:$0xff] %v6824
        %6909 = vst [vmem:[%s404 + $0x168] sm:$0x3f] %v6825
        %6910 = vst [vmem:[%s404 + $0x170] sm:$0x3f] %v6826
        %6911 = vst [vmem:[%s404 + $0x178] sm:$0x3f] %v6827
        %6912 = vst [vmem:[%s404 + $0x180] sm:$0xff] %v6828
        %6913 = vst [vmem:[%s404 + $0x188] sm:$0xff] %v6829
        %6914 = vst [vmem:[%s404 + $0x190] sm:$0xff] %v6830
        %6915 = vst [vmem:[%s404 + $0x198] sm:$0x3f] %v6831
        %6916 = vst [vmem:[%s404 + $0x1a0] sm:$0x3f] %v6832
        %6917 = vst [vmem:[%s404 + $0x1a8] sm:$0x3f] %v6833
        %6918 = vst [vmem:[%s404 + $0x1b0] sm:$0xff] %v6834
        %6919 = vst [vmem:[%s404 + $0x1b8] sm:$0xff] %v6835
        %6920 = vst [vmem:[%s404 + $0x1c0] sm:$0xff] %v6836
        %6921 = vst [vmem:[%s404 + $0x1c8] sm:$0x3f] %v6837
        %6922 = vst [vmem:[%s404 + $0x1d0] sm:$0x3f] %v6838
        %6923 = vst [vmem:[%s404 + $0x1d8] sm:$0x3f] %v6839
        %6924 = vst [vmem:[%s404 + $0x1e0] sm:$0xff] %v6840
        %6925 = vst [vmem:[%s404 + $0x1e8] sm:$0xff] %v6841
        %6926 = vst [vmem:[%s404 + $0x1f0] sm:$0xff] %v6842
        %6927 = vst [vmem:[%s404 + $0x1f8] sm:$0x3f] %v6843
        %6928 = vst [vmem:[%s404 + $0x200] sm:$0x3f] %v6844
        %6929 = vst [vmem:[%s404 + $0x208] sm:$0x3f] %v6845
        %6930 = vst [vmem:[%s404 + $0x210] sm:$0xff] %v6846
        %6931 = vst [vmem:[%s404 + $0x218] sm:$0xff] %v6847
        %6932 = vst [vmem:[%s404 + $0x220] sm:$0xff] %v6848
        %6933 = vst [vmem:[%s404 + $0x228] sm:$0x3f] %v6849
        %6934 = vst [vmem:[%s404 + $0x230] sm:$0x3f] %v6850
        %6935 = vst [vmem:[%s404 + $0x238] sm:$0x3f] %v6851
        %6936 = vst [vmem:[%s404 + $0x240] sm:$0xff] %v6852
        %6937 = vst [vmem:[%s404 + $0x248] sm:$0xff] %v6853
        %6938 = vst [vmem:[%s404 + $0x250] sm:$0xff] %v6854
        %6939 = vst [vmem:[%s404 + $0x258] sm:$0x3f] %v6855
        %6940 = vst [vmem:[%s404 + $0x260] sm:$0x3f] %v6856
        %6941 = vst [vmem:[%s404 + $0x268] sm:$0x3f] %v6857
        %6942 = vst [vmem:[%s404 + $0x270] sm:$0xff] %v6858
        %6943 = vst [vmem:[%s404 + $0x278] sm:$0xff] %v6859
        %6944 = vst [vmem:[%s404 + $0x280] sm:$0xff] %v6860
        %6945 = vst [vmem:[%s404 + $0x288] sm:$0x3f] %v6861
        %6946 = vst [vmem:[%s404 + $0x290] sm:$0x3f] %v6862
        %6947 = vst [vmem:[%s404 + $0x298] sm:$0x3f] %v6863
        %s6948 = sand.u32 %s209, 1
        %s6949 = scalar_lea.sflag [#allocation5], %s6948
        %s6950 = sand.u32 %s209, 1
        %s6951 = smul.addr %s6950, 672
        %s6952 = scalar_lea.vmem [#allocation7], %s6951
        // Predicated region
        $region76: #{tpu_custom_call.1} parent=66 // pred_check
          %p6953 = pneg %p219
        $region77: #{tpu_custom_call.1} parent=66 // pred_check_branch
          %6955 = sbr.rel (%p6953) target = $region79
        $region78: #{tpu_custom_call.1} parent=66 // pred_region
          %s6956 = smul.u32 3, %s24
          %6958 = vsyncadd %s6949, 0
          %s6959 = smul.addr %s6956, 8
          %s6960 = scalar_lea.hbm %s7, %s6959
          %s6961 = sshll.u32 %s6952, 4
          %s6962 = int_to_ptr.vmem [resolvable:$true] %s6961
          %s6963 = sshll.u32 %s6960, 4
          %s6964 = int_to_ptr.hbm [resolvable:$true] %s6963
          %6969 = dma.vmem_to_hbm [thread:$0]  %s6962, 10752, %s6964, %s6949, 384, 768, 24
        $region79: #{tpu_custom_call.1} parent=66 // pred_fallthru
          _
      $region67: #{tpu_custom_call.1} parent=5 // pred_fallthru
        _
      %p6970 = scmp.le.s32.totalorder 2, %s19
      // Predicated region
      $region80: #{tpu_custom_call.1} parent=5 // pred_check
        %p6971 = pneg %p6970
      $region81: #{tpu_custom_call.1} parent=5 // pred_check_branch
        %6973 = sbr.rel (%p6971) target = $region83
      $region82: #{tpu_custom_call.1} parent=5 // pred_region
        %s6974 = ssub.s32 %s19, 2
        // Predicated region
        $region84: #{tpu_custom_call.1} parent=82 // pred_check
          %p6975 = pneg %p225
        $region85: #{tpu_custom_call.1} parent=82 // pred_check_branch
          %6977 = sbr.rel (%p6975) target = $region87
        $region86: #{tpu_custom_call.1} parent=82 // pred_region
          %s6978 = sand.u32 %s210, 1
          %s6979 = scalar_lea.sflag [#allocation5], %s6978
          %s6980 = sand.u32 %s210, 1
          %s6981 = smul.addr %s6980, 672
          %s6982 = scalar_lea.vmem [#allocation7], %s6981
          %6984 = dma.done %s6979, 10752
        $region87: #{tpu_custom_call.1} parent=82 // pred_fallthru
          _
      $region83: #{tpu_custom_call.1} parent=5 // pred_fallthru
        _
    $region6: #{tpu_custom_call.1} parent=1 // loop_footer
      %s23 = sadd.s32 1, %s19
    $region7: #{tpu_custom_call.1} parent=1 // loop_footer_branch
      %18 = sbr.rel target = $region3
    $region8: #{tpu_custom_call.1} parent=1 // loop_exit
      _
    %6985 = vsyncpa [#allocation4], 1
    %s6986 = scalar_lea.sflag [#allocation4], 1
    %6987 = vsyncpa %s6986, 1
    %6988 = vsyncpa [#allocation5], 1
    %s6989 = scalar_lea.sflag [#allocation5], 1
    %6990 = vsyncpa %s6989, 1

</llo_original>
